<compile_context>
chip_gen: v6e
topology: v6e:2x2x1
jax: 0.10.0
libtpu: 0.0.40
codegen_flags: <defaults>
</compile_context>

<pallas_src>
import jax
import jax.numpy as jnp
from jax.experimental import pallas as pl
from jax.experimental.pallas import tpu as pltpu

LEAKY_SLOPE = 0.01      # nn.LeakyReLU() default
BN_EPS = 1e-5           # nn.BatchNorm3d default
CP = 16                 # channel padding granularity (bf16 sublane packing)


def _cdiv(a, b):
    return -(-a // b)


def _round_up(a, b):
    return _cdiv(a, b) * b


# ---------------------------------------------------------------------------
# Conv kernels: in-kernel mini-im2col + single big-K MXU matmul + BN stats
# ---------------------------------------------------------------------------
def _make_conv1_kernel(offsets, tm, hb, cin_p):
    """Layer-1: input is the bf16, zero-padded, flattened volume."""
    def kernel(x_ref, xh_ref, w_ref, b_ref, sm_ref, y_ref, s_ref, q_ref,
               zwin_ref, xcol_ref):
        # Stage the (cin_p, TM+HB) window once in VMEM (tile + narrow halo).
        zwin_ref[:, :tm] = x_ref[...]
        zwin_ref[:, tm:] = xh_ref[...]
        # Mini-im2col: stack 27 shifted tap slices along the contraction dim.
        for t, off in enumerate(offsets):
            xcol_ref[t * cin_p:(t + 1) * cin_p, :] = zwin_ref[:, off:off + tm]
        # Single big-K matmul (K = 27*cin_p), f32 accumulation on the MXU.
        acc = jnp.dot(w_ref[...], xcol_ref[...],
                      preferred_element_type=jnp.float32) + b_ref[...]
        y_ref[...] = acc.astype(y_ref.dtype)
        # Masked per-channel batch statistics for the folded BatchNorm.
        ym = jnp.where(sm_ref[...] > 0.0, acc, 0.0)
        s_ref[...] = jnp.broadcast_to(jnp.sum(ym, axis=1, keepdims=True),
                                      s_ref.shape)
        q_ref[...] = jnp.broadcast_to(jnp.sum(ym * ym, axis=1, keepdims=True),
                                      q_ref.shape)
    return kernel


def _make_conv2_kernel(offsets, tm, hb, cin_p):
    """Layer-2: reads raw bf16 conv-1 output; BN+LReLU+zero-pad fused here."""
    def kernel(yh_ref, ym_ref, mh_ref, mm_ref, sc_ref, sh_ref, w_ref, b_ref,
               sm_ref, y_ref, s_ref, q_ref, zwin_ref, xcol_ref):
        sc = sc_ref[...]
        sh = sh_ref[...]
        # Previous layer's BN + LeakyReLU applied exactly once per element,
        # masked with a select (garbage / padding positions become exact 0),
        # written bf16 into the VMEM window scratch.
        zh = sc * yh_ref[...].astype(jnp.float32) + sh
        zh = jnp.where(zh >= 0.0, zh, LEAKY_SLOPE * zh)
        zwin_ref[:, :hb] = jnp.where(mh_ref[...] > 0.0, zh,
                                     0.0).astype(jnp.bfloat16)
        zm = sc * ym_ref[...].astype(jnp.float32) + sh
        zm = jnp.where(zm >= 0.0, zm, LEAKY_SLOPE * zm)
        zwin_ref[:, hb:] = jnp.where(mm_ref[...] > 0.0, zm,
                                     0.0).astype(jnp.bfloat16)
        for t, off in enumerate(offsets):
            xcol_ref[t * cin_p:(t + 1) * cin_p, :] = zwin_ref[:, off:off + tm]
        acc = jnp.dot(w_ref[...], xcol_ref[...],
                      preferred_element_type=jnp.float32) + b_ref[...]
        y_ref[...] = acc
        ym2 = jnp.where(sm_ref[...] > 0.0, acc, 0.0)
        s_ref[...] = jnp.broadcast_to(jnp.sum(ym2, axis=1, keepdims=True),
                                      s_ref.shape)
        q_ref[...] = jnp.broadcast_to(jnp.sum(ym2 * ym2, axis=1, keepdims=True),
                                      q_ref.shape)
    return kernel


def _conv1_call(xf, w_big, bias, mask_store, offsets, tm, hb, kk, grid,
                cin_p, cout_p):
    kernel = _make_conv1_kernel(offsets, tm, hb, cin_p)
    return pl.pallas_call(
        kernel,
        out_shape=(
            jax.ShapeDtypeStruct((cout_p, (grid + 1) * tm), jnp.bfloat16),
            jax.ShapeDtypeStruct((cout_p, grid * 128), jnp.float32),
            jax.ShapeDtypeStruct((cout_p, grid * 128), jnp.float32),
        ),
        grid_spec=pltpu.PrefetchScalarGridSpec(
            num_scalar_prefetch=0,
            grid=(grid,),
            in_specs=[
                pl.BlockSpec((cin_p, tm), lambda i: (0, i)),            # tile
                pl.BlockSpec((cin_p, hb), lambda i: (0, (i + 1) * kk)),  # halo (ahead)
                pl.BlockSpec((cout_p, 27 * cin_p), lambda i: (0, 0)),   # stacked weights
                pl.BlockSpec((cout_p, 1), lambda i: (0, 0)),            # bias
                pl.BlockSpec((1, tm), lambda i: (0, i + 1)),            # stats mask
            ],
            out_specs=[
                pl.BlockSpec((cout_p, tm), lambda i: (0, i + 1)),       # +1-block front pad
                pl.BlockSpec((cout_p, 128), lambda i: (0, i)),
                pl.BlockSpec((cout_p, 128), lambda i: (0, i)),
            ],
            scratch_shapes=[
                pltpu.VMEM((cin_p, tm + hb), jnp.bfloat16),             # window
                pltpu.VMEM((27 * cin_p, tm), jnp.bfloat16),             # mini-im2col
            ],
        ),
        compiler_params=pltpu.CompilerParams(dimension_semantics=("parallel",)),
    )(xf, xf, w_big, bias, mask_store)


def _conv2_call(y1, mask_store, scale, shift, w_big, bias, mask_cen,
                offsets, tm, hb, kk, grid, cin_p, cout_p):
    kernel = _make_conv2_kernel(offsets, tm, hb, cin_p)
    return pl.pallas_call(
        kernel,
        out_shape=(
            jax.ShapeDtypeStruct((cout_p, grid * tm), jnp.float32),
            jax.ShapeDtypeStruct((cout_p, grid * 128), jnp.float32),
            jax.ShapeDtypeStruct((cout_p, grid * 128), jnp.float32),
        ),
        grid_spec=pltpu.PrefetchScalarGridSpec(
            num_scalar_prefetch=0,
            grid=(grid,),
            in_specs=[
                pl.BlockSpec((cin_p, hb), lambda i: (0, (i + 1) * kk - 1)),  # halo (behind)
                pl.BlockSpec((cin_p, tm), lambda i: (0, i + 1)),             # main tile
                pl.BlockSpec((1, hb), lambda i: (0, (i + 1) * kk - 1)),      # validity mask (halo)
                pl.BlockSpec((1, tm), lambda i: (0, i + 1)),                 # validity mask (main)
                pl.BlockSpec((cin_p, 1), lambda i: (0, 0)),                  # BN scale (layer 1)
                pl.BlockSpec((cin_p, 1), lambda i: (0, 0)),                  # BN shift (layer 1)
                pl.BlockSpec((cout_p, 27 * cin_p), lambda i: (0, 0)),        # stacked weights
                pl.BlockSpec((cout_p, 1), lambda i: (0, 0)),                 # bias
                pl.BlockSpec((1, tm), lambda i: (0, i)),                     # stats mask (centered)
            ],
            out_specs=[
                pl.BlockSpec((cout_p, tm), lambda i: (0, i)),
                pl.BlockSpec((cout_p, 128), lambda i: (0, i)),
                pl.BlockSpec((cout_p, 128), lambda i: (0, i)),
            ],
            scratch_shapes=[
                pltpu.VMEM((cin_p, hb + tm), jnp.bfloat16),
                pltpu.VMEM((27 * cin_p, tm), jnp.bfloat16),
            ],
        ),
        compiler_params=pltpu.CompilerParams(dimension_semantics=("parallel",)),
    )(y1, y1, mask_store, mask_store, scale, shift, w_big, bias, mask_cen)


# ---------------------------------------------------------------------------
# BN batch statistics -> folded scale / shift
# ---------------------------------------------------------------------------
def _scale_shift_from_stats(psum, pssq, gamma_p, beta_p, n_valid):
    cp = psum.shape[0]
    s = psum.reshape(cp, -1, 128)[:, :, 0].sum(axis=1)
    q = pssq.reshape(cp, -1, 128)[:, :, 0].sum(axis=1)
    mean = s / n_valid
    # TODO(synk): single-pass E[x^2]-E[x]^2 in f32 (clamped >= 0); a two-pass
    # formulation would match PyTorch's BN stats more tightly for large values.
    var = jnp.maximum(q / n_valid - mean * mean, 0.0)
    scale = gamma_p * jax.lax.rsqrt(var + BN_EPS)
    shift = beta_p - mean * scale
    return scale.reshape(cp, 1), shift.reshape(cp, 1)


# ---------------------------------------------------------------------------
# One encoder level: conv -> BN -> LReLU -> conv -> BN -> LReLU
# ---------------------------------------------------------------------------
def _conv_bn_level(x_cf, layer_params, D, H, W):
    """x_cf: (C0, N, D, H, W) f32 channels-first.  Returns (C2, N, D, H, W)."""
    (w1, b1, g1, bt1), (w2, b2, g2, bt2) = layer_params
    c0, n = x_cf.shape[0], x_cf.shape[1]
    c1, c2 = w1.shape[0], w2.shape[0]
    c0p, c1p, c2p = (_round_up(c, CP) for c in (c0, c1, c2))

    dp, hp, wp = D + 2, H + 2, W + 2
    vol = dp * hp * wp
    p_tot = n * vol
    s1 = hp * wp + wp + 1                       # flat stride of a (+1,+1,+1) shift
    hb = _round_up(2 * s1, 128)                 # one-sided halo width (lanes)
    kk = max(1, min(max(1, 1024 // hb), _cdiv(p_tot, 2 * hb)))
    tm = kk * hb                                # lane tile (multiple of halo & 128)
    grid = _cdiv(p_tot, tm)
    n_valid = float(n * D * H * W)

    flat = [kd * hp * wp + kh * wp + kw
            for kd in range(3) for kh in range(3) for kw in range(3)]
    offs1 = flat                                # conv-1: halo strictly ahead
    offs2 = [hb - 2 * s1 + f for f in flat]     # conv-2: halo strictly behind

    # Stacked (Cout_p, 27*Cin_p) bf16 weights matching the im2col row order.
    def stack_w(w, cin, cout, cin_p, cout_p):
        wt = jnp.transpose(w, (2, 3, 4, 1, 0)).reshape(27, cin, cout)
        wt = jnp.pad(wt, ((0, 0), (0, cin_p - cin), (0, cout_p - cout)))
        return jnp.transpose(wt.reshape(27 * cin_p, cout_p),
                             (1, 0)).astype(jnp.bfloat16)

    w1_big = stack_w(w1, c0, c1, c0p, c1p)
    w2_big = stack_w(w2, c1, c2, c1p, c2p)
    b1_c = jnp.pad(b1, (0, c1p - c1)).reshape(c1p, 1).astype(jnp.float32)
    b2_c = jnp.pad(b2, (0, c2p - c2)).reshape(c2p, 1).astype(jnp.float32)
    g1_p, bt1_p = jnp.pad(g1, (0, c1p - c1)), jnp.pad(bt1, (0, c1p - c1))
    g2_p, bt2_p = jnp.pad(g2, (0, c2p - c2)), jnp.pad(bt2, (0, c2p - c2))

    # Validity masks over the flattened padded volume.
    ones = jnp.ones((D, H, W), jnp.float32)
    m_low = jnp.pad(ones, ((0, 2), (0, 2), (0, 2)))      # voxel (d,h,w) stored at (d,h,w)
    m_low = jnp.broadcast_to(m_low[None], (n, dp, hp, wp)).reshape(1, p_tot)
    m_low_store = jnp.pad(m_low, ((0, 0), (tm, grid * tm - p_tot)))
    m_cen = jnp.pad(ones, ((1, 1), (1, 1), (1, 1)))      # voxel (d,h,w) stored at (d+1,h+1,w+1)
    m_cen = jnp.broadcast_to(m_cen[None], (n, dp, hp, wp)).reshape(1, p_tot)
    m_cen = jnp.pad(m_cen, ((0, 0), (0, grid * tm - p_tot)))

    # ---- conv layer 1: centered zero-padded bf16 input, low-corner output ----
    x_pad = jnp.pad(x_cf, ((0, c0p - c0), (0, 0), (1, 1), (1, 1), (1, 1)))
    xf = x_pad.reshape(c0p, p_tot)
    xf = jnp.pad(xf, ((0, 0), (0, (grid + 1) * tm - p_tot))).astype(jnp.bfloat16)

    y1, ps1, pq1 = _conv1_call(xf, w1_big, b1_c, m_low_store, offs1,
                               tm, hb, kk, grid, c0p, c1p)
    sc1, sh1 = _scale_shift_from_stats(ps1, pq1, g1_p, bt1_p, n_valid)

    # ---- conv layer 2: raw bf16 y1 in; its BN+LReLU fused into the input path ----
    y2, ps2, pq2 = _conv2_call(y1, m_low_store, sc1, sh1, w2_big, b2_c, m_cen,
                               offs2, tm, hb, kk, grid, c1p, c2p)
    sc2, sh2 = _scale_shift_from_stats(ps2, pq2, g2_p, bt2_p, n_valid)

    # Final BatchNorm + LeakyReLU in jnp on the valid (centered) voxels so XLA
    # fuses it with the slice/reshape/transpose epilogue (no extra launch).
    y2v = y2[:c2, :p_tot].reshape(c2, n, dp, hp, wp)[:, :, 1:D + 1, 1:H + 1, 1:W + 1]
    z = sc2[:c2].reshape(c2, 1, 1, 1, 1) * y2v + sh2[:c2].reshape(c2, 1, 1, 1, 1)
    return jnp.where(z >= 0, z, LEAKY_SLOPE * z)


# ---------------------------------------------------------------------------
# encoder_block equivalent
# ---------------------------------------------------------------------------
class EncoderBlockPallas:
    def __init__(self, depth_num, in_channel, key):
        self.depth_num = depth_num
        self.params = []
        for i in range(depth_num):
            if i == 0:
                channel1 = [in_channel[0], 16]
                channel2 = [16, 32]
            else:
                channel1 = [in_channel[i], in_channel[i]]
                channel2 = [in_channel[i], in_channel[i] * 2]
            layers = []
            for j in range(2):
                cin, cout = channel1[j], channel2[j]
                key, kw_, kb_ = jax.random.split(key, 3)
                fan_in = cin * 27
                fan_out = cout * 27
                std = (2.0 / (fan_in + fan_out)) ** 0.5           # xavier_normal_
                w = std * jax.random.normal(kw_, (cout, cin, 3, 3, 3), jnp.float32)
                bound = 1.0 / (fan_in ** 0.5)                     # Conv3d default bias init
                b = jax.random.uniform(kb_, (cout,), jnp.float32, -bound, bound)
                gamma = jnp.ones((cout,), jnp.float32)            # BN affine defaults
                beta = jnp.zeros((cout,), jnp.float32)
                layers.append((w, b, gamma, beta))
            self.params.append(layers)
        # TODO(synk): BatchNorm running-stat (momentum) buffer updates are a
        # training-time side effect and are not modelled; forward uses batch stats.
        self._fwd = jax.jit(self._forward, static_argnums=(1,))

    def _forward(self, x_ncdhw, depth):
        N, C, D, H, W = x_ncdhw.shape
        if depth != 0:
            # MaxPool3d(2, stride=2): strided window max fused by XLA
            # (no 8-D transpose / extra pallas launch on the largest tensor).
            D, H, W = D // 2, H // 2, W // 2
            xp = x_ncdhw[:, :, :2 * D, :2 * H, :2 * W]
            xp = xp.reshape(N, C, D, 2, H, 2, W, 2).max(axis=(3, 5, 7))
            x_cf = jnp.transpose(xp, (1, 0, 2, 3, 4))
        else:
            x_cf = jnp.transpose(x_ncdhw, (1, 0, 2, 3, 4))
        out_cf = _conv_bn_level(x_cf, self.params[depth], D, H, W)
        return jnp.transpose(out_cf, (1, 0, 2, 3, 4))    # back to NCDHW

    def __call__(self, x_ncdhw, depth):
        return self._fwd(x_ncdhw, depth)


if __name__ == "__main__":
    key = jax.random.PRNGKey(0)
    kparams, kx0, kx1 = jax.random.split(key, 3)

    depth_num = 2
    in_channel = [4, 8]
    enc = EncoderBlockPallas(depth_num, in_channel, kparams)

    # NCDHW inputs (PyTorch convention), small 3D volumes.
    x0 = jax.random.normal(kx0, (2, 4, 8, 8, 8), jnp.float32)   # depth 0
    x1 = jax.random.normal(kx1, (2, 8, 8, 8, 8), jnp.float32)   # depth 1

    y0 = jax.block_until_ready(enc(x0, 0))
    y1 = jax.block_until_ready(enc(x1, 1))

    assert y0.shape == (2, 32, 8, 8, 8), y0.shape   # conv(4->16) -> conv(16->32)
    assert y1.shape == (2, 16, 4, 4, 4), y1.shape   # pool -> conv(8->8) -> conv(8->16)
    assert bool(jnp.all(jnp.isfinite(y0))) and bool(jnp.all(jnp.isfinite(y1)))
    print("KERNEL_OK")
</pallas_src>

<mosaic_0001>
module attributes {stable_mosaic.version = 11 : i64} {
  func.func @kernel(%arg0: i32, %arg1: memref<16x1024xbf16, #tpu.memory_space<vmem>>, %arg2: memref<16x256xbf16, #tpu.memory_space<vmem>>, %arg3: memref<16x432xbf16, #tpu.memory_space<vmem>>, %arg4: memref<16x1xf32, #tpu.memory_space<vmem>>, %arg5: memref<1x1024xf32, #tpu.memory_space<vmem>>, %arg6: memref<16x1024xbf16, #tpu.memory_space<vmem>>, %arg7: memref<16x128xf32, #tpu.memory_space<vmem>>, %arg8: memref<16x128xf32, #tpu.memory_space<vmem>>, %arg9: memref<16x1280xbf16, #tpu.memory_space<vmem>>, %arg10: memref<432x1024xbf16, #tpu.memory_space<vmem>>) attributes {dimension_semantics = [#tpu.dimension_semantics<parallel>], iteration_bounds = array<i64: 2>, scalar_prefetch = 0 : i64, scratch_operands = 2 : i64, tpu.core_type = #tpu.core_type<tc>, window_params = [{transform_indices = @transform_0, window_bounds = array<i64: 16, 1024>}, {transform_indices = @transform_1, window_bounds = array<i64: 16, 256>}, {pipeline_mode = #tpu.pipeline_mode<synchronous>, transform_indices = @transform_2, window_bounds = array<i64: 16, 432>}, {pipeline_mode = #tpu.pipeline_mode<synchronous>, transform_indices = @transform_3, window_bounds = array<i64: 16, 1>}, {transform_indices = @transform_4, window_bounds = array<i64: 1, 1024>}, {transform_indices = @transform_5, window_bounds = array<i64: 16, 1024>}, {transform_indices = @transform_6, window_bounds = array<i64: 16, 128>}, {transform_indices = @transform_7, window_bounds = array<i64: 16, 128>}]} {
    %c0 = arith.constant 0 : index
    %c0_0 = arith.constant 0 : index
    %0 = vector.load %arg1[%c0, %c0_0] : memref<16x1024xbf16, #tpu.memory_space<vmem>>, vector<16x1024xbf16>
    %c0_1 = arith.constant 0 : index
    %c0_2 = arith.constant 0 : index
    %1 = vector.load %arg9[%c0_1, %c0_2] : memref<16x1280xbf16, #tpu.memory_space<vmem>>, vector<16x1024xbf16>
    tpu.vector_store %arg9[%c0_1, %c0_2], %0 {strides = array<i32>} : memref<16x1280xbf16, #tpu.memory_space<vmem>>, vector<16x1024xbf16>,
    %c0_3 = arith.constant 0 : index
    %c0_4 = arith.constant 0 : index
    %2 = vector.load %arg2[%c0_3, %c0_4] : memref<16x256xbf16, #tpu.memory_space<vmem>>, vector<16x256xbf16>
    %c0_5 = arith.constant 0 : index
    %c1024 = arith.constant 1024 : index
    %3 = vector.load %arg9[%c0_5, %c1024] : memref<16x1280xbf16, #tpu.memory_space<vmem>>, vector<16x256xbf16>
    tpu.vector_store %arg9[%c0_5, %c1024], %2 {strides = array<i32>} : memref<16x1280xbf16, #tpu.memory_space<vmem>>, vector<16x256xbf16>,
    %c0_6 = arith.constant 0 : index
    %c0_7 = arith.constant 0 : index
    %4 = vector.load %arg9[%c0_6, %c0_7] : memref<16x1280xbf16, #tpu.memory_space<vmem>>, vector<16x1024xbf16>
    %c0_8 = arith.constant 0 : index
    %c0_9 = arith.constant 0 : index
    %5 = vector.load %arg10[%c0_8, %c0_9] : memref<432x1024xbf16, #tpu.memory_space<vmem>>, vector<16x1024xbf16>
    tpu.vector_store %arg10[%c0_8, %c0_9], %4 {strides = array<i32>} : memref<432x1024xbf16, #tpu.memory_space<vmem>>, vector<16x1024xbf16>,
    %c0_10 = arith.constant 0 : index
    %c1 = arith.constant 1 : index
    %6 = vector.load %arg9[%c0_10, %c1] : memref<16x1280xbf16, #tpu.memory_space<vmem>>, vector<16x1024xbf16>
    %c16 = arith.constant 16 : index
    %c0_11 = arith.constant 0 : index
    %7 = vector.load %arg10[%c16, %c0_11] : memref<432x1024xbf16, #tpu.memory_space<vmem>>, vector<16x1024xbf16>
    tpu.vector_store %arg10[%c16, %c0_11], %6 {strides = array<i32>} : memref<432x1024xbf16, #tpu.memory_space<vmem>>, vector<16x1024xbf16>,
    %c0_12 = arith.constant 0 : index
    %c2 = arith.constant 2 : index
    %8 = vector.load %arg9[%c0_12, %c2] : memref<16x1280xbf16, #tpu.memory_space<vmem>>, vector<16x1024xbf16>
    %c32 = arith.constant 32 : index
    %c0_13 = arith.constant 0 : index
    %9 = vector.load %arg10[%c32, %c0_13] : memref<432x1024xbf16, #tpu.memory_space<vmem>>, vector<16x1024xbf16>
    tpu.vector_store %arg10[%c32, %c0_13], %8 {strides = array<i32>} : memref<432x1024xbf16, #tpu.memory_space<vmem>>, vector<16x1024xbf16>,
    %c0_14 = arith.constant 0 : index
    %c10 = arith.constant 10 : index
    %10 = vector.load %arg9[%c0_14, %c10] : memref<16x1280xbf16, #tpu.memory_space<vmem>>, vector<16x1024xbf16>
    %c48 = arith.constant 48 : index
    %c0_15 = arith.constant 0 : index
    %11 = vector.load %arg10[%c48, %c0_15] : memref<432x1024xbf16, #tpu.memory_space<vmem>>, vector<16x1024xbf16>
    tpu.vector_store %arg10[%c48, %c0_15], %10 {strides = array<i32>} : memref<432x1024xbf16, #tpu.memory_space<vmem>>, vector<16x1024xbf16>,
    %c0_16 = arith.constant 0 : index
    %c11 = arith.constant 11 : index
    %12 = vector.load %arg9[%c0_16, %c11] : memref<16x1280xbf16, #tpu.memory_space<vmem>>, vector<16x1024xbf16>
    %c64 = arith.constant 64 : index
    %c0_17 = arith.constant 0 : index
    %13 = vector.load %arg10[%c64, %c0_17] : memref<432x1024xbf16, #tpu.memory_space<vmem>>, vector<16x1024xbf16>
    tpu.vector_store %arg10[%c64, %c0_17], %12 {strides = array<i32>} : memref<432x1024xbf16, #tpu.memory_space<vmem>>, vector<16x1024xbf16>,
    %c0_18 = arith.constant 0 : index
    %c12 = arith.constant 12 : index
    %14 = vector.load %arg9[%c0_18, %c12] : memref<16x1280xbf16, #tpu.memory_space<vmem>>, vector<16x1024xbf16>
    %c80 = arith.constant 80 : index
    %c0_19 = arith.constant 0 : index
    %15 = vector.load %arg10[%c80, %c0_19] : memref<432x1024xbf16, #tpu.memory_space<vmem>>, vector<16x1024xbf16>
    tpu.vector_store %arg10[%c80, %c0_19], %14 {strides = array<i32>} : memref<432x1024xbf16, #tpu.memory_space<vmem>>, vector<16x1024xbf16>,
    %c0_20 = arith.constant 0 : index
    %c20 = arith.constant 20 : index
    %16 = vector.load %arg9[%c0_20, %c20] : memref<16x1280xbf16, #tpu.memory_space<vmem>>, vector<16x1024xbf16>
    %c96 = arith.constant 96 : index
    %c0_21 = arith.constant 0 : index
    %17 = vector.load %arg10[%c96, %c0_21] : memref<432x1024xbf16, #tpu.memory_space<vmem>>, vector<16x1024xbf16>
    tpu.vector_store %arg10[%c96, %c0_21], %16 {strides = array<i32>} : memref<432x1024xbf16, #tpu.memory_space<vmem>>, vector<16x1024xbf16>,
    %c0_22 = arith.constant 0 : index
    %c21 = arith.constant 21 : index
    %18 = vector.load %arg9[%c0_22, %c21] : memref<16x1280xbf16, #tpu.memory_space<vmem>>, vector<16x1024xbf16>
    %c112 = arith.constant 112 : index
    %c0_23 = arith.constant 0 : index
    %19 = vector.load %arg10[%c112, %c0_23] : memref<432x1024xbf16, #tpu.memory_space<vmem>>, vector<16x1024xbf16>
    tpu.vector_store %arg10[%c112, %c0_23], %18 {strides = array<i32>} : memref<432x1024xbf16, #tpu.memory_space<vmem>>, vector<16x1024xbf16>,
    %c0_24 = arith.constant 0 : index
    %c22 = arith.constant 22 : index
    %20 = vector.load %arg9[%c0_24, %c22] : memref<16x1280xbf16, #tpu.memory_space<vmem>>, vector<16x1024xbf16>
    %c128 = arith.constant 128 : index
    %c0_25 = arith.constant 0 : index
    %21 = vector.load %arg10[%c128, %c0_25] : memref<432x1024xbf16, #tpu.memory_space<vmem>>, vector<16x1024xbf16>
    tpu.vector_store %arg10[%c128, %c0_25], %20 {strides = array<i32>} : memref<432x1024xbf16, #tpu.memory_space<vmem>>, vector<16x1024xbf16>,
    %c0_26 = arith.constant 0 : index
    %c100 = arith.constant 100 : index
    %22 = vector.load %arg9[%c0_26, %c100] : memref<16x1280xbf16, #tpu.memory_space<vmem>>, vector<16x1024xbf16>
    %c144 = arith.constant 144 : index
    %c0_27 = arith.constant 0 : index
    %23 = vector.load %arg10[%c144, %c0_27] : memref<432x1024xbf16, #tpu.memory_space<vmem>>, vector<16x1024xbf16>
    tpu.vector_store %arg10[%c144, %c0_27], %22 {strides = array<i32>} : memref<432x1024xbf16, #tpu.memory_space<vmem>>, vector<16x1024xbf16>,
    %c0_28 = arith.constant 0 : index
    %c101 = arith.constant 101 : index
    %24 = vector.load %arg9[%c0_28, %c101] : memref<16x1280xbf16, #tpu.memory_space<vmem>>, vector<16x1024xbf16>
    %c160 = arith.constant 160 : index
    %c0_29 = arith.constant 0 : index
    %25 = vector.load %arg10[%c160, %c0_29] : memref<432x1024xbf16, #tpu.memory_space<vmem>>, vector<16x1024xbf16>
    tpu.vector_store %arg10[%c160, %c0_29], %24 {strides = array<i32>} : memref<432x1024xbf16, #tpu.memory_space<vmem>>, vector<16x1024xbf16>,
    %c0_30 = arith.constant 0 : index
    %c102 = arith.constant 102 : index
    %26 = vector.load %arg9[%c0_30, %c102] : memref<16x1280xbf16, #tpu.memory_space<vmem>>, vector<16x1024xbf16>
    %c176 = arith.constant 176 : index
    %c0_31 = arith.constant 0 : index
    %27 = vector.load %arg10[%c176, %c0_31] : memref<432x1024xbf16, #tpu.memory_space<vmem>>, vector<16x1024xbf16>
    tpu.vector_store %arg10[%c176, %c0_31], %26 {strides = array<i32>} : memref<432x1024xbf16, #tpu.memory_space<vmem>>, vector<16x1024xbf16>,
    %c0_32 = arith.constant 0 : index
    %c110 = arith.constant 110 : index
    %28 = vector.load %arg9[%c0_32, %c110] : memref<16x1280xbf16, #tpu.memory_space<vmem>>, vector<16x1024xbf16>
    %c192 = arith.constant 192 : index
    %c0_33 = arith.constant 0 : index
    %29 = vector.load %arg10[%c192, %c0_33] : memref<432x1024xbf16, #tpu.memory_space<vmem>>, vector<16x1024xbf16>
    tpu.vector_store %arg10[%c192, %c0_33], %28 {strides = array<i32>} : memref<432x1024xbf16, #tpu.memory_space<vmem>>, vector<16x1024xbf16>,
    %c0_34 = arith.constant 0 : index
    %c111 = arith.constant 111 : index
    %30 = vector.load %arg9[%c0_34, %c111] : memref<16x1280xbf16, #tpu.memory_space<vmem>>, vector<16x1024xbf16>
    %c208 = arith.constant 208 : index
    %c0_35 = arith.constant 0 : index
    %31 = vector.load %arg10[%c208, %c0_35] : memref<432x1024xbf16, #tpu.memory_space<vmem>>, vector<16x1024xbf16>
    tpu.vector_store %arg10[%c208, %c0_35], %30 {strides = array<i32>} : memref<432x1024xbf16, #tpu.memory_space<vmem>>, vector<16x1024xbf16>,
    %c0_36 = arith.constant 0 : index
    %c112_37 = arith.constant 112 : index
    %32 = vector.load %arg9[%c0_36, %c112_37] : memref<16x1280xbf16, #tpu.memory_space<vmem>>, vector<16x1024xbf16>
    %c224 = arith.constant 224 : index
    %c0_38 = arith.constant 0 : index
    %33 = vector.load %arg10[%c224, %c0_38] : memref<432x1024xbf16, #tpu.memory_space<vmem>>, vector<16x1024xbf16>
    tpu.vector_store %arg10[%c224, %c0_38], %32 {strides = array<i32>} : memref<432x1024xbf16, #tpu.memory_space<vmem>>, vector<16x1024xbf16>,
    %c0_39 = arith.constant 0 : index
    %c120 = arith.constant 120 : index
    %34 = vector.load %arg9[%c0_39, %c120] : memref<16x1280xbf16, #tpu.memory_space<vmem>>, vector<16x1024xbf16>
    %c240 = arith.constant 240 : index
    %c0_40 = arith.constant 0 : index
    %35 = vector.load %arg10[%c240, %c0_40] : memref<432x1024xbf16, #tpu.memory_space<vmem>>, vector<16x1024xbf16>
    tpu.vector_store %arg10[%c240, %c0_40], %34 {strides = array<i32>} : memref<432x1024xbf16, #tpu.memory_space<vmem>>, vector<16x1024xbf16>,
    %c0_41 = arith.constant 0 : index
    %c121 = arith.constant 121 : index
    %36 = vector.load %arg9[%c0_41, %c121] : memref<16x1280xbf16, #tpu.memory_space<vmem>>, vector<16x1024xbf16>
    %c256 = arith.constant 256 : index
    %c0_42 = arith.constant 0 : index
    %37 = vector.load %arg10[%c256, %c0_42] : memref<432x1024xbf16, #tpu.memory_space<vmem>>, vector<16x1024xbf16>
    tpu.vector_store %arg10[%c256, %c0_42], %36 {strides = array<i32>} : memref<432x1024xbf16, #tpu.memory_space<vmem>>, vector<16x1024xbf16>,
    %c0_43 = arith.constant 0 : index
    %c122 = arith.constant 122 : index
    %38 = vector.load %arg9[%c0_43, %c122] : memref<16x1280xbf16, #tpu.memory_space<vmem>>, vector<16x1024xbf16>
    %c272 = arith.constant 272 : index
    %c0_44 = arith.constant 0 : index
    %39 = vector.load %arg10[%c272, %c0_44] : memref<432x1024xbf16, #tpu.memory_space<vmem>>, vector<16x1024xbf16>
    tpu.vector_store %arg10[%c272, %c0_44], %38 {strides = array<i32>} : memref<432x1024xbf16, #tpu.memory_space<vmem>>, vector<16x1024xbf16>,
    %c0_45 = arith.constant 0 : index
    %c200 = arith.constant 200 : index
    %40 = vector.load %arg9[%c0_45, %c200] : memref<16x1280xbf16, #tpu.memory_space<vmem>>, vector<16x1024xbf16>
    %c288 = arith.constant 288 : index
    %c0_46 = arith.constant 0 : index
    %41 = vector.load %arg10[%c288, %c0_46] : memref<432x1024xbf16, #tpu.memory_space<vmem>>, vector<16x1024xbf16>
    tpu.vector_store %arg10[%c288, %c0_46], %40 {strides = array<i32>} : memref<432x1024xbf16, #tpu.memory_space<vmem>>, vector<16x1024xbf16>,
    %c0_47 = arith.constant 0 : index
    %c201 = arith.constant 201 : index
    %42 = vector.load %arg9[%c0_47, %c201] : memref<16x1280xbf16, #tpu.memory_space<vmem>>, vector<16x1024xbf16>
    %c304 = arith.constant 304 : index
    %c0_48 = arith.constant 0 : index
    %43 = vector.load %arg10[%c304, %c0_48] : memref<432x1024xbf16, #tpu.memory_space<vmem>>, vector<16x1024xbf16>
    tpu.vector_store %arg10[%c304, %c0_48], %42 {strides = array<i32>} : memref<432x1024xbf16, #tpu.memory_space<vmem>>, vector<16x1024xbf16>,
    %c0_49 = arith.constant 0 : index
    %c202 = arith.constant 202 : index
    %44 = vector.load %arg9[%c0_49, %c202] : memref<16x1280xbf16, #tpu.memory_space<vmem>>, vector<16x1024xbf16>
    %c320 = arith.constant 320 : index
    %c0_50 = arith.constant 0 : index
    %45 = vector.load %arg10[%c320, %c0_50] : memref<432x1024xbf16, #tpu.memory_space<vmem>>, vector<16x1024xbf16>
    tpu.vector_store %arg10[%c320, %c0_50], %44 {strides = array<i32>} : memref<432x1024xbf16, #tpu.memory_space<vmem>>, vector<16x1024xbf16>,
    %c0_51 = arith.constant 0 : index
    %c210 = arith.constant 210 : index
    %46 = vector.load %arg9[%c0_51, %c210] : memref<16x1280xbf16, #tpu.memory_space<vmem>>, vector<16x1024xbf16>
    %c336 = arith.constant 336 : index
    %c0_52 = arith.constant 0 : index
    %47 = vector.load %arg10[%c336, %c0_52] : memref<432x1024xbf16, #tpu.memory_space<vmem>>, vector<16x1024xbf16>
    tpu.vector_store %arg10[%c336, %c0_52], %46 {strides = array<i32>} : memref<432x1024xbf16, #tpu.memory_space<vmem>>, vector<16x1024xbf16>,
    %c0_53 = arith.constant 0 : index
    %c211 = arith.constant 211 : index
    %48 = vector.load %arg9[%c0_53, %c211] : memref<16x1280xbf16, #tpu.memory_space<vmem>>, vector<16x1024xbf16>
    %c352 = arith.constant 352 : index
    %c0_54 = arith.constant 0 : index
    %49 = vector.load %arg10[%c352, %c0_54] : memref<432x1024xbf16, #tpu.memory_space<vmem>>, vector<16x1024xbf16>
    tpu.vector_store %arg10[%c352, %c0_54], %48 {strides = array<i32>} : memref<432x1024xbf16, #tpu.memory_space<vmem>>, vector<16x1024xbf16>,
    %c0_55 = arith.constant 0 : index
    %c212 = arith.constant 212 : index
    %50 = vector.load %arg9[%c0_55, %c212] : memref<16x1280xbf16, #tpu.memory_space<vmem>>, vector<16x1024xbf16>
    %c368 = arith.constant 368 : index
    %c0_56 = arith.constant 0 : index
    %51 = vector.load %arg10[%c368, %c0_56] : memref<432x1024xbf16, #tpu.memory_space<vmem>>, vector<16x1024xbf16>
    tpu.vector_store %arg10[%c368, %c0_56], %50 {strides = array<i32>} : memref<432x1024xbf16, #tpu.memory_space<vmem>>, vector<16x1024xbf16>,
    %c0_57 = arith.constant 0 : index
    %c220 = arith.constant 220 : index
    %52 = vector.load %arg9[%c0_57, %c220] : memref<16x1280xbf16, #tpu.memory_space<vmem>>, vector<16x1024xbf16>
    %c384 = arith.constant 384 : index
    %c0_58 = arith.constant 0 : index
    %53 = vector.load %arg10[%c384, %c0_58] : memref<432x1024xbf16, #tpu.memory_space<vmem>>, vector<16x1024xbf16>
    tpu.vector_store %arg10[%c384, %c0_58], %52 {strides = array<i32>} : memref<432x1024xbf16, #tpu.memory_space<vmem>>, vector<16x1024xbf16>,
    %c0_59 = arith.constant 0 : index
    %c221 = arith.constant 221 : index
    %54 = vector.load %arg9[%c0_59, %c221] : memref<16x1280xbf16, #tpu.memory_space<vmem>>, vector<16x1024xbf16>
    %c400 = arith.constant 400 : index
    %c0_60 = arith.constant 0 : index
    %55 = vector.load %arg10[%c400, %c0_60] : memref<432x1024xbf16, #tpu.memory_space<vmem>>, vector<16x1024xbf16>
    tpu.vector_store %arg10[%c400, %c0_60], %54 {strides = array<i32>} : memref<432x1024xbf16, #tpu.memory_space<vmem>>, vector<16x1024xbf16>,
    %c0_61 = arith.constant 0 : index
    %c222 = arith.constant 222 : index
    %56 = vector.load %arg9[%c0_61, %c222] : memref<16x1280xbf16, #tpu.memory_space<vmem>>, vector<16x1024xbf16>
    %c416 = arith.constant 416 : index
    %c0_62 = arith.constant 0 : index
    %57 = vector.load %arg10[%c416, %c0_62] : memref<432x1024xbf16, #tpu.memory_space<vmem>>, vector<16x1024xbf16>
    tpu.vector_store %arg10[%c416, %c0_62], %56 {strides = array<i32>} : memref<432x1024xbf16, #tpu.memory_space<vmem>>, vector<16x1024xbf16>,
    %c0_63 = arith.constant 0 : index
    %c0_64 = arith.constant 0 : index
    %58 = vector.load %arg3[%c0_63, %c0_64] : memref<16x432xbf16, #tpu.memory_space<vmem>>, vector<16x432xbf16>
    %c0_65 = arith.constant 0 : index
    %c0_66 = arith.constant 0 : index
    %59 = vector.load %arg10[%c0_65, %c0_66] : memref<432x1024xbf16, #tpu.memory_space<vmem>>, vector<432x1024xbf16>
    %cst = arith.constant dense<0.000000e+00> : vector<16x1024xf32>
    %60 = tpu.matmul %58, %59, %cst {dimension_numbers = #tpu.dot_dimension_numbers<[1], [0], [0], [1], [0, 0, 1, 1], [], []>} : vector<16x432xbf16>, vector<432x1024xbf16>, vector<16x1024xf32> -> vector<16x1024xf32>
    %c0_67 = arith.constant 0 : index
    %c0_68 = arith.constant 0 : index
    %61 = vector.load %arg4[%c0_67, %c0_68] : memref<16x1xf32, #tpu.memory_space<vmem>>, vector<16x1xf32>
    %62 = vector.broadcast %61 : vector<16x1xf32> to vector<16x1024xf32>
    %63 = arith.addf %60, %62 : vector<16x1024xf32>
    %64 = arith.truncf %63 : vector<16x1024xf32> to vector<16x1024xbf16>
    %c0_69 = arith.constant 0 : index
    %c0_70 = arith.constant 0 : index
    %65 = vector.load %arg6[%c0_69, %c0_70] : memref<16x1024xbf16, #tpu.memory_space<vmem>>, vector<16x1024xbf16>
    tpu.vector_store %arg6[%c0_69, %c0_70], %64 {strides = array<i32>} : memref<16x1024xbf16, #tpu.memory_space<vmem>>, vector<16x1024xbf16>,
    %c0_71 = arith.constant 0 : index
    %c0_72 = arith.constant 0 : index
    %66 = vector.load %arg5[%c0_71, %c0_72] : memref<1x1024xf32, #tpu.memory_space<vmem>>, vector<1x1024xf32>
    %cst_73 = arith.constant 0.000000e+00 : f32
    %67 = vector.broadcast %cst_73 : f32 to vector<1x1024xf32>
    %68 = arith.cmpf ogt, %66, %67 : vector<1x1024xf32>
    %cst_74 = arith.constant 0.000000e+00 : f32
    %69 = vector.shape_cast %68 : vector<1x1024xi1> to vector<1x1024xi1>
    %70 = vector.broadcast %69 : vector<1x1024xi1> to vector<16x1024xi1>
    %71 = vector.broadcast %cst_74 : f32 to vector<16x1024xf32>
    %72 = arith.select %70, %63, %71 : vector<16x1024xi1>, vector<16x1024xf32>
    %cst_75 = arith.constant dense<0.000000e+00> : vector<16xf32>
    %73 = vector.multi_reduction <add>, %72, %cst_75 [1] : vector<16x1024xf32> to vector<16xf32>
    %74 = vector.shape_cast %73 : vector<16xf32> to vector<16x1xf32>
    %75 = vector.shape_cast %74 : vector<16x1xf32> to vector<16x1xf32>
    %76 = vector.broadcast %75 : vector<16x1xf32> to vector<16x128xf32>
    %c0_76 = arith.constant 0 : index
    %c0_77 = arith.constant 0 : index
    %77 = vector.load %arg7[%c0_76, %c0_77] : memref<16x128xf32, #tpu.memory_space<vmem>>, vector<16x128xf32>
    tpu.vector_store %arg7[%c0_76, %c0_77], %76 {strides = array<i32>} : memref<16x128xf32, #tpu.memory_space<vmem>>, vector<16x128xf32>,
    %78 = arith.mulf %72, %72 : vector<16x1024xf32>
    %cst_78 = arith.constant dense<0.000000e+00> : vector<16xf32>
    %79 = vector.multi_reduction <add>, %78, %cst_78 [1] : vector<16x1024xf32> to vector<16xf32>
    %80 = vector.shape_cast %79 : vector<16xf32> to vector<16x1xf32>
    %81 = vector.shape_cast %80 : vector<16x1xf32> to vector<16x1xf32>
    %82 = vector.broadcast %81 : vector<16x1xf32> to vector<16x128xf32>
    %c0_79 = arith.constant 0 : index
    %c0_80 = arith.constant 0 : index
    %83 = vector.load %arg8[%c0_79, %c0_80] : memref<16x128xf32, #tpu.memory_space<vmem>>, vector<16x128xf32>
    tpu.vector_store %arg8[%c0_79, %c0_80], %82 {strides = array<i32>} : memref<16x128xf32, #tpu.memory_space<vmem>>, vector<16x128xf32>,
    return
  }
  func.func @transform_0(%arg0: i32) -> (i32, i32) {
    %c0_i32 = arith.constant 0 : i32
    %c0_i32_0 = arith.constant 0 : i32
    return %c0_i32, %arg0 : i32, i32
  }
  func.func @transform_1(%arg0: i32) -> (i32, i32) {
    %c1_i32 = arith.constant 1 : i32
    %0 = arith.addi %arg0, %c1_i32 : i32
    %c4_i32 = arith.constant 4 : i32
    %1 = arith.muli %0, %c4_i32 : i32
    %c0_i32 = arith.constant 0 : i32
    %c0_i32_0 = arith.constant 0 : i32
    return %c0_i32, %1 : i32, i32
  }
  func.func @transform_2(%arg0: i32) -> (i32, i32) {
    %c0_i32 = arith.constant 0 : i32
    %c0_i32_0 = arith.constant 0 : i32
    %c0_i32_1 = arith.constant 0 : i32
    return %c0_i32, %c0_i32_0 : i32, i32
  }
  func.func @transform_3(%arg0: i32) -> (i32, i32) {
    %c0_i32 = arith.constant 0 : i32
    %c0_i32_0 = arith.constant 0 : i32
    %c0_i32_1 = arith.constant 0 : i32
    return %c0_i32, %c0_i32_0 : i32, i32
  }
  func.func @transform_4(%arg0: i32) -> (i32, i32) {
    %c1_i32 = arith.constant 1 : i32
    %0 = arith.addi %arg0, %c1_i32 : i32
    %c0_i32 = arith.constant 0 : i32
    %c0_i32_0 = arith.constant 0 : i32
    return %c0_i32, %0 : i32, i32
  }
  func.func @transform_5(%arg0: i32) -> (i32, i32) {
    %c1_i32 = arith.constant 1 : i32
    %0 = arith.addi %arg0, %c1_i32 : i32
    %c0_i32 = arith.constant 0 : i32
    %c0_i32_0 = arith.constant 0 : i32
    return %c0_i32, %0 : i32, i32
  }
  func.func @transform_6(%arg0: i32) -> (i32, i32) {
    %c0_i32 = arith.constant 0 : i32
    %c0_i32_0 = arith.constant 0 : i32
    return %c0_i32, %arg0 : i32, i32
  }
  func.func @transform_7(%arg0: i32) -> (i32, i32) {
    %c0_i32 = arith.constant 0 : i32
    %c0_i32_0 = arith.constant 0 : i32
    return %c0_i32, %arg0 : i32, i32
  }
}

module attributes {stable_mosaic.version = 11 : i64} {
  func.func @kernel(%arg0: i32, %arg1: memref<16x256xbf16, #tpu.memory_space<vmem>>, %arg2: memref<16x1024xbf16, #tpu.memory_space<vmem>>, %arg3: memref<1x256xf32, #tpu.memory_space<vmem>>, %arg4: memref<1x1024xf32, #tpu.memory_space<vmem>>, %arg5: memref<16x1xf32, #tpu.memory_space<vmem>>, %arg6: memref<16x1xf32, #tpu.memory_space<vmem>>, %arg7: memref<32x432xbf16, #tpu.memory_space<vmem>>, %arg8: memref<32x1xf32, #tpu.memory_space<vmem>>, %arg9: memref<1x1024xf32, #tpu.memory_space<vmem>>, %arg10: memref<32x1024xf32, #tpu.memory_space<vmem>>, %arg11: memref<32x128xf32, #tpu.memory_space<vmem>>, %arg12: memref<32x128xf32, #tpu.memory_space<vmem>>, %arg13: memref<16x1280xbf16, #tpu.memory_space<vmem>>, %arg14: memref<432x1024xbf16, #tpu.memory_space<vmem>>) attributes {dimension_semantics = [#tpu.dimension_semantics<parallel>], iteration_bounds = array<i64: 2>, scalar_prefetch = 0 : i64, scratch_operands = 2 : i64, tpu.core_type = #tpu.core_type<tc>, window_params = [{transform_indices = @transform_0, window_bounds = array<i64: 16, 256>}, {transform_indices = @transform_1, window_bounds = array<i64: 16, 1024>}, {transform_indices = @transform_2, window_bounds = array<i64: 1, 256>}, {transform_indices = @transform_3, window_bounds = array<i64: 1, 1024>}, {pipeline_mode = #tpu.pipeline_mode<synchronous>, transform_indices = @transform_4, window_bounds = array<i64: 16, 1>}, {pipeline_mode = #tpu.pipeline_mode<synchronous>, transform_indices = @transform_5, window_bounds = array<i64: 16, 1>}, {pipeline_mode = #tpu.pipeline_mode<synchronous>, transform_indices = @transform_6, window_bounds = array<i64: 32, 432>}, {pipeline_mode = #tpu.pipeline_mode<synchronous>, transform_indices = @transform_7, window_bounds = array<i64: 32, 1>}, {transform_indices = @transform_8, window_bounds = array<i64: 1, 1024>}, {transform_indices = @transform_9, window_bounds = array<i64: 32, 1024>}, {transform_indices = @transform_10, window_bounds = array<i64: 32, 128>}, {transform_indices = @transform_11, window_bounds = array<i64: 32, 128>}]} {
    %c0 = arith.constant 0 : index
    %c0_0 = arith.constant 0 : index
    %0 = vector.load %arg5[%c0, %c0_0] : memref<16x1xf32, #tpu.memory_space<vmem>>, vector<16x1xf32>
    %c0_1 = arith.constant 0 : index
    %c0_2 = arith.constant 0 : index
    %1 = vector.load %arg6[%c0_1, %c0_2] : memref<16x1xf32, #tpu.memory_space<vmem>>, vector<16x1xf32>
    %c0_3 = arith.constant 0 : index
    %c0_4 = arith.constant 0 : index
    %2 = vector.load %arg1[%c0_3, %c0_4] : memref<16x256xbf16, #tpu.memory_space<vmem>>, vector<16x256xbf16>
    %3 = arith.extf %2 : vector<16x256xbf16> to vector<16x256xf32>
    %4 = vector.broadcast %0 : vector<16x1xf32> to vector<16x256xf32>
    %5 = arith.mulf %4, %3 : vector<16x256xf32>
    %6 = vector.broadcast %1 : vector<16x1xf32> to vector<16x256xf32>
    %7 = arith.addf %5, %6 : vector<16x256xf32>
    %cst = arith.constant 0.000000e+00 : f32
    %8 = vector.broadcast %cst : f32 to vector<16x256xf32>
    %9 = arith.cmpf oge, %7, %8 : vector<16x256xf32>
    %cst_5 = arith.constant 0.00999999977 : f32
    %10 = vector.broadcast %cst_5 : f32 to vector<16x256xf32>
    %11 = arith.mulf %10, %7 : vector<16x256xf32>
    %12 = arith.select %9, %7, %11 : vector<16x256xi1>, vector<16x256xf32>
    %c0_6 = arith.constant 0 : index
    %c0_7 = arith.constant 0 : index
    %13 = vector.load %arg3[%c0_6, %c0_7] : memref<1x256xf32, #tpu.memory_space<vmem>>, vector<1x256xf32>
    %cst_8 = arith.constant 0.000000e+00 : f32
    %14 = vector.broadcast %cst_8 : f32 to vector<1x256xf32>
    %15 = arith.cmpf ogt, %13, %14 : vector<1x256xf32>
    %cst_9 = arith.constant 0.000000e+00 : f32
    %16 = vector.shape_cast %15 : vector<1x256xi1> to vector<1x256xi1>
    %17 = vector.broadcast %16 : vector<1x256xi1> to vector<16x256xi1>
    %18 = vector.broadcast %cst_9 : f32 to vector<16x256xf32>
    %19 = arith.select %17, %12, %18 : vector<16x256xi1>, vector<16x256xf32>
    %20 = arith.truncf %19 : vector<16x256xf32> to vector<16x256xbf16>
    %c0_10 = arith.constant 0 : index
    %c0_11 = arith.constant 0 : index
    %21 = vector.load %arg13[%c0_10, %c0_11] : memref<16x1280xbf16, #tpu.memory_space<vmem>>, vector<16x256xbf16>
    tpu.vector_store %arg13[%c0_10, %c0_11], %20 {strides = array<i32>} : memref<16x1280xbf16, #tpu.memory_space<vmem>>, vector<16x256xbf16>,
    %c0_12 = arith.constant 0 : index
    %c0_13 = arith.constant 0 : index
    %22 = vector.load %arg2[%c0_12, %c0_13] : memref<16x1024xbf16, #tpu.memory_space<vmem>>, vector<16x1024xbf16>
    %23 = arith.extf %22 : vector<16x1024xbf16> to vector<16x1024xf32>
    %24 = vector.broadcast %0 : vector<16x1xf32> to vector<16x1024xf32>
    %25 = arith.mulf %24, %23 : vector<16x1024xf32>
    %26 = vector.broadcast %1 : vector<16x1xf32> to vector<16x1024xf32>
    %27 = arith.addf %25, %26 : vector<16x1024xf32>
    %cst_14 = arith.constant 0.000000e+00 : f32
    %28 = vector.broadcast %cst_14 : f32 to vector<16x1024xf32>
    %29 = arith.cmpf oge, %27, %28 : vector<16x1024xf32>
    %cst_15 = arith.constant 0.00999999977 : f32
    %30 = vector.broadcast %cst_15 : f32 to vector<16x1024xf32>
    %31 = arith.mulf %30, %27 : vector<16x1024xf32>
    %32 = arith.select %29, %27, %31 : vector<16x1024xi1>, vector<16x1024xf32>
    %c0_16 = arith.constant 0 : index
    %c0_17 = arith.constant 0 : index
    %33 = vector.load %arg4[%c0_16, %c0_17] : memref<1x1024xf32, #tpu.memory_space<vmem>>, vector<1x1024xf32>
    %cst_18 = arith.constant 0.000000e+00 : f32
    %34 = vector.broadcast %cst_18 : f32 to vector<1x1024xf32>
    %35 = arith.cmpf ogt, %33, %34 : vector<1x1024xf32>
    %cst_19 = arith.constant 0.000000e+00 : f32
    %36 = vector.shape_cast %35 : vector<1x1024xi1> to vector<1x1024xi1>
    %37 = vector.broadcast %36 : vector<1x1024xi1> to vector<16x1024xi1>
    %38 = vector.broadcast %cst_19 : f32 to vector<16x1024xf32>
    %39 = arith.select %37, %32, %38 : vector<16x1024xi1>, vector<16x1024xf32>
    %40 = arith.truncf %39 : vector<16x1024xf32> to vector<16x1024xbf16>
    %c0_20 = arith.constant 0 : index
    %c256 = arith.constant 256 : index
    %41 = vector.load %arg13[%c0_20, %c256] : memref<16x1280xbf16, #tpu.memory_space<vmem>>, vector<16x1024xbf16>
    tpu.vector_store %arg13[%c0_20, %c256], %40 {strides = array<i32>} : memref<16x1280xbf16, #tpu.memory_space<vmem>>, vector<16x1024xbf16>,
    %c0_21 = arith.constant 0 : index
    %c34 = arith.constant 34 : index
    %42 = vector.load %arg13[%c0_21, %c34] : memref<16x1280xbf16, #tpu.memory_space<vmem>>, vector<16x1024xbf16>
    %c0_22 = arith.constant 0 : index
    %c0_23 = arith.constant 0 : index
    %43 = vector.load %arg14[%c0_22, %c0_23] : memref<432x1024xbf16, #tpu.memory_space<vmem>>, vector<16x1024xbf16>
    tpu.vector_store %arg14[%c0_22, %c0_23], %42 {strides = array<i32>} : memref<432x1024xbf16, #tpu.memory_space<vmem>>, vector<16x1024xbf16>,
    %c0_24 = arith.constant 0 : index
    %c35 = arith.constant 35 : index
    %44 = vector.load %arg13[%c0_24, %c35] : memref<16x1280xbf16, #tpu.memory_space<vmem>>, vector<16x1024xbf16>
    %c16 = arith.constant 16 : index
    %c0_25 = arith.constant 0 : index
    %45 = vector.load %arg14[%c16, %c0_25] : memref<432x1024xbf16, #tpu.memory_space<vmem>>, vector<16x1024xbf16>
    tpu.vector_store %arg14[%c16, %c0_25], %44 {strides = array<i32>} : memref<432x1024xbf16, #tpu.memory_space<vmem>>, vector<16x1024xbf16>,
    %c0_26 = arith.constant 0 : index
    %c36 = arith.constant 36 : index
    %46 = vector.load %arg13[%c0_26, %c36] : memref<16x1280xbf16, #tpu.memory_space<vmem>>, vector<16x1024xbf16>
    %c32 = arith.constant 32 : index
    %c0_27 = arith.constant 0 : index
    %47 = vector.load %arg14[%c32, %c0_27] : memref<432x1024xbf16, #tpu.memory_space<vmem>>, vector<16x1024xbf16>
    tpu.vector_store %arg14[%c32, %c0_27], %46 {strides = array<i32>} : memref<432x1024xbf16, #tpu.memory_space<vmem>>, vector<16x1024xbf16>,
    %c0_28 = arith.constant 0 : index
    %c44 = arith.constant 44 : index
    %48 = vector.load %arg13[%c0_28, %c44] : memref<16x1280xbf16, #tpu.memory_space<vmem>>, vector<16x1024xbf16>
    %c48 = arith.constant 48 : index
    %c0_29 = arith.constant 0 : index
    %49 = vector.load %arg14[%c48, %c0_29] : memref<432x1024xbf16, #tpu.memory_space<vmem>>, vector<16x1024xbf16>
    tpu.vector_store %arg14[%c48, %c0_29], %48 {strides = array<i32>} : memref<432x1024xbf16, #tpu.memory_space<vmem>>, vector<16x1024xbf16>,
    %c0_30 = arith.constant 0 : index
    %c45 = arith.constant 45 : index
    %50 = vector.load %arg13[%c0_30, %c45] : memref<16x1280xbf16, #tpu.memory_space<vmem>>, vector<16x1024xbf16>
    %c64 = arith.constant 64 : index
    %c0_31 = arith.constant 0 : index
    %51 = vector.load %arg14[%c64, %c0_31] : memref<432x1024xbf16, #tpu.memory_space<vmem>>, vector<16x1024xbf16>
    tpu.vector_store %arg14[%c64, %c0_31], %50 {strides = array<i32>} : memref<432x1024xbf16, #tpu.memory_space<vmem>>, vector<16x1024xbf16>,
    %c0_32 = arith.constant 0 : index
    %c46 = arith.constant 46 : index
    %52 = vector.load %arg13[%c0_32, %c46] : memref<16x1280xbf16, #tpu.memory_space<vmem>>, vector<16x1024xbf16>
    %c80 = arith.constant 80 : index
    %c0_33 = arith.constant 0 : index
    %53 = vector.load %arg14[%c80, %c0_33] : memref<432x1024xbf16, #tpu.memory_space<vmem>>, vector<16x1024xbf16>
    tpu.vector_store %arg14[%c80, %c0_33], %52 {strides = array<i32>} : memref<432x1024xbf16, #tpu.memory_space<vmem>>, vector<16x1024xbf16>,
    %c0_34 = arith.constant 0 : index
    %c54 = arith.constant 54 : index
    %54 = vector.load %arg13[%c0_34, %c54] : memref<16x1280xbf16, #tpu.memory_space<vmem>>, vector<16x1024xbf16>
    %c96 = arith.constant 96 : index
    %c0_35 = arith.constant 0 : index
    %55 = vector.load %arg14[%c96, %c0_35] : memref<432x1024xbf16, #tpu.memory_space<vmem>>, vector<16x1024xbf16>
    tpu.vector_store %arg14[%c96, %c0_35], %54 {strides = array<i32>} : memref<432x1024xbf16, #tpu.memory_space<vmem>>, vector<16x1024xbf16>,
    %c0_36 = arith.constant 0 : index
    %c55 = arith.constant 55 : index
    %56 = vector.load %arg13[%c0_36, %c55] : memref<16x1280xbf16, #tpu.memory_space<vmem>>, vector<16x1024xbf16>
    %c112 = arith.constant 112 : index
    %c0_37 = arith.constant 0 : index
    %57 = vector.load %arg14[%c112, %c0_37] : memref<432x1024xbf16, #tpu.memory_space<vmem>>, vector<16x1024xbf16>
    tpu.vector_store %arg14[%c112, %c0_37], %56 {strides = array<i32>} : memref<432x1024xbf16, #tpu.memory_space<vmem>>, vector<16x1024xbf16>,
    %c0_38 = arith.constant 0 : index
    %c56 = arith.constant 56 : index
    %58 = vector.load %arg13[%c0_38, %c56] : memref<16x1280xbf16, #tpu.memory_space<vmem>>, vector<16x1024xbf16>
    %c128 = arith.constant 128 : index
    %c0_39 = arith.constant 0 : index
    %59 = vector.load %arg14[%c128, %c0_39] : memref<432x1024xbf16, #tpu.memory_space<vmem>>, vector<16x1024xbf16>
    tpu.vector_store %arg14[%c128, %c0_39], %58 {strides = array<i32>} : memref<432x1024xbf16, #tpu.memory_space<vmem>>, vector<16x1024xbf16>,
    %c0_40 = arith.constant 0 : index
    %c134 = arith.constant 134 : index
    %60 = vector.load %arg13[%c0_40, %c134] : memref<16x1280xbf16, #tpu.memory_space<vmem>>, vector<16x1024xbf16>
    %c144 = arith.constant 144 : index
    %c0_41 = arith.constant 0 : index
    %61 = vector.load %arg14[%c144, %c0_41] : memref<432x1024xbf16, #tpu.memory_space<vmem>>, vector<16x1024xbf16>
    tpu.vector_store %arg14[%c144, %c0_41], %60 {strides = array<i32>} : memref<432x1024xbf16, #tpu.memory_space<vmem>>, vector<16x1024xbf16>,
    %c0_42 = arith.constant 0 : index
    %c135 = arith.constant 135 : index
    %62 = vector.load %arg13[%c0_42, %c135] : memref<16x1280xbf16, #tpu.memory_space<vmem>>, vector<16x1024xbf16>
    %c160 = arith.constant 160 : index
    %c0_43 = arith.constant 0 : index
    %63 = vector.load %arg14[%c160, %c0_43] : memref<432x1024xbf16, #tpu.memory_space<vmem>>, vector<16x1024xbf16>
    tpu.vector_store %arg14[%c160, %c0_43], %62 {strides = array<i32>} : memref<432x1024xbf16, #tpu.memory_space<vmem>>, vector<16x1024xbf16>,
    %c0_44 = arith.constant 0 : index
    %c136 = arith.constant 136 : index
    %64 = vector.load %arg13[%c0_44, %c136] : memref<16x1280xbf16, #tpu.memory_space<vmem>>, vector<16x1024xbf16>
    %c176 = arith.constant 176 : index
    %c0_45 = arith.constant 0 : index
    %65 = vector.load %arg14[%c176, %c0_45] : memref<432x1024xbf16, #tpu.memory_space<vmem>>, vector<16x1024xbf16>
    tpu.vector_store %arg14[%c176, %c0_45], %64 {strides = array<i32>} : memref<432x1024xbf16, #tpu.memory_space<vmem>>, vector<16x1024xbf16>,
    %c0_46 = arith.constant 0 : index
    %c144_47 = arith.constant 144 : index
    %66 = vector.load %arg13[%c0_46, %c144_47] : memref<16x1280xbf16, #tpu.memory_space<vmem>>, vector<16x1024xbf16>
    %c192 = arith.constant 192 : index
    %c0_48 = arith.constant 0 : index
    %67 = vector.load %arg14[%c192, %c0_48] : memref<432x1024xbf16, #tpu.memory_space<vmem>>, vector<16x1024xbf16>
    tpu.vector_store %arg14[%c192, %c0_48], %66 {strides = array<i32>} : memref<432x1024xbf16, #tpu.memory_space<vmem>>, vector<16x1024xbf16>,
    %c0_49 = arith.constant 0 : index
    %c145 = arith.constant 145 : index
    %68 = vector.load %arg13[%c0_49, %c145] : memref<16x1280xbf16, #tpu.memory_space<vmem>>, vector<16x1024xbf16>
    %c208 = arith.constant 208 : index
    %c0_50 = arith.constant 0 : index
    %69 = vector.load %arg14[%c208, %c0_50] : memref<432x1024xbf16, #tpu.memory_space<vmem>>, vector<16x1024xbf16>
    tpu.vector_store %arg14[%c208, %c0_50], %68 {strides = array<i32>} : memref<432x1024xbf16, #tpu.memory_space<vmem>>, vector<16x1024xbf16>,
    %c0_51 = arith.constant 0 : index
    %c146 = arith.constant 146 : index
    %70 = vector.load %arg13[%c0_51, %c146] : memref<16x1280xbf16, #tpu.memory_space<vmem>>, vector<16x1024xbf16>
    %c224 = arith.constant 224 : index
    %c0_52 = arith.constant 0 : index
    %71 = vector.load %arg14[%c224, %c0_52] : memref<432x1024xbf16, #tpu.memory_space<vmem>>, vector<16x1024xbf16>
    tpu.vector_store %arg14[%c224, %c0_52], %70 {strides = array<i32>} : memref<432x1024xbf16, #tpu.memory_space<vmem>>, vector<16x1024xbf16>,
    %c0_53 = arith.constant 0 : index
    %c154 = arith.constant 154 : index
    %72 = vector.load %arg13[%c0_53, %c154] : memref<16x1280xbf16, #tpu.memory_space<vmem>>, vector<16x1024xbf16>
    %c240 = arith.constant 240 : index
    %c0_54 = arith.constant 0 : index
    %73 = vector.load %arg14[%c240, %c0_54] : memref<432x1024xbf16, #tpu.memory_space<vmem>>, vector<16x1024xbf16>
    tpu.vector_store %arg14[%c240, %c0_54], %72 {strides = array<i32>} : memref<432x1024xbf16, #tpu.memory_space<vmem>>, vector<16x1024xbf16>,
    %c0_55 = arith.constant 0 : index
    %c155 = arith.constant 155 : index
    %74 = vector.load %arg13[%c0_55, %c155] : memref<16x1280xbf16, #tpu.memory_space<vmem>>, vector<16x1024xbf16>
    %c256_56 = arith.constant 256 : index
    %c0_57 = arith.constant 0 : index
    %75 = vector.load %arg14[%c256_56, %c0_57] : memref<432x1024xbf16, #tpu.memory_space<vmem>>, vector<16x1024xbf16>
    tpu.vector_store %arg14[%c256_56, %c0_57], %74 {strides = array<i32>} : memref<432x1024xbf16, #tpu.memory_space<vmem>>, vector<16x1024xbf16>,
    %c0_58 = arith.constant 0 : index
    %c156 = arith.constant 156 : index
    %76 = vector.load %arg13[%c0_58, %c156] : memref<16x1280xbf16, #tpu.memory_space<vmem>>, vector<16x1024xbf16>
    %c272 = arith.constant 272 : index
    %c0_59 = arith.constant 0 : index
    %77 = vector.load %arg14[%c272, %c0_59] : memref<432x1024xbf16, #tpu.memory_space<vmem>>, vector<16x1024xbf16>
    tpu.vector_store %arg14[%c272, %c0_59], %76 {strides = array<i32>} : memref<432x1024xbf16, #tpu.memory_space<vmem>>, vector<16x1024xbf16>,
    %c0_60 = arith.constant 0 : index
    %c234 = arith.constant 234 : index
    %78 = vector.load %arg13[%c0_60, %c234] : memref<16x1280xbf16, #tpu.memory_space<vmem>>, vector<16x1024xbf16>
    %c288 = arith.constant 288 : index
    %c0_61 = arith.constant 0 : index
    %79 = vector.load %arg14[%c288, %c0_61] : memref<432x1024xbf16, #tpu.memory_space<vmem>>, vector<16x1024xbf16>
    tpu.vector_store %arg14[%c288, %c0_61], %78 {strides = array<i32>} : memref<432x1024xbf16, #tpu.memory_space<vmem>>, vector<16x1024xbf16>,
    %c0_62 = arith.constant 0 : index
    %c235 = arith.constant 235 : index
    %80 = vector.load %arg13[%c0_62, %c235] : memref<16x1280xbf16, #tpu.memory_space<vmem>>, vector<16x1024xbf16>
    %c304 = arith.constant 304 : index
    %c0_63 = arith.constant 0 : index
    %81 = vector.load %arg14[%c304, %c0_63] : memref<432x1024xbf16, #tpu.memory_space<vmem>>, vector<16x1024xbf16>
    tpu.vector_store %arg14[%c304, %c0_63], %80 {strides = array<i32>} : memref<432x1024xbf16, #tpu.memory_space<vmem>>, vector<16x1024xbf16>,
    %c0_64 = arith.constant 0 : index
    %c236 = arith.constant 236 : index
    %82 = vector.load %arg13[%c0_64, %c236] : memref<16x1280xbf16, #tpu.memory_space<vmem>>, vector<16x1024xbf16>
    %c320 = arith.constant 320 : index
    %c0_65 = arith.constant 0 : index
    %83 = vector.load %arg14[%c320, %c0_65] : memref<432x1024xbf16, #tpu.memory_space<vmem>>, vector<16x1024xbf16>
    tpu.vector_store %arg14[%c320, %c0_65], %82 {strides = array<i32>} : memref<432x1024xbf16, #tpu.memory_space<vmem>>, vector<16x1024xbf16>,
    %c0_66 = arith.constant 0 : index
    %c244 = arith.constant 244 : index
    %84 = vector.load %arg13[%c0_66, %c244] : memref<16x1280xbf16, #tpu.memory_space<vmem>>, vector<16x1024xbf16>
    %c336 = arith.constant 336 : index
    %c0_67 = arith.constant 0 : index
    %85 = vector.load %arg14[%c336, %c0_67] : memref<432x1024xbf16, #tpu.memory_space<vmem>>, vector<16x1024xbf16>
    tpu.vector_store %arg14[%c336, %c0_67], %84 {strides = array<i32>} : memref<432x1024xbf16, #tpu.memory_space<vmem>>, vector<16x1024xbf16>,
    %c0_68 = arith.constant 0 : index
    %c245 = arith.constant 245 : index
    %86 = vector.load %arg13[%c0_68, %c245] : memref<16x1280xbf16, #tpu.memory_space<vmem>>, vector<16x1024xbf16>
    %c352 = arith.constant 352 : index
    %c0_69 = arith.constant 0 : index
    %87 = vector.load %arg14[%c352, %c0_69] : memref<432x1024xbf16, #tpu.memory_space<vmem>>, vector<16x1024xbf16>
    tpu.vector_store %arg14[%c352, %c0_69], %86 {strides = array<i32>} : memref<432x1024xbf16, #tpu.memory_space<vmem>>, vector<16x1024xbf16>,
    %c0_70 = arith.constant 0 : index
    %c246 = arith.constant 246 : index
    %88 = vector.load %arg13[%c0_70, %c246] : memref<16x1280xbf16, #tpu.memory_space<vmem>>, vector<16x1024xbf16>
    %c368 = arith.constant 368 : index
    %c0_71 = arith.constant 0 : index
    %89 = vector.load %arg14[%c368, %c0_71] : memref<432x1024xbf16, #tpu.memory_space<vmem>>, vector<16x1024xbf16>
    tpu.vector_store %arg14[%c368, %c0_71], %88 {strides = array<i32>} : memref<432x1024xbf16, #tpu.memory_space<vmem>>, vector<16x1024xbf16>,
    %c0_72 = arith.constant 0 : index
    %c254 = arith.constant 254 : index
    %90 = vector.load %arg13[%c0_72, %c254] : memref<16x1280xbf16, #tpu.memory_space<vmem>>, vector<16x1024xbf16>
    %c384 = arith.constant 384 : index
    %c0_73 = arith.constant 0 : index
    %91 = vector.load %arg14[%c384, %c0_73] : memref<432x1024xbf16, #tpu.memory_space<vmem>>, vector<16x1024xbf16>
    tpu.vector_store %arg14[%c384, %c0_73], %90 {strides = array<i32>} : memref<432x1024xbf16, #tpu.memory_space<vmem>>, vector<16x1024xbf16>,
    %c0_74 = arith.constant 0 : index
    %c255 = arith.constant 255 : index
    %92 = vector.load %arg13[%c0_74, %c255] : memref<16x1280xbf16, #tpu.memory_space<vmem>>, vector<16x1024xbf16>
    %c400 = arith.constant 400 : index
    %c0_75 = arith.constant 0 : index
    %93 = vector.load %arg14[%c400, %c0_75] : memref<432x1024xbf16, #tpu.memory_space<vmem>>, vector<16x1024xbf16>
    tpu.vector_store %arg14[%c400, %c0_75], %92 {strides = array<i32>} : memref<432x1024xbf16, #tpu.memory_space<vmem>>, vector<16x1024xbf16>,
    %c0_76 = arith.constant 0 : index
    %c256_77 = arith.constant 256 : index
    %94 = vector.load %arg13[%c0_76, %c256_77] : memref<16x1280xbf16, #tpu.memory_space<vmem>>, vector<16x1024xbf16>
    %c416 = arith.constant 416 : index
    %c0_78 = arith.constant 0 : index
    %95 = vector.load %arg14[%c416, %c0_78] : memref<432x1024xbf16, #tpu.memory_space<vmem>>, vector<16x1024xbf16>
    tpu.vector_store %arg14[%c416, %c0_78], %94 {strides = array<i32>} : memref<432x1024xbf16, #tpu.memory_space<vmem>>, vector<16x1024xbf16>,
    %c0_79 = arith.constant 0 : index
    %c0_80 = arith.constant 0 : index
    %96 = vector.load %arg7[%c0_79, %c0_80] : memref<32x432xbf16, #tpu.memory_space<vmem>>, vector<32x432xbf16>
    %c0_81 = arith.constant 0 : index
    %c0_82 = arith.constant 0 : index
    %97 = vector.load %arg14[%c0_81, %c0_82] : memref<432x1024xbf16, #tpu.memory_space<vmem>>, vector<432x1024xbf16>
    %cst_83 = arith.constant dense<0.000000e+00> : vector<32x1024xf32>
    %98 = tpu.matmul %96, %97, %cst_83 {dimension_numbers = #tpu.dot_dimension_numbers<[1], [0], [0], [1], [0, 0, 1, 1], [], []>} : vector<32x432xbf16>, vector<432x1024xbf16>, vector<32x1024xf32> -> vector<32x1024xf32>
    %c0_84 = arith.constant 0 : index
    %c0_85 = arith.constant 0 : index
    %99 = vector.load %arg8[%c0_84, %c0_85] : memref<32x1xf32, #tpu.memory_space<vmem>>, vector<32x1xf32>
    %100 = vector.broadcast %99 : vector<32x1xf32> to vector<32x1024xf32>
    %101 = arith.addf %98, %100 : vector<32x1024xf32>
    %c0_86 = arith.constant 0 : index
    %c0_87 = arith.constant 0 : index
    %102 = vector.load %arg10[%c0_86, %c0_87] : memref<32x1024xf32, #tpu.memory_space<vmem>>, vector<32x1024xf32>
    tpu.vector_store %arg10[%c0_86, %c0_87], %101 {strides = array<i32>} : memref<32x1024xf32, #tpu.memory_space<vmem>>, vector<32x1024xf32>,
    %c0_88 = arith.constant 0 : index
    %c0_89 = arith.constant 0 : index
    %103 = vector.load %arg9[%c0_88, %c0_89] : memref<1x1024xf32, #tpu.memory_space<vmem>>, vector<1x1024xf32>
    %cst_90 = arith.constant 0.000000e+00 : f32
    %104 = vector.broadcast %cst_90 : f32 to vector<1x1024xf32>
    %105 = arith.cmpf ogt, %103, %104 : vector<1x1024xf32>
    %cst_91 = arith.constant 0.000000e+00 : f32
    %106 = vector.shape_cast %105 : vector<1x1024xi1> to vector<1x1024xi1>
    %107 = vector.broadcast %106 : vector<1x1024xi1> to vector<32x1024xi1>
    %108 = vector.broadcast %cst_91 : f32 to vector<32x1024xf32>
    %109 = arith.select %107, %101, %108 : vector<32x1024xi1>, vector<32x1024xf32>
    %cst_92 = arith.constant dense<0.000000e+00> : vector<32xf32>
    %110 = vector.multi_reduction <add>, %109, %cst_92 [1] : vector<32x1024xf32> to vector<32xf32>
    %111 = vector.shape_cast %110 : vector<32xf32> to vector<32x1xf32>
    %112 = vector.shape_cast %111 : vector<32x1xf32> to vector<32x1xf32>
    %113 = vector.broadcast %112 : vector<32x1xf32> to vector<32x128xf32>
    %c0_93 = arith.constant 0 : index
    %c0_94 = arith.constant 0 : index
    %114 = vector.load %arg11[%c0_93, %c0_94] : memref<32x128xf32, #tpu.memory_space<vmem>>, vector<32x128xf32>
    tpu.vector_store %arg11[%c0_93, %c0_94], %113 {strides = array<i32>} : memref<32x128xf32, #tpu.memory_space<vmem>>, vector<32x128xf32>,
    %115 = arith.mulf %109, %109 : vector<32x1024xf32>
    %cst_95 = arith.constant dense<0.000000e+00> : vector<32xf32>
    %116 = vector.multi_reduction <add>, %115, %cst_95 [1] : vector<32x1024xf32> to vector<32xf32>
    %117 = vector.shape_cast %116 : vector<32xf32> to vector<32x1xf32>
    %118 = vector.shape_cast %117 : vector<32x1xf32> to vector<32x1xf32>
    %119 = vector.broadcast %118 : vector<32x1xf32> to vector<32x128xf32>
    %c0_96 = arith.constant 0 : index
    %c0_97 = arith.constant 0 : index
    %120 = vector.load %arg12[%c0_96, %c0_97] : memref<32x128xf32, #tpu.memory_space<vmem>>, vector<32x128xf32>
    tpu.vector_store %arg12[%c0_96, %c0_97], %119 {strides = array<i32>} : memref<32x128xf32, #tpu.memory_space<vmem>>, vector<32x128xf32>,
    return
  }
  func.func @transform_0(%arg0: i32) -> (i32, i32) {
    %c1_i32 = arith.constant 1 : i32
    %0 = arith.addi %arg0, %c1_i32 : i32
    %c4_i32 = arith.constant 4 : i32
    %1 = arith.muli %0, %c4_i32 : i32
    %c1_i32_0 = arith.constant 1 : i32
    %2 = arith.subi %1, %c1_i32_0 : i32
    %c0_i32 = arith.constant 0 : i32
    %c0_i32_1 = arith.constant 0 : i32
    return %c0_i32, %2 : i32, i32
  }
  func.func @transform_1(%arg0: i32) -> (i32, i32) {
    %c1_i32 = arith.constant 1 : i32
    %0 = arith.addi %arg0, %c1_i32 : i32
    %c0_i32 = arith.constant 0 : i32
    %c0_i32_0 = arith.constant 0 : i32
    return %c0_i32, %0 : i32, i32
  }
  func.func @transform_2(%arg0: i32) -> (i32, i32) {
    %c1_i32 = arith.constant 1 : i32
    %0 = arith.addi %arg0, %c1_i32 : i32
    %c4_i32 = arith.constant 4 : i32
    %1 = arith.muli %0, %c4_i32 : i32
    %c1_i32_0 = arith.constant 1 : i32
    %2 = arith.subi %1, %c1_i32_0 : i32
    %c0_i32 = arith.constant 0 : i32
    %c0_i32_1 = arith.constant 0 : i32
    return %c0_i32, %2 : i32, i32
  }
  func.func @transform_3(%arg0: i32) -> (i32, i32) {
    %c1_i32 = arith.constant 1 : i32
    %0 = arith.addi %arg0, %c1_i32 : i32
    %c0_i32 = arith.constant 0 : i32
    %c0_i32_0 = arith.constant 0 : i32
    return %c0_i32, %0 : i32, i32
  }
  func.func @transform_4(%arg0: i32) -> (i32, i32) {
    %c0_i32 = arith.constant 0 : i32
    %c0_i32_0 = arith.constant 0 : i32
    %c0_i32_1 = arith.constant 0 : i32
    return %c0_i32, %c0_i32_0 : i32, i32
  }
  func.func @transform_5(%arg0: i32) -> (i32, i32) {
    %c0_i32 = arith.constant 0 : i32
    %c0_i32_0 = arith.constant 0 : i32
    %c0_i32_1 = arith.constant 0 : i32
    return %c0_i32, %c0_i32_0 : i32, i32
  }
  func.func @transform_6(%arg0: i32) -> (i32, i32) {
    %c0_i32 = arith.constant 0 : i32
    %c0_i32_0 = arith.constant 0 : i32
    %c0_i32_1 = arith.constant 0 : i32
    return %c0_i32, %c0_i32_0 : i32, i32
  }
  func.func @transform_7(%arg0: i32) -> (i32, i32) {
    %c0_i32 = arith.constant 0 : i32
    %c0_i32_0 = arith.constant 0 : i32
    %c0_i32_1 = arith.constant 0 : i32
    return %c0_i32, %c0_i32_0 : i32, i32
  }
  func.func @transform_8(%arg0: i32) -> (i32, i32) {
    %c0_i32 = arith.constant 0 : i32
    %c0_i32_0 = arith.constant 0 : i32
    return %c0_i32, %arg0 : i32, i32
  }
  func.func @transform_9(%arg0: i32) -> (i32, i32) {
    %c0_i32 = arith.constant 0 : i32
    %c0_i32_0 = arith.constant 0 : i32
    return %c0_i32, %arg0 : i32, i32
  }
  func.func @transform_10(%arg0: i32) -> (i32, i32) {
    %c0_i32 = arith.constant 0 : i32
    %c0_i32_0 = arith.constant 0 : i32
    return %c0_i32, %arg0 : i32, i32
  }
  func.func @transform_11(%arg0: i32) -> (i32, i32) {
    %c0_i32 = arith.constant 0 : i32
    %c0_i32_0 = arith.constant 0 : i32
    return %c0_i32, %arg0 : i32, i32
  }
}

</mosaic_0001>

<llo_original>
// kernel: _forward.2
$region0: #{_forward.2}
  #allocation0 [shape = 'u32[]', space=smem, size = 0x4, offset = 0x4, fixed_abs, tag = 'smem constant byte address 0x4 - core index']
  #allocation1 [shape = 'u32[144,128]{1,0:T(1,128)}', space=vmem, size = 0x12000, scoped, tag = 'internal scratch']
  #allocation2 [shape = 'bf16[16,1280]{1,0:T(8,128)(2,1)}', space=vmem, size = 0xa000, scoped, tag = 'scratch operand']
  #allocation3 [shape = 'bf16[432,1024]{1,0:T(8,128)(2,1)}', space=vmem, size = 0xd8000, scoped, tag = 'scratch operand']
  %s0 = inlined_call_operand.vmem [shape: bf16[16,3072], index: 0, kind: input, shape index: {}, may-alias: {0,1}]
  %s1 = inlined_call_operand.vmem [shape: bf16[16,3072], index: 1, kind: input, shape index: {}, may-alias: {0,1}]
  %s2 = inlined_call_operand.vmem [shape: bf16[16,432], index: 2, kind: input, shape index: {}]
  %s3 = inlined_call_operand.vmem [shape: f32[16,1], index: 3, kind: input, shape index: {}]
  %s4 = inlined_call_operand.vmem [shape: f32[1,3072], index: 4, kind: input, shape index: {}]
  %s5 = inlined_call_operand.vmem [shape: bf16[16,3072], index: 5, kind: output, shape index: {0}]
  %s6 = inlined_call_operand.vmem [shape: f32[16,256], index: 6, kind: output, shape index: {1}]
  %s7 = inlined_call_operand.vmem [shape: f32[16,256], index: 7, kind: output, shape index: {2}]
  %8 = xla_tuple %s5, %s6, %s7
  %s9 = sld [smem:[#allocation0]]
  $region217: #{_forward.2} parent=0
    _
  %s11 = ssub.s32 1, %s9
  %s12 = scalar_select 0, %s11, %s9
  $region1: #{_forward.2} parent=0
    #allocation4 [shape = 'u8[65536]{0}', space=vmem, size = 0x10000, scoped, tag = 'input window, operand 0']
    #allocation5 [shape = 'u8[16384]{0}', space=vmem, size = 0x4000, scoped, tag = 'input window, operand 1']
    #allocation6 [shape = 'u8[65536]{0}', space=vmem, size = 0x10000, scoped, tag = 'output window, operand 0']
    #allocation7 [shape = 'u8[16384]{0}', space=vmem, size = 0x4000, scoped, tag = 'output window, operand 1']
    #allocation8 [shape = 'u8[16384]{0}', space=vmem, size = 0x4000, scoped, tag = 'output window, operand 2']
    loop: start=0, step=1, limit=4
    $region2: #{_forward.2} parent=1 // loop_pre_header
      _
    $region3: #{_forward.2} parent=1 // loop_header
      %s14 = sphi 0, %s18
      %p15 = scmp.ge.s32.totalorder %s14, 4
      %s24 = sphi 0, %s26
      %s27 = sphi 0, %s24
      %s28 = sphi 0, %s27
      %s44 = sphi 0, %s28
      %s54 = sphi 0, %s56
      %s57 = sphi 0, %s54
      %s58 = sphi 0, %s57
      %s74 = sphi 0, %s58
      %s78 = sphi 0, %s78
      %s80 = sphi 0, %s78
      %s81 = sphi 0, %s80
      %s95 = sphi 0, %s81
      %s99 = sphi 0, %s99
      %s101 = sphi 0, %s99
      %s102 = sphi 0, %s101
      %s116 = sphi 0, %s102
      %s124 = sphi 0, %s126
      %s127 = sphi 0, %s124
      %s128 = sphi 0, %s127
      %s144 = sphi 0, %s128
      %s152 = sphi 0, %s154
      %s155 = sphi 0, %s152
      %s156 = sphi 0, %s155
      %s172 = sphi 0, %s156
      %s178 = sphi 0, %s180
      %s181 = sphi 0, %s178
      %s182 = sphi 0, %s181
      %s198 = sphi 0, %s182
      %s204 = sphi 0, %s206
      %s207 = sphi 0, %s204
      %s208 = sphi 0, %s207
      %s224 = sphi 0, %s208
    $region4: #{_forward.2} parent=1 // loop_header_branch
      %17 = sbr.rel (%p15) target = $region8
    $region5: #{_forward.2} parent=1 // loop_body
      %s19 = ssub.s32 %s14, 1
      %s20 = ssub.s32 %s14, 2
      %s21 = sadd.s32 %s14, 1
      %s22 = ssub.s32 %s14, %s21
      %p23 = scmp.eq.s32.totalorder %s22, 0
      %s25 = sadd.s32 %s24, 1
      %s26 = scalar_select %p23, %s24, %s25
      %p29 = pneg %p23
      %p30 = scmp.eq.s32.totalorder %s14, 1
      %p31 = por %p29, %p30
      %p32 = scmp.ne.s32.totalorder %s24, %s27
      %p33 = scmp.eq.s32.totalorder %s14, 0
      %p34 = por %p32, %p33
      %p35 = scmp.ne.s32.totalorder %s24, %s27
      %p36 = scmp.eq.s32.totalorder %s19, 1
      %p37 = por %p35, %p36
      %p38 = scmp.ne.s32.totalorder %s27, %s28
      %p39 = scmp.eq.s32.totalorder %s19, 0
      %p40 = por %p38, %p39
      %p41 = scmp.ne.s32.totalorder %s27, %s28
      %p42 = scmp.eq.s32.totalorder %s20, 1
      %p43 = por %p41, %p42
      %p45 = scmp.ne.s32.totalorder %s28, %s44
      %p46 = scmp.eq.s32.totalorder %s20, 0
      %p47 = por %p45, %p46
      %s48 = sadd.s32 %s14, 1
      %s49 = smul.u32 %s48, 4
      %s50 = sadd.s32 %s21, 1
      %s51 = smul.u32 %s50, 4
      %s52 = ssub.s32 %s49, %s51
      %p53 = scmp.eq.s32.totalorder %s52, 0
      %s55 = sadd.s32 %s54, 1
      %s56 = scalar_select %p53, %s54, %s55
      %p59 = pneg %p53
      %p60 = scmp.eq.s32.totalorder %s14, 1
      %p61 = por %p59, %p60
      %p62 = scmp.ne.s32.totalorder %s54, %s57
      %p63 = scmp.eq.s32.totalorder %s14, 0
      %p64 = por %p62, %p63
      %p65 = scmp.ne.s32.totalorder %s54, %s57
      %p66 = scmp.eq.s32.totalorder %s19, 1
      %p67 = por %p65, %p66
      %p68 = scmp.ne.s32.totalorder %s57, %s58
      %p69 = scmp.eq.s32.totalorder %s19, 0
      %p70 = por %p68, %p69
      %p71 = scmp.ne.s32.totalorder %s57, %s58
      %p72 = scmp.eq.s32.totalorder %s20, 1
      %p73 = por %p71, %p72
      %p75 = scmp.ne.s32.totalorder %s58, %s74
      %p76 = scmp.eq.s32.totalorder %s20, 0
      %p77 = por %p75, %p76
      %s79 = sadd.s32 %s78, 1
      %p82 = scmp.eq.s32.totalorder %s14, 1
      %p83 = scmp.ne.s32.totalorder %s78, %s80
      %p84 = scmp.eq.s32.totalorder %s14, 0
      %p85 = por %p83, %p84
      %p86 = scmp.ne.s32.totalorder %s78, %s80
      %p87 = scmp.eq.s32.totalorder %s19, 1
      %p88 = por %p86, %p87
      %p89 = scmp.ne.s32.totalorder %s80, %s81
      %p90 = scmp.eq.s32.totalorder %s19, 0
      %p91 = por %p89, %p90
      %p92 = scmp.ne.s32.totalorder %s80, %s81
      %p93 = scmp.eq.s32.totalorder %s20, 1
      %p94 = por %p92, %p93
      %p96 = scmp.ne.s32.totalorder %s81, %s95
      %p97 = scmp.eq.s32.totalorder %s20, 0
      %p98 = por %p96, %p97
      %s100 = sadd.s32 %s99, 1
      %p103 = scmp.eq.s32.totalorder %s14, 1
      %p104 = scmp.ne.s32.totalorder %s99, %s101
      %p105 = scmp.eq.s32.totalorder %s14, 0
      %p106 = por %p104, %p105
      %p107 = scmp.ne.s32.totalorder %s99, %s101
      %p108 = scmp.eq.s32.totalorder %s19, 1
      %p109 = por %p107, %p108
      %p110 = scmp.ne.s32.totalorder %s101, %s102
      %p111 = scmp.eq.s32.totalorder %s19, 0
      %p112 = por %p110, %p111
      %p113 = scmp.ne.s32.totalorder %s101, %s102
      %p114 = scmp.eq.s32.totalorder %s20, 1
      %p115 = por %p113, %p114
      %p117 = scmp.ne.s32.totalorder %s102, %s116
      %p118 = scmp.eq.s32.totalorder %s20, 0
      %p119 = por %p117, %p118
      %s120 = sadd.s32 %s14, 1
      %s121 = sadd.s32 %s21, 1
      %s122 = ssub.s32 %s120, %s121
      %p123 = scmp.eq.s32.totalorder %s122, 0
      %s125 = sadd.s32 %s124, 1
      %s126 = scalar_select %p123, %s124, %s125
      %p129 = pneg %p123
      %p130 = scmp.eq.s32.totalorder %s14, 1
      %p131 = por %p129, %p130
      %p132 = scmp.ne.s32.totalorder %s124, %s127
      %p133 = scmp.eq.s32.totalorder %s14, 0
      %p134 = por %p132, %p133
      %p135 = scmp.ne.s32.totalorder %s124, %s127
      %p136 = scmp.eq.s32.totalorder %s19, 1
      %p137 = por %p135, %p136
      %p138 = scmp.ne.s32.totalorder %s127, %s128
      %p139 = scmp.eq.s32.totalorder %s19, 0
      %p140 = por %p138, %p139
      %p141 = scmp.ne.s32.totalorder %s127, %s128
      %p142 = scmp.eq.s32.totalorder %s20, 1
      %p143 = por %p141, %p142
      %p145 = scmp.ne.s32.totalorder %s128, %s144
      %p146 = scmp.eq.s32.totalorder %s20, 0
      %p147 = por %p145, %p146
      %s148 = sadd.s32 %s14, 1
      %s149 = sadd.s32 %s21, 1
      %s150 = ssub.s32 %s148, %s149
      %p151 = scmp.eq.s32.totalorder %s150, 0
      %s153 = sadd.s32 %s152, 1
      %s154 = scalar_select %p151, %s152, %s153
      %p157 = pneg %p151
      %p158 = scmp.eq.s32.totalorder %s14, 1
      %p159 = por %p157, %p158
      %p160 = scmp.ne.s32.totalorder %s152, %s155
      %p161 = scmp.eq.s32.totalorder %s14, 0
      %p162 = por %p160, %p161
      %p163 = scmp.ne.s32.totalorder %s152, %s155
      %p164 = scmp.eq.s32.totalorder %s19, 1
      %p165 = por %p163, %p164
      %p166 = scmp.ne.s32.totalorder %s155, %s156
      %p167 = scmp.eq.s32.totalorder %s19, 0
      %p168 = por %p166, %p167
      %p169 = scmp.ne.s32.totalorder %s155, %s156
      %p170 = scmp.eq.s32.totalorder %s20, 1
      %p171 = por %p169, %p170
      %p173 = scmp.ne.s32.totalorder %s156, %s172
      %p174 = scmp.eq.s32.totalorder %s20, 0
      %p175 = por %p173, %p174
      %s176 = ssub.s32 %s14, %s21
      %p177 = scmp.eq.s32.totalorder %s176, 0
      %s179 = sadd.s32 %s178, 1
      %s180 = scalar_select %p177, %s178, %s179
      %p183 = pneg %p177
      %p184 = scmp.eq.s32.totalorder %s14, 1
      %p185 = por %p183, %p184
      %p186 = scmp.ne.s32.totalorder %s178, %s181
      %p187 = scmp.eq.s32.totalorder %s14, 0
      %p188 = por %p186, %p187
      %p189 = scmp.ne.s32.totalorder %s178, %s181
      %p190 = scmp.eq.s32.totalorder %s19, 1
      %p191 = por %p189, %p190
      %p192 = scmp.ne.s32.totalorder %s181, %s182
      %p193 = scmp.eq.s32.totalorder %s19, 0
      %p194 = por %p192, %p193
      %p195 = scmp.ne.s32.totalorder %s181, %s182
      %p196 = scmp.eq.s32.totalorder %s20, 1
      %p197 = por %p195, %p196
      %p199 = scmp.ne.s32.totalorder %s182, %s198
      %p200 = scmp.eq.s32.totalorder %s20, 0
      %p201 = por %p199, %p200
      %s202 = ssub.s32 %s14, %s21
      %p203 = scmp.eq.s32.totalorder %s202, 0
      %s205 = sadd.s32 %s204, 1
      %s206 = scalar_select %p203, %s204, %s205
      %p209 = pneg %p203
      %p210 = scmp.eq.s32.totalorder %s14, 1
      %p211 = por %p209, %p210
      %p212 = scmp.ne.s32.totalorder %s204, %s207
      %p213 = scmp.eq.s32.totalorder %s14, 0
      %p214 = por %p212, %p213
      %p215 = scmp.ne.s32.totalorder %s204, %s207
      %p216 = scmp.eq.s32.totalorder %s19, 1
      %p217 = por %p215, %p216
      %p218 = scmp.ne.s32.totalorder %s207, %s208
      %p219 = scmp.eq.s32.totalorder %s19, 0
      %p220 = por %p218, %p219
      %p221 = scmp.ne.s32.totalorder %s207, %s208
      %p222 = scmp.eq.s32.totalorder %s20, 1
      %p223 = por %p221, %p222
      %p225 = scmp.ne.s32.totalorder %s208, %s224
      %p226 = scmp.eq.s32.totalorder %s20, 0
      %p227 = por %p225, %p226
      %p228 = scmp.le.s32.totalorder 1, %s14
      %p229 = scmp.lt.s32.totalorder %s14, 3
      %p230 = pnand %p228, %p229
      %p231 = pneg %p230
      // Predicated region
      $region9: #{_forward.2} parent=5 // pred_check
        _
      $region10: #{_forward.2} parent=5 // pred_check_branch
        %233 = sbr.rel (%p230) target = $region12
      $region11: #{_forward.2} parent=5 // pred_region
        %s234 = ssub.s32 %s14, 1
        // Predicated region
        $region13: #{_forward.2} parent=11 // pred_check
          %p235 = pneg %p91
        $region14: #{_forward.2} parent=11 // pred_check_branch
          %237 = sbr.rel (%p235) target = $region16
        $region15: #{_forward.2} parent=11 // pred_region
          _
        $region16: #{_forward.2} parent=11 // pred_fallthru
          _
        // Predicated region
        $region17: #{_forward.2} parent=11 // pred_check
          %p238 = pneg %p112
        $region18: #{_forward.2} parent=11 // pred_check_branch
          %240 = sbr.rel (%p238) target = $region20
        $region19: #{_forward.2} parent=11 // pred_region
          _
        $region20: #{_forward.2} parent=11 // pred_fallthru
          _
      $region12: #{_forward.2} parent=5 // pred_fallthru
        _
      %p241 = scmp.lt.s32.totalorder %s14, 2
      // Predicated region
      $region21: #{_forward.2} parent=5 // pred_check
        %p242 = pneg %p241
      $region22: #{_forward.2} parent=5 // pred_check_branch
        %244 = sbr.rel (%p242) target = $region24
      $region23: #{_forward.2} parent=5 // pred_region
        // Predicated region
        $region25: #{_forward.2} parent=23 // pred_check
          %p245 = pneg %p34
        $region26: #{_forward.2} parent=23 // pred_check_branch
          %247 = sbr.rel (%p245) target = $region28
        $region27: #{_forward.2} parent=23 // pred_region
          %s248 = sand.u32 %s24, 1
          %s249 = sand.u32 %s24, 1
          %s250 = smul.addr %s249, 64
          %s251 = scalar_lea.vmem [#allocation4], %s250
          %s252 = smul.u32 8, %s14
          %s253 = smul.addr %s252, 4
          %s254 = scalar_lea.vmem %s0, %s253
          // Predicated region
          $region29: #{_forward.2} parent=27 // pred_check
            _
          $region30: #{_forward.2} parent=27 // pred_check_branch
            %256 = sbr.rel (0) target = $region32
          $region31: #{_forward.2} parent=27 // pred_region
            // Predicated region
            $region33: #{_forward.2} parent=31 // pred_check
              _
            $region34: #{_forward.2} parent=31 // pred_check_branch
              %258 = sbr.rel (0) target = $region36
            $region35: #{_forward.2} parent=31 // pred_region
              loop: start=0, step=1, limit=1
              $region37: #{_forward.2} parent=35 // loop_pre_header
                _
              $region38: #{_forward.2} parent=35 // loop_header
                %s260 = sphi 0, %s264
                %p261 = scmp.ge.s32.totalorder %s260, 1
                %s265 = sphi %s254, %s254
                %s266 = sphi %s251, %s251
              $region39: #{_forward.2} parent=35 // loop_header_branch
                %263 = sbr.rel (%p261) target = $region43
              $region40: #{_forward.2} parent=35 // loop_body
                %v267 = vld [vmem:[%s265] sm:$0xff]
                %268 = vst [vmem:[%s266] sm:$0xff] %v267
                %v269 = vld [vmem:[%s265 + $0x8] sm:$0xff]
                %270 = vst [vmem:[%s266 + $0x8] sm:$0xff] %v269
                %v271 = vld [vmem:[%s265 + $0x10] sm:$0xff]
                %272 = vst [vmem:[%s266 + $0x10] sm:$0xff] %v271
                %v273 = vld [vmem:[%s265 + $0x18] sm:$0xff]
                %274 = vst [vmem:[%s266 + $0x18] sm:$0xff] %v273
                %v275 = vld [vmem:[%s265 + $0x60] sm:$0xff]
                %276 = vst [vmem:[%s266 + $0x20] sm:$0xff] %v275
                %v277 = vld [vmem:[%s265 + $0x68] sm:$0xff]
                %278 = vst [vmem:[%s266 + $0x28] sm:$0xff] %v277
                %v279 = vld [vmem:[%s265 + $0x70] sm:$0xff]
                %280 = vst [vmem:[%s266 + $0x30] sm:$0xff] %v279
                %v281 = vld [vmem:[%s265 + $0x78] sm:$0xff]
                %282 = vst [vmem:[%s266 + $0x38] sm:$0xff] %v281
              $region41: #{_forward.2} parent=35 // loop_footer
                %s264 = sadd.s32 1, %s260
              $region42: #{_forward.2} parent=35 // loop_footer_branch
                %259 = sbr.rel target = $region38
              $region43: #{_forward.2} parent=35 // loop_exit
                _
            $region36: #{_forward.2} parent=31 // pred_fallthru
              _
            // Predicated region
            $region44: #{_forward.2} parent=31 // pred_check
              _
            $region45: #{_forward.2} parent=31 // pred_check_branch
              %284 = sbr.rel target = $region47
            $region46: #{_forward.2} parent=31 // pred_region
              _
            $region47: #{_forward.2} parent=31 // pred_fallthru
              _
          $region32: #{_forward.2} parent=27 // pred_fallthru
            _
          %285 = vnop
        $region28: #{_forward.2} parent=23 // pred_fallthru
          _
        // Predicated region
        $region48: #{_forward.2} parent=23 // pred_check
          %p286 = pneg %p64
        $region49: #{_forward.2} parent=23 // pred_check_branch
          %288 = sbr.rel (%p286) target = $region51
        $region50: #{_forward.2} parent=23 // pred_region
          %s289 = sand.u32 %s54, 1
          %s290 = sand.u32 %s54, 1
          %s291 = smul.addr %s290, 16
          %s292 = scalar_lea.vmem [#allocation5], %s291
          %s293 = sadd.s32 %s14, 1
          %s294 = smul.u32 %s293, 4
          %s295 = smul.u32 2, %s294
          %s296 = smul.addr %s295, 4
          %s297 = scalar_lea.vmem %s1, %s296
          // Predicated region
          $region52: #{_forward.2} parent=50 // pred_check
            _
          $region53: #{_forward.2} parent=50 // pred_check_branch
            %299 = sbr.rel (0) target = $region55
          $region54: #{_forward.2} parent=50 // pred_region
            // Predicated region
            $region56: #{_forward.2} parent=54 // pred_check
              _
            $region57: #{_forward.2} parent=54 // pred_check_branch
              %301 = sbr.rel (0) target = $region59
            $region58: #{_forward.2} parent=54 // pred_region
              // Predicated region
              $region71: #{_forward.2} parent=58 // pred_check
                _
              $region72: #{_forward.2} parent=58 // pred_check_branch
                %319 = sbr.rel (0) target = $region74
              $region73: #{_forward.2} parent=58 // pred_region
                loop: start=0, step=1, limit=1
                $region75: #{_forward.2} parent=73 // loop_pre_header
                  _
                $region76: #{_forward.2} parent=73 // loop_header
                  %s321 = sphi 0, %s325
                  %p322 = scmp.ge.s32.totalorder %s321, 1
                  %s326 = sphi %s297, %s297
                  %s327 = sphi %s292, %s292
                $region77: #{_forward.2} parent=73 // loop_header_branch
                  %324 = sbr.rel (%p322) target = $region81
                $region78: #{_forward.2} parent=73 // loop_body
                  %v328 = vld [vmem:[%s326] sm:$0xff]
                  %329 = vst [vmem:[%s327] sm:$0xff] %v328
                  %v330 = vld [vmem:[%s326 + $0x60] sm:$0xff]
                  %331 = vst [vmem:[%s327 + $0x8] sm:$0xff] %v330
                $region79: #{_forward.2} parent=73 // loop_footer
                  %s325 = sadd.s32 1, %s321
                $region80: #{_forward.2} parent=73 // loop_footer_branch
                  %320 = sbr.rel target = $region76
                $region81: #{_forward.2} parent=73 // loop_exit
                  _
              $region74: #{_forward.2} parent=58 // pred_fallthru
                _
              // Predicated region
              $region82: #{_forward.2} parent=58 // pred_check
                _
              $region83: #{_forward.2} parent=58 // pred_check_branch
                %333 = sbr.rel target = $region85
              $region84: #{_forward.2} parent=58 // pred_region
                _
              $region85: #{_forward.2} parent=58 // pred_fallthru
                _
            $region59: #{_forward.2} parent=54 // pred_fallthru
              _
            // Predicated region
            $region60: #{_forward.2} parent=54 // pred_check
              _
            $region61: #{_forward.2} parent=54 // pred_check_branch
              %303 = sbr.rel target = $region63
            $region62: #{_forward.2} parent=54 // pred_region
              %s305 = ssub.s32 256, 1
              loop: start=0, step=1, limit=1
              $region64: #{_forward.2} parent=62 // loop_pre_header
                _
              $region65: #{_forward.2} parent=62 // loop_header
                %s307 = sphi 0, %s311
                %p308 = scmp.ge.s32.totalorder %s307, 1
                %s312 = sphi %s297, %s297
                %s313 = sphi %s292, %s292
              $region66: #{_forward.2} parent=62 // loop_header_branch
                %310 = sbr.rel (%p308) target = $region70
              $region67: #{_forward.2} parent=62 // loop_body
                %v314 = vld [vmem:[%s312] sm:%s305]
                %315 = vst [vmem:[%s313] sm:%s305] %v314
                %v316 = vld [vmem:[%s312 + $0x60] sm:%s305]
                %317 = vst [vmem:[%s313 + $0x8] sm:%s305] %v316
              $region68: #{_forward.2} parent=62 // loop_footer
                %s311 = sadd.s32 1, %s307
              $region69: #{_forward.2} parent=62 // loop_footer_branch
                %306 = sbr.rel target = $region65
              $region70: #{_forward.2} parent=62 // loop_exit
                _
            $region63: #{_forward.2} parent=54 // pred_fallthru
              _
          $region55: #{_forward.2} parent=50 // pred_fallthru
            _
          %334 = vnop
        $region51: #{_forward.2} parent=23 // pred_fallthru
          _
        // Predicated region
        $region86: #{_forward.2} parent=23 // pred_check
          %p335 = pneg %p134
        $region87: #{_forward.2} parent=23 // pred_check_branch
          %337 = sbr.rel (%p335) target = $region89
        $region88: #{_forward.2} parent=23 // pred_region
          %s338 = sadd.s32 %s14, 1
          %s339 = smul.u32 8, %s338
          %p340 = scmp.lt.s32.totalorder %s339, 23
          %s341 = scalar_select %p340, %s339, 23
          %s342 = scalar_lea.vmem %s4, %s341
          %s343 = sadd.s32 %s14, 1
          %s344 = smul.u32 8, %s343
        $region89: #{_forward.2} parent=23 // pred_fallthru
          _
      $region24: #{_forward.2} parent=5 // pred_fallthru
        _
      %p345 = scmp.le.s32.totalorder 1, %s14
      %p346 = scmp.lt.s32.totalorder %s14, 3
      %p347 = pnand %p345, %p346
      %p348 = pneg %p347
      // Predicated region
      $region90: #{_forward.2} parent=5 // pred_check
        _
      $region91: #{_forward.2} parent=5 // pred_check_branch
        %350 = sbr.rel (%p347) target = $region93
      $region92: #{_forward.2} parent=5 // pred_region
        %s351 = ssub.s32 %s14, 1
        %s352 = sand.u32 %s27, 1
        %s353 = sand.u32 %s27, 1
        %s354 = smul.addr %s353, 64
        %s355 = scalar_lea.vmem [#allocation4], %s354
        // Predicated region
        $region94: #{_forward.2} parent=92 // pred_check
          %p356 = pneg %p40
        $region95: #{_forward.2} parent=92 // pred_check_branch
          %358 = sbr.rel (%p356) target = $region97
        $region96: #{_forward.2} parent=92 // pred_region
          _
        $region97: #{_forward.2} parent=92 // pred_fallthru
          _
        %s359 = sand.u32 %s57, 1
        %s360 = sand.u32 %s57, 1
        %s361 = smul.addr %s360, 16
        %s362 = scalar_lea.vmem [#allocation5], %s361
        // Predicated region
        $region98: #{_forward.2} parent=92 // pred_check
          %p363 = pneg %p70
        $region99: #{_forward.2} parent=92 // pred_check_branch
          %365 = sbr.rel (%p363) target = $region101
        $region100: #{_forward.2} parent=92 // pred_region
          _
        $region101: #{_forward.2} parent=92 // pred_fallthru
          _
        %s366 = sand.u32 %s27, 1
        %s367 = sand.u32 %s27, 1
        %s368 = smul.addr %s367, 64
        %s369 = scalar_lea.vmem [#allocation4], %s368
        %p370 = pneg %p40
        %p371 = pneg %p37
        %s372 = sand.u32 %s57, 1
        %s373 = sand.u32 %s57, 1
        %s374 = smul.addr %s373, 16
        %s375 = scalar_lea.vmem [#allocation5], %s374
        %p376 = pneg %p70
        %p377 = pneg %p67
        %p378 = pneg %p91
        %p379 = pneg %p88
        %p380 = pneg %p112
        %p381 = pneg %p109
        %s382 = sadd.s32 %s19, 1
        %s383 = smul.u32 8, %s382
        %p384 = scmp.lt.s32.totalorder %s383, 23
        %s385 = scalar_select %p384, %s383, 23
        %s386 = scalar_lea.vmem %s4, %s385
        %p387 = pneg %p140
        %p388 = pneg %p137
        %p389 = pneg %p168
        %p390 = pneg %p165
        %s391 = sand.u32 %s155, 1
        %s392 = sand.u32 %s155, 1
        %s393 = smul.addr %s392, 64
        %s394 = scalar_lea.vmem [#allocation6], %s393
        %p395 = pneg %p194
        %p396 = pneg %p191
        %s397 = sand.u32 %s181, 1
        %s398 = sand.u32 %s181, 1
        %s399 = smul.addr %s398, 16
        %s400 = scalar_lea.vmem [#allocation7], %s399
        %p401 = pneg %p220
        %p402 = pneg %p217
        %s403 = sand.u32 %s207, 1
        %s404 = sand.u32 %s207, 1
        %s405 = smul.addr %s404, 16
        %s406 = scalar_lea.vmem [#allocation8], %s405
        %s407 = smul.u32 8, %s19
        %s408 = sadd.s32 %s19, 1
        %s409 = smul.u32 %s408, 4
        %s410 = smul.u32 2, %s409
        %s411 = sadd.s32 %s19, 1
        %s412 = smul.u32 8, %s411
        %p413 = scmp.lt.s32.totalorder %s412, 23
        %s414 = scalar_select %p413, %s412, 23
        %s415 = scalar_lea.vmem %s4, %s414
        %s416 = sadd.s32 %s19, 1
        %s417 = smul.u32 8, %s416
        %s418 = sadd.s32 %s19, 1
        %s419 = smul.u32 8, %s418
        %v421 = vld [vmem:[%s355] sm:$0xff]
        %v422 = vld [vmem:[%s355 + $0x8] sm:$0xff]
        %v423 = vld [vmem:[%s355 + $0x10] sm:$0xff]
        %v424 = vld [vmem:[%s355 + $0x18] sm:$0xff]
        %v425 = vld [vmem:[%s355 + $0x20] sm:$0xff]
        %v426 = vld [vmem:[%s355 + $0x28] sm:$0xff]
        %v427 = vld [vmem:[%s355 + $0x30] sm:$0xff]
        %v428 = vld [vmem:[%s355 + $0x38] sm:$0xff]
        %429 = vst [vmem:[#allocation2] sm:$0xff] %v421
        %430 = vst [vmem:[#allocation2 + $0x8] sm:$0xff] %v422
        %431 = vst [vmem:[#allocation2 + $0x10] sm:$0xff] %v423
        %432 = vst [vmem:[#allocation2 + $0x18] sm:$0xff] %v424
        %433 = vst [vmem:[#allocation2 + $0x28] sm:$0xff] %v425
        %434 = vst [vmem:[#allocation2 + $0x30] sm:$0xff] %v426
        %435 = vst [vmem:[#allocation2 + $0x38] sm:$0xff] %v427
        %436 = vst [vmem:[#allocation2 + $0x40] sm:$0xff] %v428
        %v437 = vld [vmem:[%s362] sm:$0xff]
        %v438 = vld [vmem:[%s362 + $0x8] sm:$0xff]
        %439 = vst [vmem:[#allocation2 + $0x20] sm:$0xff] %v437
        %440 = vst [vmem:[#allocation2 + $0x48] sm:$0xff] %v438
        %v441 = vld [vmem:[#allocation2] sm:$0xff]
        %v442 = vld [vmem:[#allocation2 + $0x8] sm:$0xff]
        %v443 = vld [vmem:[#allocation2 + $0x10] sm:$0xff]
        %v444 = vld [vmem:[#allocation2 + $0x18] sm:$0xff]
        %v445 = vld [vmem:[#allocation2 + $0x28] sm:$0xff]
        %v446 = vld [vmem:[#allocation2 + $0x30] sm:$0xff]
        %v447 = vld [vmem:[#allocation2 + $0x38] sm:$0xff]
        %v448 = vld [vmem:[#allocation2 + $0x40] sm:$0xff]
        %449 = vst [vmem:[#allocation3] sm:$0xff] %v441
        %450 = vst [vmem:[#allocation3 + $0x8] sm:$0xff] %v442
        %451 = vst [vmem:[#allocation3 + $0x10] sm:$0xff] %v443
        %452 = vst [vmem:[#allocation3 + $0x18] sm:$0xff] %v444
        %453 = vst [vmem:[#allocation3 + $0x20] sm:$0xff] %v445
        %454 = vst [vmem:[#allocation3 + $0x28] sm:$0xff] %v446
        %455 = vst [vmem:[#allocation3 + $0x30] sm:$0xff] %v447
        %456 = vst [vmem:[#allocation3 + $0x38] sm:$0xff] %v448
        %v457 = vld [vmem:[#allocation2] sm:$0xff]
        %v458 = vld [vmem:[#allocation2 + $0x8] sm:$0xff]
        %v459 = vld [vmem:[#allocation2 + $0x10] sm:$0xff]
        %v460 = vld [vmem:[#allocation2 + $0x18] sm:$0xff]
        %v461 = vld [vmem:[#allocation2 + $0x20] sm:$0xf]
        %v462 = vld [vmem:[#allocation2 + $0x28] sm:$0xff]
        %v463 = vld [vmem:[#allocation2 + $0x30] sm:$0xff]
        %v464 = vld [vmem:[#allocation2 + $0x38] sm:$0xff]
        %v465 = vld [vmem:[#allocation2 + $0x40] sm:$0xff]
        %v466 = vld [vmem:[#allocation2 + $0x48] sm:$0xf]
        %477 = vrot.lane.b32.xlu0 %v457, 127
        %v478 = vpop.permute.xlu0 %477
        %479 = vrot.lane.b32.xlu0 %v458, 127
        %v480 = vpop.permute.xlu0 %479
        %481 = vrot.lane.b32.xlu0 %v459, 127
        %v482 = vpop.permute.xlu0 %481
        %483 = vrot.lane.b32.xlu0 %v460, 127
        %v484 = vpop.permute.xlu0 %483
        %485 = vrot.lane.b32.xlu0 %v461, 127
        %v486 = vpop.permute.xlu0 %485
        %487 = vrot.lane.b32.xlu0 %v462, 127
        %v488 = vpop.permute.xlu0 %487
        %489 = vrot.lane.b32.xlu0 %v463, 127
        %v490 = vpop.permute.xlu0 %489
        %491 = vrot.lane.b32.xlu0 %v464, 127
        %v492 = vpop.permute.xlu0 %491
        %493 = vrot.lane.b32.xlu0 %v465, 127
        %v494 = vpop.permute.xlu0 %493
        %495 = vrot.lane.b32.xlu0 %v466, 127
        %v496 = vpop.permute.xlu0 %495
        %v497 = vrot.slane %v478, 4
        %v498 = vrot.slane %v480, 4
        %v499 = vrot.slane %v482, 4
        %v500 = vrot.slane %v484, 4
        %v501 = vrot.slane %v486, 4
        %v502 = vrot.slane %v488, 4
        %v503 = vrot.slane %v490, 4
        %v504 = vrot.slane %v492, 4
        %v505 = vrot.slane %v494, 4
        %v506 = vrot.slane %v496, 4
        %vm507 = vcmask 1043456
        %v508 = vsel %vm507, %v497, %v498
        %vm509 = vcmask 1039360
        %v510 = vsel %vm509, %v478, %v508
        %v511 = vsel %vm507, %v498, %v499
        %v512 = vsel %vm509, %v480, %v511
        %v513 = vsel %vm507, %v499, %v500
        %v514 = vsel %vm509, %v482, %v513
        %v515 = vsel %vm507, %v500, %v501
        %v516 = vsel %vm509, %v484, %v515
        %v517 = vsel %vm507, %v502, %v503
        %v518 = vsel %vm509, %v488, %v517
        %v519 = vsel %vm507, %v503, %v504
        %v520 = vsel %vm509, %v490, %v519
        %v521 = vsel %vm507, %v504, %v505
        %v522 = vsel %vm509, %v492, %v521
        %v523 = vsel %vm507, %v505, %v506
        %v524 = vsel %vm509, %v494, %v523
        %533 = vst [vmem:[#allocation3 + $0x40] sm:$0xff] %v510
        %534 = vst [vmem:[#allocation3 + $0x48] sm:$0xff] %v512
        %535 = vst [vmem:[#allocation3 + $0x50] sm:$0xff] %v514
        %536 = vst [vmem:[#allocation3 + $0x58] sm:$0xff] %v516
        %537 = vst [vmem:[#allocation3 + $0x60] sm:$0xff] %v518
        %538 = vst [vmem:[#allocation3 + $0x68] sm:$0xff] %v520
        %539 = vst [vmem:[#allocation3 + $0x70] sm:$0xff] %v522
        %540 = vst [vmem:[#allocation3 + $0x78] sm:$0xff] %v524
        %v541 = vld [vmem:[#allocation2] sm:$0xff]
        %v542 = vld [vmem:[#allocation2 + $0x8] sm:$0xff]
        %v543 = vld [vmem:[#allocation2 + $0x10] sm:$0xff]
        %v544 = vld [vmem:[#allocation2 + $0x18] sm:$0xff]
        %v545 = vld [vmem:[#allocation2 + $0x20] sm:$0xf]
        %v546 = vld [vmem:[#allocation2 + $0x28] sm:$0xff]
        %v547 = vld [vmem:[#allocation2 + $0x30] sm:$0xff]
        %v548 = vld [vmem:[#allocation2 + $0x38] sm:$0xff]
        %v549 = vld [vmem:[#allocation2 + $0x40] sm:$0xff]
        %v550 = vld [vmem:[#allocation2 + $0x48] sm:$0xf]
        %561 = vrot.lane.b32.xlu0 %v541, 126
        %v562 = vpop.permute.xlu0 %561
        %563 = vrot.lane.b32.xlu0 %v542, 126
        %v564 = vpop.permute.xlu0 %563
        %565 = vrot.lane.b32.xlu0 %v543, 126
        %v566 = vpop.permute.xlu0 %565
        %567 = vrot.lane.b32.xlu0 %v544, 126
        %v568 = vpop.permute.xlu0 %567
        %569 = vrot.lane.b32.xlu0 %v545, 126
        %v570 = vpop.permute.xlu0 %569
        %571 = vrot.lane.b32.xlu0 %v546, 126
        %v572 = vpop.permute.xlu0 %571
        %573 = vrot.lane.b32.xlu0 %v547, 126
        %v574 = vpop.permute.xlu0 %573
        %575 = vrot.lane.b32.xlu0 %v548, 126
        %v576 = vpop.permute.xlu0 %575
        %577 = vrot.lane.b32.xlu0 %v549, 126
        %v578 = vpop.permute.xlu0 %577
        %579 = vrot.lane.b32.xlu0 %v550, 126
        %v580 = vpop.permute.xlu0 %579
        %v581 = vrot.slane %v562, 4
        %v582 = vrot.slane %v564, 4
        %v583 = vrot.slane %v566, 4
        %v584 = vrot.slane %v568, 4
        %v585 = vrot.slane %v570, 4
        %v586 = vrot.slane %v572, 4
        %v587 = vrot.slane %v574, 4
        %v588 = vrot.slane %v576, 4
        %v589 = vrot.slane %v578, 4
        %v590 = vrot.slane %v580, 4
        %v591 = vsel %vm507, %v581, %v582
        %vm592 = vcmask 1031168
        %v593 = vsel %vm592, %v562, %v591
        %v594 = vsel %vm507, %v582, %v583
        %v595 = vsel %vm592, %v564, %v594
        %v596 = vsel %vm507, %v583, %v584
        %v597 = vsel %vm592, %v566, %v596
        %v598 = vsel %vm507, %v584, %v585
        %v599 = vsel %vm592, %v568, %v598
        %v600 = vsel %vm507, %v586, %v587
        %v601 = vsel %vm592, %v572, %v600
        %v602 = vsel %vm507, %v587, %v588
        %v603 = vsel %vm592, %v574, %v602
        %v604 = vsel %vm507, %v588, %v589
        %v605 = vsel %vm592, %v576, %v604
        %v606 = vsel %vm507, %v589, %v590
        %v607 = vsel %vm592, %v578, %v606
        %616 = vst [vmem:[#allocation3 + $0x80] sm:$0xff] %v593
        %617 = vst [vmem:[#allocation3 + $0x88] sm:$0xff] %v595
        %618 = vst [vmem:[#allocation3 + $0x90] sm:$0xff] %v597
        %619 = vst [vmem:[#allocation3 + $0x98] sm:$0xff] %v599
        %620 = vst [vmem:[#allocation3 + $0xa0] sm:$0xff] %v601
        %621 = vst [vmem:[#allocation3 + $0xa8] sm:$0xff] %v603
        %622 = vst [vmem:[#allocation3 + $0xb0] sm:$0xff] %v605
        %623 = vst [vmem:[#allocation3 + $0xb8] sm:$0xff] %v607
        %v624 = vld [vmem:[#allocation2] sm:$0xff]
        %v625 = vld [vmem:[#allocation2 + $0x8] sm:$0xff]
        %v626 = vld [vmem:[#allocation2 + $0x10] sm:$0xff]
        %v627 = vld [vmem:[#allocation2 + $0x18] sm:$0xff]
        %v628 = vld [vmem:[#allocation2 + $0x20] sm:$0xf]
        %v629 = vld [vmem:[#allocation2 + $0x28] sm:$0xff]
        %v630 = vld [vmem:[#allocation2 + $0x30] sm:$0xff]
        %v631 = vld [vmem:[#allocation2 + $0x38] sm:$0xff]
        %v632 = vld [vmem:[#allocation2 + $0x40] sm:$0xff]
        %v633 = vld [vmem:[#allocation2 + $0x48] sm:$0xf]
        %644 = vrot.lane.b32.xlu0 %v624, 118
        %v645 = vpop.permute.xlu0 %644
        %646 = vrot.lane.b32.xlu0 %v625, 118
        %v647 = vpop.permute.xlu0 %646
        %648 = vrot.lane.b32.xlu0 %v626, 118
        %v649 = vpop.permute.xlu0 %648
        %650 = vrot.lane.b32.xlu0 %v627, 118
        %v651 = vpop.permute.xlu0 %650
        %652 = vrot.lane.b32.xlu0 %v628, 118
        %v653 = vpop.permute.xlu0 %652
        %654 = vrot.lane.b32.xlu0 %v629, 118
        %v655 = vpop.permute.xlu0 %654
        %656 = vrot.lane.b32.xlu0 %v630, 118
        %v657 = vpop.permute.xlu0 %656
        %658 = vrot.lane.b32.xlu0 %v631, 118
        %v659 = vpop.permute.xlu0 %658
        %660 = vrot.lane.b32.xlu0 %v632, 118
        %v661 = vpop.permute.xlu0 %660
        %662 = vrot.lane.b32.xlu0 %v633, 118
        %v663 = vpop.permute.xlu0 %662
        %v664 = vrot.slane %v645, 4
        %v665 = vrot.slane %v647, 4
        %v666 = vrot.slane %v649, 4
        %v667 = vrot.slane %v651, 4
        %v668 = vrot.slane %v653, 4
        %v669 = vrot.slane %v655, 4
        %v670 = vrot.slane %v657, 4
        %v671 = vrot.slane %v659, 4
        %v672 = vrot.slane %v661, 4
        %v673 = vrot.slane %v663, 4
        %v674 = vsel %vm507, %v664, %v665
        %vm675 = vcmask 965632
        %v676 = vsel %vm675, %v645, %v674
        %v677 = vsel %vm507, %v665, %v666
        %v678 = vsel %vm675, %v647, %v677
        %v679 = vsel %vm507, %v666, %v667
        %v680 = vsel %vm675, %v649, %v679
        %v681 = vsel %vm507, %v667, %v668
        %v682 = vsel %vm675, %v651, %v681
        %v683 = vsel %vm507, %v669, %v670
        %v684 = vsel %vm675, %v655, %v683
        %v685 = vsel %vm507, %v670, %v671
        %v686 = vsel %vm675, %v657, %v685
        %v687 = vsel %vm507, %v671, %v672
        %v688 = vsel %vm675, %v659, %v687
        %v689 = vsel %vm507, %v672, %v673
        %v690 = vsel %vm675, %v661, %v689
        %699 = vst [vmem:[#allocation3 + $0xc0] sm:$0xff] %v676
        %700 = vst [vmem:[#allocation3 + $0xc8] sm:$0xff] %v678
        %701 = vst [vmem:[#allocation3 + $0xd0] sm:$0xff] %v680
        %702 = vst [vmem:[#allocation3 + $0xd8] sm:$0xff] %v682
        %703 = vst [vmem:[#allocation3 + $0xe0] sm:$0xff] %v684
        %704 = vst [vmem:[#allocation3 + $0xe8] sm:$0xff] %v686
        %705 = vst [vmem:[#allocation3 + $0xf0] sm:$0xff] %v688
        %706 = vst [vmem:[#allocation3 + $0xf8] sm:$0xff] %v690
        %v707 = vld [vmem:[#allocation2] sm:$0xff]
        %v708 = vld [vmem:[#allocation2 + $0x8] sm:$0xff]
        %v709 = vld [vmem:[#allocation2 + $0x10] sm:$0xff]
        %v710 = vld [vmem:[#allocation2 + $0x18] sm:$0xff]
        %v711 = vld [vmem:[#allocation2 + $0x20] sm:$0xf]
        %v712 = vld [vmem:[#allocation2 + $0x28] sm:$0xff]
        %v713 = vld [vmem:[#allocation2 + $0x30] sm:$0xff]
        %v714 = vld [vmem:[#allocation2 + $0x38] sm:$0xff]
        %v715 = vld [vmem:[#allocation2 + $0x40] sm:$0xff]
        %v716 = vld [vmem:[#allocation2 + $0x48] sm:$0xf]
        %727 = vrot.lane.b32.xlu0 %v707, 117
        %v728 = vpop.permute.xlu0 %727
        %729 = vrot.lane.b32.xlu0 %v708, 117
        %v730 = vpop.permute.xlu0 %729
        %731 = vrot.lane.b32.xlu0 %v709, 117
        %v732 = vpop.permute.xlu0 %731
        %733 = vrot.lane.b32.xlu0 %v710, 117
        %v734 = vpop.permute.xlu0 %733
        %735 = vrot.lane.b32.xlu0 %v711, 117
        %v736 = vpop.permute.xlu0 %735
        %737 = vrot.lane.b32.xlu0 %v712, 117
        %v738 = vpop.permute.xlu0 %737
        %739 = vrot.lane.b32.xlu0 %v713, 117
        %v740 = vpop.permute.xlu0 %739
        %741 = vrot.lane.b32.xlu0 %v714, 117
        %v742 = vpop.permute.xlu0 %741
        %743 = vrot.lane.b32.xlu0 %v715, 117
        %v744 = vpop.permute.xlu0 %743
        %745 = vrot.lane.b32.xlu0 %v716, 117
        %v746 = vpop.permute.xlu0 %745
        %v747 = vrot.slane %v728, 4
        %v748 = vrot.slane %v730, 4
        %v749 = vrot.slane %v732, 4
        %v750 = vrot.slane %v734, 4
        %v751 = vrot.slane %v736, 4
        %v752 = vrot.slane %v738, 4
        %v753 = vrot.slane %v740, 4
        %v754 = vrot.slane %v742, 4
        %v755 = vrot.slane %v744, 4
        %v756 = vrot.slane %v746, 4
        %v757 = vsel %vm507, %v747, %v748
        %vm758 = vcmask 957440
        %v759 = vsel %vm758, %v728, %v757
        %v760 = vsel %vm507, %v748, %v749
        %v761 = vsel %vm758, %v730, %v760
        %v762 = vsel %vm507, %v749, %v750
        %v763 = vsel %vm758, %v732, %v762
        %v764 = vsel %vm507, %v750, %v751
        %v765 = vsel %vm758, %v734, %v764
        %v766 = vsel %vm507, %v752, %v753
        %v767 = vsel %vm758, %v738, %v766
        %v768 = vsel %vm507, %v753, %v754
        %v769 = vsel %vm758, %v740, %v768
        %v770 = vsel %vm507, %v754, %v755
        %v771 = vsel %vm758, %v742, %v770
        %v772 = vsel %vm507, %v755, %v756
        %v773 = vsel %vm758, %v744, %v772
        %782 = vst [vmem:[#allocation3 + $0x100] sm:$0xff] %v759
        %783 = vst [vmem:[#allocation3 + $0x108] sm:$0xff] %v761
        %784 = vst [vmem:[#allocation3 + $0x110] sm:$0xff] %v763
        %785 = vst [vmem:[#allocation3 + $0x118] sm:$0xff] %v765
        %786 = vst [vmem:[#allocation3 + $0x120] sm:$0xff] %v767
        %787 = vst [vmem:[#allocation3 + $0x128] sm:$0xff] %v769
        %788 = vst [vmem:[#allocation3 + $0x130] sm:$0xff] %v771
        %789 = vst [vmem:[#allocation3 + $0x138] sm:$0xff] %v773
        %v790 = vld [vmem:[#allocation2] sm:$0xff]
        %v791 = vld [vmem:[#allocation2 + $0x8] sm:$0xff]
        %v792 = vld [vmem:[#allocation2 + $0x10] sm:$0xff]
        %v793 = vld [vmem:[#allocation2 + $0x18] sm:$0xff]
        %v794 = vld [vmem:[#allocation2 + $0x20] sm:$0xf]
        %v795 = vld [vmem:[#allocation2 + $0x28] sm:$0xff]
        %v796 = vld [vmem:[#allocation2 + $0x30] sm:$0xff]
        %v797 = vld [vmem:[#allocation2 + $0x38] sm:$0xff]
        %v798 = vld [vmem:[#allocation2 + $0x40] sm:$0xff]
        %v799 = vld [vmem:[#allocation2 + $0x48] sm:$0xf]
        %810 = vrot.lane.b32.xlu0 %v790, 116
        %v811 = vpop.permute.xlu0 %810
        %812 = vrot.lane.b32.xlu0 %v791, 116
        %v813 = vpop.permute.xlu0 %812
        %814 = vrot.lane.b32.xlu0 %v792, 116
        %v815 = vpop.permute.xlu0 %814
        %816 = vrot.lane.b32.xlu0 %v793, 116
        %v817 = vpop.permute.xlu0 %816
        %818 = vrot.lane.b32.xlu0 %v794, 116
        %v819 = vpop.permute.xlu0 %818
        %820 = vrot.lane.b32.xlu0 %v795, 116
        %v821 = vpop.permute.xlu0 %820
        %822 = vrot.lane.b32.xlu0 %v796, 116
        %v823 = vpop.permute.xlu0 %822
        %824 = vrot.lane.b32.xlu0 %v797, 116
        %v825 = vpop.permute.xlu0 %824
        %826 = vrot.lane.b32.xlu0 %v798, 116
        %v827 = vpop.permute.xlu0 %826
        %828 = vrot.lane.b32.xlu0 %v799, 116
        %v829 = vpop.permute.xlu0 %828
        %v830 = vrot.slane %v811, 4
        %v831 = vrot.slane %v813, 4
        %v832 = vrot.slane %v815, 4
        %v833 = vrot.slane %v817, 4
        %v834 = vrot.slane %v819, 4
        %v835 = vrot.slane %v821, 4
        %v836 = vrot.slane %v823, 4
        %v837 = vrot.slane %v825, 4
        %v838 = vrot.slane %v827, 4
        %v839 = vrot.slane %v829, 4
        %v840 = vsel %vm507, %v830, %v831
        %vm841 = vcmask 949248
        %v842 = vsel %vm841, %v811, %v840
        %v843 = vsel %vm507, %v831, %v832
        %v844 = vsel %vm841, %v813, %v843
        %v845 = vsel %vm507, %v832, %v833
        %v846 = vsel %vm841, %v815, %v845
        %v847 = vsel %vm507, %v833, %v834
        %v848 = vsel %vm841, %v817, %v847
        %v849 = vsel %vm507, %v835, %v836
        %v850 = vsel %vm841, %v821, %v849
        %v851 = vsel %vm507, %v836, %v837
        %v852 = vsel %vm841, %v823, %v851
        %v853 = vsel %vm507, %v837, %v838
        %v854 = vsel %vm841, %v825, %v853
        %v855 = vsel %vm507, %v838, %v839
        %v856 = vsel %vm841, %v827, %v855
        %865 = vst [vmem:[#allocation3 + $0x140] sm:$0xff] %v842
        %866 = vst [vmem:[#allocation3 + $0x148] sm:$0xff] %v844
        %867 = vst [vmem:[#allocation3 + $0x150] sm:$0xff] %v846
        %868 = vst [vmem:[#allocation3 + $0x158] sm:$0xff] %v848
        %869 = vst [vmem:[#allocation3 + $0x160] sm:$0xff] %v850
        %870 = vst [vmem:[#allocation3 + $0x168] sm:$0xff] %v852
        %871 = vst [vmem:[#allocation3 + $0x170] sm:$0xff] %v854
        %872 = vst [vmem:[#allocation3 + $0x178] sm:$0xff] %v856
        %v873 = vld [vmem:[#allocation2] sm:$0xff]
        %v874 = vld [vmem:[#allocation2 + $0x8] sm:$0xff]
        %v875 = vld [vmem:[#allocation2 + $0x10] sm:$0xff]
        %v876 = vld [vmem:[#allocation2 + $0x18] sm:$0xff]
        %v877 = vld [vmem:[#allocation2 + $0x20] sm:$0xf]
        %v878 = vld [vmem:[#allocation2 + $0x28] sm:$0xff]
        %v879 = vld [vmem:[#allocation2 + $0x30] sm:$0xff]
        %v880 = vld [vmem:[#allocation2 + $0x38] sm:$0xff]
        %v881 = vld [vmem:[#allocation2 + $0x40] sm:$0xff]
        %v882 = vld [vmem:[#allocation2 + $0x48] sm:$0xf]
        %893 = vrot.lane.b32.xlu0 %v873, 108
        %v894 = vpop.permute.xlu0 %893
        %895 = vrot.lane.b32.xlu0 %v874, 108
        %v896 = vpop.permute.xlu0 %895
        %897 = vrot.lane.b32.xlu0 %v875, 108
        %v898 = vpop.permute.xlu0 %897
        %899 = vrot.lane.b32.xlu0 %v876, 108
        %v900 = vpop.permute.xlu0 %899
        %901 = vrot.lane.b32.xlu0 %v877, 108
        %v902 = vpop.permute.xlu0 %901
        %903 = vrot.lane.b32.xlu0 %v878, 108
        %v904 = vpop.permute.xlu0 %903
        %905 = vrot.lane.b32.xlu0 %v879, 108
        %v906 = vpop.permute.xlu0 %905
        %907 = vrot.lane.b32.xlu0 %v880, 108
        %v908 = vpop.permute.xlu0 %907
        %909 = vrot.lane.b32.xlu0 %v881, 108
        %v910 = vpop.permute.xlu0 %909
        %911 = vrot.lane.b32.xlu0 %v882, 108
        %v912 = vpop.permute.xlu0 %911
        %v913 = vrot.slane %v894, 4
        %v914 = vrot.slane %v896, 4
        %v915 = vrot.slane %v898, 4
        %v916 = vrot.slane %v900, 4
        %v917 = vrot.slane %v902, 4
        %v918 = vrot.slane %v904, 4
        %v919 = vrot.slane %v906, 4
        %v920 = vrot.slane %v908, 4
        %v921 = vrot.slane %v910, 4
        %v922 = vrot.slane %v912, 4
        %v923 = vsel %vm507, %v913, %v914
        %vm924 = vcmask 883712
        %v925 = vsel %vm924, %v894, %v923
        %v926 = vsel %vm507, %v914, %v915
        %v927 = vsel %vm924, %v896, %v926
        %v928 = vsel %vm507, %v915, %v916
        %v929 = vsel %vm924, %v898, %v928
        %v930 = vsel %vm507, %v916, %v917
        %v931 = vsel %vm924, %v900, %v930
        %v932 = vsel %vm507, %v918, %v919
        %v933 = vsel %vm924, %v904, %v932
        %v934 = vsel %vm507, %v919, %v920
        %v935 = vsel %vm924, %v906, %v934
        %v936 = vsel %vm507, %v920, %v921
        %v937 = vsel %vm924, %v908, %v936
        %v938 = vsel %vm507, %v921, %v922
        %v939 = vsel %vm924, %v910, %v938
        %948 = vst [vmem:[#allocation3 + $0x180] sm:$0xff] %v925
        %949 = vst [vmem:[#allocation3 + $0x188] sm:$0xff] %v927
        %950 = vst [vmem:[#allocation3 + $0x190] sm:$0xff] %v929
        %951 = vst [vmem:[#allocation3 + $0x198] sm:$0xff] %v931
        %952 = vst [vmem:[#allocation3 + $0x1a0] sm:$0xff] %v933
        %953 = vst [vmem:[#allocation3 + $0x1a8] sm:$0xff] %v935
        %954 = vst [vmem:[#allocation3 + $0x1b0] sm:$0xff] %v937
        %955 = vst [vmem:[#allocation3 + $0x1b8] sm:$0xff] %v939
        %v956 = vld [vmem:[#allocation2] sm:$0xff]
        %v957 = vld [vmem:[#allocation2 + $0x8] sm:$0xff]
        %v958 = vld [vmem:[#allocation2 + $0x10] sm:$0xff]
        %v959 = vld [vmem:[#allocation2 + $0x18] sm:$0xff]
        %v960 = vld [vmem:[#allocation2 + $0x20] sm:$0xf]
        %v961 = vld [vmem:[#allocation2 + $0x28] sm:$0xff]
        %v962 = vld [vmem:[#allocation2 + $0x30] sm:$0xff]
        %v963 = vld [vmem:[#allocation2 + $0x38] sm:$0xff]
        %v964 = vld [vmem:[#allocation2 + $0x40] sm:$0xff]
        %v965 = vld [vmem:[#allocation2 + $0x48] sm:$0xf]
        %976 = vrot.lane.b32.xlu0 %v956, 107
        %v977 = vpop.permute.xlu0 %976
        %978 = vrot.lane.b32.xlu0 %v957, 107
        %v979 = vpop.permute.xlu0 %978
        %980 = vrot.lane.b32.xlu0 %v958, 107
        %v981 = vpop.permute.xlu0 %980
        %982 = vrot.lane.b32.xlu0 %v959, 107
        %v983 = vpop.permute.xlu0 %982
        %984 = vrot.lane.b32.xlu0 %v960, 107
        %v985 = vpop.permute.xlu0 %984
        %986 = vrot.lane.b32.xlu0 %v961, 107
        %v987 = vpop.permute.xlu0 %986
        %988 = vrot.lane.b32.xlu0 %v962, 107
        %v989 = vpop.permute.xlu0 %988
        %990 = vrot.lane.b32.xlu0 %v963, 107
        %v991 = vpop.permute.xlu0 %990
        %992 = vrot.lane.b32.xlu0 %v964, 107
        %v993 = vpop.permute.xlu0 %992
        %994 = vrot.lane.b32.xlu0 %v965, 107
        %v995 = vpop.permute.xlu0 %994
        %v996 = vrot.slane %v977, 4
        %v997 = vrot.slane %v979, 4
        %v998 = vrot.slane %v981, 4
        %v999 = vrot.slane %v983, 4
        %v1000 = vrot.slane %v985, 4
        %v1001 = vrot.slane %v987, 4
        %v1002 = vrot.slane %v989, 4
        %v1003 = vrot.slane %v991, 4
        %v1004 = vrot.slane %v993, 4
        %v1005 = vrot.slane %v995, 4
        %v1006 = vsel %vm507, %v996, %v997
        %vm1007 = vcmask 875520
        %v1008 = vsel %vm1007, %v977, %v1006
        %v1009 = vsel %vm507, %v997, %v998
        %v1010 = vsel %vm1007, %v979, %v1009
        %v1011 = vsel %vm507, %v998, %v999
        %v1012 = vsel %vm1007, %v981, %v1011
        %v1013 = vsel %vm507, %v999, %v1000
        %v1014 = vsel %vm1007, %v983, %v1013
        %v1015 = vsel %vm507, %v1001, %v1002
        %v1016 = vsel %vm1007, %v987, %v1015
        %v1017 = vsel %vm507, %v1002, %v1003
        %v1018 = vsel %vm1007, %v989, %v1017
        %v1019 = vsel %vm507, %v1003, %v1004
        %v1020 = vsel %vm1007, %v991, %v1019
        %v1021 = vsel %vm507, %v1004, %v1005
        %v1022 = vsel %vm1007, %v993, %v1021
        %1031 = vst [vmem:[#allocation3 + $0x1c0] sm:$0xff] %v1008
        %1032 = vst [vmem:[#allocation3 + $0x1c8] sm:$0xff] %v1010
        %1033 = vst [vmem:[#allocation3 + $0x1d0] sm:$0xff] %v1012
        %1034 = vst [vmem:[#allocation3 + $0x1d8] sm:$0xff] %v1014
        %1035 = vst [vmem:[#allocation3 + $0x1e0] sm:$0xff] %v1016
        %1036 = vst [vmem:[#allocation3 + $0x1e8] sm:$0xff] %v1018
        %1037 = vst [vmem:[#allocation3 + $0x1f0] sm:$0xff] %v1020
        %1038 = vst [vmem:[#allocation3 + $0x1f8] sm:$0xff] %v1022
        %v1039 = vld [vmem:[#allocation2] sm:$0xff]
        %v1040 = vld [vmem:[#allocation2 + $0x8] sm:$0xff]
        %v1041 = vld [vmem:[#allocation2 + $0x10] sm:$0xff]
        %v1042 = vld [vmem:[#allocation2 + $0x18] sm:$0xff]
        %v1043 = vld [vmem:[#allocation2 + $0x20] sm:$0xf]
        %v1044 = vld [vmem:[#allocation2 + $0x28] sm:$0xff]
        %v1045 = vld [vmem:[#allocation2 + $0x30] sm:$0xff]
        %v1046 = vld [vmem:[#allocation2 + $0x38] sm:$0xff]
        %v1047 = vld [vmem:[#allocation2 + $0x40] sm:$0xff]
        %v1048 = vld [vmem:[#allocation2 + $0x48] sm:$0xf]
        %1059 = vrot.lane.b32.xlu0 %v1039, 106
        %v1060 = vpop.permute.xlu0 %1059
        %1061 = vrot.lane.b32.xlu0 %v1040, 106
        %v1062 = vpop.permute.xlu0 %1061
        %1063 = vrot.lane.b32.xlu0 %v1041, 106
        %v1064 = vpop.permute.xlu0 %1063
        %1065 = vrot.lane.b32.xlu0 %v1042, 106
        %v1066 = vpop.permute.xlu0 %1065
        %1067 = vrot.lane.b32.xlu0 %v1043, 106
        %v1068 = vpop.permute.xlu0 %1067
        %1069 = vrot.lane.b32.xlu0 %v1044, 106
        %v1070 = vpop.permute.xlu0 %1069
        %1071 = vrot.lane.b32.xlu0 %v1045, 106
        %v1072 = vpop.permute.xlu0 %1071
        %1073 = vrot.lane.b32.xlu0 %v1046, 106
        %v1074 = vpop.permute.xlu0 %1073
        %1075 = vrot.lane.b32.xlu0 %v1047, 106
        %v1076 = vpop.permute.xlu0 %1075
        %1077 = vrot.lane.b32.xlu0 %v1048, 106
        %v1078 = vpop.permute.xlu0 %1077
        %v1079 = vrot.slane %v1060, 4
        %v1080 = vrot.slane %v1062, 4
        %v1081 = vrot.slane %v1064, 4
        %v1082 = vrot.slane %v1066, 4
        %v1083 = vrot.slane %v1068, 4
        %v1084 = vrot.slane %v1070, 4
        %v1085 = vrot.slane %v1072, 4
        %v1086 = vrot.slane %v1074, 4
        %v1087 = vrot.slane %v1076, 4
        %v1088 = vrot.slane %v1078, 4
        %v1089 = vsel %vm507, %v1079, %v1080
        %vm1090 = vcmask 867328
        %v1091 = vsel %vm1090, %v1060, %v1089
        %v1092 = vsel %vm507, %v1080, %v1081
        %v1093 = vsel %vm1090, %v1062, %v1092
        %v1094 = vsel %vm507, %v1081, %v1082
        %v1095 = vsel %vm1090, %v1064, %v1094
        %v1096 = vsel %vm507, %v1082, %v1083
        %v1097 = vsel %vm1090, %v1066, %v1096
        %v1098 = vsel %vm507, %v1084, %v1085
        %v1099 = vsel %vm1090, %v1070, %v1098
        %v1100 = vsel %vm507, %v1085, %v1086
        %v1101 = vsel %vm1090, %v1072, %v1100
        %v1102 = vsel %vm507, %v1086, %v1087
        %v1103 = vsel %vm1090, %v1074, %v1102
        %v1104 = vsel %vm507, %v1087, %v1088
        %v1105 = vsel %vm1090, %v1076, %v1104
        %1114 = vst [vmem:[#allocation3 + $0x200] sm:$0xff] %v1091
        %1115 = vst [vmem:[#allocation3 + $0x208] sm:$0xff] %v1093
        %1116 = vst [vmem:[#allocation3 + $0x210] sm:$0xff] %v1095
        %1117 = vst [vmem:[#allocation3 + $0x218] sm:$0xff] %v1097
        %1118 = vst [vmem:[#allocation3 + $0x220] sm:$0xff] %v1099
        %1119 = vst [vmem:[#allocation3 + $0x228] sm:$0xff] %v1101
        %1120 = vst [vmem:[#allocation3 + $0x230] sm:$0xff] %v1103
        %1121 = vst [vmem:[#allocation3 + $0x238] sm:$0xff] %v1105
        %v1122 = vld [vmem:[#allocation2] sm:$0xff]
        %v1123 = vld [vmem:[#allocation2 + $0x8] sm:$0xff]
        %v1124 = vld [vmem:[#allocation2 + $0x10] sm:$0xff]
        %v1125 = vld [vmem:[#allocation2 + $0x18] sm:$0xff]
        %v1126 = vld [vmem:[#allocation2 + $0x20] sm:$0xf]
        %v1127 = vld [vmem:[#allocation2 + $0x28] sm:$0xff]
        %v1128 = vld [vmem:[#allocation2 + $0x30] sm:$0xff]
        %v1129 = vld [vmem:[#allocation2 + $0x38] sm:$0xff]
        %v1130 = vld [vmem:[#allocation2 + $0x40] sm:$0xff]
        %v1131 = vld [vmem:[#allocation2 + $0x48] sm:$0xf]
        %1142 = vrot.lane.b32.xlu0 %v1122, 28
        %v1143 = vpop.permute.xlu0 %1142
        %1144 = vrot.lane.b32.xlu0 %v1123, 28
        %v1145 = vpop.permute.xlu0 %1144
        %1146 = vrot.lane.b32.xlu0 %v1124, 28
        %v1147 = vpop.permute.xlu0 %1146
        %1148 = vrot.lane.b32.xlu0 %v1125, 28
        %v1149 = vpop.permute.xlu0 %1148
        %1150 = vrot.lane.b32.xlu0 %v1126, 28
        %v1151 = vpop.permute.xlu0 %1150
        %1152 = vrot.lane.b32.xlu0 %v1127, 28
        %v1153 = vpop.permute.xlu0 %1152
        %1154 = vrot.lane.b32.xlu0 %v1128, 28
        %v1155 = vpop.permute.xlu0 %1154
        %1156 = vrot.lane.b32.xlu0 %v1129, 28
        %v1157 = vpop.permute.xlu0 %1156
        %1158 = vrot.lane.b32.xlu0 %v1130, 28
        %v1159 = vpop.permute.xlu0 %1158
        %1160 = vrot.lane.b32.xlu0 %v1131, 28
        %v1161 = vpop.permute.xlu0 %1160
        %v1162 = vrot.slane %v1143, 4
        %v1163 = vrot.slane %v1145, 4
        %v1164 = vrot.slane %v1147, 4
        %v1165 = vrot.slane %v1149, 4
        %v1166 = vrot.slane %v1151, 4
        %v1167 = vrot.slane %v1153, 4
        %v1168 = vrot.slane %v1155, 4
        %v1169 = vrot.slane %v1157, 4
        %v1170 = vrot.slane %v1159, 4
        %v1171 = vrot.slane %v1161, 4
        %v1172 = vsel %vm507, %v1162, %v1163
        %vm1173 = vcmask 228352
        %v1174 = vsel %vm1173, %v1143, %v1172
        %v1175 = vsel %vm507, %v1163, %v1164
        %v1176 = vsel %vm1173, %v1145, %v1175
        %v1177 = vsel %vm507, %v1164, %v1165
        %v1178 = vsel %vm1173, %v1147, %v1177
        %v1179 = vsel %vm507, %v1165, %v1166
        %v1180 = vsel %vm1173, %v1149, %v1179
        %v1181 = vsel %vm507, %v1167, %v1168
        %v1182 = vsel %vm1173, %v1153, %v1181
        %v1183 = vsel %vm507, %v1168, %v1169
        %v1184 = vsel %vm1173, %v1155, %v1183
        %v1185 = vsel %vm507, %v1169, %v1170
        %v1186 = vsel %vm1173, %v1157, %v1185
        %v1187 = vsel %vm507, %v1170, %v1171
        %v1188 = vsel %vm1173, %v1159, %v1187
        %1197 = vst [vmem:[#allocation3 + $0x240] sm:$0xff] %v1174
        %1198 = vst [vmem:[#allocation3 + $0x248] sm:$0xff] %v1176
        %1199 = vst [vmem:[#allocation3 + $0x250] sm:$0xff] %v1178
        %1200 = vst [vmem:[#allocation3 + $0x258] sm:$0xff] %v1180
        %1201 = vst [vmem:[#allocation3 + $0x260] sm:$0xff] %v1182
        %1202 = vst [vmem:[#allocation3 + $0x268] sm:$0xff] %v1184
        %1203 = vst [vmem:[#allocation3 + $0x270] sm:$0xff] %v1186
        %1204 = vst [vmem:[#allocation3 + $0x278] sm:$0xff] %v1188
        %v1205 = vld [vmem:[#allocation2] sm:$0xff]
        %v1206 = vld [vmem:[#allocation2 + $0x8] sm:$0xff]
        %v1207 = vld [vmem:[#allocation2 + $0x10] sm:$0xff]
        %v1208 = vld [vmem:[#allocation2 + $0x18] sm:$0xff]
        %v1209 = vld [vmem:[#allocation2 + $0x20] sm:$0xf]
        %v1210 = vld [vmem:[#allocation2 + $0x28] sm:$0xff]
        %v1211 = vld [vmem:[#allocation2 + $0x30] sm:$0xff]
        %v1212 = vld [vmem:[#allocation2 + $0x38] sm:$0xff]
        %v1213 = vld [vmem:[#allocation2 + $0x40] sm:$0xff]
        %v1214 = vld [vmem:[#allocation2 + $0x48] sm:$0xf]
        %1225 = vrot.lane.b32.xlu0 %v1205, 27
        %v1226 = vpop.permute.xlu0 %1225
        %1227 = vrot.lane.b32.xlu0 %v1206, 27
        %v1228 = vpop.permute.xlu0 %1227
        %1229 = vrot.lane.b32.xlu0 %v1207, 27
        %v1230 = vpop.permute.xlu0 %1229
        %1231 = vrot.lane.b32.xlu0 %v1208, 27
        %v1232 = vpop.permute.xlu0 %1231
        %1233 = vrot.lane.b32.xlu0 %v1209, 27
        %v1234 = vpop.permute.xlu0 %1233
        %1235 = vrot.lane.b32.xlu0 %v1210, 27
        %v1236 = vpop.permute.xlu0 %1235
        %1237 = vrot.lane.b32.xlu0 %v1211, 27
        %v1238 = vpop.permute.xlu0 %1237
        %1239 = vrot.lane.b32.xlu0 %v1212, 27
        %v1240 = vpop.permute.xlu0 %1239
        %1241 = vrot.lane.b32.xlu0 %v1213, 27
        %v1242 = vpop.permute.xlu0 %1241
        %1243 = vrot.lane.b32.xlu0 %v1214, 27
        %v1244 = vpop.permute.xlu0 %1243
        %v1245 = vrot.slane %v1226, 4
        %v1246 = vrot.slane %v1228, 4
        %v1247 = vrot.slane %v1230, 4
        %v1248 = vrot.slane %v1232, 4
        %v1249 = vrot.slane %v1234, 4
        %v1250 = vrot.slane %v1236, 4
        %v1251 = vrot.slane %v1238, 4
        %v1252 = vrot.slane %v1240, 4
        %v1253 = vrot.slane %v1242, 4
        %v1254 = vrot.slane %v1244, 4
        %v1255 = vsel %vm507, %v1245, %v1246
        %vm1256 = vcmask 220160
        %v1257 = vsel %vm1256, %v1226, %v1255
        %v1258 = vsel %vm507, %v1246, %v1247
        %v1259 = vsel %vm1256, %v1228, %v1258
        %v1260 = vsel %vm507, %v1247, %v1248
        %v1261 = vsel %vm1256, %v1230, %v1260
        %v1262 = vsel %vm507, %v1248, %v1249
        %v1263 = vsel %vm1256, %v1232, %v1262
        %v1264 = vsel %vm507, %v1250, %v1251
        %v1265 = vsel %vm1256, %v1236, %v1264
        %v1266 = vsel %vm507, %v1251, %v1252
        %v1267 = vsel %vm1256, %v1238, %v1266
        %v1268 = vsel %vm507, %v1252, %v1253
        %v1269 = vsel %vm1256, %v1240, %v1268
        %v1270 = vsel %vm507, %v1253, %v1254
        %v1271 = vsel %vm1256, %v1242, %v1270
        %1280 = vst [vmem:[#allocation3 + $0x280] sm:$0xff] %v1257
        %1281 = vst [vmem:[#allocation3 + $0x288] sm:$0xff] %v1259
        %1282 = vst [vmem:[#allocation3 + $0x290] sm:$0xff] %v1261
        %1283 = vst [vmem:[#allocation3 + $0x298] sm:$0xff] %v1263
        %1284 = vst [vmem:[#allocation3 + $0x2a0] sm:$0xff] %v1265
        %1285 = vst [vmem:[#allocation3 + $0x2a8] sm:$0xff] %v1267
        %1286 = vst [vmem:[#allocation3 + $0x2b0] sm:$0xff] %v1269
        %1287 = vst [vmem:[#allocation3 + $0x2b8] sm:$0xff] %v1271
        %v1288 = vld [vmem:[#allocation2] sm:$0xff]
        %v1289 = vld [vmem:[#allocation2 + $0x8] sm:$0xff]
        %v1290 = vld [vmem:[#allocation2 + $0x10] sm:$0xff]
        %v1291 = vld [vmem:[#allocation2 + $0x18] sm:$0xff]
        %v1292 = vld [vmem:[#allocation2 + $0x20] sm:$0xf]
        %v1293 = vld [vmem:[#allocation2 + $0x28] sm:$0xff]
        %v1294 = vld [vmem:[#allocation2 + $0x30] sm:$0xff]
        %v1295 = vld [vmem:[#allocation2 + $0x38] sm:$0xff]
        %v1296 = vld [vmem:[#allocation2 + $0x40] sm:$0xff]
        %v1297 = vld [vmem:[#allocation2 + $0x48] sm:$0xf]
        %1308 = vrot.lane.b32.xlu0 %v1288, 26
        %v1309 = vpop.permute.xlu0 %1308
        %1310 = vrot.lane.b32.xlu0 %v1289, 26
        %v1311 = vpop.permute.xlu0 %1310
        %1312 = vrot.lane.b32.xlu0 %v1290, 26
        %v1313 = vpop.permute.xlu0 %1312
        %1314 = vrot.lane.b32.xlu0 %v1291, 26
        %v1315 = vpop.permute.xlu0 %1314
        %1316 = vrot.lane.b32.xlu0 %v1292, 26
        %v1317 = vpop.permute.xlu0 %1316
        %1318 = vrot.lane.b32.xlu0 %v1293, 26
        %v1319 = vpop.permute.xlu0 %1318
        %1320 = vrot.lane.b32.xlu0 %v1294, 26
        %v1321 = vpop.permute.xlu0 %1320
        %1322 = vrot.lane.b32.xlu0 %v1295, 26
        %v1323 = vpop.permute.xlu0 %1322
        %1324 = vrot.lane.b32.xlu0 %v1296, 26
        %v1325 = vpop.permute.xlu0 %1324
        %1326 = vrot.lane.b32.xlu0 %v1297, 26
        %v1327 = vpop.permute.xlu0 %1326
        %v1328 = vrot.slane %v1309, 4
        %v1329 = vrot.slane %v1311, 4
        %v1330 = vrot.slane %v1313, 4
        %v1331 = vrot.slane %v1315, 4
        %v1332 = vrot.slane %v1317, 4
        %v1333 = vrot.slane %v1319, 4
        %v1334 = vrot.slane %v1321, 4
        %v1335 = vrot.slane %v1323, 4
        %v1336 = vrot.slane %v1325, 4
        %v1337 = vrot.slane %v1327, 4
        %v1338 = vsel %vm507, %v1328, %v1329
        %vm1339 = vcmask 211968
        %v1340 = vsel %vm1339, %v1309, %v1338
        %v1341 = vsel %vm507, %v1329, %v1330
        %v1342 = vsel %vm1339, %v1311, %v1341
        %v1343 = vsel %vm507, %v1330, %v1331
        %v1344 = vsel %vm1339, %v1313, %v1343
        %v1345 = vsel %vm507, %v1331, %v1332
        %v1346 = vsel %vm1339, %v1315, %v1345
        %v1347 = vsel %vm507, %v1333, %v1334
        %v1348 = vsel %vm1339, %v1319, %v1347
        %v1349 = vsel %vm507, %v1334, %v1335
        %v1350 = vsel %vm1339, %v1321, %v1349
        %v1351 = vsel %vm507, %v1335, %v1336
        %v1352 = vsel %vm1339, %v1323, %v1351
        %v1353 = vsel %vm507, %v1336, %v1337
        %v1354 = vsel %vm1339, %v1325, %v1353
        %1363 = vst [vmem:[#allocation3 + $0x2c0] sm:$0xff] %v1340
        %1364 = vst [vmem:[#allocation3 + $0x2c8] sm:$0xff] %v1342
        %1365 = vst [vmem:[#allocation3 + $0x2d0] sm:$0xff] %v1344
        %1366 = vst [vmem:[#allocation3 + $0x2d8] sm:$0xff] %v1346
        %1367 = vst [vmem:[#allocation3 + $0x2e0] sm:$0xff] %v1348
        %1368 = vst [vmem:[#allocation3 + $0x2e8] sm:$0xff] %v1350
        %1369 = vst [vmem:[#allocation3 + $0x2f0] sm:$0xff] %v1352
        %1370 = vst [vmem:[#allocation3 + $0x2f8] sm:$0xff] %v1354
        %v1371 = vld [vmem:[#allocation2] sm:$0xff]
        %v1372 = vld [vmem:[#allocation2 + $0x8] sm:$0xff]
        %v1373 = vld [vmem:[#allocation2 + $0x10] sm:$0xff]
        %v1374 = vld [vmem:[#allocation2 + $0x18] sm:$0xff]
        %v1375 = vld [vmem:[#allocation2 + $0x20] sm:$0xf]
        %v1376 = vld [vmem:[#allocation2 + $0x28] sm:$0xff]
        %v1377 = vld [vmem:[#allocation2 + $0x30] sm:$0xff]
        %v1378 = vld [vmem:[#allocation2 + $0x38] sm:$0xff]
        %v1379 = vld [vmem:[#allocation2 + $0x40] sm:$0xff]
        %v1380 = vld [vmem:[#allocation2 + $0x48] sm:$0xf]
        %1391 = vrot.lane.b32.xlu0 %v1371, 18
        %v1392 = vpop.permute.xlu0 %1391
        %1393 = vrot.lane.b32.xlu0 %v1372, 18
        %v1394 = vpop.permute.xlu0 %1393
        %1395 = vrot.lane.b32.xlu0 %v1373, 18
        %v1396 = vpop.permute.xlu0 %1395
        %1397 = vrot.lane.b32.xlu0 %v1374, 18
        %v1398 = vpop.permute.xlu0 %1397
        %1399 = vrot.lane.b32.xlu0 %v1375, 18
        %v1400 = vpop.permute.xlu0 %1399
        %1401 = vrot.lane.b32.xlu0 %v1376, 18
        %v1402 = vpop.permute.xlu0 %1401
        %1403 = vrot.lane.b32.xlu0 %v1377, 18
        %v1404 = vpop.permute.xlu0 %1403
        %1405 = vrot.lane.b32.xlu0 %v1378, 18
        %v1406 = vpop.permute.xlu0 %1405
        %1407 = vrot.lane.b32.xlu0 %v1379, 18
        %v1408 = vpop.permute.xlu0 %1407
        %1409 = vrot.lane.b32.xlu0 %v1380, 18
        %v1410 = vpop.permute.xlu0 %1409
        %v1411 = vrot.slane %v1392, 4
        %v1412 = vrot.slane %v1394, 4
        %v1413 = vrot.slane %v1396, 4
        %v1414 = vrot.slane %v1398, 4
        %v1415 = vrot.slane %v1400, 4
        %v1416 = vrot.slane %v1402, 4
        %v1417 = vrot.slane %v1404, 4
        %v1418 = vrot.slane %v1406, 4
        %v1419 = vrot.slane %v1408, 4
        %v1420 = vrot.slane %v1410, 4
        %v1421 = vsel %vm507, %v1411, %v1412
        %vm1422 = vcmask 146432
        %v1423 = vsel %vm1422, %v1392, %v1421
        %v1424 = vsel %vm507, %v1412, %v1413
        %v1425 = vsel %vm1422, %v1394, %v1424
        %v1426 = vsel %vm507, %v1413, %v1414
        %v1427 = vsel %vm1422, %v1396, %v1426
        %v1428 = vsel %vm507, %v1414, %v1415
        %v1429 = vsel %vm1422, %v1398, %v1428
        %v1430 = vsel %vm507, %v1416, %v1417
        %v1431 = vsel %vm1422, %v1402, %v1430
        %v1432 = vsel %vm507, %v1417, %v1418
        %v1433 = vsel %vm1422, %v1404, %v1432
        %v1434 = vsel %vm507, %v1418, %v1419
        %v1435 = vsel %vm1422, %v1406, %v1434
        %v1436 = vsel %vm507, %v1419, %v1420
        %v1437 = vsel %vm1422, %v1408, %v1436
        %1446 = vst [vmem:[#allocation3 + $0x300] sm:$0xff] %v1423
        %1447 = vst [vmem:[#allocation3 + $0x308] sm:$0xff] %v1425
        %1448 = vst [vmem:[#allocation3 + $0x310] sm:$0xff] %v1427
        %1449 = vst [vmem:[#allocation3 + $0x318] sm:$0xff] %v1429
        %1450 = vst [vmem:[#allocation3 + $0x320] sm:$0xff] %v1431
        %1451 = vst [vmem:[#allocation3 + $0x328] sm:$0xff] %v1433
        %1452 = vst [vmem:[#allocation3 + $0x330] sm:$0xff] %v1435
        %1453 = vst [vmem:[#allocation3 + $0x338] sm:$0xff] %v1437
        %v1454 = vld [vmem:[#allocation2] sm:$0xff]
        %v1455 = vld [vmem:[#allocation2 + $0x8] sm:$0xff]
        %v1456 = vld [vmem:[#allocation2 + $0x10] sm:$0xff]
        %v1457 = vld [vmem:[#allocation2 + $0x18] sm:$0xff]
        %v1458 = vld [vmem:[#allocation2 + $0x20] sm:$0xf]
        %v1459 = vld [vmem:[#allocation2 + $0x28] sm:$0xff]
        %v1460 = vld [vmem:[#allocation2 + $0x30] sm:$0xff]
        %v1461 = vld [vmem:[#allocation2 + $0x38] sm:$0xff]
        %v1462 = vld [vmem:[#allocation2 + $0x40] sm:$0xff]
        %v1463 = vld [vmem:[#allocation2 + $0x48] sm:$0xf]
        %1474 = vrot.lane.b32.xlu0 %v1454, 17
        %v1475 = vpop.permute.xlu0 %1474
        %1476 = vrot.lane.b32.xlu0 %v1455, 17
        %v1477 = vpop.permute.xlu0 %1476
        %1478 = vrot.lane.b32.xlu0 %v1456, 17
        %v1479 = vpop.permute.xlu0 %1478
        %1480 = vrot.lane.b32.xlu0 %v1457, 17
        %v1481 = vpop.permute.xlu0 %1480
        %1482 = vrot.lane.b32.xlu0 %v1458, 17
        %v1483 = vpop.permute.xlu0 %1482
        %1484 = vrot.lane.b32.xlu0 %v1459, 17
        %v1485 = vpop.permute.xlu0 %1484
        %1486 = vrot.lane.b32.xlu0 %v1460, 17
        %v1487 = vpop.permute.xlu0 %1486
        %1488 = vrot.lane.b32.xlu0 %v1461, 17
        %v1489 = vpop.permute.xlu0 %1488
        %1490 = vrot.lane.b32.xlu0 %v1462, 17
        %v1491 = vpop.permute.xlu0 %1490
        %1492 = vrot.lane.b32.xlu0 %v1463, 17
        %v1493 = vpop.permute.xlu0 %1492
        %v1494 = vrot.slane %v1475, 4
        %v1495 = vrot.slane %v1477, 4
        %v1496 = vrot.slane %v1479, 4
        %v1497 = vrot.slane %v1481, 4
        %v1498 = vrot.slane %v1483, 4
        %v1499 = vrot.slane %v1485, 4
        %v1500 = vrot.slane %v1487, 4
        %v1501 = vrot.slane %v1489, 4
        %v1502 = vrot.slane %v1491, 4
        %v1503 = vrot.slane %v1493, 4
        %v1504 = vsel %vm507, %v1494, %v1495
        %vm1505 = vcmask 138240
        %v1506 = vsel %vm1505, %v1475, %v1504
        %v1507 = vsel %vm507, %v1495, %v1496
        %v1508 = vsel %vm1505, %v1477, %v1507
        %v1509 = vsel %vm507, %v1496, %v1497
        %v1510 = vsel %vm1505, %v1479, %v1509
        %v1511 = vsel %vm507, %v1497, %v1498
        %v1512 = vsel %vm1505, %v1481, %v1511
        %v1513 = vsel %vm507, %v1499, %v1500
        %v1514 = vsel %vm1505, %v1485, %v1513
        %v1515 = vsel %vm507, %v1500, %v1501
        %v1516 = vsel %vm1505, %v1487, %v1515
        %v1517 = vsel %vm507, %v1501, %v1502
        %v1518 = vsel %vm1505, %v1489, %v1517
        %v1519 = vsel %vm507, %v1502, %v1503
        %v1520 = vsel %vm1505, %v1491, %v1519
        %1529 = vst [vmem:[#allocation3 + $0x340] sm:$0xff] %v1506
        %1530 = vst [vmem:[#allocation3 + $0x348] sm:$0xff] %v1508
        %1531 = vst [vmem:[#allocation3 + $0x350] sm:$0xff] %v1510
        %1532 = vst [vmem:[#allocation3 + $0x358] sm:$0xff] %v1512
        %1533 = vst [vmem:[#allocation3 + $0x360] sm:$0xff] %v1514
        %1534 = vst [vmem:[#allocation3 + $0x368] sm:$0xff] %v1516
        %1535 = vst [vmem:[#allocation3 + $0x370] sm:$0xff] %v1518
        %1536 = vst [vmem:[#allocation3 + $0x378] sm:$0xff] %v1520
        %v1537 = vld [vmem:[#allocation2] sm:$0xff]
        %v1538 = vld [vmem:[#allocation2 + $0x8] sm:$0xff]
        %v1539 = vld [vmem:[#allocation2 + $0x10] sm:$0xff]
        %v1540 = vld [vmem:[#allocation2 + $0x18] sm:$0xff]
        %v1541 = vld [vmem:[#allocation2 + $0x20] sm:$0xf]
        %v1542 = vld [vmem:[#allocation2 + $0x28] sm:$0xff]
        %v1543 = vld [vmem:[#allocation2 + $0x30] sm:$0xff]
        %v1544 = vld [vmem:[#allocation2 + $0x38] sm:$0xff]
        %v1545 = vld [vmem:[#allocation2 + $0x40] sm:$0xff]
        %v1546 = vld [vmem:[#allocation2 + $0x48] sm:$0xf]
        %1557 = vrot.lane.b32.xlu0 %v1537, 16
        %v1558 = vpop.permute.xlu0 %1557
        %1559 = vrot.lane.b32.xlu0 %v1538, 16
        %v1560 = vpop.permute.xlu0 %1559
        %1561 = vrot.lane.b32.xlu0 %v1539, 16
        %v1562 = vpop.permute.xlu0 %1561
        %1563 = vrot.lane.b32.xlu0 %v1540, 16
        %v1564 = vpop.permute.xlu0 %1563
        %1565 = vrot.lane.b32.xlu0 %v1541, 16
        %v1566 = vpop.permute.xlu0 %1565
        %1567 = vrot.lane.b32.xlu0 %v1542, 16
        %v1568 = vpop.permute.xlu0 %1567
        %1569 = vrot.lane.b32.xlu0 %v1543, 16
        %v1570 = vpop.permute.xlu0 %1569
        %1571 = vrot.lane.b32.xlu0 %v1544, 16
        %v1572 = vpop.permute.xlu0 %1571
        %1573 = vrot.lane.b32.xlu0 %v1545, 16
        %v1574 = vpop.permute.xlu0 %1573
        %1575 = vrot.lane.b32.xlu0 %v1546, 16
        %v1576 = vpop.permute.xlu0 %1575
        %v1577 = vrot.slane %v1558, 4
        %v1578 = vrot.slane %v1560, 4
        %v1579 = vrot.slane %v1562, 4
        %v1580 = vrot.slane %v1564, 4
        %v1581 = vrot.slane %v1566, 4
        %v1582 = vrot.slane %v1568, 4
        %v1583 = vrot.slane %v1570, 4
        %v1584 = vrot.slane %v1572, 4
        %v1585 = vrot.slane %v1574, 4
        %v1586 = vrot.slane %v1576, 4
        %v1587 = vsel %vm507, %v1577, %v1578
        %vm1588 = vcmask 130048
        %v1589 = vsel %vm1588, %v1558, %v1587
        %v1590 = vsel %vm507, %v1578, %v1579
        %v1591 = vsel %vm1588, %v1560, %v1590
        %v1592 = vsel %vm507, %v1579, %v1580
        %v1593 = vsel %vm1588, %v1562, %v1592
        %v1594 = vsel %vm507, %v1580, %v1581
        %v1595 = vsel %vm1588, %v1564, %v1594
        %v1596 = vsel %vm507, %v1582, %v1583
        %v1597 = vsel %vm1588, %v1568, %v1596
        %v1598 = vsel %vm507, %v1583, %v1584
        %v1599 = vsel %vm1588, %v1570, %v1598
        %v1600 = vsel %vm507, %v1584, %v1585
        %v1601 = vsel %vm1588, %v1572, %v1600
        %v1602 = vsel %vm507, %v1585, %v1586
        %v1603 = vsel %vm1588, %v1574, %v1602
        %1612 = vst [vmem:[#allocation3 + $0x380] sm:$0xff] %v1589
        %1613 = vst [vmem:[#allocation3 + $0x388] sm:$0xff] %v1591
        %1614 = vst [vmem:[#allocation3 + $0x390] sm:$0xff] %v1593
        %1615 = vst [vmem:[#allocation3 + $0x398] sm:$0xff] %v1595
        %1616 = vst [vmem:[#allocation3 + $0x3a0] sm:$0xff] %v1597
        %1617 = vst [vmem:[#allocation3 + $0x3a8] sm:$0xff] %v1599
        %1618 = vst [vmem:[#allocation3 + $0x3b0] sm:$0xff] %v1601
        %1619 = vst [vmem:[#allocation3 + $0x3b8] sm:$0xff] %v1603
        %v1620 = vld [vmem:[#allocation2] sm:$0xff]
        %v1621 = vld [vmem:[#allocation2 + $0x8] sm:$0xff]
        %v1622 = vld [vmem:[#allocation2 + $0x10] sm:$0xff]
        %v1623 = vld [vmem:[#allocation2 + $0x18] sm:$0xff]
        %v1624 = vld [vmem:[#allocation2 + $0x20] sm:$0xf]
        %v1625 = vld [vmem:[#allocation2 + $0x28] sm:$0xff]
        %v1626 = vld [vmem:[#allocation2 + $0x30] sm:$0xff]
        %v1627 = vld [vmem:[#allocation2 + $0x38] sm:$0xff]
        %v1628 = vld [vmem:[#allocation2 + $0x40] sm:$0xff]
        %v1629 = vld [vmem:[#allocation2 + $0x48] sm:$0xf]
        %1640 = vrot.lane.b32.xlu0 %v1620, 8
        %v1641 = vpop.permute.xlu0 %1640
        %1642 = vrot.lane.b32.xlu0 %v1621, 8
        %v1643 = vpop.permute.xlu0 %1642
        %1644 = vrot.lane.b32.xlu0 %v1622, 8
        %v1645 = vpop.permute.xlu0 %1644
        %1646 = vrot.lane.b32.xlu0 %v1623, 8
        %v1647 = vpop.permute.xlu0 %1646
        %1648 = vrot.lane.b32.xlu0 %v1624, 8
        %v1649 = vpop.permute.xlu0 %1648
        %1650 = vrot.lane.b32.xlu0 %v1625, 8
        %v1651 = vpop.permute.xlu0 %1650
        %1652 = vrot.lane.b32.xlu0 %v1626, 8
        %v1653 = vpop.permute.xlu0 %1652
        %1654 = vrot.lane.b32.xlu0 %v1627, 8
        %v1655 = vpop.permute.xlu0 %1654
        %1656 = vrot.lane.b32.xlu0 %v1628, 8
        %v1657 = vpop.permute.xlu0 %1656
        %1658 = vrot.lane.b32.xlu0 %v1629, 8
        %v1659 = vpop.permute.xlu0 %1658
        %v1660 = vrot.slane %v1641, 4
        %v1661 = vrot.slane %v1643, 4
        %v1662 = vrot.slane %v1645, 4
        %v1663 = vrot.slane %v1647, 4
        %v1664 = vrot.slane %v1649, 4
        %v1665 = vrot.slane %v1651, 4
        %v1666 = vrot.slane %v1653, 4
        %v1667 = vrot.slane %v1655, 4
        %v1668 = vrot.slane %v1657, 4
        %v1669 = vrot.slane %v1659, 4
        %v1670 = vsel %vm507, %v1660, %v1661
        %vm1671 = vcmask 64512
        %v1672 = vsel %vm1671, %v1641, %v1670
        %v1673 = vsel %vm507, %v1661, %v1662
        %v1674 = vsel %vm1671, %v1643, %v1673
        %v1675 = vsel %vm507, %v1662, %v1663
        %v1676 = vsel %vm1671, %v1645, %v1675
        %v1677 = vsel %vm507, %v1663, %v1664
        %v1678 = vsel %vm1671, %v1647, %v1677
        %v1679 = vsel %vm507, %v1665, %v1666
        %v1680 = vsel %vm1671, %v1651, %v1679
        %v1681 = vsel %vm507, %v1666, %v1667
        %v1682 = vsel %vm1671, %v1653, %v1681
        %v1683 = vsel %vm507, %v1667, %v1668
        %v1684 = vsel %vm1671, %v1655, %v1683
        %v1685 = vsel %vm507, %v1668, %v1669
        %v1686 = vsel %vm1671, %v1657, %v1685
        %1695 = vst [vmem:[#allocation3 + $0x3c0] sm:$0xff] %v1672
        %1696 = vst [vmem:[#allocation3 + $0x3c8] sm:$0xff] %v1674
        %1697 = vst [vmem:[#allocation3 + $0x3d0] sm:$0xff] %v1676
        %1698 = vst [vmem:[#allocation3 + $0x3d8] sm:$0xff] %v1678
        %1699 = vst [vmem:[#allocation3 + $0x3e0] sm:$0xff] %v1680
        %1700 = vst [vmem:[#allocation3 + $0x3e8] sm:$0xff] %v1682
        %1701 = vst [vmem:[#allocation3 + $0x3f0] sm:$0xff] %v1684
        %1702 = vst [vmem:[#allocation3 + $0x3f8] sm:$0xff] %v1686
        %v1703 = vld [vmem:[#allocation2] sm:$0xff]
        %v1704 = vld [vmem:[#allocation2 + $0x8] sm:$0xff]
        %v1705 = vld [vmem:[#allocation2 + $0x10] sm:$0xff]
        %v1706 = vld [vmem:[#allocation2 + $0x18] sm:$0xff]
        %v1707 = vld [vmem:[#allocation2 + $0x20] sm:$0xf]
        %v1708 = vld [vmem:[#allocation2 + $0x28] sm:$0xff]
        %v1709 = vld [vmem:[#allocation2 + $0x30] sm:$0xff]
        %v1710 = vld [vmem:[#allocation2 + $0x38] sm:$0xff]
        %v1711 = vld [vmem:[#allocation2 + $0x40] sm:$0xff]
        %v1712 = vld [vmem:[#allocation2 + $0x48] sm:$0xf]
        %1723 = vrot.lane.b32.xlu0 %v1703, 7
        %v1724 = vpop.permute.xlu0 %1723
        %1725 = vrot.lane.b32.xlu0 %v1704, 7
        %v1726 = vpop.permute.xlu0 %1725
        %1727 = vrot.lane.b32.xlu0 %v1705, 7
        %v1728 = vpop.permute.xlu0 %1727
        %1729 = vrot.lane.b32.xlu0 %v1706, 7
        %v1730 = vpop.permute.xlu0 %1729
        %1731 = vrot.lane.b32.xlu0 %v1707, 7
        %v1732 = vpop.permute.xlu0 %1731
        %1733 = vrot.lane.b32.xlu0 %v1708, 7
        %v1734 = vpop.permute.xlu0 %1733
        %1735 = vrot.lane.b32.xlu0 %v1709, 7
        %v1736 = vpop.permute.xlu0 %1735
        %1737 = vrot.lane.b32.xlu0 %v1710, 7
        %v1738 = vpop.permute.xlu0 %1737
        %1739 = vrot.lane.b32.xlu0 %v1711, 7
        %v1740 = vpop.permute.xlu0 %1739
        %1741 = vrot.lane.b32.xlu0 %v1712, 7
        %v1742 = vpop.permute.xlu0 %1741
        %v1743 = vrot.slane %v1724, 4
        %v1744 = vrot.slane %v1726, 4
        %v1745 = vrot.slane %v1728, 4
        %v1746 = vrot.slane %v1730, 4
        %v1747 = vrot.slane %v1732, 4
        %v1748 = vrot.slane %v1734, 4
        %v1749 = vrot.slane %v1736, 4
        %v1750 = vrot.slane %v1738, 4
        %v1751 = vrot.slane %v1740, 4
        %v1752 = vrot.slane %v1742, 4
        %v1753 = vsel %vm507, %v1743, %v1744
        %vm1754 = vcmask 56320
        %v1755 = vsel %vm1754, %v1724, %v1753
        %v1756 = vsel %vm507, %v1744, %v1745
        %v1757 = vsel %vm1754, %v1726, %v1756
        %v1758 = vsel %vm507, %v1745, %v1746
        %v1759 = vsel %vm1754, %v1728, %v1758
        %v1760 = vsel %vm507, %v1746, %v1747
        %v1761 = vsel %vm1754, %v1730, %v1760
        %v1762 = vsel %vm507, %v1748, %v1749
        %v1763 = vsel %vm1754, %v1734, %v1762
        %v1764 = vsel %vm507, %v1749, %v1750
        %v1765 = vsel %vm1754, %v1736, %v1764
        %v1766 = vsel %vm507, %v1750, %v1751
        %v1767 = vsel %vm1754, %v1738, %v1766
        %v1768 = vsel %vm507, %v1751, %v1752
        %v1769 = vsel %vm1754, %v1740, %v1768
        %1778 = vst [vmem:[#allocation3 + $0x400] sm:$0xff] %v1755
        %1779 = vst [vmem:[#allocation3 + $0x408] sm:$0xff] %v1757
        %1780 = vst [vmem:[#allocation3 + $0x410] sm:$0xff] %v1759
        %1781 = vst [vmem:[#allocation3 + $0x418] sm:$0xff] %v1761
        %1782 = vst [vmem:[#allocation3 + $0x420] sm:$0xff] %v1763
        %1783 = vst [vmem:[#allocation3 + $0x428] sm:$0xff] %v1765
        %1784 = vst [vmem:[#allocation3 + $0x430] sm:$0xff] %v1767
        %1785 = vst [vmem:[#allocation3 + $0x438] sm:$0xff] %v1769
        %v1786 = vld [vmem:[#allocation2] sm:$0xff]
        %v1787 = vld [vmem:[#allocation2 + $0x8] sm:$0xff]
        %v1788 = vld [vmem:[#allocation2 + $0x10] sm:$0xff]
        %v1789 = vld [vmem:[#allocation2 + $0x18] sm:$0xff]
        %v1790 = vld [vmem:[#allocation2 + $0x20] sm:$0xf]
        %v1791 = vld [vmem:[#allocation2 + $0x28] sm:$0xff]
        %v1792 = vld [vmem:[#allocation2 + $0x30] sm:$0xff]
        %v1793 = vld [vmem:[#allocation2 + $0x38] sm:$0xff]
        %v1794 = vld [vmem:[#allocation2 + $0x40] sm:$0xff]
        %v1795 = vld [vmem:[#allocation2 + $0x48] sm:$0xf]
        %1806 = vrot.lane.b32.xlu0 %v1786, 6
        %v1807 = vpop.permute.xlu0 %1806
        %1808 = vrot.lane.b32.xlu0 %v1787, 6
        %v1809 = vpop.permute.xlu0 %1808
        %1810 = vrot.lane.b32.xlu0 %v1788, 6
        %v1811 = vpop.permute.xlu0 %1810
        %1812 = vrot.lane.b32.xlu0 %v1789, 6
        %v1813 = vpop.permute.xlu0 %1812
        %1814 = vrot.lane.b32.xlu0 %v1790, 6
        %v1815 = vpop.permute.xlu0 %1814
        %1816 = vrot.lane.b32.xlu0 %v1791, 6
        %v1817 = vpop.permute.xlu0 %1816
        %1818 = vrot.lane.b32.xlu0 %v1792, 6
        %v1819 = vpop.permute.xlu0 %1818
        %1820 = vrot.lane.b32.xlu0 %v1793, 6
        %v1821 = vpop.permute.xlu0 %1820
        %1822 = vrot.lane.b32.xlu0 %v1794, 6
        %v1823 = vpop.permute.xlu0 %1822
        %1824 = vrot.lane.b32.xlu0 %v1795, 6
        %v1825 = vpop.permute.xlu0 %1824
        %v1826 = vrot.slane %v1807, 4
        %v1827 = vrot.slane %v1809, 4
        %v1828 = vrot.slane %v1811, 4
        %v1829 = vrot.slane %v1813, 4
        %v1830 = vrot.slane %v1815, 4
        %v1831 = vrot.slane %v1817, 4
        %v1832 = vrot.slane %v1819, 4
        %v1833 = vrot.slane %v1821, 4
        %v1834 = vrot.slane %v1823, 4
        %v1835 = vrot.slane %v1825, 4
        %v1836 = vsel %vm507, %v1826, %v1827
        %vm1837 = vcmask 48128
        %v1838 = vsel %vm1837, %v1807, %v1836
        %v1839 = vsel %vm507, %v1827, %v1828
        %v1840 = vsel %vm1837, %v1809, %v1839
        %v1841 = vsel %vm507, %v1828, %v1829
        %v1842 = vsel %vm1837, %v1811, %v1841
        %v1843 = vsel %vm507, %v1829, %v1830
        %v1844 = vsel %vm1837, %v1813, %v1843
        %v1845 = vsel %vm507, %v1831, %v1832
        %v1846 = vsel %vm1837, %v1817, %v1845
        %v1847 = vsel %vm507, %v1832, %v1833
        %v1848 = vsel %vm1837, %v1819, %v1847
        %v1849 = vsel %vm507, %v1833, %v1834
        %v1850 = vsel %vm1837, %v1821, %v1849
        %v1851 = vsel %vm507, %v1834, %v1835
        %v1852 = vsel %vm1837, %v1823, %v1851
        %1861 = vst [vmem:[#allocation3 + $0x440] sm:$0xff] %v1838
        %1862 = vst [vmem:[#allocation3 + $0x448] sm:$0xff] %v1840
        %1863 = vst [vmem:[#allocation3 + $0x450] sm:$0xff] %v1842
        %1864 = vst [vmem:[#allocation3 + $0x458] sm:$0xff] %v1844
        %1865 = vst [vmem:[#allocation3 + $0x460] sm:$0xff] %v1846
        %1866 = vst [vmem:[#allocation3 + $0x468] sm:$0xff] %v1848
        %1867 = vst [vmem:[#allocation3 + $0x470] sm:$0xff] %v1850
        %1868 = vst [vmem:[#allocation3 + $0x478] sm:$0xff] %v1852
        %v1869 = vld [vmem:[#allocation2 + $0x4] sm:$0xff]
        %v1870 = vld [vmem:[#allocation2 + $0xc] sm:$0xff]
        %v1871 = vld [vmem:[#allocation2 + $0x14] sm:$0xff]
        %v1872 = vld [vmem:[#allocation2 + $0x1c] sm:$0xff]
        %v1873 = vld [vmem:[#allocation2 + $0x24] sm:$0xf]
        %v1874 = vld [vmem:[#allocation2 + $0x2c] sm:$0xff]
        %v1875 = vld [vmem:[#allocation2 + $0x34] sm:$0xff]
        %v1876 = vld [vmem:[#allocation2 + $0x3c] sm:$0xff]
        %v1877 = vld [vmem:[#allocation2 + $0x44] sm:$0xff]
        %v1878 = vld [vmem:[#allocation2 + $0x4c] sm:$0xf]
        %1889 = vrot.lane.b32.xlu0 %v1869, 56
        %v1890 = vpop.permute.xlu0 %1889
        %1891 = vrot.lane.b32.xlu0 %v1870, 56
        %v1892 = vpop.permute.xlu0 %1891
        %1893 = vrot.lane.b32.xlu0 %v1871, 56
        %v1894 = vpop.permute.xlu0 %1893
        %1895 = vrot.lane.b32.xlu0 %v1872, 56
        %v1896 = vpop.permute.xlu0 %1895
        %1897 = vrot.lane.b32.xlu0 %v1873, 56
        %v1898 = vpop.permute.xlu0 %1897
        %1899 = vrot.lane.b32.xlu0 %v1874, 56
        %v1900 = vpop.permute.xlu0 %1899
        %1901 = vrot.lane.b32.xlu0 %v1875, 56
        %v1902 = vpop.permute.xlu0 %1901
        %1903 = vrot.lane.b32.xlu0 %v1876, 56
        %v1904 = vpop.permute.xlu0 %1903
        %1905 = vrot.lane.b32.xlu0 %v1877, 56
        %v1906 = vpop.permute.xlu0 %1905
        %1907 = vrot.lane.b32.xlu0 %v1878, 56
        %v1908 = vpop.permute.xlu0 %1907
        %v1909 = vrot.slane %v1890, 4
        %v1910 = vrot.slane %v1892, 4
        %v1911 = vrot.slane %v1894, 4
        %v1912 = vrot.slane %v1896, 4
        %v1913 = vrot.slane %v1898, 4
        %v1914 = vrot.slane %v1900, 4
        %v1915 = vrot.slane %v1902, 4
        %v1916 = vrot.slane %v1904, 4
        %v1917 = vrot.slane %v1906, 4
        %v1918 = vrot.slane %v1908, 4
        %v1919 = vsel %vm507, %v1909, %v1910
        %vm1920 = vcmask 457728
        %v1921 = vsel %vm1920, %v1890, %v1919
        %v1922 = vsel %vm507, %v1910, %v1911
        %v1923 = vsel %vm1920, %v1892, %v1922
        %v1924 = vsel %vm507, %v1911, %v1912
        %v1925 = vsel %vm1920, %v1894, %v1924
        %v1926 = vsel %vm507, %v1912, %v1913
        %v1927 = vsel %vm1920, %v1896, %v1926
        %v1928 = vsel %vm507, %v1914, %v1915
        %v1929 = vsel %vm1920, %v1900, %v1928
        %v1930 = vsel %vm507, %v1915, %v1916
        %v1931 = vsel %vm1920, %v1902, %v1930
        %v1932 = vsel %vm507, %v1916, %v1917
        %v1933 = vsel %vm1920, %v1904, %v1932
        %v1934 = vsel %vm507, %v1917, %v1918
        %v1935 = vsel %vm1920, %v1906, %v1934
        %1944 = vst [vmem:[#allocation3 + $0x480] sm:$0xff] %v1921
        %1945 = vst [vmem:[#allocation3 + $0x488] sm:$0xff] %v1923
        %1946 = vst [vmem:[#allocation3 + $0x490] sm:$0xff] %v1925
        %1947 = vst [vmem:[#allocation3 + $0x498] sm:$0xff] %v1927
        %1948 = vst [vmem:[#allocation3 + $0x4a0] sm:$0xff] %v1929
        %1949 = vst [vmem:[#allocation3 + $0x4a8] sm:$0xff] %v1931
        %1950 = vst [vmem:[#allocation3 + $0x4b0] sm:$0xff] %v1933
        %1951 = vst [vmem:[#allocation3 + $0x4b8] sm:$0xff] %v1935
        %v1952 = vld [vmem:[#allocation2 + $0x4] sm:$0xff]
        %v1953 = vld [vmem:[#allocation2 + $0xc] sm:$0xff]
        %v1954 = vld [vmem:[#allocation2 + $0x14] sm:$0xff]
        %v1955 = vld [vmem:[#allocation2 + $0x1c] sm:$0xff]
        %v1956 = vld [vmem:[#allocation2 + $0x24] sm:$0xf]
        %v1957 = vld [vmem:[#allocation2 + $0x2c] sm:$0xff]
        %v1958 = vld [vmem:[#allocation2 + $0x34] sm:$0xff]
        %v1959 = vld [vmem:[#allocation2 + $0x3c] sm:$0xff]
        %v1960 = vld [vmem:[#allocation2 + $0x44] sm:$0xff]
        %v1961 = vld [vmem:[#allocation2 + $0x4c] sm:$0xf]
        %1972 = vrot.lane.b32.xlu0 %v1952, 55
        %v1973 = vpop.permute.xlu0 %1972
        %1974 = vrot.lane.b32.xlu0 %v1953, 55
        %v1975 = vpop.permute.xlu0 %1974
        %1976 = vrot.lane.b32.xlu0 %v1954, 55
        %v1977 = vpop.permute.xlu0 %1976
        %1978 = vrot.lane.b32.xlu0 %v1955, 55
        %v1979 = vpop.permute.xlu0 %1978
        %1980 = vrot.lane.b32.xlu0 %v1956, 55
        %v1981 = vpop.permute.xlu0 %1980
        %1982 = vrot.lane.b32.xlu0 %v1957, 55
        %v1983 = vpop.permute.xlu0 %1982
        %1984 = vrot.lane.b32.xlu0 %v1958, 55
        %v1985 = vpop.permute.xlu0 %1984
        %1986 = vrot.lane.b32.xlu0 %v1959, 55
        %v1987 = vpop.permute.xlu0 %1986
        %1988 = vrot.lane.b32.xlu0 %v1960, 55
        %v1989 = vpop.permute.xlu0 %1988
        %1990 = vrot.lane.b32.xlu0 %v1961, 55
        %v1991 = vpop.permute.xlu0 %1990
        %v1992 = vrot.slane %v1973, 4
        %v1993 = vrot.slane %v1975, 4
        %v1994 = vrot.slane %v1977, 4
        %v1995 = vrot.slane %v1979, 4
        %v1996 = vrot.slane %v1981, 4
        %v1997 = vrot.slane %v1983, 4
        %v1998 = vrot.slane %v1985, 4
        %v1999 = vrot.slane %v1987, 4
        %v2000 = vrot.slane %v1989, 4
        %v2001 = vrot.slane %v1991, 4
        %v2002 = vsel %vm507, %v1992, %v1993
        %vm2003 = vcmask 449536
        %v2004 = vsel %vm2003, %v1973, %v2002
        %v2005 = vsel %vm507, %v1993, %v1994
        %v2006 = vsel %vm2003, %v1975, %v2005
        %v2007 = vsel %vm507, %v1994, %v1995
        %v2008 = vsel %vm2003, %v1977, %v2007
        %v2009 = vsel %vm507, %v1995, %v1996
        %v2010 = vsel %vm2003, %v1979, %v2009
        %v2011 = vsel %vm507, %v1997, %v1998
        %v2012 = vsel %vm2003, %v1983, %v2011
        %v2013 = vsel %vm507, %v1998, %v1999
        %v2014 = vsel %vm2003, %v1985, %v2013
        %v2015 = vsel %vm507, %v1999, %v2000
        %v2016 = vsel %vm2003, %v1987, %v2015
        %v2017 = vsel %vm507, %v2000, %v2001
        %v2018 = vsel %vm2003, %v1989, %v2017
        %2027 = vst [vmem:[#allocation3 + $0x4c0] sm:$0xff] %v2004
        %2028 = vst [vmem:[#allocation3 + $0x4c8] sm:$0xff] %v2006
        %2029 = vst [vmem:[#allocation3 + $0x4d0] sm:$0xff] %v2008
        %2030 = vst [vmem:[#allocation3 + $0x4d8] sm:$0xff] %v2010
        %2031 = vst [vmem:[#allocation3 + $0x4e0] sm:$0xff] %v2012
        %2032 = vst [vmem:[#allocation3 + $0x4e8] sm:$0xff] %v2014
        %2033 = vst [vmem:[#allocation3 + $0x4f0] sm:$0xff] %v2016
        %2034 = vst [vmem:[#allocation3 + $0x4f8] sm:$0xff] %v2018
        %v2035 = vld [vmem:[#allocation2 + $0x4] sm:$0xff]
        %v2036 = vld [vmem:[#allocation2 + $0xc] sm:$0xff]
        %v2037 = vld [vmem:[#allocation2 + $0x14] sm:$0xff]
        %v2038 = vld [vmem:[#allocation2 + $0x1c] sm:$0xff]
        %v2039 = vld [vmem:[#allocation2 + $0x24] sm:$0xf]
        %v2040 = vld [vmem:[#allocation2 + $0x2c] sm:$0xff]
        %v2041 = vld [vmem:[#allocation2 + $0x34] sm:$0xff]
        %v2042 = vld [vmem:[#allocation2 + $0x3c] sm:$0xff]
        %v2043 = vld [vmem:[#allocation2 + $0x44] sm:$0xff]
        %v2044 = vld [vmem:[#allocation2 + $0x4c] sm:$0xf]
        %2055 = vrot.lane.b32.xlu0 %v2035, 54
        %v2056 = vpop.permute.xlu0 %2055
        %2057 = vrot.lane.b32.xlu0 %v2036, 54
        %v2058 = vpop.permute.xlu0 %2057
        %2059 = vrot.lane.b32.xlu0 %v2037, 54
        %v2060 = vpop.permute.xlu0 %2059
        %2061 = vrot.lane.b32.xlu0 %v2038, 54
        %v2062 = vpop.permute.xlu0 %2061
        %2063 = vrot.lane.b32.xlu0 %v2039, 54
        %v2064 = vpop.permute.xlu0 %2063
        %2065 = vrot.lane.b32.xlu0 %v2040, 54
        %v2066 = vpop.permute.xlu0 %2065
        %2067 = vrot.lane.b32.xlu0 %v2041, 54
        %v2068 = vpop.permute.xlu0 %2067
        %2069 = vrot.lane.b32.xlu0 %v2042, 54
        %v2070 = vpop.permute.xlu0 %2069
        %2071 = vrot.lane.b32.xlu0 %v2043, 54
        %v2072 = vpop.permute.xlu0 %2071
        %2073 = vrot.lane.b32.xlu0 %v2044, 54
        %v2074 = vpop.permute.xlu0 %2073
        %v2075 = vrot.slane %v2056, 4
        %v2076 = vrot.slane %v2058, 4
        %v2077 = vrot.slane %v2060, 4
        %v2078 = vrot.slane %v2062, 4
        %v2079 = vrot.slane %v2064, 4
        %v2080 = vrot.slane %v2066, 4
        %v2081 = vrot.slane %v2068, 4
        %v2082 = vrot.slane %v2070, 4
        %v2083 = vrot.slane %v2072, 4
        %v2084 = vrot.slane %v2074, 4
        %v2085 = vsel %vm507, %v2075, %v2076
        %vm2086 = vcmask 441344
        %v2087 = vsel %vm2086, %v2056, %v2085
        %v2088 = vsel %vm507, %v2076, %v2077
        %v2089 = vsel %vm2086, %v2058, %v2088
        %v2090 = vsel %vm507, %v2077, %v2078
        %v2091 = vsel %vm2086, %v2060, %v2090
        %v2092 = vsel %vm507, %v2078, %v2079
        %v2093 = vsel %vm2086, %v2062, %v2092
        %v2094 = vsel %vm507, %v2080, %v2081
        %v2095 = vsel %vm2086, %v2066, %v2094
        %v2096 = vsel %vm507, %v2081, %v2082
        %v2097 = vsel %vm2086, %v2068, %v2096
        %v2098 = vsel %vm507, %v2082, %v2083
        %v2099 = vsel %vm2086, %v2070, %v2098
        %v2100 = vsel %vm507, %v2083, %v2084
        %v2101 = vsel %vm2086, %v2072, %v2100
        %2110 = vst [vmem:[#allocation3 + $0x500] sm:$0xff] %v2087
        %2111 = vst [vmem:[#allocation3 + $0x508] sm:$0xff] %v2089
        %2112 = vst [vmem:[#allocation3 + $0x510] sm:$0xff] %v2091
        %2113 = vst [vmem:[#allocation3 + $0x518] sm:$0xff] %v2093
        %2114 = vst [vmem:[#allocation3 + $0x520] sm:$0xff] %v2095
        %2115 = vst [vmem:[#allocation3 + $0x528] sm:$0xff] %v2097
        %2116 = vst [vmem:[#allocation3 + $0x530] sm:$0xff] %v2099
        %2117 = vst [vmem:[#allocation3 + $0x538] sm:$0xff] %v2101
        %v2118 = vld [vmem:[#allocation2 + $0x4] sm:$0xff]
        %v2119 = vld [vmem:[#allocation2 + $0xc] sm:$0xff]
        %v2120 = vld [vmem:[#allocation2 + $0x14] sm:$0xff]
        %v2121 = vld [vmem:[#allocation2 + $0x1c] sm:$0xff]
        %v2122 = vld [vmem:[#allocation2 + $0x24] sm:$0xf]
        %v2123 = vld [vmem:[#allocation2 + $0x2c] sm:$0xff]
        %v2124 = vld [vmem:[#allocation2 + $0x34] sm:$0xff]
        %v2125 = vld [vmem:[#allocation2 + $0x3c] sm:$0xff]
        %v2126 = vld [vmem:[#allocation2 + $0x44] sm:$0xff]
        %v2127 = vld [vmem:[#allocation2 + $0x4c] sm:$0xf]
        %2138 = vrot.lane.b32.xlu0 %v2118, 46
        %v2139 = vpop.permute.xlu0 %2138
        %2140 = vrot.lane.b32.xlu0 %v2119, 46
        %v2141 = vpop.permute.xlu0 %2140
        %2142 = vrot.lane.b32.xlu0 %v2120, 46
        %v2143 = vpop.permute.xlu0 %2142
        %2144 = vrot.lane.b32.xlu0 %v2121, 46
        %v2145 = vpop.permute.xlu0 %2144
        %2146 = vrot.lane.b32.xlu0 %v2122, 46
        %v2147 = vpop.permute.xlu0 %2146
        %2148 = vrot.lane.b32.xlu0 %v2123, 46
        %v2149 = vpop.permute.xlu0 %2148
        %2150 = vrot.lane.b32.xlu0 %v2124, 46
        %v2151 = vpop.permute.xlu0 %2150
        %2152 = vrot.lane.b32.xlu0 %v2125, 46
        %v2153 = vpop.permute.xlu0 %2152
        %2154 = vrot.lane.b32.xlu0 %v2126, 46
        %v2155 = vpop.permute.xlu0 %2154
        %2156 = vrot.lane.b32.xlu0 %v2127, 46
        %v2157 = vpop.permute.xlu0 %2156
        %v2158 = vrot.slane %v2139, 4
        %v2159 = vrot.slane %v2141, 4
        %v2160 = vrot.slane %v2143, 4
        %v2161 = vrot.slane %v2145, 4
        %v2162 = vrot.slane %v2147, 4
        %v2163 = vrot.slane %v2149, 4
        %v2164 = vrot.slane %v2151, 4
        %v2165 = vrot.slane %v2153, 4
        %v2166 = vrot.slane %v2155, 4
        %v2167 = vrot.slane %v2157, 4
        %v2168 = vsel %vm507, %v2158, %v2159
        %vm2169 = vcmask 375808
        %v2170 = vsel %vm2169, %v2139, %v2168
        %v2171 = vsel %vm507, %v2159, %v2160
        %v2172 = vsel %vm2169, %v2141, %v2171
        %v2173 = vsel %vm507, %v2160, %v2161
        %v2174 = vsel %vm2169, %v2143, %v2173
        %v2175 = vsel %vm507, %v2161, %v2162
        %v2176 = vsel %vm2169, %v2145, %v2175
        %v2177 = vsel %vm507, %v2163, %v2164
        %v2178 = vsel %vm2169, %v2149, %v2177
        %v2179 = vsel %vm507, %v2164, %v2165
        %v2180 = vsel %vm2169, %v2151, %v2179
        %v2181 = vsel %vm507, %v2165, %v2166
        %v2182 = vsel %vm2169, %v2153, %v2181
        %v2183 = vsel %vm507, %v2166, %v2167
        %v2184 = vsel %vm2169, %v2155, %v2183
        %2193 = vst [vmem:[#allocation3 + $0x540] sm:$0xff] %v2170
        %2194 = vst [vmem:[#allocation3 + $0x548] sm:$0xff] %v2172
        %2195 = vst [vmem:[#allocation3 + $0x550] sm:$0xff] %v2174
        %2196 = vst [vmem:[#allocation3 + $0x558] sm:$0xff] %v2176
        %2197 = vst [vmem:[#allocation3 + $0x560] sm:$0xff] %v2178
        %2198 = vst [vmem:[#allocation3 + $0x568] sm:$0xff] %v2180
        %2199 = vst [vmem:[#allocation3 + $0x570] sm:$0xff] %v2182
        %2200 = vst [vmem:[#allocation3 + $0x578] sm:$0xff] %v2184
        %v2201 = vld [vmem:[#allocation2 + $0x4] sm:$0xff]
        %v2202 = vld [vmem:[#allocation2 + $0xc] sm:$0xff]
        %v2203 = vld [vmem:[#allocation2 + $0x14] sm:$0xff]
        %v2204 = vld [vmem:[#allocation2 + $0x1c] sm:$0xff]
        %v2205 = vld [vmem:[#allocation2 + $0x24] sm:$0xf]
        %v2206 = vld [vmem:[#allocation2 + $0x2c] sm:$0xff]
        %v2207 = vld [vmem:[#allocation2 + $0x34] sm:$0xff]
        %v2208 = vld [vmem:[#allocation2 + $0x3c] sm:$0xff]
        %v2209 = vld [vmem:[#allocation2 + $0x44] sm:$0xff]
        %v2210 = vld [vmem:[#allocation2 + $0x4c] sm:$0xf]
        %2221 = vrot.lane.b32.xlu0 %v2201, 45
        %v2222 = vpop.permute.xlu0 %2221
        %2223 = vrot.lane.b32.xlu0 %v2202, 45
        %v2224 = vpop.permute.xlu0 %2223
        %2225 = vrot.lane.b32.xlu0 %v2203, 45
        %v2226 = vpop.permute.xlu0 %2225
        %2227 = vrot.lane.b32.xlu0 %v2204, 45
        %v2228 = vpop.permute.xlu0 %2227
        %2229 = vrot.lane.b32.xlu0 %v2205, 45
        %v2230 = vpop.permute.xlu0 %2229
        %2231 = vrot.lane.b32.xlu0 %v2206, 45
        %v2232 = vpop.permute.xlu0 %2231
        %2233 = vrot.lane.b32.xlu0 %v2207, 45
        %v2234 = vpop.permute.xlu0 %2233
        %2235 = vrot.lane.b32.xlu0 %v2208, 45
        %v2236 = vpop.permute.xlu0 %2235
        %2237 = vrot.lane.b32.xlu0 %v2209, 45
        %v2238 = vpop.permute.xlu0 %2237
        %2239 = vrot.lane.b32.xlu0 %v2210, 45
        %v2240 = vpop.permute.xlu0 %2239
        %v2241 = vrot.slane %v2222, 4
        %v2242 = vrot.slane %v2224, 4
        %v2243 = vrot.slane %v2226, 4
        %v2244 = vrot.slane %v2228, 4
        %v2245 = vrot.slane %v2230, 4
        %v2246 = vrot.slane %v2232, 4
        %v2247 = vrot.slane %v2234, 4
        %v2248 = vrot.slane %v2236, 4
        %v2249 = vrot.slane %v2238, 4
        %v2250 = vrot.slane %v2240, 4
        %v2251 = vsel %vm507, %v2241, %v2242
        %vm2252 = vcmask 367616
        %v2253 = vsel %vm2252, %v2222, %v2251
        %v2254 = vsel %vm507, %v2242, %v2243
        %v2255 = vsel %vm2252, %v2224, %v2254
        %v2256 = vsel %vm507, %v2243, %v2244
        %v2257 = vsel %vm2252, %v2226, %v2256
        %v2258 = vsel %vm507, %v2244, %v2245
        %v2259 = vsel %vm2252, %v2228, %v2258
        %v2260 = vsel %vm507, %v2246, %v2247
        %v2261 = vsel %vm2252, %v2232, %v2260
        %v2262 = vsel %vm507, %v2247, %v2248
        %v2263 = vsel %vm2252, %v2234, %v2262
        %v2264 = vsel %vm507, %v2248, %v2249
        %v2265 = vsel %vm2252, %v2236, %v2264
        %v2266 = vsel %vm507, %v2249, %v2250
        %v2267 = vsel %vm2252, %v2238, %v2266
        %2276 = vst [vmem:[#allocation3 + $0x580] sm:$0xff] %v2253
        %2277 = vst [vmem:[#allocation3 + $0x588] sm:$0xff] %v2255
        %2278 = vst [vmem:[#allocation3 + $0x590] sm:$0xff] %v2257
        %2279 = vst [vmem:[#allocation3 + $0x598] sm:$0xff] %v2259
        %2280 = vst [vmem:[#allocation3 + $0x5a0] sm:$0xff] %v2261
        %2281 = vst [vmem:[#allocation3 + $0x5a8] sm:$0xff] %v2263
        %2282 = vst [vmem:[#allocation3 + $0x5b0] sm:$0xff] %v2265
        %2283 = vst [vmem:[#allocation3 + $0x5b8] sm:$0xff] %v2267
        %v2284 = vld [vmem:[#allocation2 + $0x4] sm:$0xff]
        %v2285 = vld [vmem:[#allocation2 + $0xc] sm:$0xff]
        %v2286 = vld [vmem:[#allocation2 + $0x14] sm:$0xff]
        %v2287 = vld [vmem:[#allocation2 + $0x1c] sm:$0xff]
        %v2288 = vld [vmem:[#allocation2 + $0x24] sm:$0xf]
        %v2289 = vld [vmem:[#allocation2 + $0x2c] sm:$0xff]
        %v2290 = vld [vmem:[#allocation2 + $0x34] sm:$0xff]
        %v2291 = vld [vmem:[#allocation2 + $0x3c] sm:$0xff]
        %v2292 = vld [vmem:[#allocation2 + $0x44] sm:$0xff]
        %v2293 = vld [vmem:[#allocation2 + $0x4c] sm:$0xf]
        %2304 = vrot.lane.b32.xlu0 %v2284, 44
        %v2305 = vpop.permute.xlu0 %2304
        %2306 = vrot.lane.b32.xlu0 %v2285, 44
        %v2307 = vpop.permute.xlu0 %2306
        %2308 = vrot.lane.b32.xlu0 %v2286, 44
        %v2309 = vpop.permute.xlu0 %2308
        %2310 = vrot.lane.b32.xlu0 %v2287, 44
        %v2311 = vpop.permute.xlu0 %2310
        %2312 = vrot.lane.b32.xlu0 %v2288, 44
        %v2313 = vpop.permute.xlu0 %2312
        %2314 = vrot.lane.b32.xlu0 %v2289, 44
        %v2315 = vpop.permute.xlu0 %2314
        %2316 = vrot.lane.b32.xlu0 %v2290, 44
        %v2317 = vpop.permute.xlu0 %2316
        %2318 = vrot.lane.b32.xlu0 %v2291, 44
        %v2319 = vpop.permute.xlu0 %2318
        %2320 = vrot.lane.b32.xlu0 %v2292, 44
        %v2321 = vpop.permute.xlu0 %2320
        %2322 = vrot.lane.b32.xlu0 %v2293, 44
        %v2323 = vpop.permute.xlu0 %2322
        %v2324 = vrot.slane %v2305, 4
        %v2325 = vrot.slane %v2307, 4
        %v2326 = vrot.slane %v2309, 4
        %v2327 = vrot.slane %v2311, 4
        %v2328 = vrot.slane %v2313, 4
        %v2329 = vrot.slane %v2315, 4
        %v2330 = vrot.slane %v2317, 4
        %v2331 = vrot.slane %v2319, 4
        %v2332 = vrot.slane %v2321, 4
        %v2333 = vrot.slane %v2323, 4
        %v2334 = vsel %vm507, %v2324, %v2325
        %vm2335 = vcmask 359424
        %v2336 = vsel %vm2335, %v2305, %v2334
        %v2337 = vsel %vm507, %v2325, %v2326
        %v2338 = vsel %vm2335, %v2307, %v2337
        %v2339 = vsel %vm507, %v2326, %v2327
        %v2340 = vsel %vm2335, %v2309, %v2339
        %v2341 = vsel %vm507, %v2327, %v2328
        %v2342 = vsel %vm2335, %v2311, %v2341
        %v2343 = vsel %vm507, %v2329, %v2330
        %v2344 = vsel %vm2335, %v2315, %v2343
        %v2345 = vsel %vm507, %v2330, %v2331
        %v2346 = vsel %vm2335, %v2317, %v2345
        %v2347 = vsel %vm507, %v2331, %v2332
        %v2348 = vsel %vm2335, %v2319, %v2347
        %v2349 = vsel %vm507, %v2332, %v2333
        %v2350 = vsel %vm2335, %v2321, %v2349
        %2359 = vst [vmem:[#allocation3 + $0x5c0] sm:$0xff] %v2336
        %2360 = vst [vmem:[#allocation3 + $0x5c8] sm:$0xff] %v2338
        %2361 = vst [vmem:[#allocation3 + $0x5d0] sm:$0xff] %v2340
        %2362 = vst [vmem:[#allocation3 + $0x5d8] sm:$0xff] %v2342
        %2363 = vst [vmem:[#allocation3 + $0x5e0] sm:$0xff] %v2344
        %2364 = vst [vmem:[#allocation3 + $0x5e8] sm:$0xff] %v2346
        %2365 = vst [vmem:[#allocation3 + $0x5f0] sm:$0xff] %v2348
        %2366 = vst [vmem:[#allocation3 + $0x5f8] sm:$0xff] %v2350
        %v2367 = vld [vmem:[#allocation2 + $0x4] sm:$0xff]
        %v2368 = vld [vmem:[#allocation2 + $0xc] sm:$0xff]
        %v2369 = vld [vmem:[#allocation2 + $0x14] sm:$0xff]
        %v2370 = vld [vmem:[#allocation2 + $0x1c] sm:$0xff]
        %v2371 = vld [vmem:[#allocation2 + $0x24] sm:$0xf]
        %v2372 = vld [vmem:[#allocation2 + $0x2c] sm:$0xff]
        %v2373 = vld [vmem:[#allocation2 + $0x34] sm:$0xff]
        %v2374 = vld [vmem:[#allocation2 + $0x3c] sm:$0xff]
        %v2375 = vld [vmem:[#allocation2 + $0x44] sm:$0xff]
        %v2376 = vld [vmem:[#allocation2 + $0x4c] sm:$0xf]
        %2387 = vrot.lane.b32.xlu0 %v2367, 36
        %v2388 = vpop.permute.xlu0 %2387
        %2389 = vrot.lane.b32.xlu0 %v2368, 36
        %v2390 = vpop.permute.xlu0 %2389
        %2391 = vrot.lane.b32.xlu0 %v2369, 36
        %v2392 = vpop.permute.xlu0 %2391
        %2393 = vrot.lane.b32.xlu0 %v2370, 36
        %v2394 = vpop.permute.xlu0 %2393
        %2395 = vrot.lane.b32.xlu0 %v2371, 36
        %v2396 = vpop.permute.xlu0 %2395
        %2397 = vrot.lane.b32.xlu0 %v2372, 36
        %v2398 = vpop.permute.xlu0 %2397
        %2399 = vrot.lane.b32.xlu0 %v2373, 36
        %v2400 = vpop.permute.xlu0 %2399
        %2401 = vrot.lane.b32.xlu0 %v2374, 36
        %v2402 = vpop.permute.xlu0 %2401
        %2403 = vrot.lane.b32.xlu0 %v2375, 36
        %v2404 = vpop.permute.xlu0 %2403
        %2405 = vrot.lane.b32.xlu0 %v2376, 36
        %v2406 = vpop.permute.xlu0 %2405
        %v2407 = vrot.slane %v2388, 4
        %v2408 = vrot.slane %v2390, 4
        %v2409 = vrot.slane %v2392, 4
        %v2410 = vrot.slane %v2394, 4
        %v2411 = vrot.slane %v2396, 4
        %v2412 = vrot.slane %v2398, 4
        %v2413 = vrot.slane %v2400, 4
        %v2414 = vrot.slane %v2402, 4
        %v2415 = vrot.slane %v2404, 4
        %v2416 = vrot.slane %v2406, 4
        %v2417 = vsel %vm507, %v2407, %v2408
        %vm2418 = vcmask 293888
        %v2419 = vsel %vm2418, %v2388, %v2417
        %v2420 = vsel %vm507, %v2408, %v2409
        %v2421 = vsel %vm2418, %v2390, %v2420
        %v2422 = vsel %vm507, %v2409, %v2410
        %v2423 = vsel %vm2418, %v2392, %v2422
        %v2424 = vsel %vm507, %v2410, %v2411
        %v2425 = vsel %vm2418, %v2394, %v2424
        %v2426 = vsel %vm507, %v2412, %v2413
        %v2427 = vsel %vm2418, %v2398, %v2426
        %v2428 = vsel %vm507, %v2413, %v2414
        %v2429 = vsel %vm2418, %v2400, %v2428
        %v2430 = vsel %vm507, %v2414, %v2415
        %v2431 = vsel %vm2418, %v2402, %v2430
        %v2432 = vsel %vm507, %v2415, %v2416
        %v2433 = vsel %vm2418, %v2404, %v2432
        %2442 = vst [vmem:[#allocation3 + $0x600] sm:$0xff] %v2419
        %2443 = vst [vmem:[#allocation3 + $0x608] sm:$0xff] %v2421
        %2444 = vst [vmem:[#allocation3 + $0x610] sm:$0xff] %v2423
        %2445 = vst [vmem:[#allocation3 + $0x618] sm:$0xff] %v2425
        %2446 = vst [vmem:[#allocation3 + $0x620] sm:$0xff] %v2427
        %2447 = vst [vmem:[#allocation3 + $0x628] sm:$0xff] %v2429
        %2448 = vst [vmem:[#allocation3 + $0x630] sm:$0xff] %v2431
        %2449 = vst [vmem:[#allocation3 + $0x638] sm:$0xff] %v2433
        %v2450 = vld [vmem:[#allocation2 + $0x4] sm:$0xff]
        %v2451 = vld [vmem:[#allocation2 + $0xc] sm:$0xff]
        %v2452 = vld [vmem:[#allocation2 + $0x14] sm:$0xff]
        %v2453 = vld [vmem:[#allocation2 + $0x1c] sm:$0xff]
        %v2454 = vld [vmem:[#allocation2 + $0x24] sm:$0xf]
        %v2455 = vld [vmem:[#allocation2 + $0x2c] sm:$0xff]
        %v2456 = vld [vmem:[#allocation2 + $0x34] sm:$0xff]
        %v2457 = vld [vmem:[#allocation2 + $0x3c] sm:$0xff]
        %v2458 = vld [vmem:[#allocation2 + $0x44] sm:$0xff]
        %v2459 = vld [vmem:[#allocation2 + $0x4c] sm:$0xf]
        %2470 = vrot.lane.b32.xlu0 %v2450, 35
        %v2471 = vpop.permute.xlu0 %2470
        %2472 = vrot.lane.b32.xlu0 %v2451, 35
        %v2473 = vpop.permute.xlu0 %2472
        %2474 = vrot.lane.b32.xlu0 %v2452, 35
        %v2475 = vpop.permute.xlu0 %2474
        %2476 = vrot.lane.b32.xlu0 %v2453, 35
        %v2477 = vpop.permute.xlu0 %2476
        %2478 = vrot.lane.b32.xlu0 %v2454, 35
        %v2479 = vpop.permute.xlu0 %2478
        %2480 = vrot.lane.b32.xlu0 %v2455, 35
        %v2481 = vpop.permute.xlu0 %2480
        %2482 = vrot.lane.b32.xlu0 %v2456, 35
        %v2483 = vpop.permute.xlu0 %2482
        %2484 = vrot.lane.b32.xlu0 %v2457, 35
        %v2485 = vpop.permute.xlu0 %2484
        %2486 = vrot.lane.b32.xlu0 %v2458, 35
        %v2487 = vpop.permute.xlu0 %2486
        %2488 = vrot.lane.b32.xlu0 %v2459, 35
        %v2489 = vpop.permute.xlu0 %2488
        %v2490 = vrot.slane %v2471, 4
        %v2491 = vrot.slane %v2473, 4
        %v2492 = vrot.slane %v2475, 4
        %v2493 = vrot.slane %v2477, 4
        %v2494 = vrot.slane %v2479, 4
        %v2495 = vrot.slane %v2481, 4
        %v2496 = vrot.slane %v2483, 4
        %v2497 = vrot.slane %v2485, 4
        %v2498 = vrot.slane %v2487, 4
        %v2499 = vrot.slane %v2489, 4
        %v2500 = vsel %vm507, %v2490, %v2491
        %vm2501 = vcmask 285696
        %v2502 = vsel %vm2501, %v2471, %v2500
        %v2503 = vsel %vm507, %v2491, %v2492
        %v2504 = vsel %vm2501, %v2473, %v2503
        %v2505 = vsel %vm507, %v2492, %v2493
        %v2506 = vsel %vm2501, %v2475, %v2505
        %v2507 = vsel %vm507, %v2493, %v2494
        %v2508 = vsel %vm2501, %v2477, %v2507
        %v2509 = vsel %vm507, %v2495, %v2496
        %v2510 = vsel %vm2501, %v2481, %v2509
        %v2511 = vsel %vm507, %v2496, %v2497
        %v2512 = vsel %vm2501, %v2483, %v2511
        %v2513 = vsel %vm507, %v2497, %v2498
        %v2514 = vsel %vm2501, %v2485, %v2513
        %v2515 = vsel %vm507, %v2498, %v2499
        %v2516 = vsel %vm2501, %v2487, %v2515
        %2525 = vst [vmem:[#allocation3 + $0x640] sm:$0xff] %v2502
        %2526 = vst [vmem:[#allocation3 + $0x648] sm:$0xff] %v2504
        %2527 = vst [vmem:[#allocation3 + $0x650] sm:$0xff] %v2506
        %2528 = vst [vmem:[#allocation3 + $0x658] sm:$0xff] %v2508
        %2529 = vst [vmem:[#allocation3 + $0x660] sm:$0xff] %v2510
        %2530 = vst [vmem:[#allocation3 + $0x668] sm:$0xff] %v2512
        %2531 = vst [vmem:[#allocation3 + $0x670] sm:$0xff] %v2514
        %2532 = vst [vmem:[#allocation3 + $0x678] sm:$0xff] %v2516
        %v2533 = vld [vmem:[#allocation2 + $0x4] sm:$0xff]
        %v2534 = vld [vmem:[#allocation2 + $0xc] sm:$0xff]
        %v2535 = vld [vmem:[#allocation2 + $0x14] sm:$0xff]
        %v2536 = vld [vmem:[#allocation2 + $0x1c] sm:$0xff]
        %v2537 = vld [vmem:[#allocation2 + $0x24] sm:$0xf]
        %v2538 = vld [vmem:[#allocation2 + $0x2c] sm:$0xff]
        %v2539 = vld [vmem:[#allocation2 + $0x34] sm:$0xff]
        %v2540 = vld [vmem:[#allocation2 + $0x3c] sm:$0xff]
        %v2541 = vld [vmem:[#allocation2 + $0x44] sm:$0xff]
        %v2542 = vld [vmem:[#allocation2 + $0x4c] sm:$0xf]
        %2553 = vrot.lane.b32.xlu0 %v2533, 34
        %v2554 = vpop.permute.xlu0 %2553
        %2555 = vrot.lane.b32.xlu0 %v2534, 34
        %v2556 = vpop.permute.xlu0 %2555
        %2557 = vrot.lane.b32.xlu0 %v2535, 34
        %v2558 = vpop.permute.xlu0 %2557
        %2559 = vrot.lane.b32.xlu0 %v2536, 34
        %v2560 = vpop.permute.xlu0 %2559
        %2561 = vrot.lane.b32.xlu0 %v2537, 34
        %v2562 = vpop.permute.xlu0 %2561
        %2563 = vrot.lane.b32.xlu0 %v2538, 34
        %v2564 = vpop.permute.xlu0 %2563
        %2565 = vrot.lane.b32.xlu0 %v2539, 34
        %v2566 = vpop.permute.xlu0 %2565
        %2567 = vrot.lane.b32.xlu0 %v2540, 34
        %v2568 = vpop.permute.xlu0 %2567
        %2569 = vrot.lane.b32.xlu0 %v2541, 34
        %v2570 = vpop.permute.xlu0 %2569
        %2571 = vrot.lane.b32.xlu0 %v2542, 34
        %v2572 = vpop.permute.xlu0 %2571
        %v2573 = vrot.slane %v2554, 4
        %v2574 = vrot.slane %v2556, 4
        %v2575 = vrot.slane %v2558, 4
        %v2576 = vrot.slane %v2560, 4
        %v2577 = vrot.slane %v2562, 4
        %v2578 = vrot.slane %v2564, 4
        %v2579 = vrot.slane %v2566, 4
        %v2580 = vrot.slane %v2568, 4
        %v2581 = vrot.slane %v2570, 4
        %v2582 = vrot.slane %v2572, 4
        %v2583 = vsel %vm507, %v2573, %v2574
        %vm2584 = vcmask 277504
        %v2585 = vsel %vm2584, %v2554, %v2583
        %v2586 = vsel %vm507, %v2574, %v2575
        %v2587 = vsel %vm2584, %v2556, %v2586
        %v2588 = vsel %vm507, %v2575, %v2576
        %v2589 = vsel %vm2584, %v2558, %v2588
        %v2590 = vsel %vm507, %v2576, %v2577
        %v2591 = vsel %vm2584, %v2560, %v2590
        %v2592 = vsel %vm507, %v2578, %v2579
        %v2593 = vsel %vm2584, %v2564, %v2592
        %v2594 = vsel %vm507, %v2579, %v2580
        %v2595 = vsel %vm2584, %v2566, %v2594
        %v2596 = vsel %vm507, %v2580, %v2581
        %v2597 = vsel %vm2584, %v2568, %v2596
        %v2598 = vsel %vm507, %v2581, %v2582
        %v2599 = vsel %vm2584, %v2570, %v2598
        %2608 = vst [vmem:[#allocation3 + $0x680] sm:$0xff] %v2585
        %2609 = vst [vmem:[#allocation3 + $0x688] sm:$0xff] %v2587
        %2610 = vst [vmem:[#allocation3 + $0x690] sm:$0xff] %v2589
        %2611 = vst [vmem:[#allocation3 + $0x698] sm:$0xff] %v2591
        %2612 = vst [vmem:[#allocation3 + $0x6a0] sm:$0xff] %v2593
        %2613 = vst [vmem:[#allocation3 + $0x6a8] sm:$0xff] %v2595
        %2614 = vst [vmem:[#allocation3 + $0x6b0] sm:$0xff] %v2597
        %2615 = vst [vmem:[#allocation3 + $0x6b8] sm:$0xff] %v2599
        %v2616 = vld [vmem:[%s2] sm:$0xff]
        %v2617 = vld [vmem:[%s2 + $0x8] sm:$0xff]
        %v2618 = vld [vmem:[%s2 + $0x10] sm:$0xff]
        %v2619 = vld [vmem:[%s2 + $0x18] sm:$0xff]
        %v2620 = vld [vmem:[#allocation3] sm:$0xff]
        %v2621 = vld [vmem:[#allocation3 + $0x8] sm:$0xff]
        %v2622 = vld [vmem:[#allocation3 + $0x10] sm:$0xff]
        %v2623 = vld [vmem:[#allocation3 + $0x18] sm:$0xff]
        %v2624 = vld [vmem:[#allocation3 + $0x20] sm:$0xff]
        %v2625 = vld [vmem:[#allocation3 + $0x28] sm:$0xff]
        %v2626 = vld [vmem:[#allocation3 + $0x30] sm:$0xff]
        %v2627 = vld [vmem:[#allocation3 + $0x38] sm:$0xff]
        %v2628 = vld [vmem:[#allocation3 + $0x40] sm:$0xff]
        %v2629 = vld [vmem:[#allocation3 + $0x48] sm:$0xff]
        %v2630 = vld [vmem:[#allocation3 + $0x50] sm:$0xff]
        %v2631 = vld [vmem:[#allocation3 + $0x58] sm:$0xff]
        %v2632 = vld [vmem:[#allocation3 + $0x60] sm:$0xff]
        %v2633 = vld [vmem:[#allocation3 + $0x68] sm:$0xff]
        %v2634 = vld [vmem:[#allocation3 + $0x70] sm:$0xff]
        %v2635 = vld [vmem:[#allocation3 + $0x78] sm:$0xff]
        %v2636 = vld [vmem:[#allocation3 + $0x80] sm:$0xff]
        %v2637 = vld [vmem:[#allocation3 + $0x88] sm:$0xff]
        %v2638 = vld [vmem:[#allocation3 + $0x90] sm:$0xff]
        %v2639 = vld [vmem:[#allocation3 + $0x98] sm:$0xff]
        %v2640 = vld [vmem:[#allocation3 + $0xa0] sm:$0xff]
        %v2641 = vld [vmem:[#allocation3 + $0xa8] sm:$0xff]
        %v2642 = vld [vmem:[#allocation3 + $0xb0] sm:$0xff]
        %v2643 = vld [vmem:[#allocation3 + $0xb8] sm:$0xff]
        %v2644 = vld [vmem:[#allocation3 + $0xc0] sm:$0xff]
        %v2645 = vld [vmem:[#allocation3 + $0xc8] sm:$0xff]
        %v2646 = vld [vmem:[#allocation3 + $0xd0] sm:$0xff]
        %v2647 = vld [vmem:[#allocation3 + $0xd8] sm:$0xff]
        %v2648 = vld [vmem:[#allocation3 + $0xe0] sm:$0xff]
        %v2649 = vld [vmem:[#allocation3 + $0xe8] sm:$0xff]
        %v2650 = vld [vmem:[#allocation3 + $0xf0] sm:$0xff]
        %v2651 = vld [vmem:[#allocation3 + $0xf8] sm:$0xff]
        %v2652 = vld [vmem:[#allocation3 + $0x100] sm:$0xff]
        %v2653 = vld [vmem:[#allocation3 + $0x108] sm:$0xff]
        %v2654 = vld [vmem:[#allocation3 + $0x110] sm:$0xff]
        %v2655 = vld [vmem:[#allocation3 + $0x118] sm:$0xff]
        %v2656 = vld [vmem:[#allocation3 + $0x120] sm:$0xff]
        %v2657 = vld [vmem:[#allocation3 + $0x128] sm:$0xff]
        %v2658 = vld [vmem:[#allocation3 + $0x130] sm:$0xff]
        %v2659 = vld [vmem:[#allocation3 + $0x138] sm:$0xff]
        %v2660 = vld [vmem:[#allocation3 + $0x140] sm:$0xff]
        %v2661 = vld [vmem:[#allocation3 + $0x148] sm:$0xff]
        %v2662 = vld [vmem:[#allocation3 + $0x150] sm:$0xff]
        %v2663 = vld [vmem:[#allocation3 + $0x158] sm:$0xff]
        %v2664 = vld [vmem:[#allocation3 + $0x160] sm:$0xff]
        %v2665 = vld [vmem:[#allocation3 + $0x168] sm:$0xff]
        %v2666 = vld [vmem:[#allocation3 + $0x170] sm:$0xff]
        %v2667 = vld [vmem:[#allocation3 + $0x178] sm:$0xff]
        %v2668 = vld [vmem:[#allocation3 + $0x180] sm:$0xff]
        %v2669 = vld [vmem:[#allocation3 + $0x188] sm:$0xff]
        %v2670 = vld [vmem:[#allocation3 + $0x190] sm:$0xff]
        %v2671 = vld [vmem:[#allocation3 + $0x198] sm:$0xff]
        %v2672 = vld [vmem:[#allocation3 + $0x1a0] sm:$0xff]
        %v2673 = vld [vmem:[#allocation3 + $0x1a8] sm:$0xff]
        %v2674 = vld [vmem:[#allocation3 + $0x1b0] sm:$0xff]
        %v2675 = vld [vmem:[#allocation3 + $0x1b8] sm:$0xff]
        %v2676 = vld [vmem:[#allocation3 + $0x1c0] sm:$0xff]
        %v2677 = vld [vmem:[#allocation3 + $0x1c8] sm:$0xff]
        %v2678 = vld [vmem:[#allocation3 + $0x1d0] sm:$0xff]
        %v2679 = vld [vmem:[#allocation3 + $0x1d8] sm:$0xff]
        %v2680 = vld [vmem:[#allocation3 + $0x1e0] sm:$0xff]
        %v2681 = vld [vmem:[#allocation3 + $0x1e8] sm:$0xff]
        %v2682 = vld [vmem:[#allocation3 + $0x1f0] sm:$0xff]
        %v2683 = vld [vmem:[#allocation3 + $0x1f8] sm:$0xff]
        %v2684 = vld [vmem:[#allocation3 + $0x200] sm:$0xff]
        %v2685 = vld [vmem:[#allocation3 + $0x208] sm:$0xff]
        %v2686 = vld [vmem:[#allocation3 + $0x210] sm:$0xff]
        %v2687 = vld [vmem:[#allocation3 + $0x218] sm:$0xff]
        %v2688 = vld [vmem:[#allocation3 + $0x220] sm:$0xff]
        %v2689 = vld [vmem:[#allocation3 + $0x228] sm:$0xff]
        %v2690 = vld [vmem:[#allocation3 + $0x230] sm:$0xff]
        %v2691 = vld [vmem:[#allocation3 + $0x238] sm:$0xff]
        %v2692 = vld [vmem:[#allocation3 + $0x240] sm:$0xff]
        %v2693 = vld [vmem:[#allocation3 + $0x248] sm:$0xff]
        %v2694 = vld [vmem:[#allocation3 + $0x250] sm:$0xff]
        %v2695 = vld [vmem:[#allocation3 + $0x258] sm:$0xff]
        %v2696 = vld [vmem:[#allocation3 + $0x260] sm:$0xff]
        %v2697 = vld [vmem:[#allocation3 + $0x268] sm:$0xff]
        %v2698 = vld [vmem:[#allocation3 + $0x270] sm:$0xff]
        %v2699 = vld [vmem:[#allocation3 + $0x278] sm:$0xff]
        %v2700 = vld [vmem:[#allocation3 + $0x280] sm:$0xff]
        %v2701 = vld [vmem:[#allocation3 + $0x288] sm:$0xff]
        %v2702 = vld [vmem:[#allocation3 + $0x290] sm:$0xff]
        %v2703 = vld [vmem:[#allocation3 + $0x298] sm:$0xff]
        %v2704 = vld [vmem:[#allocation3 + $0x2a0] sm:$0xff]
        %v2705 = vld [vmem:[#allocation3 + $0x2a8] sm:$0xff]
        %v2706 = vld [vmem:[#allocation3 + $0x2b0] sm:$0xff]
        %v2707 = vld [vmem:[#allocation3 + $0x2b8] sm:$0xff]
        %v2708 = vld [vmem:[#allocation3 + $0x2c0] sm:$0xff]
        %v2709 = vld [vmem:[#allocation3 + $0x2c8] sm:$0xff]
        %v2710 = vld [vmem:[#allocation3 + $0x2d0] sm:$0xff]
        %v2711 = vld [vmem:[#allocation3 + $0x2d8] sm:$0xff]
        %v2712 = vld [vmem:[#allocation3 + $0x2e0] sm:$0xff]
        %v2713 = vld [vmem:[#allocation3 + $0x2e8] sm:$0xff]
        %v2714 = vld [vmem:[#allocation3 + $0x2f0] sm:$0xff]
        %v2715 = vld [vmem:[#allocation3 + $0x2f8] sm:$0xff]
        %v2716 = vld [vmem:[#allocation3 + $0x300] sm:$0xff]
        %v2717 = vld [vmem:[#allocation3 + $0x308] sm:$0xff]
        %v2718 = vld [vmem:[#allocation3 + $0x310] sm:$0xff]
        %v2719 = vld [vmem:[#allocation3 + $0x318] sm:$0xff]
        %v2720 = vld [vmem:[#allocation3 + $0x320] sm:$0xff]
        %v2721 = vld [vmem:[#allocation3 + $0x328] sm:$0xff]
        %v2722 = vld [vmem:[#allocation3 + $0x330] sm:$0xff]
        %v2723 = vld [vmem:[#allocation3 + $0x338] sm:$0xff]
        %v2724 = vld [vmem:[#allocation3 + $0x340] sm:$0xff]
        %v2725 = vld [vmem:[#allocation3 + $0x348] sm:$0xff]
        %v2726 = vld [vmem:[#allocation3 + $0x350] sm:$0xff]
        %v2727 = vld [vmem:[#allocation3 + $0x358] sm:$0xff]
        %v2728 = vld [vmem:[#allocation3 + $0x360] sm:$0xff]
        %v2729 = vld [vmem:[#allocation3 + $0x368] sm:$0xff]
        %v2730 = vld [vmem:[#allocation3 + $0x370] sm:$0xff]
        %v2731 = vld [vmem:[#allocation3 + $0x378] sm:$0xff]
        %v2732 = vld [vmem:[#allocation3 + $0x380] sm:$0xff]
        %v2733 = vld [vmem:[#allocation3 + $0x388] sm:$0xff]
        %v2734 = vld [vmem:[#allocation3 + $0x390] sm:$0xff]
        %v2735 = vld [vmem:[#allocation3 + $0x398] sm:$0xff]
        %v2736 = vld [vmem:[#allocation3 + $0x3a0] sm:$0xff]
        %v2737 = vld [vmem:[#allocation3 + $0x3a8] sm:$0xff]
        %v2738 = vld [vmem:[#allocation3 + $0x3b0] sm:$0xff]
        %v2739 = vld [vmem:[#allocation3 + $0x3b8] sm:$0xff]
        %v2740 = vld [vmem:[#allocation3 + $0x3c0] sm:$0xff]
        %v2741 = vld [vmem:[#allocation3 + $0x3c8] sm:$0xff]
        %v2742 = vld [vmem:[#allocation3 + $0x3d0] sm:$0xff]
        %v2743 = vld [vmem:[#allocation3 + $0x3d8] sm:$0xff]
        %v2744 = vld [vmem:[#allocation3 + $0x3e0] sm:$0xff]
        %v2745 = vld [vmem:[#allocation3 + $0x3e8] sm:$0xff]
        %v2746 = vld [vmem:[#allocation3 + $0x3f0] sm:$0xff]
        %v2747 = vld [vmem:[#allocation3 + $0x3f8] sm:$0xff]
        %v2748 = vld [vmem:[#allocation3 + $0x400] sm:$0xff]
        %v2749 = vld [vmem:[#allocation3 + $0x408] sm:$0xff]
        %v2750 = vld [vmem:[#allocation3 + $0x410] sm:$0xff]
        %v2751 = vld [vmem:[#allocation3 + $0x418] sm:$0xff]
        %v2752 = vld [vmem:[#allocation3 + $0x420] sm:$0xff]
        %v2753 = vld [vmem:[#allocation3 + $0x428] sm:$0xff]
        %v2754 = vld [vmem:[#allocation3 + $0x430] sm:$0xff]
        %v2755 = vld [vmem:[#allocation3 + $0x438] sm:$0xff]
        %v2756 = vld [vmem:[#allocation3 + $0x440] sm:$0xff]
        %v2757 = vld [vmem:[#allocation3 + $0x448] sm:$0xff]
        %v2758 = vld [vmem:[#allocation3 + $0x450] sm:$0xff]
        %v2759 = vld [vmem:[#allocation3 + $0x458] sm:$0xff]
        %v2760 = vld [vmem:[#allocation3 + $0x460] sm:$0xff]
        %v2761 = vld [vmem:[#allocation3 + $0x468] sm:$0xff]
        %v2762 = vld [vmem:[#allocation3 + $0x470] sm:$0xff]
        %v2763 = vld [vmem:[#allocation3 + $0x478] sm:$0xff]
        %v2764 = vld [vmem:[#allocation3 + $0x480] sm:$0xff]
        %v2765 = vld [vmem:[#allocation3 + $0x488] sm:$0xff]
        %v2766 = vld [vmem:[#allocation3 + $0x490] sm:$0xff]
        %v2767 = vld [vmem:[#allocation3 + $0x498] sm:$0xff]
        %v2768 = vld [vmem:[#allocation3 + $0x4a0] sm:$0xff]
        %v2769 = vld [vmem:[#allocation3 + $0x4a8] sm:$0xff]
        %v2770 = vld [vmem:[#allocation3 + $0x4b0] sm:$0xff]
        %v2771 = vld [vmem:[#allocation3 + $0x4b8] sm:$0xff]
        %v2772 = vld [vmem:[#allocation3 + $0x4c0] sm:$0xff]
        %v2773 = vld [vmem:[#allocation3 + $0x4c8] sm:$0xff]
        %v2774 = vld [vmem:[#allocation3 + $0x4d0] sm:$0xff]
        %v2775 = vld [vmem:[#allocation3 + $0x4d8] sm:$0xff]
        %v2776 = vld [vmem:[#allocation3 + $0x4e0] sm:$0xff]
        %v2777 = vld [vmem:[#allocation3 + $0x4e8] sm:$0xff]
        %v2778 = vld [vmem:[#allocation3 + $0x4f0] sm:$0xff]
        %v2779 = vld [vmem:[#allocation3 + $0x4f8] sm:$0xff]
        %v2780 = vld [vmem:[#allocation3 + $0x500] sm:$0xff]
        %v2781 = vld [vmem:[#allocation3 + $0x508] sm:$0xff]
        %v2782 = vld [vmem:[#allocation3 + $0x510] sm:$0xff]
        %v2783 = vld [vmem:[#allocation3 + $0x518] sm:$0xff]
        %v2784 = vld [vmem:[#allocation3 + $0x520] sm:$0xff]
        %v2785 = vld [vmem:[#allocation3 + $0x528] sm:$0xff]
        %v2786 = vld [vmem:[#allocation3 + $0x530] sm:$0xff]
        %v2787 = vld [vmem:[#allocation3 + $0x538] sm:$0xff]
        %v2788 = vld [vmem:[#allocation3 + $0x540] sm:$0xff]
        %v2789 = vld [vmem:[#allocation3 + $0x548] sm:$0xff]
        %v2790 = vld [vmem:[#allocation3 + $0x550] sm:$0xff]
        %v2791 = vld [vmem:[#allocation3 + $0x558] sm:$0xff]
        %v2792 = vld [vmem:[#allocation3 + $0x560] sm:$0xff]
        %v2793 = vld [vmem:[#allocation3 + $0x568] sm:$0xff]
        %v2794 = vld [vmem:[#allocation3 + $0x570] sm:$0xff]
        %v2795 = vld [vmem:[#allocation3 + $0x578] sm:$0xff]
        %v2796 = vld [vmem:[#allocation3 + $0x580] sm:$0xff]
        %v2797 = vld [vmem:[#allocation3 + $0x588] sm:$0xff]
        %v2798 = vld [vmem:[#allocation3 + $0x590] sm:$0xff]
        %v2799 = vld [vmem:[#allocation3 + $0x598] sm:$0xff]
        %v2800 = vld [vmem:[#allocation3 + $0x5a0] sm:$0xff]
        %v2801 = vld [vmem:[#allocation3 + $0x5a8] sm:$0xff]
        %v2802 = vld [vmem:[#allocation3 + $0x5b0] sm:$0xff]
        %v2803 = vld [vmem:[#allocation3 + $0x5b8] sm:$0xff]
        %v2804 = vld [vmem:[#allocation3 + $0x5c0] sm:$0xff]
        %v2805 = vld [vmem:[#allocation3 + $0x5c8] sm:$0xff]
        %v2806 = vld [vmem:[#allocation3 + $0x5d0] sm:$0xff]
        %v2807 = vld [vmem:[#allocation3 + $0x5d8] sm:$0xff]
        %v2808 = vld [vmem:[#allocation3 + $0x5e0] sm:$0xff]
        %v2809 = vld [vmem:[#allocation3 + $0x5e8] sm:$0xff]
        %v2810 = vld [vmem:[#allocation3 + $0x5f0] sm:$0xff]
        %v2811 = vld [vmem:[#allocation3 + $0x5f8] sm:$0xff]
        %v2812 = vld [vmem:[#allocation3 + $0x600] sm:$0xff]
        %v2813 = vld [vmem:[#allocation3 + $0x608] sm:$0xff]
        %v2814 = vld [vmem:[#allocation3 + $0x610] sm:$0xff]
        %v2815 = vld [vmem:[#allocation3 + $0x618] sm:$0xff]
        %v2816 = vld [vmem:[#allocation3 + $0x620] sm:$0xff]
        %v2817 = vld [vmem:[#allocation3 + $0x628] sm:$0xff]
        %v2818 = vld [vmem:[#allocation3 + $0x630] sm:$0xff]
        %v2819 = vld [vmem:[#allocation3 + $0x638] sm:$0xff]
        %v2820 = vld [vmem:[#allocation3 + $0x640] sm:$0xff]
        %v2821 = vld [vmem:[#allocation3 + $0x648] sm:$0xff]
        %v2822 = vld [vmem:[#allocation3 + $0x650] sm:$0xff]
        %v2823 = vld [vmem:[#allocation3 + $0x658] sm:$0xff]
        %v2824 = vld [vmem:[#allocation3 + $0x660] sm:$0xff]
        %v2825 = vld [vmem:[#allocation3 + $0x668] sm:$0xff]
        %v2826 = vld [vmem:[#allocation3 + $0x670] sm:$0xff]
        %v2827 = vld [vmem:[#allocation3 + $0x678] sm:$0xff]
        %v2828 = vld [vmem:[#allocation3 + $0x680] sm:$0xff]
        %v2829 = vld [vmem:[#allocation3 + $0x688] sm:$0xff]
        %v2830 = vld [vmem:[#allocation3 + $0x690] sm:$0xff]
        %v2831 = vld [vmem:[#allocation3 + $0x698] sm:$0xff]
        %v2832 = vld [vmem:[#allocation3 + $0x6a0] sm:$0xff]
        %v2833 = vld [vmem:[#allocation3 + $0x6a8] sm:$0xff]
        %v2834 = vld [vmem:[#allocation3 + $0x6b0] sm:$0xff]
        %v2835 = vld [vmem:[#allocation3 + $0x6b8] sm:$0xff]
        %v2836 = vld [vmem:[%s3] sm:$0xff]
        %v2837 = vld [vmem:[%s3 + $0x8] sm:$0xff]
        %2839 = vset.pattern.permute.xlu0 0
        %2840 = vperm.xlu0 %2839, %v2836
        %v2841 = vpop.permute.xlu0 %2840
        %2844 = vset.pattern.permute.xlu0 0
        %2845 = vperm.xlu0 %2844, %v2837
        %v2846 = vpop.permute.xlu0 %2845
        %v2852 = vunpack.c.l.b16 %v2616
        %v2853 = vunpack.c.h.b16 %v2616
        %v2854 = vunpack.c.l.b16 %v2617
        %v2855 = vunpack.c.h.b16 %v2617
        %v2856 = vunpack.c.l.b16 %v2618
        %v2857 = vunpack.c.h.b16 %v2618
        %v2858 = vunpack.c.l.b16 %v2619
        %v2859 = vunpack.c.h.b16 %v2619
        %v2860 = vpack.c.b16 %v2856, %v2852
        %v2861 = vpack.c.b16 %v2857, %v2853
        %v2862 = vpack.c.b16 %v2858, %v2854
        %v2863 = vpack.c.b16 %v2859, %v2855
        %v3083 = vunpack.c.l.b16 %v2620
        %v3084 = vunpack.c.h.b16 %v2620
        %v3085 = vunpack.c.l.b16 %v2621
        %v3086 = vunpack.c.h.b16 %v2621
        %v3087 = vunpack.c.l.b16 %v2622
        %v3088 = vunpack.c.h.b16 %v2622
        %v3089 = vunpack.c.l.b16 %v2623
        %v3090 = vunpack.c.h.b16 %v2623
        %v3091 = vunpack.c.l.b16 %v2624
        %v3092 = vunpack.c.h.b16 %v2624
        %v3093 = vunpack.c.l.b16 %v2625
        %v3094 = vunpack.c.h.b16 %v2625
        %v3095 = vunpack.c.l.b16 %v2626
        %v3096 = vunpack.c.h.b16 %v2626
        %v3097 = vunpack.c.l.b16 %v2627
        %v3098 = vunpack.c.h.b16 %v2627
        %v3099 = vunpack.c.l.b16 %v2628
        %v3100 = vunpack.c.h.b16 %v2628
        %v3101 = vunpack.c.l.b16 %v2629
        %v3102 = vunpack.c.h.b16 %v2629
        %v3103 = vunpack.c.l.b16 %v2630
        %v3104 = vunpack.c.h.b16 %v2630
        %v3105 = vunpack.c.l.b16 %v2631
        %v3106 = vunpack.c.h.b16 %v2631
        %v3107 = vunpack.c.l.b16 %v2632
        %v3108 = vunpack.c.h.b16 %v2632
        %v3109 = vunpack.c.l.b16 %v2633
        %v3110 = vunpack.c.h.b16 %v2633
        %v3111 = vunpack.c.l.b16 %v2634
        %v3112 = vunpack.c.h.b16 %v2634
        %v3113 = vunpack.c.l.b16 %v2635
        %v3114 = vunpack.c.h.b16 %v2635
        %v3115 = vunpack.c.l.b16 %v2636
        %v3116 = vunpack.c.h.b16 %v2636
        %v3117 = vunpack.c.l.b16 %v2637
        %v3118 = vunpack.c.h.b16 %v2637
        %v3119 = vunpack.c.l.b16 %v2638
        %v3120 = vunpack.c.h.b16 %v2638
        %v3121 = vunpack.c.l.b16 %v2639
        %v3122 = vunpack.c.h.b16 %v2639
        %v3123 = vunpack.c.l.b16 %v2640
        %v3124 = vunpack.c.h.b16 %v2640
        %v3125 = vunpack.c.l.b16 %v2641
        %v3126 = vunpack.c.h.b16 %v2641
        %v3127 = vunpack.c.l.b16 %v2642
        %v3128 = vunpack.c.h.b16 %v2642
        %v3129 = vunpack.c.l.b16 %v2643
        %v3130 = vunpack.c.h.b16 %v2643
        %v3131 = vunpack.c.l.b16 %v2644
        %v3132 = vunpack.c.h.b16 %v2644
        %v3133 = vunpack.c.l.b16 %v2645
        %v3134 = vunpack.c.h.b16 %v2645
        %v3135 = vunpack.c.l.b16 %v2646
        %v3136 = vunpack.c.h.b16 %v2646
        %v3137 = vunpack.c.l.b16 %v2647
        %v3138 = vunpack.c.h.b16 %v2647
        %v3139 = vunpack.c.l.b16 %v2648
        %v3140 = vunpack.c.h.b16 %v2648
        %v3141 = vunpack.c.l.b16 %v2649
        %v3142 = vunpack.c.h.b16 %v2649
        %v3143 = vunpack.c.l.b16 %v2650
        %v3144 = vunpack.c.h.b16 %v2650
        %v3145 = vunpack.c.l.b16 %v2651
        %v3146 = vunpack.c.h.b16 %v2651
        %v3147 = vunpack.c.l.b16 %v2652
        %v3148 = vunpack.c.h.b16 %v2652
        %v3149 = vunpack.c.l.b16 %v2653
        %v3150 = vunpack.c.h.b16 %v2653
        %v3151 = vunpack.c.l.b16 %v2654
        %v3152 = vunpack.c.h.b16 %v2654
        %v3153 = vunpack.c.l.b16 %v2655
        %v3154 = vunpack.c.h.b16 %v2655
        %v3155 = vunpack.c.l.b16 %v2656
        %v3156 = vunpack.c.h.b16 %v2656
        %v3157 = vunpack.c.l.b16 %v2657
        %v3158 = vunpack.c.h.b16 %v2657
        %v3159 = vunpack.c.l.b16 %v2658
        %v3160 = vunpack.c.h.b16 %v2658
        %v3161 = vunpack.c.l.b16 %v2659
        %v3162 = vunpack.c.h.b16 %v2659
        %v3163 = vunpack.c.l.b16 %v2660
        %v3164 = vunpack.c.h.b16 %v2660
        %v3165 = vunpack.c.l.b16 %v2661
        %v3166 = vunpack.c.h.b16 %v2661
        %v3167 = vunpack.c.l.b16 %v2662
        %v3168 = vunpack.c.h.b16 %v2662
        %v3169 = vunpack.c.l.b16 %v2663
        %v3170 = vunpack.c.h.b16 %v2663
        %v3171 = vunpack.c.l.b16 %v2664
        %v3172 = vunpack.c.h.b16 %v2664
        %v3173 = vunpack.c.l.b16 %v2665
        %v3174 = vunpack.c.h.b16 %v2665
        %v3175 = vunpack.c.l.b16 %v2666
        %v3176 = vunpack.c.h.b16 %v2666
        %v3177 = vunpack.c.l.b16 %v2667
        %v3178 = vunpack.c.h.b16 %v2667
        %v3179 = vunpack.c.l.b16 %v2668
        %v3180 = vunpack.c.h.b16 %v2668
        %v3181 = vunpack.c.l.b16 %v2669
        %v3182 = vunpack.c.h.b16 %v2669
        %v3183 = vunpack.c.l.b16 %v2670
        %v3184 = vunpack.c.h.b16 %v2670
        %v3185 = vunpack.c.l.b16 %v2671
        %v3186 = vunpack.c.h.b16 %v2671
        %v3187 = vunpack.c.l.b16 %v2672
        %v3188 = vunpack.c.h.b16 %v2672
        %v3189 = vunpack.c.l.b16 %v2673
        %v3190 = vunpack.c.h.b16 %v2673
        %v3191 = vunpack.c.l.b16 %v2674
        %v3192 = vunpack.c.h.b16 %v2674
        %v3193 = vunpack.c.l.b16 %v2675
        %v3194 = vunpack.c.h.b16 %v2675
        %v3195 = vunpack.c.l.b16 %v2676
        %v3196 = vunpack.c.h.b16 %v2676
        %v3197 = vunpack.c.l.b16 %v2677
        %v3198 = vunpack.c.h.b16 %v2677
        %v3199 = vunpack.c.l.b16 %v2678
        %v3200 = vunpack.c.h.b16 %v2678
        %v3201 = vunpack.c.l.b16 %v2679
        %v3202 = vunpack.c.h.b16 %v2679
        %v3203 = vunpack.c.l.b16 %v2680
        %v3204 = vunpack.c.h.b16 %v2680
        %v3205 = vunpack.c.l.b16 %v2681
        %v3206 = vunpack.c.h.b16 %v2681
        %v3207 = vunpack.c.l.b16 %v2682
        %v3208 = vunpack.c.h.b16 %v2682
        %v3209 = vunpack.c.l.b16 %v2683
        %v3210 = vunpack.c.h.b16 %v2683
        %v3211 = vunpack.c.l.b16 %v2684
        %v3212 = vunpack.c.h.b16 %v2684
        %v3213 = vunpack.c.l.b16 %v2685
        %v3214 = vunpack.c.h.b16 %v2685
        %v3215 = vunpack.c.l.b16 %v2686
        %v3216 = vunpack.c.h.b16 %v2686
        %v3217 = vunpack.c.l.b16 %v2687
        %v3218 = vunpack.c.h.b16 %v2687
        %v3219 = vunpack.c.l.b16 %v2688
        %v3220 = vunpack.c.h.b16 %v2688
        %v3221 = vunpack.c.l.b16 %v2689
        %v3222 = vunpack.c.h.b16 %v2689
        %v3223 = vunpack.c.l.b16 %v2690
        %v3224 = vunpack.c.h.b16 %v2690
        %v3225 = vunpack.c.l.b16 %v2691
        %v3226 = vunpack.c.h.b16 %v2691
        %v3227 = vunpack.c.l.b16 %v2692
        %v3228 = vunpack.c.h.b16 %v2692
        %v3229 = vunpack.c.l.b16 %v2693
        %v3230 = vunpack.c.h.b16 %v2693
        %v3231 = vunpack.c.l.b16 %v2694
        %v3232 = vunpack.c.h.b16 %v2694
        %v3233 = vunpack.c.l.b16 %v2695
        %v3234 = vunpack.c.h.b16 %v2695
        %v3235 = vunpack.c.l.b16 %v2696
        %v3236 = vunpack.c.h.b16 %v2696
        %v3237 = vunpack.c.l.b16 %v2697
        %v3238 = vunpack.c.h.b16 %v2697
        %v3239 = vunpack.c.l.b16 %v2698
        %v3240 = vunpack.c.h.b16 %v2698
        %v3241 = vunpack.c.l.b16 %v2699
        %v3242 = vunpack.c.h.b16 %v2699
        %v3243 = vunpack.c.l.b16 %v2700
        %v3244 = vunpack.c.h.b16 %v2700
        %v3245 = vunpack.c.l.b16 %v2701
        %v3246 = vunpack.c.h.b16 %v2701
        %v3247 = vunpack.c.l.b16 %v2702
        %v3248 = vunpack.c.h.b16 %v2702
        %v3249 = vunpack.c.l.b16 %v2703
        %v3250 = vunpack.c.h.b16 %v2703
        %v3251 = vunpack.c.l.b16 %v2704
        %v3252 = vunpack.c.h.b16 %v2704
        %v3253 = vunpack.c.l.b16 %v2705
        %v3254 = vunpack.c.h.b16 %v2705
        %v3255 = vunpack.c.l.b16 %v2706
        %v3256 = vunpack.c.h.b16 %v2706
        %v3257 = vunpack.c.l.b16 %v2707
        %v3258 = vunpack.c.h.b16 %v2707
        %v3259 = vunpack.c.l.b16 %v2708
        %v3260 = vunpack.c.h.b16 %v2708
        %v3261 = vunpack.c.l.b16 %v2709
        %v3262 = vunpack.c.h.b16 %v2709
        %v3263 = vunpack.c.l.b16 %v2710
        %v3264 = vunpack.c.h.b16 %v2710
        %v3265 = vunpack.c.l.b16 %v2711
        %v3266 = vunpack.c.h.b16 %v2711
        %v3267 = vunpack.c.l.b16 %v2712
        %v3268 = vunpack.c.h.b16 %v2712
        %v3269 = vunpack.c.l.b16 %v2713
        %v3270 = vunpack.c.h.b16 %v2713
        %v3271 = vunpack.c.l.b16 %v2714
        %v3272 = vunpack.c.h.b16 %v2714
        %v3273 = vunpack.c.l.b16 %v2715
        %v3274 = vunpack.c.h.b16 %v2715
        %v3275 = vunpack.c.l.b16 %v2716
        %v3276 = vunpack.c.h.b16 %v2716
        %v3277 = vunpack.c.l.b16 %v2717
        %v3278 = vunpack.c.h.b16 %v2717
        %v3279 = vunpack.c.l.b16 %v2718
        %v3280 = vunpack.c.h.b16 %v2718
        %v3281 = vunpack.c.l.b16 %v2719
        %v3282 = vunpack.c.h.b16 %v2719
        %v3283 = vunpack.c.l.b16 %v2720
        %v3284 = vunpack.c.h.b16 %v2720
        %v3285 = vunpack.c.l.b16 %v2721
        %v3286 = vunpack.c.h.b16 %v2721
        %v3287 = vunpack.c.l.b16 %v2722
        %v3288 = vunpack.c.h.b16 %v2722
        %v3289 = vunpack.c.l.b16 %v2723
        %v3290 = vunpack.c.h.b16 %v2723
        %v3291 = vunpack.c.l.b16 %v2724
        %v3292 = vunpack.c.h.b16 %v2724
        %v3293 = vunpack.c.l.b16 %v2725
        %v3294 = vunpack.c.h.b16 %v2725
        %v3295 = vunpack.c.l.b16 %v2726
        %v3296 = vunpack.c.h.b16 %v2726
        %v3297 = vunpack.c.l.b16 %v2727
        %v3298 = vunpack.c.h.b16 %v2727
        %v3299 = vunpack.c.l.b16 %v2728
        %v3300 = vunpack.c.h.b16 %v2728
        %v3301 = vunpack.c.l.b16 %v2729
        %v3302 = vunpack.c.h.b16 %v2729
        %v3303 = vunpack.c.l.b16 %v2730
        %v3304 = vunpack.c.h.b16 %v2730
        %v3305 = vunpack.c.l.b16 %v2731
        %v3306 = vunpack.c.h.b16 %v2731
        %v3307 = vunpack.c.l.b16 %v2732
        %v3308 = vunpack.c.h.b16 %v2732
        %v3309 = vunpack.c.l.b16 %v2733
        %v3310 = vunpack.c.h.b16 %v2733
        %v3311 = vunpack.c.l.b16 %v2734
        %v3312 = vunpack.c.h.b16 %v2734
        %v3313 = vunpack.c.l.b16 %v2735
        %v3314 = vunpack.c.h.b16 %v2735
        %v3315 = vunpack.c.l.b16 %v2736
        %v3316 = vunpack.c.h.b16 %v2736
        %v3317 = vunpack.c.l.b16 %v2737
        %v3318 = vunpack.c.h.b16 %v2737
        %v3319 = vunpack.c.l.b16 %v2738
        %v3320 = vunpack.c.h.b16 %v2738
        %v3321 = vunpack.c.l.b16 %v2739
        %v3322 = vunpack.c.h.b16 %v2739
        %v3323 = vunpack.c.l.b16 %v2740
        %v3324 = vunpack.c.h.b16 %v2740
        %v3325 = vunpack.c.l.b16 %v2741
        %v3326 = vunpack.c.h.b16 %v2741
        %v3327 = vunpack.c.l.b16 %v2742
        %v3328 = vunpack.c.h.b16 %v2742
        %v3329 = vunpack.c.l.b16 %v2743
        %v3330 = vunpack.c.h.b16 %v2743
        %v3331 = vunpack.c.l.b16 %v2744
        %v3332 = vunpack.c.h.b16 %v2744
        %v3333 = vunpack.c.l.b16 %v2745
        %v3334 = vunpack.c.h.b16 %v2745
        %v3335 = vunpack.c.l.b16 %v2746
        %v3336 = vunpack.c.h.b16 %v2746
        %v3337 = vunpack.c.l.b16 %v2747
        %v3338 = vunpack.c.h.b16 %v2747
        %v3339 = vunpack.c.l.b16 %v2748
        %v3340 = vunpack.c.h.b16 %v2748
        %v3341 = vunpack.c.l.b16 %v2749
        %v3342 = vunpack.c.h.b16 %v2749
        %v3343 = vunpack.c.l.b16 %v2750
        %v3344 = vunpack.c.h.b16 %v2750
        %v3345 = vunpack.c.l.b16 %v2751
        %v3346 = vunpack.c.h.b16 %v2751
        %v3347 = vunpack.c.l.b16 %v2752
        %v3348 = vunpack.c.h.b16 %v2752
        %v3349 = vunpack.c.l.b16 %v2753
        %v3350 = vunpack.c.h.b16 %v2753
        %v3351 = vunpack.c.l.b16 %v2754
        %v3352 = vunpack.c.h.b16 %v2754
        %v3353 = vunpack.c.l.b16 %v2755
        %v3354 = vunpack.c.h.b16 %v2755
        %v3355 = vunpack.c.l.b16 %v2756
        %v3356 = vunpack.c.h.b16 %v2756
        %v3357 = vunpack.c.l.b16 %v2757
        %v3358 = vunpack.c.h.b16 %v2757
        %v3359 = vunpack.c.l.b16 %v2758
        %v3360 = vunpack.c.h.b16 %v2758
        %v3361 = vunpack.c.l.b16 %v2759
        %v3362 = vunpack.c.h.b16 %v2759
        %v3363 = vunpack.c.l.b16 %v2760
        %v3364 = vunpack.c.h.b16 %v2760
        %v3365 = vunpack.c.l.b16 %v2761
        %v3366 = vunpack.c.h.b16 %v2761
        %v3367 = vunpack.c.l.b16 %v2762
        %v3368 = vunpack.c.h.b16 %v2762
        %v3369 = vunpack.c.l.b16 %v2763
        %v3370 = vunpack.c.h.b16 %v2763
        %v3371 = vunpack.c.l.b16 %v2764
        %v3372 = vunpack.c.h.b16 %v2764
        %v3373 = vunpack.c.l.b16 %v2765
        %v3374 = vunpack.c.h.b16 %v2765
        %v3375 = vunpack.c.l.b16 %v2766
        %v3376 = vunpack.c.h.b16 %v2766
        %v3377 = vunpack.c.l.b16 %v2767
        %v3378 = vunpack.c.h.b16 %v2767
        %v3379 = vunpack.c.l.b16 %v2768
        %v3380 = vunpack.c.h.b16 %v2768
        %v3381 = vunpack.c.l.b16 %v2769
        %v3382 = vunpack.c.h.b16 %v2769
        %v3383 = vunpack.c.l.b16 %v2770
        %v3384 = vunpack.c.h.b16 %v2770
        %v3385 = vunpack.c.l.b16 %v2771
        %v3386 = vunpack.c.h.b16 %v2771
        %v3387 = vunpack.c.l.b16 %v2772
        %v3388 = vunpack.c.h.b16 %v2772
        %v3389 = vunpack.c.l.b16 %v2773
        %v3390 = vunpack.c.h.b16 %v2773
        %v3391 = vunpack.c.l.b16 %v2774
        %v3392 = vunpack.c.h.b16 %v2774
        %v3393 = vunpack.c.l.b16 %v2775
        %v3394 = vunpack.c.h.b16 %v2775
        %v3395 = vunpack.c.l.b16 %v2776
        %v3396 = vunpack.c.h.b16 %v2776
        %v3397 = vunpack.c.l.b16 %v2777
        %v3398 = vunpack.c.h.b16 %v2777
        %v3399 = vunpack.c.l.b16 %v2778
        %v3400 = vunpack.c.h.b16 %v2778
        %v3401 = vunpack.c.l.b16 %v2779
        %v3402 = vunpack.c.h.b16 %v2779
        %v3403 = vunpack.c.l.b16 %v2780
        %v3404 = vunpack.c.h.b16 %v2780
        %v3405 = vunpack.c.l.b16 %v2781
        %v3406 = vunpack.c.h.b16 %v2781
        %v3407 = vunpack.c.l.b16 %v2782
        %v3408 = vunpack.c.h.b16 %v2782
        %v3409 = vunpack.c.l.b16 %v2783
        %v3410 = vunpack.c.h.b16 %v2783
        %v3411 = vunpack.c.l.b16 %v2784
        %v3412 = vunpack.c.h.b16 %v2784
        %v3413 = vunpack.c.l.b16 %v2785
        %v3414 = vunpack.c.h.b16 %v2785
        %v3415 = vunpack.c.l.b16 %v2786
        %v3416 = vunpack.c.h.b16 %v2786
        %v3417 = vunpack.c.l.b16 %v2787
        %v3418 = vunpack.c.h.b16 %v2787
        %v3419 = vunpack.c.l.b16 %v2788
        %v3420 = vunpack.c.h.b16 %v2788
        %v3421 = vunpack.c.l.b16 %v2789
        %v3422 = vunpack.c.h.b16 %v2789
        %v3423 = vunpack.c.l.b16 %v2790
        %v3424 = vunpack.c.h.b16 %v2790
        %v3425 = vunpack.c.l.b16 %v2791
        %v3426 = vunpack.c.h.b16 %v2791
        %v3427 = vunpack.c.l.b16 %v2792
        %v3428 = vunpack.c.h.b16 %v2792
        %v3429 = vunpack.c.l.b16 %v2793
        %v3430 = vunpack.c.h.b16 %v2793
        %v3431 = vunpack.c.l.b16 %v2794
        %v3432 = vunpack.c.h.b16 %v2794
        %v3433 = vunpack.c.l.b16 %v2795
        %v3434 = vunpack.c.h.b16 %v2795
        %v3435 = vunpack.c.l.b16 %v2796
        %v3436 = vunpack.c.h.b16 %v2796
        %v3437 = vunpack.c.l.b16 %v2797
        %v3438 = vunpack.c.h.b16 %v2797
        %v3439 = vunpack.c.l.b16 %v2798
        %v3440 = vunpack.c.h.b16 %v2798
        %v3441 = vunpack.c.l.b16 %v2799
        %v3442 = vunpack.c.h.b16 %v2799
        %v3443 = vunpack.c.l.b16 %v2800
        %v3444 = vunpack.c.h.b16 %v2800
        %v3445 = vunpack.c.l.b16 %v2801
        %v3446 = vunpack.c.h.b16 %v2801
        %v3447 = vunpack.c.l.b16 %v2802
        %v3448 = vunpack.c.h.b16 %v2802
        %v3449 = vunpack.c.l.b16 %v2803
        %v3450 = vunpack.c.h.b16 %v2803
        %v3451 = vunpack.c.l.b16 %v2804
        %v3452 = vunpack.c.h.b16 %v2804
        %v3453 = vunpack.c.l.b16 %v2805
        %v3454 = vunpack.c.h.b16 %v2805
        %v3455 = vunpack.c.l.b16 %v2806
        %v3456 = vunpack.c.h.b16 %v2806
        %v3457 = vunpack.c.l.b16 %v2807
        %v3458 = vunpack.c.h.b16 %v2807
        %v3459 = vunpack.c.l.b16 %v2808
        %v3460 = vunpack.c.h.b16 %v2808
        %v3461 = vunpack.c.l.b16 %v2809
        %v3462 = vunpack.c.h.b16 %v2809
        %v3463 = vunpack.c.l.b16 %v2810
        %v3464 = vunpack.c.h.b16 %v2810
        %v3465 = vunpack.c.l.b16 %v2811
        %v3466 = vunpack.c.h.b16 %v2811
        %v3467 = vunpack.c.l.b16 %v2812
        %v3468 = vunpack.c.h.b16 %v2812
        %v3469 = vunpack.c.l.b16 %v2813
        %v3470 = vunpack.c.h.b16 %v2813
        %v3471 = vunpack.c.l.b16 %v2814
        %v3472 = vunpack.c.h.b16 %v2814
        %v3473 = vunpack.c.l.b16 %v2815
        %v3474 = vunpack.c.h.b16 %v2815
        %v3475 = vunpack.c.l.b16 %v2816
        %v3476 = vunpack.c.h.b16 %v2816
        %v3477 = vunpack.c.l.b16 %v2817
        %v3478 = vunpack.c.h.b16 %v2817
        %v3479 = vunpack.c.l.b16 %v2818
        %v3480 = vunpack.c.h.b16 %v2818
        %v3481 = vunpack.c.l.b16 %v2819
        %v3482 = vunpack.c.h.b16 %v2819
        %v3483 = vunpack.c.l.b16 %v2820
        %v3484 = vunpack.c.h.b16 %v2820
        %v3485 = vunpack.c.l.b16 %v2821
        %v3486 = vunpack.c.h.b16 %v2821
        %v3487 = vunpack.c.l.b16 %v2822
        %v3488 = vunpack.c.h.b16 %v2822
        %v3489 = vunpack.c.l.b16 %v2823
        %v3490 = vunpack.c.h.b16 %v2823
        %v3491 = vunpack.c.l.b16 %v2824
        %v3492 = vunpack.c.h.b16 %v2824
        %v3493 = vunpack.c.l.b16 %v2825
        %v3494 = vunpack.c.h.b16 %v2825
        %v3495 = vunpack.c.l.b16 %v2826
        %v3496 = vunpack.c.h.b16 %v2826
        %v3497 = vunpack.c.l.b16 %v2827
        %v3498 = vunpack.c.h.b16 %v2827
        %v3499 = vunpack.c.l.b16 %v2828
        %v3500 = vunpack.c.h.b16 %v2828
        %v3501 = vunpack.c.l.b16 %v2829
        %v3502 = vunpack.c.h.b16 %v2829
        %v3503 = vunpack.c.l.b16 %v2830
        %v3504 = vunpack.c.h.b16 %v2830
        %v3505 = vunpack.c.l.b16 %v2831
        %v3506 = vunpack.c.h.b16 %v2831
        %v3507 = vunpack.c.l.b16 %v2832
        %v3508 = vunpack.c.h.b16 %v2832
        %v3509 = vunpack.c.l.b16 %v2833
        %v3510 = vunpack.c.h.b16 %v2833
        %v3511 = vunpack.c.l.b16 %v2834
        %v3512 = vunpack.c.h.b16 %v2834
        %v3513 = vunpack.c.l.b16 %v2835
        %v3514 = vunpack.c.h.b16 %v2835
        %v3515 = vpack.c.b16 %v3091, %v3083
        %v3516 = vpack.c.b16 %v3092, %v3084
        %v3517 = vpack.c.b16 %v3093, %v3085
        %v3518 = vpack.c.b16 %v3094, %v3086
        %v3519 = vpack.c.b16 %v3095, %v3087
        %v3520 = vpack.c.b16 %v3096, %v3088
        %v3521 = vpack.c.b16 %v3097, %v3089
        %v3522 = vpack.c.b16 %v3098, %v3090
        %v3523 = vpack.c.b16 %v3107, %v3099
        %v3524 = vpack.c.b16 %v3108, %v3100
        %v3525 = vpack.c.b16 %v3109, %v3101
        %v3526 = vpack.c.b16 %v3110, %v3102
        %v3527 = vpack.c.b16 %v3111, %v3103
        %v3528 = vpack.c.b16 %v3112, %v3104
        %v3529 = vpack.c.b16 %v3113, %v3105
        %v3530 = vpack.c.b16 %v3114, %v3106
        %v3531 = vpack.c.b16 %v3123, %v3115
        %v3532 = vpack.c.b16 %v3124, %v3116
        %v3533 = vpack.c.b16 %v3125, %v3117
        %v3534 = vpack.c.b16 %v3126, %v3118
        %v3535 = vpack.c.b16 %v3127, %v3119
        %v3536 = vpack.c.b16 %v3128, %v3120
        %v3537 = vpack.c.b16 %v3129, %v3121
        %v3538 = vpack.c.b16 %v3130, %v3122
        %v3539 = vpack.c.b16 %v3139, %v3131
        %v3540 = vpack.c.b16 %v3140, %v3132
        %v3541 = vpack.c.b16 %v3141, %v3133
        %v3542 = vpack.c.b16 %v3142, %v3134
        %v3543 = vpack.c.b16 %v3143, %v3135
        %v3544 = vpack.c.b16 %v3144, %v3136
        %v3545 = vpack.c.b16 %v3145, %v3137
        %v3546 = vpack.c.b16 %v3146, %v3138
        %v3547 = vpack.c.b16 %v3155, %v3147
        %v3548 = vpack.c.b16 %v3156, %v3148
        %v3549 = vpack.c.b16 %v3157, %v3149
        %v3550 = vpack.c.b16 %v3158, %v3150
        %v3551 = vpack.c.b16 %v3159, %v3151
        %v3552 = vpack.c.b16 %v3160, %v3152
        %v3553 = vpack.c.b16 %v3161, %v3153
        %v3554 = vpack.c.b16 %v3162, %v3154
        %v3555 = vpack.c.b16 %v3171, %v3163
        %v3556 = vpack.c.b16 %v3172, %v3164
        %v3557 = vpack.c.b16 %v3173, %v3165
        %v3558 = vpack.c.b16 %v3174, %v3166
        %v3559 = vpack.c.b16 %v3175, %v3167
        %v3560 = vpack.c.b16 %v3176, %v3168
        %v3561 = vpack.c.b16 %v3177, %v3169
        %v3562 = vpack.c.b16 %v3178, %v3170
        %v3563 = vpack.c.b16 %v3187, %v3179
        %v3564 = vpack.c.b16 %v3188, %v3180
        %v3565 = vpack.c.b16 %v3189, %v3181
        %v3566 = vpack.c.b16 %v3190, %v3182
        %v3567 = vpack.c.b16 %v3191, %v3183
        %v3568 = vpack.c.b16 %v3192, %v3184
        %v3569 = vpack.c.b16 %v3193, %v3185
        %v3570 = vpack.c.b16 %v3194, %v3186
        %v3571 = vpack.c.b16 %v3203, %v3195
        %v3572 = vpack.c.b16 %v3204, %v3196
        %v3573 = vpack.c.b16 %v3205, %v3197
        %v3574 = vpack.c.b16 %v3206, %v3198
        %v3575 = vpack.c.b16 %v3207, %v3199
        %v3576 = vpack.c.b16 %v3208, %v3200
        %v3577 = vpack.c.b16 %v3209, %v3201
        %v3578 = vpack.c.b16 %v3210, %v3202
        %v3579 = vpack.c.b16 %v3219, %v3211
        %v3580 = vpack.c.b16 %v3220, %v3212
        %v3581 = vpack.c.b16 %v3221, %v3213
        %v3582 = vpack.c.b16 %v3222, %v3214
        %v3583 = vpack.c.b16 %v3223, %v3215
        %v3584 = vpack.c.b16 %v3224, %v3216
        %v3585 = vpack.c.b16 %v3225, %v3217
        %v3586 = vpack.c.b16 %v3226, %v3218
        %v3587 = vpack.c.b16 %v3235, %v3227
        %v3588 = vpack.c.b16 %v3236, %v3228
        %v3589 = vpack.c.b16 %v3237, %v3229
        %v3590 = vpack.c.b16 %v3238, %v3230
        %v3591 = vpack.c.b16 %v3239, %v3231
        %v3592 = vpack.c.b16 %v3240, %v3232
        %v3593 = vpack.c.b16 %v3241, %v3233
        %v3594 = vpack.c.b16 %v3242, %v3234
        %v3595 = vpack.c.b16 %v3251, %v3243
        %v3596 = vpack.c.b16 %v3252, %v3244
        %v3597 = vpack.c.b16 %v3253, %v3245
        %v3598 = vpack.c.b16 %v3254, %v3246
        %v3599 = vpack.c.b16 %v3255, %v3247
        %v3600 = vpack.c.b16 %v3256, %v3248
        %v3601 = vpack.c.b16 %v3257, %v3249
        %v3602 = vpack.c.b16 %v3258, %v3250
        %v3603 = vpack.c.b16 %v3267, %v3259
        %v3604 = vpack.c.b16 %v3268, %v3260
        %v3605 = vpack.c.b16 %v3269, %v3261
        %v3606 = vpack.c.b16 %v3270, %v3262
        %v3607 = vpack.c.b16 %v3271, %v3263
        %v3608 = vpack.c.b16 %v3272, %v3264
        %v3609 = vpack.c.b16 %v3273, %v3265
        %v3610 = vpack.c.b16 %v3274, %v3266
        %v3611 = vpack.c.b16 %v3283, %v3275
        %v3612 = vpack.c.b16 %v3284, %v3276
        %v3613 = vpack.c.b16 %v3285, %v3277
        %v3614 = vpack.c.b16 %v3286, %v3278
        %v3615 = vpack.c.b16 %v3287, %v3279
        %v3616 = vpack.c.b16 %v3288, %v3280
        %v3617 = vpack.c.b16 %v3289, %v3281
        %v3618 = vpack.c.b16 %v3290, %v3282
        %v3619 = vpack.c.b16 %v3299, %v3291
        %v3620 = vpack.c.b16 %v3300, %v3292
        %v3621 = vpack.c.b16 %v3301, %v3293
        %v3622 = vpack.c.b16 %v3302, %v3294
        %v3623 = vpack.c.b16 %v3303, %v3295
        %v3624 = vpack.c.b16 %v3304, %v3296
        %v3625 = vpack.c.b16 %v3305, %v3297
        %v3626 = vpack.c.b16 %v3306, %v3298
        %v3627 = vpack.c.b16 %v3315, %v3307
        %v3628 = vpack.c.b16 %v3316, %v3308
        %v3629 = vpack.c.b16 %v3317, %v3309
        %v3630 = vpack.c.b16 %v3318, %v3310
        %v3631 = vpack.c.b16 %v3319, %v3311
        %v3632 = vpack.c.b16 %v3320, %v3312
        %v3633 = vpack.c.b16 %v3321, %v3313
        %v3634 = vpack.c.b16 %v3322, %v3314
        %v3635 = vpack.c.b16 %v3331, %v3323
        %v3636 = vpack.c.b16 %v3332, %v3324
        %v3637 = vpack.c.b16 %v3333, %v3325
        %v3638 = vpack.c.b16 %v3334, %v3326
        %v3639 = vpack.c.b16 %v3335, %v3327
        %v3640 = vpack.c.b16 %v3336, %v3328
        %v3641 = vpack.c.b16 %v3337, %v3329
        %v3642 = vpack.c.b16 %v3338, %v3330
        %v3643 = vpack.c.b16 %v3347, %v3339
        %v3644 = vpack.c.b16 %v3348, %v3340
        %v3645 = vpack.c.b16 %v3349, %v3341
        %v3646 = vpack.c.b16 %v3350, %v3342
        %v3647 = vpack.c.b16 %v3351, %v3343
        %v3648 = vpack.c.b16 %v3352, %v3344
        %v3649 = vpack.c.b16 %v3353, %v3345
        %v3650 = vpack.c.b16 %v3354, %v3346
        %v3651 = vpack.c.b16 %v3363, %v3355
        %v3652 = vpack.c.b16 %v3364, %v3356
        %v3653 = vpack.c.b16 %v3365, %v3357
        %v3654 = vpack.c.b16 %v3366, %v3358
        %v3655 = vpack.c.b16 %v3367, %v3359
        %v3656 = vpack.c.b16 %v3368, %v3360
        %v3657 = vpack.c.b16 %v3369, %v3361
        %v3658 = vpack.c.b16 %v3370, %v3362
        %v3659 = vpack.c.b16 %v3379, %v3371
        %v3660 = vpack.c.b16 %v3380, %v3372
        %v3661 = vpack.c.b16 %v3381, %v3373
        %v3662 = vpack.c.b16 %v3382, %v3374
        %v3663 = vpack.c.b16 %v3383, %v3375
        %v3664 = vpack.c.b16 %v3384, %v3376
        %v3665 = vpack.c.b16 %v3385, %v3377
        %v3666 = vpack.c.b16 %v3386, %v3378
        %v3667 = vpack.c.b16 %v3395, %v3387
        %v3668 = vpack.c.b16 %v3396, %v3388
        %v3669 = vpack.c.b16 %v3397, %v3389
        %v3670 = vpack.c.b16 %v3398, %v3390
        %v3671 = vpack.c.b16 %v3399, %v3391
        %v3672 = vpack.c.b16 %v3400, %v3392
        %v3673 = vpack.c.b16 %v3401, %v3393
        %v3674 = vpack.c.b16 %v3402, %v3394
        %v3675 = vpack.c.b16 %v3411, %v3403
        %v3676 = vpack.c.b16 %v3412, %v3404
        %v3677 = vpack.c.b16 %v3413, %v3405
        %v3678 = vpack.c.b16 %v3414, %v3406
        %v3679 = vpack.c.b16 %v3415, %v3407
        %v3680 = vpack.c.b16 %v3416, %v3408
        %v3681 = vpack.c.b16 %v3417, %v3409
        %v3682 = vpack.c.b16 %v3418, %v3410
        %v3683 = vpack.c.b16 %v3427, %v3419
        %v3684 = vpack.c.b16 %v3428, %v3420
        %v3685 = vpack.c.b16 %v3429, %v3421
        %v3686 = vpack.c.b16 %v3430, %v3422
        %v3687 = vpack.c.b16 %v3431, %v3423
        %v3688 = vpack.c.b16 %v3432, %v3424
        %v3689 = vpack.c.b16 %v3433, %v3425
        %v3690 = vpack.c.b16 %v3434, %v3426
        %v3691 = vpack.c.b16 %v3443, %v3435
        %v3692 = vpack.c.b16 %v3444, %v3436
        %v3693 = vpack.c.b16 %v3445, %v3437
        %v3694 = vpack.c.b16 %v3446, %v3438
        %v3695 = vpack.c.b16 %v3447, %v3439
        %v3696 = vpack.c.b16 %v3448, %v3440
        %v3697 = vpack.c.b16 %v3449, %v3441
        %v3698 = vpack.c.b16 %v3450, %v3442
        %v3699 = vpack.c.b16 %v3459, %v3451
        %v3700 = vpack.c.b16 %v3460, %v3452
        %v3701 = vpack.c.b16 %v3461, %v3453
        %v3702 = vpack.c.b16 %v3462, %v3454
        %v3703 = vpack.c.b16 %v3463, %v3455
        %v3704 = vpack.c.b16 %v3464, %v3456
        %v3705 = vpack.c.b16 %v3465, %v3457
        %v3706 = vpack.c.b16 %v3466, %v3458
        %v3707 = vpack.c.b16 %v3475, %v3467
        %v3708 = vpack.c.b16 %v3476, %v3468
        %v3709 = vpack.c.b16 %v3477, %v3469
        %v3710 = vpack.c.b16 %v3478, %v3470
        %v3711 = vpack.c.b16 %v3479, %v3471
        %v3712 = vpack.c.b16 %v3480, %v3472
        %v3713 = vpack.c.b16 %v3481, %v3473
        %v3714 = vpack.c.b16 %v3482, %v3474
        %v3715 = vpack.c.b16 %v3491, %v3483
        %v3716 = vpack.c.b16 %v3492, %v3484
        %v3717 = vpack.c.b16 %v3493, %v3485
        %v3718 = vpack.c.b16 %v3494, %v3486
        %v3719 = vpack.c.b16 %v3495, %v3487
        %v3720 = vpack.c.b16 %v3496, %v3488
        %v3721 = vpack.c.b16 %v3497, %v3489
        %v3722 = vpack.c.b16 %v3498, %v3490
        %v3723 = vpack.c.b16 %v3507, %v3499
        %v3724 = vpack.c.b16 %v3508, %v3500
        %v3725 = vpack.c.b16 %v3509, %v3501
        %v3726 = vpack.c.b16 %v3510, %v3502
        %v3727 = vpack.c.b16 %v3511, %v3503
        %v3728 = vpack.c.b16 %v3512, %v3504
        %v3729 = vpack.c.b16 %v3513, %v3505
        %v3730 = vpack.c.b16 %v3514, %v3506
        %vm3947 = vcmask 392192
        %v3949 = vsel %vm3947, %v2863, 0
        %3951 = vmatprep.subr.bf16.mxu0 %v3572
        %3952 = vmatpush1.bf16.msra.mxu0 %v3571
        %3953 = vmatprep.subr.bf16.mxu0 %v3564
        %3954 = vmatpush1.bf16.msra.mxu0 %v3563
        %3955 = vmatprep.subr.bf16.mxu0 %v3556
        %3956 = vmatpush1.bf16.msra.mxu0 %v3555
        %3957 = vmatprep.subr.bf16.mxu0 %v3548
        %3958 = vmatpush1.bf16.msra.mxu0 %v3547
        %3959 = vmatprep.subr.bf16.mxu0 %v3540
        %3960 = vmatpush1.bf16.msra.mxu0 %v3539
        %3961 = vmatprep.subr.bf16.mxu0 %v3532
        %3962 = vmatpush1.bf16.msra.mxu0 %v3531
        %3963 = vmatprep.subr.bf16.mxu0 %v3524
        %3964 = vmatpush1.bf16.msra.mxu0 %v3523
        %3965 = vmatprep.subr.bf16.mxu0 %v3516
        %3966 = vmatpush1.bf16.msra.mxu0 %v3515
        %3967 = vmatprep.subr.bf16.mxu0 %v3636
        %3968 = vmatpush2.bf16.msra.mxu0 %v3635
        %3969 = vmatprep.subr.bf16.mxu0 %v3628
        %3970 = vmatpush2.bf16.msra.mxu0 %v3627
        %3971 = vmatprep.subr.bf16.mxu0 %v3620
        %3972 = vmatpush2.bf16.msra.mxu0 %v3619
        %3973 = vmatprep.subr.bf16.mxu0 %v3612
        %3974 = vmatpush2.bf16.msra.mxu0 %v3611
        %3975 = vmatprep.subr.bf16.mxu0 %v3604
        %3976 = vmatpush2.bf16.msra.mxu0 %v3603
        %3977 = vmatprep.subr.bf16.mxu0 %v3596
        %3978 = vmatpush2.bf16.msra.mxu0 %v3595
        %3979 = vmatprep.subr.bf16.mxu0 %v3588
        %3980 = vmatpush2.bf16.msra.mxu0 %v3587
        %3981 = vmatprep.subr.bf16.mxu0 %v3580
        %3982 = vmatpush2.bf16.msra.mxu0 %v3579
        %3983 = vmatprep.mubr.bf16.mxu0 %v2861
        %3984 = vmatmul.mubr.bf16.gmra.mxu0 %v2860
        %v3985 = vpop.f32.mrf.mxu0
        %v3986 = vadd.f32 %v2841, %v3985
        %v3987 = vpop.f32.mrf.mxu0
        %v3988 = vadd.f32 %v2841, %v3987
        %v3989 = vpop.f32.mrf.mxu0
        %v3990 = vadd.f32 %v2846, %v3989
        %v3991 = vpop.f32.mrf.mxu0
        %v3992 = vadd.f32 %v2846, %v3991
        %3993 = vdwg.mxu0
        %3994 = vmatprep.subr.bf16.mxu0 %v3700
        %3995 = vmatpush1.bf16.msra.mxu0 %v3699
        %3996 = vmatprep.subr.bf16.mxu0 %v3692
        %3997 = vmatpush1.bf16.msra.mxu0 %v3691
        %3998 = vmatprep.subr.bf16.mxu0 %v3684
        %3999 = vmatpush1.bf16.msra.mxu0 %v3683
        %4000 = vmatprep.subr.bf16.mxu0 %v3676
        %4001 = vmatpush1.bf16.msra.mxu0 %v3675
        %4002 = vmatprep.subr.bf16.mxu0 %v3668
        %4003 = vmatpush1.bf16.msra.mxu0 %v3667
        %4004 = vmatprep.subr.bf16.mxu0 %v3660
        %4005 = vmatpush1.bf16.msra.mxu0 %v3659
        %4006 = vmatprep.subr.bf16.mxu0 %v3652
        %4007 = vmatpush1.bf16.msra.mxu0 %v3651
        %4008 = vmatprep.subr.bf16.mxu0 %v3644
        %4009 = vmatpush1.bf16.msra.mxu0 %v3643
        %4010 = vmatprep.subr.bf16.mxu0 0
        %4011 = vmatpush2.bf16.msra.mxu0 0
        %4012 = vmatprep.subr.bf16.mxu0 0
        %4013 = vmatpush2.bf16.msra.mxu0 0
        %4014 = vmatprep.subr.bf16.mxu0 0
        %4015 = vmatpush2.bf16.msra.mxu0 0
        %4016 = vmatprep.subr.bf16.mxu0 0
        %4017 = vmatpush2.bf16.msra.mxu0 0
        %4018 = vmatprep.subr.bf16.mxu0 0
        %4019 = vmatpush2.bf16.msra.mxu0 0
        %4020 = vmatprep.subr.bf16.mxu0 %v3724
        %4021 = vmatpush2.bf16.msra.mxu0 %v3723
        %4022 = vmatprep.subr.bf16.mxu0 %v3716
        %4023 = vmatpush2.bf16.msra.mxu0 %v3715
        %4024 = vmatprep.subr.bf16.mxu0 %v3708
        %4025 = vmatpush2.bf16.msra.mxu0 %v3707
        %4026 = vmatprep.mubr.bf16.mxu0 %v3949
        %4027 = vmatmul.mubr.bf16.gmra.mxu0 %v2862
        %v4028 = vpop.f32.mrf.mxu0
        %v4029 = vadd.f32 %v3986, %v4028
        %v4030 = vpop.f32.mrf.mxu0
        %v4031 = vadd.f32 %v3988, %v4030
        %v4032 = vpop.f32.mrf.mxu0
        %v4033 = vadd.f32 %v3990, %v4032
        %v4034 = vpop.f32.mrf.mxu0
        %v4035 = vadd.f32 %v3992, %v4034
        %4036 = vdwg.mxu0
        %4037 = vmatprep.subr.bf16.mxu0 %v3574
        %4038 = vmatpush1.bf16.msra.mxu0 %v3573
        %4039 = vmatprep.subr.bf16.mxu0 %v3566
        %4040 = vmatpush1.bf16.msra.mxu0 %v3565
        %4041 = vmatprep.subr.bf16.mxu0 %v3558
        %4042 = vmatpush1.bf16.msra.mxu0 %v3557
        %4043 = vmatprep.subr.bf16.mxu0 %v3550
        %4044 = vmatpush1.bf16.msra.mxu0 %v3549
        %4045 = vmatprep.subr.bf16.mxu0 %v3542
        %4046 = vmatpush1.bf16.msra.mxu0 %v3541
        %4047 = vmatprep.subr.bf16.mxu0 %v3534
        %4048 = vmatpush1.bf16.msra.mxu0 %v3533
        %4049 = vmatprep.subr.bf16.mxu0 %v3526
        %4050 = vmatpush1.bf16.msra.mxu0 %v3525
        %4051 = vmatprep.subr.bf16.mxu0 %v3518
        %4052 = vmatpush1.bf16.msra.mxu0 %v3517
        %4053 = vmatprep.subr.bf16.mxu0 %v3638
        %4054 = vmatpush2.bf16.msra.mxu0 %v3637
        %4055 = vmatprep.subr.bf16.mxu0 %v3630
        %4056 = vmatpush2.bf16.msra.mxu0 %v3629
        %4057 = vmatprep.subr.bf16.mxu0 %v3622
        %4058 = vmatpush2.bf16.msra.mxu0 %v3621
        %4059 = vmatprep.subr.bf16.mxu0 %v3614
        %4060 = vmatpush2.bf16.msra.mxu0 %v3613
        %4061 = vmatprep.subr.bf16.mxu0 %v3606
        %4062 = vmatpush2.bf16.msra.mxu0 %v3605
        %4063 = vmatprep.subr.bf16.mxu0 %v3598
        %4064 = vmatpush2.bf16.msra.mxu0 %v3597
        %4065 = vmatprep.subr.bf16.mxu0 %v3590
        %4066 = vmatpush2.bf16.msra.mxu0 %v3589
        %4067 = vmatprep.subr.bf16.mxu0 %v3582
        %4068 = vmatpush2.bf16.msra.mxu0 %v3581
        %4069 = vmatprep.mubr.bf16.mxu0 %v2861
        %4070 = vmatmul.mubr.bf16.gmra.mxu0 %v2860
        %v4071 = vpop.f32.mrf.mxu0
        %v4072 = vadd.f32 %v2841, %v4071
        %v4073 = vpop.f32.mrf.mxu0
        %v4074 = vadd.f32 %v2841, %v4073
        %v4075 = vpop.f32.mrf.mxu0
        %v4076 = vadd.f32 %v2846, %v4075
        %v4077 = vpop.f32.mrf.mxu0
        %v4078 = vadd.f32 %v2846, %v4077
        %4079 = vdwg.mxu0
        %4080 = vmatprep.subr.bf16.mxu0 %v3702
        %4081 = vmatpush1.bf16.msra.mxu0 %v3701
        %4082 = vmatprep.subr.bf16.mxu0 %v3694
        %4083 = vmatpush1.bf16.msra.mxu0 %v3693
        %4084 = vmatprep.subr.bf16.mxu0 %v3686
        %4085 = vmatpush1.bf16.msra.mxu0 %v3685
        %4086 = vmatprep.subr.bf16.mxu0 %v3678
        %4087 = vmatpush1.bf16.msra.mxu0 %v3677
        %4088 = vmatprep.subr.bf16.mxu0 %v3670
        %4089 = vmatpush1.bf16.msra.mxu0 %v3669
        %4090 = vmatprep.subr.bf16.mxu0 %v3662
        %4091 = vmatpush1.bf16.msra.mxu0 %v3661
        %4092 = vmatprep.subr.bf16.mxu0 %v3654
        %4093 = vmatpush1.bf16.msra.mxu0 %v3653
        %4094 = vmatprep.subr.bf16.mxu0 %v3646
        %4095 = vmatpush1.bf16.msra.mxu0 %v3645
        %4096 = vmatprep.subr.bf16.mxu0 0
        %4097 = vmatpush2.bf16.msra.mxu0 0
        %4098 = vmatprep.subr.bf16.mxu0 0
        %4099 = vmatpush2.bf16.msra.mxu0 0
        %4100 = vmatprep.subr.bf16.mxu0 0
        %4101 = vmatpush2.bf16.msra.mxu0 0
        %4102 = vmatprep.subr.bf16.mxu0 0
        %4103 = vmatpush2.bf16.msra.mxu0 0
        %4104 = vmatprep.subr.bf16.mxu0 0
        %4105 = vmatpush2.bf16.msra.mxu0 0
        %4106 = vmatprep.subr.bf16.mxu0 %v3726
        %4107 = vmatpush2.bf16.msra.mxu0 %v3725
        %4108 = vmatprep.subr.bf16.mxu0 %v3718
        %4109 = vmatpush2.bf16.msra.mxu0 %v3717
        %4110 = vmatprep.subr.bf16.mxu0 %v3710
        %4111 = vmatpush2.bf16.msra.mxu0 %v3709
        %4112 = vmatprep.mubr.bf16.mxu0 %v3949
        %4113 = vmatmul.mubr.bf16.gmra.mxu0 %v2862
        %v4114 = vpop.f32.mrf.mxu0
        %v4115 = vadd.f32 %v4072, %v4114
        %v4116 = vpop.f32.mrf.mxu0
        %v4117 = vadd.f32 %v4074, %v4116
        %v4118 = vpop.f32.mrf.mxu0
        %v4119 = vadd.f32 %v4076, %v4118
        %v4120 = vpop.f32.mrf.mxu0
        %v4121 = vadd.f32 %v4078, %v4120
        %4122 = vdwg.mxu0
        %4123 = vmatprep.subr.bf16.mxu0 %v3576
        %4124 = vmatpush1.bf16.msra.mxu0 %v3575
        %4125 = vmatprep.subr.bf16.mxu0 %v3568
        %4126 = vmatpush1.bf16.msra.mxu0 %v3567
        %4127 = vmatprep.subr.bf16.mxu0 %v3560
        %4128 = vmatpush1.bf16.msra.mxu0 %v3559
        %4129 = vmatprep.subr.bf16.mxu0 %v3552
        %4130 = vmatpush1.bf16.msra.mxu0 %v3551
        %4131 = vmatprep.subr.bf16.mxu0 %v3544
        %4132 = vmatpush1.bf16.msra.mxu0 %v3543
        %4133 = vmatprep.subr.bf16.mxu0 %v3536
        %4134 = vmatpush1.bf16.msra.mxu0 %v3535
        %4135 = vmatprep.subr.bf16.mxu0 %v3528
        %4136 = vmatpush1.bf16.msra.mxu0 %v3527
        %4137 = vmatprep.subr.bf16.mxu0 %v3520
        %4138 = vmatpush1.bf16.msra.mxu0 %v3519
        %4139 = vmatprep.subr.bf16.mxu0 %v3640
        %4140 = vmatpush2.bf16.msra.mxu0 %v3639
        %4141 = vmatprep.subr.bf16.mxu0 %v3632
        %4142 = vmatpush2.bf16.msra.mxu0 %v3631
        %4143 = vmatprep.subr.bf16.mxu0 %v3624
        %4144 = vmatpush2.bf16.msra.mxu0 %v3623
        %4145 = vmatprep.subr.bf16.mxu0 %v3616
        %4146 = vmatpush2.bf16.msra.mxu0 %v3615
        %4147 = vmatprep.subr.bf16.mxu0 %v3608
        %4148 = vmatpush2.bf16.msra.mxu0 %v3607
        %4149 = vmatprep.subr.bf16.mxu0 %v3600
        %4150 = vmatpush2.bf16.msra.mxu0 %v3599
        %4151 = vmatprep.subr.bf16.mxu0 %v3592
        %4152 = vmatpush2.bf16.msra.mxu0 %v3591
        %4153 = vmatprep.subr.bf16.mxu0 %v3584
        %4154 = vmatpush2.bf16.msra.mxu0 %v3583
        %4155 = vmatprep.mubr.bf16.mxu0 %v2861
        %4156 = vmatmul.mubr.bf16.gmra.mxu0 %v2860
        %v4157 = vpop.f32.mrf.mxu0
        %v4158 = vadd.f32 %v2841, %v4157
        %v4159 = vpop.f32.mrf.mxu0
        %v4160 = vadd.f32 %v2841, %v4159
        %v4161 = vpop.f32.mrf.mxu0
        %v4162 = vadd.f32 %v2846, %v4161
        %v4163 = vpop.f32.mrf.mxu0
        %v4164 = vadd.f32 %v2846, %v4163
        %4165 = vdwg.mxu0
        %4166 = vmatprep.subr.bf16.mxu0 %v3704
        %4167 = vmatpush1.bf16.msra.mxu0 %v3703
        %4168 = vmatprep.subr.bf16.mxu0 %v3696
        %4169 = vmatpush1.bf16.msra.mxu0 %v3695
        %4170 = vmatprep.subr.bf16.mxu0 %v3688
        %4171 = vmatpush1.bf16.msra.mxu0 %v3687
        %4172 = vmatprep.subr.bf16.mxu0 %v3680
        %4173 = vmatpush1.bf16.msra.mxu0 %v3679
        %4174 = vmatprep.subr.bf16.mxu0 %v3672
        %4175 = vmatpush1.bf16.msra.mxu0 %v3671
        %4176 = vmatprep.subr.bf16.mxu0 %v3664
        %4177 = vmatpush1.bf16.msra.mxu0 %v3663
        %4178 = vmatprep.subr.bf16.mxu0 %v3656
        %4179 = vmatpush1.bf16.msra.mxu0 %v3655
        %4180 = vmatprep.subr.bf16.mxu0 %v3648
        %4181 = vmatpush1.bf16.msra.mxu0 %v3647
        %4182 = vmatprep.subr.bf16.mxu0 0
        %4183 = vmatpush2.bf16.msra.mxu0 0
        %4184 = vmatprep.subr.bf16.mxu0 0
        %4185 = vmatpush2.bf16.msra.mxu0 0
        %4186 = vmatprep.subr.bf16.mxu0 0
        %4187 = vmatpush2.bf16.msra.mxu0 0
        %4188 = vmatprep.subr.bf16.mxu0 0
        %4189 = vmatpush2.bf16.msra.mxu0 0
        %4190 = vmatprep.subr.bf16.mxu0 0
        %4191 = vmatpush2.bf16.msra.mxu0 0
        %4192 = vmatprep.subr.bf16.mxu0 %v3728
        %4193 = vmatpush2.bf16.msra.mxu0 %v3727
        %4194 = vmatprep.subr.bf16.mxu0 %v3720
        %4195 = vmatpush2.bf16.msra.mxu0 %v3719
        %4196 = vmatprep.subr.bf16.mxu0 %v3712
        %4197 = vmatpush2.bf16.msra.mxu0 %v3711
        %4198 = vmatprep.mubr.bf16.mxu0 %v3949
        %4199 = vmatmul.mubr.bf16.gmra.mxu0 %v2862
        %v4200 = vpop.f32.mrf.mxu0
        %v4201 = vadd.f32 %v4158, %v4200
        %v4202 = vpop.f32.mrf.mxu0
        %v4203 = vadd.f32 %v4160, %v4202
        %v4204 = vpop.f32.mrf.mxu0
        %v4205 = vadd.f32 %v4162, %v4204
        %v4206 = vpop.f32.mrf.mxu0
        %v4207 = vadd.f32 %v4164, %v4206
        %4208 = vdwg.mxu0
        %4209 = vmatprep.subr.bf16.mxu0 %v3578
        %4210 = vmatpush1.bf16.msra.mxu0 %v3577
        %4211 = vmatprep.subr.bf16.mxu0 %v3570
        %4212 = vmatpush1.bf16.msra.mxu0 %v3569
        %4213 = vmatprep.subr.bf16.mxu0 %v3562
        %4214 = vmatpush1.bf16.msra.mxu0 %v3561
        %4215 = vmatprep.subr.bf16.mxu0 %v3554
        %4216 = vmatpush1.bf16.msra.mxu0 %v3553
        %4217 = vmatprep.subr.bf16.mxu0 %v3546
        %4218 = vmatpush1.bf16.msra.mxu0 %v3545
        %4219 = vmatprep.subr.bf16.mxu0 %v3538
        %4220 = vmatpush1.bf16.msra.mxu0 %v3537
        %4221 = vmatprep.subr.bf16.mxu0 %v3530
        %4222 = vmatpush1.bf16.msra.mxu0 %v3529
        %4223 = vmatprep.subr.bf16.mxu0 %v3522
        %4224 = vmatpush1.bf16.msra.mxu0 %v3521
        %4225 = vmatprep.subr.bf16.mxu0 %v3642
        %4226 = vmatpush2.bf16.msra.mxu0 %v3641
        %4227 = vmatprep.subr.bf16.mxu0 %v3634
        %4228 = vmatpush2.bf16.msra.mxu0 %v3633
        %4229 = vmatprep.subr.bf16.mxu0 %v3626
        %4230 = vmatpush2.bf16.msra.mxu0 %v3625
        %4231 = vmatprep.subr.bf16.mxu0 %v3618
        %4232 = vmatpush2.bf16.msra.mxu0 %v3617
        %4233 = vmatprep.subr.bf16.mxu0 %v3610
        %4234 = vmatpush2.bf16.msra.mxu0 %v3609
        %4235 = vmatprep.subr.bf16.mxu0 %v3602
        %4236 = vmatpush2.bf16.msra.mxu0 %v3601
        %4237 = vmatprep.subr.bf16.mxu0 %v3594
        %4238 = vmatpush2.bf16.msra.mxu0 %v3593
        %4239 = vmatprep.subr.bf16.mxu0 %v3586
        %4240 = vmatpush2.bf16.msra.mxu0 %v3585
        %4241 = vmatprep.mubr.bf16.mxu0 %v2861
        %4242 = vmatmul.mubr.bf16.gmra.mxu0 %v2860
        %v4243 = vpop.f32.mrf.mxu0
        %v4244 = vadd.f32 %v2841, %v4243
        %v4245 = vpop.f32.mrf.mxu0
        %v4246 = vadd.f32 %v2841, %v4245
        %v4247 = vpop.f32.mrf.mxu0
        %v4248 = vadd.f32 %v2846, %v4247
        %v4249 = vpop.f32.mrf.mxu0
        %v4250 = vadd.f32 %v2846, %v4249
        %4251 = vdwg.mxu0
        %4252 = vmatprep.subr.bf16.mxu0 %v3706
        %4253 = vmatpush1.bf16.msra.mxu0 %v3705
        %4254 = vmatprep.subr.bf16.mxu0 %v3698
        %4255 = vmatpush1.bf16.msra.mxu0 %v3697
        %4256 = vmatprep.subr.bf16.mxu0 %v3690
        %4257 = vmatpush1.bf16.msra.mxu0 %v3689
        %4258 = vmatprep.subr.bf16.mxu0 %v3682
        %4259 = vmatpush1.bf16.msra.mxu0 %v3681
        %4260 = vmatprep.subr.bf16.mxu0 %v3674
        %4261 = vmatpush1.bf16.msra.mxu0 %v3673
        %4262 = vmatprep.subr.bf16.mxu0 %v3666
        %4263 = vmatpush1.bf16.msra.mxu0 %v3665
        %4264 = vmatprep.subr.bf16.mxu0 %v3658
        %4265 = vmatpush1.bf16.msra.mxu0 %v3657
        %4266 = vmatprep.subr.bf16.mxu0 %v3650
        %4267 = vmatpush1.bf16.msra.mxu0 %v3649
        %4268 = vmatprep.subr.bf16.mxu0 0
        %4269 = vmatpush2.bf16.msra.mxu0 0
        %4270 = vmatprep.subr.bf16.mxu0 0
        %4271 = vmatpush2.bf16.msra.mxu0 0
        %4272 = vmatprep.subr.bf16.mxu0 0
        %4273 = vmatpush2.bf16.msra.mxu0 0
        %4274 = vmatprep.subr.bf16.mxu0 0
        %4275 = vmatpush2.bf16.msra.mxu0 0
        %4276 = vmatprep.subr.bf16.mxu0 0
        %4277 = vmatpush2.bf16.msra.mxu0 0
        %4278 = vmatprep.subr.bf16.mxu0 %v3730
        %4279 = vmatpush2.bf16.msra.mxu0 %v3729
        %4280 = vmatprep.subr.bf16.mxu0 %v3722
        %4281 = vmatpush2.bf16.msra.mxu0 %v3721
        %4282 = vmatprep.subr.bf16.mxu0 %v3714
        %4283 = vmatpush2.bf16.msra.mxu0 %v3713
        %4284 = vmatprep.mubr.bf16.mxu0 %v3949
        %4285 = vmatmul.mubr.bf16.gmra.mxu0 %v2862
        %v4286 = vpop.f32.mrf.mxu0
        %v4287 = vadd.f32 %v4244, %v4286
        %v4288 = vpop.f32.mrf.mxu0
        %v4289 = vadd.f32 %v4246, %v4288
        %v4290 = vpop.f32.mrf.mxu0
        %v4291 = vadd.f32 %v4248, %v4290
        %v4292 = vpop.f32.mrf.mxu0
        %v4293 = vadd.f32 %v4250, %v4292
        %4294 = vdwg.mxu0
        %v4295 = vpack.c.bf16 %v4033, %v4029
        %v4296 = vpack.c.bf16 %v4035, %v4031
        %v4297 = vpack.c.bf16 %v4119, %v4115
        %v4298 = vpack.c.bf16 %v4121, %v4117
        %v4299 = vpack.c.bf16 %v4205, %v4201
        %v4300 = vpack.c.bf16 %v4207, %v4203
        %v4301 = vpack.c.bf16 %v4291, %v4287
        %v4302 = vpack.c.bf16 %v4293, %v4289
        %v4311 = vunpack.c.l.b16 %v4295
        %v4312 = vunpack.c.l.b16 %v4296
        %v4313 = vunpack.c.l.b16 %v4297
        %v4314 = vunpack.c.l.b16 %v4298
        %v4315 = vunpack.c.l.b16 %v4299
        %v4316 = vunpack.c.l.b16 %v4300
        %v4317 = vunpack.c.l.b16 %v4301
        %v4318 = vunpack.c.l.b16 %v4302
        %v4319 = vunpack.c.h.b16 %v4295
        %v4320 = vunpack.c.h.b16 %v4296
        %v4321 = vunpack.c.h.b16 %v4297
        %v4322 = vunpack.c.h.b16 %v4298
        %v4323 = vunpack.c.h.b16 %v4299
        %v4324 = vunpack.c.h.b16 %v4300
        %v4325 = vunpack.c.h.b16 %v4301
        %v4326 = vunpack.c.h.b16 %v4302
        %v4327 = vpack.c.b16 %v4312, %v4311
        %v4328 = vpack.c.b16 %v4314, %v4313
        %v4329 = vpack.c.b16 %v4316, %v4315
        %v4330 = vpack.c.b16 %v4318, %v4317
        %v4331 = vpack.c.b16 %v4320, %v4319
        %v4332 = vpack.c.b16 %v4322, %v4321
        %v4333 = vpack.c.b16 %v4324, %v4323
        %v4334 = vpack.c.b16 %v4326, %v4325
        %4343 = vst [vmem:[%s394] sm:$0xff] %v4327
        %4344 = vst [vmem:[%s394 + $0x8] sm:$0xff] %v4328
        %4345 = vst [vmem:[%s394 + $0x10] sm:$0xff] %v4329
        %4346 = vst [vmem:[%s394 + $0x18] sm:$0xff] %v4330
        %4347 = vst [vmem:[%s394 + $0x20] sm:$0xff] %v4331
        %4348 = vst [vmem:[%s394 + $0x28] sm:$0xff] %v4332
        %4349 = vst [vmem:[%s394 + $0x30] sm:$0xff] %v4333
        %4350 = vst [vmem:[%s394 + $0x38] sm:$0xff] %v4334
        %v4351 = vld [vmem:[%s415] sm:$0xff]
        %vm4352 = vcmp.gt.f32.partialorder %v4351, 0.0
        %v4353 = vsel %vm4352, 1, 0
        %v4354 = vlaneseq
        %v4355 = vshrl.u32 %v4354, 7
        %v4356 = vsub.s32 0, %v4355
        %v4357 = vrot.slane %v4353, %v4356
        %v4358 = vlaneseq
        %v4359 = vshrl.u32 %v4358, 7
        %v4360 = vsub.s32 1, %v4359
        %v4361 = vrot.slane %v4353, %v4360
        %v4362 = vlaneseq
        %v4363 = vshrl.u32 %v4362, 7
        %v4364 = vsub.s32 2, %v4363
        %v4365 = vrot.slane %v4353, %v4364
        %v4366 = vlaneseq
        %v4367 = vshrl.u32 %v4366, 7
        %v4368 = vsub.s32 3, %v4367
        %v4369 = vrot.slane %v4353, %v4368
        %v4370 = vlaneseq
        %v4371 = vshrl.u32 %v4370, 7
        %v4372 = vsub.s32 4, %v4371
        %v4373 = vrot.slane %v4353, %v4372
        %v4374 = vlaneseq
        %v4375 = vshrl.u32 %v4374, 7
        %v4376 = vsub.s32 5, %v4375
        %v4377 = vrot.slane %v4353, %v4376
        %v4378 = vlaneseq
        %v4379 = vshrl.u32 %v4378, 7
        %v4380 = vsub.s32 6, %v4379
        %v4381 = vrot.slane %v4353, %v4380
        %v4382 = vlaneseq
        %v4383 = vshrl.u32 %v4382, 7
        %v4384 = vsub.s32 7, %v4383
        %v4385 = vrot.slane %v4353, %v4384
        %vm4386 = vcmp.eq.s32.totalorder %v4357, 1
        %vm4387 = vcmp.eq.s32.totalorder %v4361, 1
        %vm4388 = vcmp.eq.s32.totalorder %v4365, 1
        %vm4389 = vcmp.eq.s32.totalorder %v4369, 1
        %vm4390 = vcmp.eq.s32.totalorder %v4373, 1
        %vm4391 = vcmp.eq.s32.totalorder %v4377, 1
        %vm4392 = vcmp.eq.s32.totalorder %v4381, 1
        %vm4393 = vcmp.eq.s32.totalorder %v4385, 1
        %v4394 = vsel %vm4386, %v4029, 0.0
        %v4395 = vsel %vm4387, %v4031, 0.0
        %v4396 = vsel %vm4388, %v4115, 0.0
        %v4397 = vsel %vm4389, %v4117, 0.0
        %v4398 = vsel %vm4390, %v4201, 0.0
        %v4399 = vsel %vm4391, %v4203, 0.0
        %v4400 = vsel %vm4392, %v4287, 0.0
        %v4401 = vsel %vm4393, %v4289, 0.0
        %v4402 = vsel %vm4386, %v4033, 0.0
        %v4403 = vsel %vm4387, %v4035, 0.0
        %v4404 = vsel %vm4388, %v4119, 0.0
        %v4405 = vsel %vm4389, %v4121, 0.0
        %v4406 = vsel %vm4390, %v4205, 0.0
        %v4407 = vsel %vm4391, %v4207, 0.0
        %v4408 = vsel %vm4392, %v4291, 0.0
        %v4409 = vsel %vm4393, %v4293, 0.0
        %v4410 = vadd.f32 %v4394, %v4395
        %v4411 = vadd.f32 %v4410, %v4396
        %v4412 = vadd.f32 %v4411, %v4397
        %v4413 = vadd.f32 %v4412, %v4398
        %v4414 = vadd.f32 %v4413, %v4399
        %v4415 = vadd.f32 %v4414, %v4400
        %v4416 = vadd.f32 %v4415, %v4401
        %4417 = vadd.xlane.f32.xlu0 %v4416
        %v4418 = vpop.xlane.xlu0 %4417
        %v4419 = vadd.f32 %v4402, %v4403
        %v4420 = vadd.f32 %v4419, %v4404
        %v4421 = vadd.f32 %v4420, %v4405
        %v4422 = vadd.f32 %v4421, %v4406
        %v4423 = vadd.f32 %v4422, %v4407
        %v4424 = vadd.f32 %v4423, %v4408
        %v4425 = vadd.f32 %v4424, %v4409
        %4426 = vadd.xlane.f32.xlu0 %v4425
        %v4427 = vpop.xlane.xlu0 %4426
        %4428 = vst [vmem:[%s400] sm:$0xff] %v4418
        %4429 = vst [vmem:[%s400 + $0x8] sm:$0xff] %v4427
        %v4430 = vmul.f32 %v4394, %v4394
        %v4431 = vmul.f32 %v4395, %v4395
        %v4432 = vmul.f32 %v4396, %v4396
        %v4433 = vmul.f32 %v4397, %v4397
        %v4434 = vmul.f32 %v4398, %v4398
        %v4435 = vmul.f32 %v4399, %v4399
        %v4436 = vmul.f32 %v4400, %v4400
        %v4437 = vmul.f32 %v4401, %v4401
        %v4438 = vmul.f32 %v4402, %v4402
        %v4439 = vmul.f32 %v4403, %v4403
        %v4440 = vmul.f32 %v4404, %v4404
        %v4441 = vmul.f32 %v4405, %v4405
        %v4442 = vmul.f32 %v4406, %v4406
        %v4443 = vmul.f32 %v4407, %v4407
        %v4444 = vmul.f32 %v4408, %v4408
        %v4445 = vmul.f32 %v4409, %v4409
        %v4446 = vadd.f32 %v4430, %v4431
        %v4447 = vadd.f32 %v4446, %v4432
        %v4448 = vadd.f32 %v4447, %v4433
        %v4449 = vadd.f32 %v4448, %v4434
        %v4450 = vadd.f32 %v4449, %v4435
        %v4451 = vadd.f32 %v4450, %v4436
        %v4452 = vadd.f32 %v4451, %v4437
        %4453 = vadd.xlane.f32.xlu0 %v4452
        %v4454 = vpop.xlane.xlu0 %4453
        %v4455 = vadd.f32 %v4438, %v4439
        %v4456 = vadd.f32 %v4455, %v4440
        %v4457 = vadd.f32 %v4456, %v4441
        %v4458 = vadd.f32 %v4457, %v4442
        %v4459 = vadd.f32 %v4458, %v4443
        %v4460 = vadd.f32 %v4459, %v4444
        %v4461 = vadd.f32 %v4460, %v4445
        %4462 = vadd.xlane.f32.xlu0 %v4461
        %v4463 = vpop.xlane.xlu0 %4462
        %4464 = vst [vmem:[%s406] sm:$0xff] %v4454
        %4465 = vst [vmem:[%s406 + $0x8] sm:$0xff] %v4463
        %s4466 = sand.u32 %s155, 1
        %s4467 = sand.u32 %s155, 1
        %s4468 = smul.addr %s4467, 64
        %s4469 = scalar_lea.vmem [#allocation6], %s4468
        %s4470 = sand.u32 %s181, 1
        %s4471 = sand.u32 %s181, 1
        %s4472 = smul.addr %s4471, 16
        %s4473 = scalar_lea.vmem [#allocation7], %s4472
        %s4474 = sand.u32 %s207, 1
        %s4475 = sand.u32 %s207, 1
        %s4476 = smul.addr %s4475, 16
        %s4477 = scalar_lea.vmem [#allocation8], %s4476
        // Predicated region
        $region102: #{_forward.2} parent=92 // pred_check
          %p4478 = pneg %p165
        $region103: #{_forward.2} parent=92 // pred_check_branch
          %4480 = sbr.rel (%p4478) target = $region105
        $region104: #{_forward.2} parent=92 // pred_region
          %s4481 = sadd.s32 %s19, 1
          %s4482 = smul.u32 8, %s4481
          %s4483 = smul.addr %s4482, 4
          %s4484 = scalar_lea.vmem %s5, %s4483
          // Predicated region
          $region106: #{_forward.2} parent=104 // pred_check
            _
          $region107: #{_forward.2} parent=104 // pred_check_branch
            %4486 = sbr.rel (0) target = $region109
          $region108: #{_forward.2} parent=104 // pred_region
            // Predicated region
            $region110: #{_forward.2} parent=108 // pred_check
              _
            $region111: #{_forward.2} parent=108 // pred_check_branch
              %4488 = sbr.rel (0) target = $region113
            $region112: #{_forward.2} parent=108 // pred_region
              loop: start=0, step=1, limit=1
              $region114: #{_forward.2} parent=112 // loop_pre_header
                _
              $region115: #{_forward.2} parent=112 // loop_header
                %s4490 = sphi 0, %s4494
                %p4491 = scmp.ge.s32.totalorder %s4490, 1
                %s4495 = sphi %s4469, %s4469
                %s4496 = sphi %s4484, %s4484
              $region116: #{_forward.2} parent=112 // loop_header_branch
                %4493 = sbr.rel (%p4491) target = $region120
              $region117: #{_forward.2} parent=112 // loop_body
                %v4497 = vld [vmem:[%s4495] sm:$0xff]
                %4498 = vst [vmem:[%s4496] sm:$0xff] %v4497
                %v4499 = vld [vmem:[%s4495 + $0x8] sm:$0xff]
                %4500 = vst [vmem:[%s4496 + $0x8] sm:$0xff] %v4499
                %v4501 = vld [vmem:[%s4495 + $0x10] sm:$0xff]
                %4502 = vst [vmem:[%s4496 + $0x10] sm:$0xff] %v4501
                %v4503 = vld [vmem:[%s4495 + $0x18] sm:$0xff]
                %4504 = vst [vmem:[%s4496 + $0x18] sm:$0xff] %v4503
                %v4505 = vld [vmem:[%s4495 + $0x20] sm:$0xff]
                %4506 = vst [vmem:[%s4496 + $0x60] sm:$0xff] %v4505
                %v4507 = vld [vmem:[%s4495 + $0x28] sm:$0xff]
                %4508 = vst [vmem:[%s4496 + $0x68] sm:$0xff] %v4507
                %v4509 = vld [vmem:[%s4495 + $0x30] sm:$0xff]
                %4510 = vst [vmem:[%s4496 + $0x70] sm:$0xff] %v4509
                %v4511 = vld [vmem:[%s4495 + $0x38] sm:$0xff]
                %4512 = vst [vmem:[%s4496 + $0x78] sm:$0xff] %v4511
              $region118: #{_forward.2} parent=112 // loop_footer
                %s4494 = sadd.s32 1, %s4490
              $region119: #{_forward.2} parent=112 // loop_footer_branch
                %4489 = sbr.rel target = $region115
              $region120: #{_forward.2} parent=112 // loop_exit
                _
            $region113: #{_forward.2} parent=108 // pred_fallthru
              _
            // Predicated region
            $region121: #{_forward.2} parent=108 // pred_check
              _
            $region122: #{_forward.2} parent=108 // pred_check_branch
              %4514 = sbr.rel target = $region124
            $region123: #{_forward.2} parent=108 // pred_region
              _
            $region124: #{_forward.2} parent=108 // pred_fallthru
              _
          $region109: #{_forward.2} parent=104 // pred_fallthru
            _
          %4515 = vnop
        $region105: #{_forward.2} parent=92 // pred_fallthru
          _
        // Predicated region
        $region125: #{_forward.2} parent=92 // pred_check
          %p4516 = pneg %p191
        $region126: #{_forward.2} parent=92 // pred_check_branch
          %4518 = sbr.rel (%p4516) target = $region128
        $region127: #{_forward.2} parent=92 // pred_region
          %s4519 = smul.addr %s19, 8
          %s4520 = scalar_lea.vmem %s6, %s4519
          // Predicated region
          $region129: #{_forward.2} parent=127 // pred_check
            _
          $region130: #{_forward.2} parent=127 // pred_check_branch
            %4522 = sbr.rel (0) target = $region132
          $region131: #{_forward.2} parent=127 // pred_region
            // Predicated region
            $region133: #{_forward.2} parent=131 // pred_check
              _
            $region134: #{_forward.2} parent=131 // pred_check_branch
              %4524 = sbr.rel (0) target = $region136
            $region135: #{_forward.2} parent=131 // pred_region
              // Predicated region
              $region148: #{_forward.2} parent=135 // pred_check
                _
              $region149: #{_forward.2} parent=135 // pred_check_branch
                %4542 = sbr.rel (0) target = $region151
              $region150: #{_forward.2} parent=135 // pred_region
                loop: start=0, step=1, limit=1
                $region152: #{_forward.2} parent=150 // loop_pre_header
                  _
                $region153: #{_forward.2} parent=150 // loop_header
                  %s4544 = sphi 0, %s4548
                  %p4545 = scmp.ge.s32.totalorder %s4544, 1
                  %s4549 = sphi %s4473, %s4473
                  %s4550 = sphi %s4520, %s4520
                $region154: #{_forward.2} parent=150 // loop_header_branch
                  %4547 = sbr.rel (%p4545) target = $region158
                $region155: #{_forward.2} parent=150 // loop_body
                  %v4551 = vld [vmem:[%s4549] sm:$0xff]
                  %4552 = vst [vmem:[%s4550] sm:$0xff] %v4551
                  %v4553 = vld [vmem:[%s4549 + $0x8] sm:$0xff]
                  %4554 = vst [vmem:[%s4550 + $0x10] sm:$0xff] %v4553
                $region156: #{_forward.2} parent=150 // loop_footer
                  %s4548 = sadd.s32 1, %s4544
                $region157: #{_forward.2} parent=150 // loop_footer_branch
                  %4543 = sbr.rel target = $region153
                $region158: #{_forward.2} parent=150 // loop_exit
                  _
              $region151: #{_forward.2} parent=135 // pred_fallthru
                _
              // Predicated region
              $region159: #{_forward.2} parent=135 // pred_check
                _
              $region160: #{_forward.2} parent=135 // pred_check_branch
                %4556 = sbr.rel target = $region162
              $region161: #{_forward.2} parent=135 // pred_region
                _
              $region162: #{_forward.2} parent=135 // pred_fallthru
                _
            $region136: #{_forward.2} parent=131 // pred_fallthru
              _
            // Predicated region
            $region137: #{_forward.2} parent=131 // pred_check
              _
            $region138: #{_forward.2} parent=131 // pred_check_branch
              %4526 = sbr.rel target = $region140
            $region139: #{_forward.2} parent=131 // pred_region
              %s4528 = ssub.s32 256, 1
              loop: start=0, step=1, limit=1
              $region141: #{_forward.2} parent=139 // loop_pre_header
                _
              $region142: #{_forward.2} parent=139 // loop_header
                %s4530 = sphi 0, %s4534
                %p4531 = scmp.ge.s32.totalorder %s4530, 1
                %s4535 = sphi %s4473, %s4473
                %s4536 = sphi %s4520, %s4520
              $region143: #{_forward.2} parent=139 // loop_header_branch
                %4533 = sbr.rel (%p4531) target = $region147
              $region144: #{_forward.2} parent=139 // loop_body
                %v4537 = vld [vmem:[%s4535] sm:%s4528]
                %4538 = vst [vmem:[%s4536] sm:%s4528] %v4537
                %v4539 = vld [vmem:[%s4535 + $0x8] sm:%s4528]
                %4540 = vst [vmem:[%s4536 + $0x10] sm:%s4528] %v4539
              $region145: #{_forward.2} parent=139 // loop_footer
                %s4534 = sadd.s32 1, %s4530
              $region146: #{_forward.2} parent=139 // loop_footer_branch
                %4529 = sbr.rel target = $region142
              $region147: #{_forward.2} parent=139 // loop_exit
                _
            $region140: #{_forward.2} parent=131 // pred_fallthru
              _
          $region132: #{_forward.2} parent=127 // pred_fallthru
            _
          %4557 = vnop
        $region128: #{_forward.2} parent=92 // pred_fallthru
          _
        // Predicated region
        $region163: #{_forward.2} parent=92 // pred_check
          %p4558 = pneg %p217
        $region164: #{_forward.2} parent=92 // pred_check_branch
          %4560 = sbr.rel (%p4558) target = $region166
        $region165: #{_forward.2} parent=92 // pred_region
          %s4561 = smul.addr %s19, 8
          %s4562 = scalar_lea.vmem %s7, %s4561
          // Predicated region
          $region167: #{_forward.2} parent=165 // pred_check
            _
          $region168: #{_forward.2} parent=165 // pred_check_branch
            %4564 = sbr.rel (0) target = $region170
          $region169: #{_forward.2} parent=165 // pred_region
            // Predicated region
            $region171: #{_forward.2} parent=169 // pred_check
              _
            $region172: #{_forward.2} parent=169 // pred_check_branch
              %4566 = sbr.rel (0) target = $region174
            $region173: #{_forward.2} parent=169 // pred_region
              // Predicated region
              $region186: #{_forward.2} parent=173 // pred_check
                _
              $region187: #{_forward.2} parent=173 // pred_check_branch
                %4584 = sbr.rel (0) target = $region189
              $region188: #{_forward.2} parent=173 // pred_region
                loop: start=0, step=1, limit=1
                $region190: #{_forward.2} parent=188 // loop_pre_header
                  _
                $region191: #{_forward.2} parent=188 // loop_header
                  %s4586 = sphi 0, %s4590
                  %p4587 = scmp.ge.s32.totalorder %s4586, 1
                  %s4591 = sphi %s4477, %s4477
                  %s4592 = sphi %s4562, %s4562
                $region192: #{_forward.2} parent=188 // loop_header_branch
                  %4589 = sbr.rel (%p4587) target = $region196
                $region193: #{_forward.2} parent=188 // loop_body
                  %v4593 = vld [vmem:[%s4591] sm:$0xff]
                  %4594 = vst [vmem:[%s4592] sm:$0xff] %v4593
                  %v4595 = vld [vmem:[%s4591 + $0x8] sm:$0xff]
                  %4596 = vst [vmem:[%s4592 + $0x10] sm:$0xff] %v4595
                $region194: #{_forward.2} parent=188 // loop_footer
                  %s4590 = sadd.s32 1, %s4586
                $region195: #{_forward.2} parent=188 // loop_footer_branch
                  %4585 = sbr.rel target = $region191
                $region196: #{_forward.2} parent=188 // loop_exit
                  _
              $region189: #{_forward.2} parent=173 // pred_fallthru
                _
              // Predicated region
              $region197: #{_forward.2} parent=173 // pred_check
                _
              $region198: #{_forward.2} parent=173 // pred_check_branch
                %4598 = sbr.rel target = $region200
              $region199: #{_forward.2} parent=173 // pred_region
                _
              $region200: #{_forward.2} parent=173 // pred_fallthru
                _
            $region174: #{_forward.2} parent=169 // pred_fallthru
              _
            // Predicated region
            $region175: #{_forward.2} parent=169 // pred_check
              _
            $region176: #{_forward.2} parent=169 // pred_check_branch
              %4568 = sbr.rel target = $region178
            $region177: #{_forward.2} parent=169 // pred_region
              %s4570 = ssub.s32 256, 1
              loop: start=0, step=1, limit=1
              $region179: #{_forward.2} parent=177 // loop_pre_header
                _
              $region180: #{_forward.2} parent=177 // loop_header
                %s4572 = sphi 0, %s4576
                %p4573 = scmp.ge.s32.totalorder %s4572, 1
                %s4577 = sphi %s4477, %s4477
                %s4578 = sphi %s4562, %s4562
              $region181: #{_forward.2} parent=177 // loop_header_branch
                %4575 = sbr.rel (%p4573) target = $region185
              $region182: #{_forward.2} parent=177 // loop_body
                %v4579 = vld [vmem:[%s4577] sm:%s4570]
                %4580 = vst [vmem:[%s4578] sm:%s4570] %v4579
                %v4581 = vld [vmem:[%s4577 + $0x8] sm:%s4570]
                %4582 = vst [vmem:[%s4578 + $0x10] sm:%s4570] %v4581
              $region183: #{_forward.2} parent=177 // loop_footer
                %s4576 = sadd.s32 1, %s4572
              $region184: #{_forward.2} parent=177 // loop_footer_branch
                %4571 = sbr.rel target = $region180
              $region185: #{_forward.2} parent=177 // loop_exit
                _
            $region178: #{_forward.2} parent=169 // pred_fallthru
              _
          $region170: #{_forward.2} parent=165 // pred_fallthru
            _
          %4599 = vnop
        $region166: #{_forward.2} parent=92 // pred_fallthru
          _
      $region93: #{_forward.2} parent=5 // pred_fallthru
        _
      %p4600 = scmp.le.s32.totalorder 2, %s14
      // Predicated region
      $region201: #{_forward.2} parent=5 // pred_check
        %p4601 = pneg %p4600
      $region202: #{_forward.2} parent=5 // pred_check_branch
        %4603 = sbr.rel (%p4601) target = $region204
      $region203: #{_forward.2} parent=5 // pred_region
        %s4604 = ssub.s32 %s14, 2
        // Predicated region
        $region205: #{_forward.2} parent=203 // pred_check
          %p4605 = pneg %p171
        $region206: #{_forward.2} parent=203 // pred_check_branch
          %4607 = sbr.rel (%p4605) target = $region208
        $region207: #{_forward.2} parent=203 // pred_region
          %s4608 = sand.u32 %s156, 1
          %s4609 = sand.u32 %s156, 1
          %s4610 = smul.addr %s4609, 64
          %s4611 = scalar_lea.vmem [#allocation6], %s4610
        $region208: #{_forward.2} parent=203 // pred_fallthru
          _
        // Predicated region
        $region209: #{_forward.2} parent=203 // pred_check
          %p4612 = pneg %p197
        $region210: #{_forward.2} parent=203 // pred_check_branch
          %4614 = sbr.rel (%p4612) target = $region212
        $region211: #{_forward.2} parent=203 // pred_region
          %s4615 = sand.u32 %s182, 1
          %s4616 = sand.u32 %s182, 1
          %s4617 = smul.addr %s4616, 16
          %s4618 = scalar_lea.vmem [#allocation7], %s4617
        $region212: #{_forward.2} parent=203 // pred_fallthru
          _
        // Predicated region
        $region213: #{_forward.2} parent=203 // pred_check
          %p4619 = pneg %p223
        $region214: #{_forward.2} parent=203 // pred_check_branch
          %4621 = sbr.rel (%p4619) target = $region216
        $region215: #{_forward.2} parent=203 // pred_region
          %s4622 = sand.u32 %s208, 1
          %s4623 = sand.u32 %s208, 1
          %s4624 = smul.addr %s4623, 16
          %s4625 = scalar_lea.vmem [#allocation8], %s4624
        $region216: #{_forward.2} parent=203 // pred_fallthru
          _
      $region204: #{_forward.2} parent=5 // pred_fallthru
        _
    $region6: #{_forward.2} parent=1 // loop_footer
      %s18 = sadd.s32 1, %s14
    $region7: #{_forward.2} parent=1 // loop_footer_branch
      %13 = sbr.rel target = $region3
    $region8: #{_forward.2} parent=1 // loop_exit
      _

// kernel: _forward.3
$region0: #{_forward.3}
  #allocation0 [shape = 'u32[]', space=smem, size = 0x4, offset = 0x4, fixed_abs, tag = 'smem constant byte address 0x4 - core index']
  #allocation1 [shape = 'u32[144,128]{1,0:T(1,128)}', space=vmem, size = 0x12000, scoped, tag = 'internal scratch']
  #allocation2 [shape = 'bf16[16,1280]{1,0:T(8,128)(2,1)}', space=vmem, size = 0xa000, scoped, tag = 'scratch operand']
  #allocation3 [shape = 'bf16[432,1024]{1,0:T(8,128)(2,1)}', space=vmem, size = 0xd8000, scoped, tag = 'scratch operand']
  %s0 = inlined_call_operand.vmem [shape: bf16[16,3072], index: 0, kind: input, shape index: {}, may-alias: {0,1}]
  %s1 = inlined_call_operand.vmem [shape: bf16[16,3072], index: 1, kind: input, shape index: {}, may-alias: {0,1}]
  %s2 = inlined_call_operand.vmem [shape: f32[1,3072], index: 2, kind: input, shape index: {}, may-alias: {2,3}]
  %s3 = inlined_call_operand.vmem [shape: f32[1,3072], index: 3, kind: input, shape index: {}, may-alias: {2,3}]
  %s4 = inlined_call_operand.vmem [shape: f32[16,1], index: 4, kind: input, shape index: {}]
  %s5 = inlined_call_operand.vmem [shape: f32[16,1], index: 5, kind: input, shape index: {}]
  %s6 = inlined_call_operand.vmem [shape: bf16[32,432], index: 6, kind: input, shape index: {}]
  %s7 = inlined_call_operand.vmem [shape: f32[32,1], index: 7, kind: input, shape index: {}]
  %s8 = inlined_call_operand.vmem [shape: f32[1,2048], index: 8, kind: input, shape index: {}]
  %s9 = inlined_call_operand.vmem [shape: f32[32,2048], index: 9, kind: output, shape index: {0}]
  %s10 = inlined_call_operand.vmem [shape: f32[32,256], index: 10, kind: output, shape index: {1}]
  %s11 = inlined_call_operand.vmem [shape: f32[32,256], index: 11, kind: output, shape index: {2}]
  %12 = xla_tuple %s9, %s10, %s11
  %s13 = sld [smem:[#allocation0]]
  $region233: #{_forward.3} parent=0
    _
  %s15 = ssub.s32 1, %s13
  %s16 = scalar_select 0, %s15, %s13
  $region1: #{_forward.3} parent=0
    #allocation4 [shape = 'u8[16384]{0}', space=vmem, size = 0x4000, scoped, tag = 'input window, operand 0']
    #allocation5 [shape = 'u8[65536]{0}', space=vmem, size = 0x10000, scoped, tag = 'input window, operand 1']
    #allocation6 [shape = 'u8[262144]{0}', space=vmem, size = 0x40000, scoped, tag = 'output window, operand 0']
    #allocation7 [shape = 'u8[32768]{0}', space=vmem, size = 0x8000, scoped, tag = 'output window, operand 1']
    #allocation8 [shape = 'u8[32768]{0}', space=vmem, size = 0x8000, scoped, tag = 'output window, operand 2']
    loop: start=0, step=1, limit=4
    $region2: #{_forward.3} parent=1 // loop_pre_header
      _
    $region3: #{_forward.3} parent=1 // loop_header
      %s18 = sphi 0, %s22
      %p19 = scmp.ge.s32.totalorder %s18, 4
      %s34 = sphi 0, %s36
      %s37 = sphi 0, %s34
      %s38 = sphi 0, %s37
      %s54 = sphi 0, %s38
      %s62 = sphi 0, %s64
      %s65 = sphi 0, %s62
      %s66 = sphi 0, %s65
      %s82 = sphi 0, %s66
      %s94 = sphi 0, %s96
      %s97 = sphi 0, %s94
      %s98 = sphi 0, %s97
      %s114 = sphi 0, %s98
      %s122 = sphi 0, %s124
      %s125 = sphi 0, %s122
      %s126 = sphi 0, %s125
      %s142 = sphi 0, %s126
      %s146 = sphi 0, %s146
      %s148 = sphi 0, %s146
      %s149 = sphi 0, %s148
      %s163 = sphi 0, %s149
      %s167 = sphi 0, %s167
      %s169 = sphi 0, %s167
      %s170 = sphi 0, %s169
      %s184 = sphi 0, %s170
      %s188 = sphi 0, %s188
      %s190 = sphi 0, %s188
      %s191 = sphi 0, %s190
      %s205 = sphi 0, %s191
      %s209 = sphi 0, %s209
      %s211 = sphi 0, %s209
      %s212 = sphi 0, %s211
      %s226 = sphi 0, %s212
      %s232 = sphi 0, %s234
      %s235 = sphi 0, %s232
      %s236 = sphi 0, %s235
      %s252 = sphi 0, %s236
      %s258 = sphi 0, %s260
      %s261 = sphi 0, %s258
      %s262 = sphi 0, %s261
      %s278 = sphi 0, %s262
      %s284 = sphi 0, %s286
      %s287 = sphi 0, %s284
      %s288 = sphi 0, %s287
      %s304 = sphi 0, %s288
      %s310 = sphi 0, %s312
      %s313 = sphi 0, %s310
      %s314 = sphi 0, %s313
      %s330 = sphi 0, %s314
    $region4: #{_forward.3} parent=1 // loop_header_branch
      %21 = sbr.rel (%p19) target = $region8
    $region5: #{_forward.3} parent=1 // loop_body
      %s23 = ssub.s32 %s18, 1
      %s24 = ssub.s32 %s18, 2
      %s25 = sadd.s32 %s18, 1
      %s26 = sadd.s32 %s18, 1
      %s27 = smul.u32 %s26, 4
      %s28 = ssub.s32 %s27, 1
      %s29 = sadd.s32 %s25, 1
      %s30 = smul.u32 %s29, 4
      %s31 = ssub.s32 %s30, 1
      %s32 = ssub.s32 %s28, %s31
      %p33 = scmp.eq.s32.totalorder %s32, 0
      %s35 = sadd.s32 %s34, 1
      %s36 = scalar_select %p33, %s34, %s35
      %p39 = pneg %p33
      %p40 = scmp.eq.s32.totalorder %s18, 1
      %p41 = por %p39, %p40
      %p42 = scmp.ne.s32.totalorder %s34, %s37
      %p43 = scmp.eq.s32.totalorder %s18, 0
      %p44 = por %p42, %p43
      %p45 = scmp.ne.s32.totalorder %s34, %s37
      %p46 = scmp.eq.s32.totalorder %s23, 1
      %p47 = por %p45, %p46
      %p48 = scmp.ne.s32.totalorder %s37, %s38
      %p49 = scmp.eq.s32.totalorder %s23, 0
      %p50 = por %p48, %p49
      %p51 = scmp.ne.s32.totalorder %s37, %s38
      %p52 = scmp.eq.s32.totalorder %s24, 1
      %p53 = por %p51, %p52
      %p55 = scmp.ne.s32.totalorder %s38, %s54
      %p56 = scmp.eq.s32.totalorder %s24, 0
      %p57 = por %p55, %p56
      %s58 = sadd.s32 %s18, 1
      %s59 = sadd.s32 %s25, 1
      %s60 = ssub.s32 %s58, %s59
      %p61 = scmp.eq.s32.totalorder %s60, 0
      %s63 = sadd.s32 %s62, 1
      %s64 = scalar_select %p61, %s62, %s63
      %p67 = pneg %p61
      %p68 = scmp.eq.s32.totalorder %s18, 1
      %p69 = por %p67, %p68
      %p70 = scmp.ne.s32.totalorder %s62, %s65
      %p71 = scmp.eq.s32.totalorder %s18, 0
      %p72 = por %p70, %p71
      %p73 = scmp.ne.s32.totalorder %s62, %s65
      %p74 = scmp.eq.s32.totalorder %s23, 1
      %p75 = por %p73, %p74
      %p76 = scmp.ne.s32.totalorder %s65, %s66
      %p77 = scmp.eq.s32.totalorder %s23, 0
      %p78 = por %p76, %p77
      %p79 = scmp.ne.s32.totalorder %s65, %s66
      %p80 = scmp.eq.s32.totalorder %s24, 1
      %p81 = por %p79, %p80
      %p83 = scmp.ne.s32.totalorder %s66, %s82
      %p84 = scmp.eq.s32.totalorder %s24, 0
      %p85 = por %p83, %p84
      %s86 = sadd.s32 %s18, 1
      %s87 = smul.u32 %s86, 4
      %s88 = ssub.s32 %s87, 1
      %s89 = sadd.s32 %s25, 1
      %s90 = smul.u32 %s89, 4
      %s91 = ssub.s32 %s90, 1
      %s92 = ssub.s32 %s88, %s91
      %p93 = scmp.eq.s32.totalorder %s92, 0
      %s95 = sadd.s32 %s94, 1
      %s96 = scalar_select %p93, %s94, %s95
      %p99 = pneg %p93
      %p100 = scmp.eq.s32.totalorder %s18, 1
      %p101 = por %p99, %p100
      %p102 = scmp.ne.s32.totalorder %s94, %s97
      %p103 = scmp.eq.s32.totalorder %s18, 0
      %p104 = por %p102, %p103
      %p105 = scmp.ne.s32.totalorder %s94, %s97
      %p106 = scmp.eq.s32.totalorder %s23, 1
      %p107 = por %p105, %p106
      %p108 = scmp.ne.s32.totalorder %s97, %s98
      %p109 = scmp.eq.s32.totalorder %s23, 0
      %p110 = por %p108, %p109
      %p111 = scmp.ne.s32.totalorder %s97, %s98
      %p112 = scmp.eq.s32.totalorder %s24, 1
      %p113 = por %p111, %p112
      %p115 = scmp.ne.s32.totalorder %s98, %s114
      %p116 = scmp.eq.s32.totalorder %s24, 0
      %p117 = por %p115, %p116
      %s118 = sadd.s32 %s18, 1
      %s119 = sadd.s32 %s25, 1
      %s120 = ssub.s32 %s118, %s119
      %p121 = scmp.eq.s32.totalorder %s120, 0
      %s123 = sadd.s32 %s122, 1
      %s124 = scalar_select %p121, %s122, %s123
      %p127 = pneg %p121
      %p128 = scmp.eq.s32.totalorder %s18, 1
      %p129 = por %p127, %p128
      %p130 = scmp.ne.s32.totalorder %s122, %s125
      %p131 = scmp.eq.s32.totalorder %s18, 0
      %p132 = por %p130, %p131
      %p133 = scmp.ne.s32.totalorder %s122, %s125
      %p134 = scmp.eq.s32.totalorder %s23, 1
      %p135 = por %p133, %p134
      %p136 = scmp.ne.s32.totalorder %s125, %s126
      %p137 = scmp.eq.s32.totalorder %s23, 0
      %p138 = por %p136, %p137
      %p139 = scmp.ne.s32.totalorder %s125, %s126
      %p140 = scmp.eq.s32.totalorder %s24, 1
      %p141 = por %p139, %p140
      %p143 = scmp.ne.s32.totalorder %s126, %s142
      %p144 = scmp.eq.s32.totalorder %s24, 0
      %p145 = por %p143, %p144
      %s147 = sadd.s32 %s146, 1
      %p150 = scmp.eq.s32.totalorder %s18, 1
      %p151 = scmp.ne.s32.totalorder %s146, %s148
      %p152 = scmp.eq.s32.totalorder %s18, 0
      %p153 = por %p151, %p152
      %p154 = scmp.ne.s32.totalorder %s146, %s148
      %p155 = scmp.eq.s32.totalorder %s23, 1
      %p156 = por %p154, %p155
      %p157 = scmp.ne.s32.totalorder %s148, %s149
      %p158 = scmp.eq.s32.totalorder %s23, 0
      %p159 = por %p157, %p158
      %p160 = scmp.ne.s32.totalorder %s148, %s149
      %p161 = scmp.eq.s32.totalorder %s24, 1
      %p162 = por %p160, %p161
      %p164 = scmp.ne.s32.totalorder %s149, %s163
      %p165 = scmp.eq.s32.totalorder %s24, 0
      %p166 = por %p164, %p165
      %s168 = sadd.s32 %s167, 1
      %p171 = scmp.eq.s32.totalorder %s18, 1
      %p172 = scmp.ne.s32.totalorder %s167, %s169
      %p173 = scmp.eq.s32.totalorder %s18, 0
      %p174 = por %p172, %p173
      %p175 = scmp.ne.s32.totalorder %s167, %s169
      %p176 = scmp.eq.s32.totalorder %s23, 1
      %p177 = por %p175, %p176
      %p178 = scmp.ne.s32.totalorder %s169, %s170
      %p179 = scmp.eq.s32.totalorder %s23, 0
      %p180 = por %p178, %p179
      %p181 = scmp.ne.s32.totalorder %s169, %s170
      %p182 = scmp.eq.s32.totalorder %s24, 1
      %p183 = por %p181, %p182
      %p185 = scmp.ne.s32.totalorder %s170, %s184
      %p186 = scmp.eq.s32.totalorder %s24, 0
      %p187 = por %p185, %p186
      %s189 = sadd.s32 %s188, 1
      %p192 = scmp.eq.s32.totalorder %s18, 1
      %p193 = scmp.ne.s32.totalorder %s188, %s190
      %p194 = scmp.eq.s32.totalorder %s18, 0
      %p195 = por %p193, %p194
      %p196 = scmp.ne.s32.totalorder %s188, %s190
      %p197 = scmp.eq.s32.totalorder %s23, 1
      %p198 = por %p196, %p197
      %p199 = scmp.ne.s32.totalorder %s190, %s191
      %p200 = scmp.eq.s32.totalorder %s23, 0
      %p201 = por %p199, %p200
      %p202 = scmp.ne.s32.totalorder %s190, %s191
      %p203 = scmp.eq.s32.totalorder %s24, 1
      %p204 = por %p202, %p203
      %p206 = scmp.ne.s32.totalorder %s191, %s205
      %p207 = scmp.eq.s32.totalorder %s24, 0
      %p208 = por %p206, %p207
      %s210 = sadd.s32 %s209, 1
      %p213 = scmp.eq.s32.totalorder %s18, 1
      %p214 = scmp.ne.s32.totalorder %s209, %s211
      %p215 = scmp.eq.s32.totalorder %s18, 0
      %p216 = por %p214, %p215
      %p217 = scmp.ne.s32.totalorder %s209, %s211
      %p218 = scmp.eq.s32.totalorder %s23, 1
      %p219 = por %p217, %p218
      %p220 = scmp.ne.s32.totalorder %s211, %s212
      %p221 = scmp.eq.s32.totalorder %s23, 0
      %p222 = por %p220, %p221
      %p223 = scmp.ne.s32.totalorder %s211, %s212
      %p224 = scmp.eq.s32.totalorder %s24, 1
      %p225 = por %p223, %p224
      %p227 = scmp.ne.s32.totalorder %s212, %s226
      %p228 = scmp.eq.s32.totalorder %s24, 0
      %p229 = por %p227, %p228
      %s230 = ssub.s32 %s18, %s25
      %p231 = scmp.eq.s32.totalorder %s230, 0
      %s233 = sadd.s32 %s232, 1
      %s234 = scalar_select %p231, %s232, %s233
      %p237 = pneg %p231
      %p238 = scmp.eq.s32.totalorder %s18, 1
      %p239 = por %p237, %p238
      %p240 = scmp.ne.s32.totalorder %s232, %s235
      %p241 = scmp.eq.s32.totalorder %s18, 0
      %p242 = por %p240, %p241
      %p243 = scmp.ne.s32.totalorder %s232, %s235
      %p244 = scmp.eq.s32.totalorder %s23, 1
      %p245 = por %p243, %p244
      %p246 = scmp.ne.s32.totalorder %s235, %s236
      %p247 = scmp.eq.s32.totalorder %s23, 0
      %p248 = por %p246, %p247
      %p249 = scmp.ne.s32.totalorder %s235, %s236
      %p250 = scmp.eq.s32.totalorder %s24, 1
      %p251 = por %p249, %p250
      %p253 = scmp.ne.s32.totalorder %s236, %s252
      %p254 = scmp.eq.s32.totalorder %s24, 0
      %p255 = por %p253, %p254
      %s256 = ssub.s32 %s18, %s25
      %p257 = scmp.eq.s32.totalorder %s256, 0
      %s259 = sadd.s32 %s258, 1
      %s260 = scalar_select %p257, %s258, %s259
      %p263 = pneg %p257
      %p264 = scmp.eq.s32.totalorder %s18, 1
      %p265 = por %p263, %p264
      %p266 = scmp.ne.s32.totalorder %s258, %s261
      %p267 = scmp.eq.s32.totalorder %s18, 0
      %p268 = por %p266, %p267
      %p269 = scmp.ne.s32.totalorder %s258, %s261
      %p270 = scmp.eq.s32.totalorder %s23, 1
      %p271 = por %p269, %p270
      %p272 = scmp.ne.s32.totalorder %s261, %s262
      %p273 = scmp.eq.s32.totalorder %s23, 0
      %p274 = por %p272, %p273
      %p275 = scmp.ne.s32.totalorder %s261, %s262
      %p276 = scmp.eq.s32.totalorder %s24, 1
      %p277 = por %p275, %p276
      %p279 = scmp.ne.s32.totalorder %s262, %s278
      %p280 = scmp.eq.s32.totalorder %s24, 0
      %p281 = por %p279, %p280
      %s282 = ssub.s32 %s18, %s25
      %p283 = scmp.eq.s32.totalorder %s282, 0
      %s285 = sadd.s32 %s284, 1
      %s286 = scalar_select %p283, %s284, %s285
      %p289 = pneg %p283
      %p290 = scmp.eq.s32.totalorder %s18, 1
      %p291 = por %p289, %p290
      %p292 = scmp.ne.s32.totalorder %s284, %s287
      %p293 = scmp.eq.s32.totalorder %s18, 0
      %p294 = por %p292, %p293
      %p295 = scmp.ne.s32.totalorder %s284, %s287
      %p296 = scmp.eq.s32.totalorder %s23, 1
      %p297 = por %p295, %p296
      %p298 = scmp.ne.s32.totalorder %s287, %s288
      %p299 = scmp.eq.s32.totalorder %s23, 0
      %p300 = por %p298, %p299
      %p301 = scmp.ne.s32.totalorder %s287, %s288
      %p302 = scmp.eq.s32.totalorder %s24, 1
      %p303 = por %p301, %p302
      %p305 = scmp.ne.s32.totalorder %s288, %s304
      %p306 = scmp.eq.s32.totalorder %s24, 0
      %p307 = por %p305, %p306
      %s308 = ssub.s32 %s18, %s25
      %p309 = scmp.eq.s32.totalorder %s308, 0
      %s311 = sadd.s32 %s310, 1
      %s312 = scalar_select %p309, %s310, %s311
      %p315 = pneg %p309
      %p316 = scmp.eq.s32.totalorder %s18, 1
      %p317 = por %p315, %p316
      %p318 = scmp.ne.s32.totalorder %s310, %s313
      %p319 = scmp.eq.s32.totalorder %s18, 0
      %p320 = por %p318, %p319
      %p321 = scmp.ne.s32.totalorder %s310, %s313
      %p322 = scmp.eq.s32.totalorder %s23, 1
      %p323 = por %p321, %p322
      %p324 = scmp.ne.s32.totalorder %s313, %s314
      %p325 = scmp.eq.s32.totalorder %s23, 0
      %p326 = por %p324, %p325
      %p327 = scmp.ne.s32.totalorder %s313, %s314
      %p328 = scmp.eq.s32.totalorder %s24, 1
      %p329 = por %p327, %p328
      %p331 = scmp.ne.s32.totalorder %s314, %s330
      %p332 = scmp.eq.s32.totalorder %s24, 0
      %p333 = por %p331, %p332
      %p334 = scmp.le.s32.totalorder 1, %s18
      %p335 = scmp.lt.s32.totalorder %s18, 3
      %p336 = pnand %p334, %p335
      %p337 = pneg %p336
      // Predicated region
      $region9: #{_forward.3} parent=5 // pred_check
        _
      $region10: #{_forward.3} parent=5 // pred_check_branch
        %339 = sbr.rel (%p336) target = $region12
      $region11: #{_forward.3} parent=5 // pred_region
        %s340 = ssub.s32 %s18, 1
        // Predicated region
        $region13: #{_forward.3} parent=11 // pred_check
          %p341 = pneg %p159
        $region14: #{_forward.3} parent=11 // pred_check_branch
          %343 = sbr.rel (%p341) target = $region16
        $region15: #{_forward.3} parent=11 // pred_region
          _
        $region16: #{_forward.3} parent=11 // pred_fallthru
          _
        // Predicated region
        $region17: #{_forward.3} parent=11 // pred_check
          %p344 = pneg %p180
        $region18: #{_forward.3} parent=11 // pred_check_branch
          %346 = sbr.rel (%p344) target = $region20
        $region19: #{_forward.3} parent=11 // pred_region
          _
        $region20: #{_forward.3} parent=11 // pred_fallthru
          _
        // Predicated region
        $region21: #{_forward.3} parent=11 // pred_check
          %p347 = pneg %p201
        $region22: #{_forward.3} parent=11 // pred_check_branch
          %349 = sbr.rel (%p347) target = $region24
        $region23: #{_forward.3} parent=11 // pred_region
          _
        $region24: #{_forward.3} parent=11 // pred_fallthru
          _
        // Predicated region
        $region25: #{_forward.3} parent=11 // pred_check
          %p350 = pneg %p222
        $region26: #{_forward.3} parent=11 // pred_check_branch
          %352 = sbr.rel (%p350) target = $region28
        $region27: #{_forward.3} parent=11 // pred_region
          _
        $region28: #{_forward.3} parent=11 // pred_fallthru
          _
      $region12: #{_forward.3} parent=5 // pred_fallthru
        _
      %p353 = scmp.lt.s32.totalorder %s18, 2
      // Predicated region
      $region29: #{_forward.3} parent=5 // pred_check
        %p354 = pneg %p353
      $region30: #{_forward.3} parent=5 // pred_check_branch
        %356 = sbr.rel (%p354) target = $region32
      $region31: #{_forward.3} parent=5 // pred_region
        // Predicated region
        $region33: #{_forward.3} parent=31 // pred_check
          %p357 = pneg %p44
        $region34: #{_forward.3} parent=31 // pred_check_branch
          %359 = sbr.rel (%p357) target = $region36
        $region35: #{_forward.3} parent=31 // pred_region
          %s360 = sand.u32 %s34, 1
          %s361 = sand.u32 %s34, 1
          %s362 = smul.addr %s361, 16
          %s363 = scalar_lea.vmem [#allocation4], %s362
          %s364 = sadd.s32 %s18, 1
          %s365 = smul.u32 %s364, 4
          %s366 = ssub.s32 %s365, 1
          %s367 = smul.u32 2, %s366
          %s368 = smul.addr %s367, 4
          %s369 = scalar_lea.vmem %s0, %s368
          // Predicated region
          $region37: #{_forward.3} parent=35 // pred_check
            _
          $region38: #{_forward.3} parent=35 // pred_check_branch
            %371 = sbr.rel (0) target = $region40
          $region39: #{_forward.3} parent=35 // pred_region
            // Predicated region
            $region41: #{_forward.3} parent=39 // pred_check
              _
            $region42: #{_forward.3} parent=39 // pred_check_branch
              %373 = sbr.rel (0) target = $region44
            $region43: #{_forward.3} parent=39 // pred_region
              // Predicated region
              $region56: #{_forward.3} parent=43 // pred_check
                _
              $region57: #{_forward.3} parent=43 // pred_check_branch
                %391 = sbr.rel (0) target = $region59
              $region58: #{_forward.3} parent=43 // pred_region
                loop: start=0, step=1, limit=1
                $region60: #{_forward.3} parent=58 // loop_pre_header
                  _
                $region61: #{_forward.3} parent=58 // loop_header
                  %s393 = sphi 0, %s397
                  %p394 = scmp.ge.s32.totalorder %s393, 1
                  %s398 = sphi %s369, %s369
                  %s399 = sphi %s363, %s363
                $region62: #{_forward.3} parent=58 // loop_header_branch
                  %396 = sbr.rel (%p394) target = $region66
                $region63: #{_forward.3} parent=58 // loop_body
                  %v400 = vld [vmem:[%s398] sm:$0xff]
                  %401 = vst [vmem:[%s399] sm:$0xff] %v400
                  %v402 = vld [vmem:[%s398 + $0x60] sm:$0xff]
                  %403 = vst [vmem:[%s399 + $0x8] sm:$0xff] %v402
                $region64: #{_forward.3} parent=58 // loop_footer
                  %s397 = sadd.s32 1, %s393
                $region65: #{_forward.3} parent=58 // loop_footer_branch
                  %392 = sbr.rel target = $region61
                $region66: #{_forward.3} parent=58 // loop_exit
                  _
              $region59: #{_forward.3} parent=43 // pred_fallthru
                _
              // Predicated region
              $region67: #{_forward.3} parent=43 // pred_check
                _
              $region68: #{_forward.3} parent=43 // pred_check_branch
                %405 = sbr.rel target = $region70
              $region69: #{_forward.3} parent=43 // pred_region
                _
              $region70: #{_forward.3} parent=43 // pred_fallthru
                _
            $region44: #{_forward.3} parent=39 // pred_fallthru
              _
            // Predicated region
            $region45: #{_forward.3} parent=39 // pred_check
              _
            $region46: #{_forward.3} parent=39 // pred_check_branch
              %375 = sbr.rel target = $region48
            $region47: #{_forward.3} parent=39 // pred_region
              %s377 = ssub.s32 256, 1
              loop: start=0, step=1, limit=1
              $region49: #{_forward.3} parent=47 // loop_pre_header
                _
              $region50: #{_forward.3} parent=47 // loop_header
                %s379 = sphi 0, %s383
                %p380 = scmp.ge.s32.totalorder %s379, 1
                %s384 = sphi %s369, %s369
                %s385 = sphi %s363, %s363
              $region51: #{_forward.3} parent=47 // loop_header_branch
                %382 = sbr.rel (%p380) target = $region55
              $region52: #{_forward.3} parent=47 // loop_body
                %v386 = vld [vmem:[%s384] sm:%s377]
                %387 = vst [vmem:[%s385] sm:%s377] %v386
                %v388 = vld [vmem:[%s384 + $0x60] sm:%s377]
                %389 = vst [vmem:[%s385 + $0x8] sm:%s377] %v388
              $region53: #{_forward.3} parent=47 // loop_footer
                %s383 = sadd.s32 1, %s379
              $region54: #{_forward.3} parent=47 // loop_footer_branch
                %378 = sbr.rel target = $region50
              $region55: #{_forward.3} parent=47 // loop_exit
                _
            $region48: #{_forward.3} parent=39 // pred_fallthru
              _
          $region40: #{_forward.3} parent=35 // pred_fallthru
            _
          %406 = vnop
        $region36: #{_forward.3} parent=31 // pred_fallthru
          _
        // Predicated region
        $region71: #{_forward.3} parent=31 // pred_check
          %p407 = pneg %p72
        $region72: #{_forward.3} parent=31 // pred_check_branch
          %409 = sbr.rel (%p407) target = $region74
        $region73: #{_forward.3} parent=31 // pred_region
          %s410 = sand.u32 %s62, 1
          %s411 = sand.u32 %s62, 1
          %s412 = smul.addr %s411, 64
          %s413 = scalar_lea.vmem [#allocation5], %s412
          %s414 = sadd.s32 %s18, 1
          %s415 = smul.u32 8, %s414
          %s416 = smul.addr %s415, 4
          %s417 = scalar_lea.vmem %s1, %s416
          // Predicated region
          $region75: #{_forward.3} parent=73 // pred_check
            _
          $region76: #{_forward.3} parent=73 // pred_check_branch
            %419 = sbr.rel (0) target = $region78
          $region77: #{_forward.3} parent=73 // pred_region
            // Predicated region
            $region79: #{_forward.3} parent=77 // pred_check
              _
            $region80: #{_forward.3} parent=77 // pred_check_branch
              %421 = sbr.rel (0) target = $region82
            $region81: #{_forward.3} parent=77 // pred_region
              loop: start=0, step=1, limit=1
              $region83: #{_forward.3} parent=81 // loop_pre_header
                _
              $region84: #{_forward.3} parent=81 // loop_header
                %s423 = sphi 0, %s427
                %p424 = scmp.ge.s32.totalorder %s423, 1
                %s428 = sphi %s417, %s417
                %s429 = sphi %s413, %s413
              $region85: #{_forward.3} parent=81 // loop_header_branch
                %426 = sbr.rel (%p424) target = $region89
              $region86: #{_forward.3} parent=81 // loop_body
                %v430 = vld [vmem:[%s428] sm:$0xff]
                %431 = vst [vmem:[%s429] sm:$0xff] %v430
                %v432 = vld [vmem:[%s428 + $0x8] sm:$0xff]
                %433 = vst [vmem:[%s429 + $0x8] sm:$0xff] %v432
                %v434 = vld [vmem:[%s428 + $0x10] sm:$0xff]
                %435 = vst [vmem:[%s429 + $0x10] sm:$0xff] %v434
                %v436 = vld [vmem:[%s428 + $0x18] sm:$0xff]
                %437 = vst [vmem:[%s429 + $0x18] sm:$0xff] %v436
                %v438 = vld [vmem:[%s428 + $0x60] sm:$0xff]
                %439 = vst [vmem:[%s429 + $0x20] sm:$0xff] %v438
                %v440 = vld [vmem:[%s428 + $0x68] sm:$0xff]
                %441 = vst [vmem:[%s429 + $0x28] sm:$0xff] %v440
                %v442 = vld [vmem:[%s428 + $0x70] sm:$0xff]
                %443 = vst [vmem:[%s429 + $0x30] sm:$0xff] %v442
                %v444 = vld [vmem:[%s428 + $0x78] sm:$0xff]
                %445 = vst [vmem:[%s429 + $0x38] sm:$0xff] %v444
              $region87: #{_forward.3} parent=81 // loop_footer
                %s427 = sadd.s32 1, %s423
              $region88: #{_forward.3} parent=81 // loop_footer_branch
                %422 = sbr.rel target = $region84
              $region89: #{_forward.3} parent=81 // loop_exit
                _
            $region82: #{_forward.3} parent=77 // pred_fallthru
              _
            // Predicated region
            $region90: #{_forward.3} parent=77 // pred_check
              _
            $region91: #{_forward.3} parent=77 // pred_check_branch
              %447 = sbr.rel target = $region93
            $region92: #{_forward.3} parent=77 // pred_region
              _
            $region93: #{_forward.3} parent=77 // pred_fallthru
              _
          $region78: #{_forward.3} parent=73 // pred_fallthru
            _
          %448 = vnop
        $region74: #{_forward.3} parent=31 // pred_fallthru
          _
        // Predicated region
        $region94: #{_forward.3} parent=31 // pred_check
          %p449 = pneg %p104
        $region95: #{_forward.3} parent=31 // pred_check_branch
          %451 = sbr.rel (%p449) target = $region97
        $region96: #{_forward.3} parent=31 // pred_region
          %s452 = sadd.s32 %s18, 1
          %s453 = smul.u32 %s452, 4
          %s454 = ssub.s32 %s453, 1
          %s455 = smul.u32 2, %s454
          %p456 = scmp.lt.s32.totalorder %s455, 23
          %s457 = scalar_select %p456, %s455, 23
          %s458 = scalar_lea.vmem %s2, %s457
          %s459 = sadd.s32 %s18, 1
          %s460 = smul.u32 %s459, 4
          %s461 = ssub.s32 %s460, 1
          %s462 = smul.u32 2, %s461
        $region97: #{_forward.3} parent=31 // pred_fallthru
          _
        // Predicated region
        $region98: #{_forward.3} parent=31 // pred_check
          %p463 = pneg %p132
        $region99: #{_forward.3} parent=31 // pred_check_branch
          %465 = sbr.rel (%p463) target = $region101
        $region100: #{_forward.3} parent=31 // pred_region
          %s466 = sadd.s32 %s18, 1
          %s467 = smul.u32 8, %s466
          %p468 = scmp.lt.s32.totalorder %s467, 23
          %s469 = scalar_select %p468, %s467, 23
          %s470 = scalar_lea.vmem %s3, %s469
          %s471 = sadd.s32 %s18, 1
          %s472 = smul.u32 8, %s471
        $region101: #{_forward.3} parent=31 // pred_fallthru
          _
        // Predicated region
        $region102: #{_forward.3} parent=31 // pred_check
          %p473 = pneg %p242
        $region103: #{_forward.3} parent=31 // pred_check_branch
          %475 = sbr.rel (%p473) target = $region105
        $region104: #{_forward.3} parent=31 // pred_region
          %s476 = smul.u32 8, %s18
          %p477 = scmp.lt.s32.totalorder %s476, 15
          %s478 = scalar_select %p477, %s476, 15
          %s479 = scalar_lea.vmem %s8, %s478
          %s480 = smul.u32 8, %s18
        $region105: #{_forward.3} parent=31 // pred_fallthru
          _
      $region32: #{_forward.3} parent=5 // pred_fallthru
        _
      %p481 = scmp.le.s32.totalorder 1, %s18
      %p482 = scmp.lt.s32.totalorder %s18, 3
      %p483 = pnand %p481, %p482
      %p484 = pneg %p483
      // Predicated region
      $region106: #{_forward.3} parent=5 // pred_check
        _
      $region107: #{_forward.3} parent=5 // pred_check_branch
        %486 = sbr.rel (%p483) target = $region109
      $region108: #{_forward.3} parent=5 // pred_region
        %s487 = ssub.s32 %s18, 1
        %s488 = sand.u32 %s37, 1
        %s489 = sand.u32 %s37, 1
        %s490 = smul.addr %s489, 16
        %s491 = scalar_lea.vmem [#allocation4], %s490
        // Predicated region
        $region110: #{_forward.3} parent=108 // pred_check
          %p492 = pneg %p50
        $region111: #{_forward.3} parent=108 // pred_check_branch
          %494 = sbr.rel (%p492) target = $region113
        $region112: #{_forward.3} parent=108 // pred_region
          _
        $region113: #{_forward.3} parent=108 // pred_fallthru
          _
        %s495 = sand.u32 %s65, 1
        %s496 = sand.u32 %s65, 1
        %s497 = smul.addr %s496, 64
        %s498 = scalar_lea.vmem [#allocation5], %s497
        // Predicated region
        $region114: #{_forward.3} parent=108 // pred_check
          %p499 = pneg %p78
        $region115: #{_forward.3} parent=108 // pred_check_branch
          %501 = sbr.rel (%p499) target = $region117
        $region116: #{_forward.3} parent=108 // pred_region
          _
        $region117: #{_forward.3} parent=108 // pred_fallthru
          _
        %s502 = sand.u32 %s37, 1
        %s503 = sand.u32 %s37, 1
        %s504 = smul.addr %s503, 16
        %s505 = scalar_lea.vmem [#allocation4], %s504
        %p506 = pneg %p50
        %p507 = pneg %p47
        %s508 = sand.u32 %s65, 1
        %s509 = sand.u32 %s65, 1
        %s510 = smul.addr %s509, 64
        %s511 = scalar_lea.vmem [#allocation5], %s510
        %p512 = pneg %p78
        %p513 = pneg %p75
        %s514 = sadd.s32 %s23, 1
        %s515 = smul.u32 %s514, 4
        %s516 = ssub.s32 %s515, 1
        %s517 = smul.u32 2, %s516
        %p518 = scmp.lt.s32.totalorder %s517, 23
        %s519 = scalar_select %p518, %s517, 23
        %s520 = scalar_lea.vmem %s2, %s519
        %p521 = pneg %p110
        %p522 = pneg %p107
        %s523 = sadd.s32 %s23, 1
        %s524 = smul.u32 8, %s523
        %p525 = scmp.lt.s32.totalorder %s524, 23
        %s526 = scalar_select %p525, %s524, 23
        %s527 = scalar_lea.vmem %s3, %s526
        %p528 = pneg %p138
        %p529 = pneg %p135
        %p530 = pneg %p159
        %p531 = pneg %p156
        %p532 = pneg %p180
        %p533 = pneg %p177
        %p534 = pneg %p201
        %p535 = pneg %p198
        %p536 = pneg %p222
        %p537 = pneg %p219
        %s538 = smul.u32 8, %s23
        %p539 = scmp.lt.s32.totalorder %s538, 15
        %s540 = scalar_select %p539, %s538, 15
        %s541 = scalar_lea.vmem %s8, %s540
        %p542 = pneg %p248
        %p543 = pneg %p245
        %p544 = pneg %p274
        %p545 = pneg %p271
        %s546 = sand.u32 %s261, 1
        %s547 = sand.u32 %s261, 1
        %s548 = smul.addr %s547, 256
        %s549 = scalar_lea.vmem [#allocation6], %s548
        %p550 = pneg %p300
        %p551 = pneg %p297
        %s552 = sand.u32 %s287, 1
        %s553 = sand.u32 %s287, 1
        %s554 = smul.addr %s553, 32
        %s555 = scalar_lea.vmem [#allocation7], %s554
        %p556 = pneg %p326
        %p557 = pneg %p323
        %s558 = sand.u32 %s313, 1
        %s559 = sand.u32 %s313, 1
        %s560 = smul.addr %s559, 32
        %s561 = scalar_lea.vmem [#allocation8], %s560
        %s562 = sadd.s32 %s23, 1
        %s563 = smul.u32 %s562, 4
        %s564 = ssub.s32 %s563, 1
        %s565 = smul.u32 2, %s564
        %s566 = sadd.s32 %s23, 1
        %s567 = smul.u32 8, %s566
        %s568 = sadd.s32 %s23, 1
        %s569 = smul.u32 %s568, 4
        %s570 = ssub.s32 %s569, 1
        %s571 = smul.u32 2, %s570
        %p572 = scmp.lt.s32.totalorder %s571, 23
        %s573 = scalar_select %p572, %s571, 23
        %s574 = scalar_lea.vmem %s2, %s573
        %s575 = sadd.s32 %s23, 1
        %s576 = smul.u32 %s575, 4
        %s577 = ssub.s32 %s576, 1
        %s578 = smul.u32 2, %s577
        %s579 = sadd.s32 %s23, 1
        %s580 = smul.u32 8, %s579
        %p581 = scmp.lt.s32.totalorder %s580, 23
        %s582 = scalar_select %p581, %s580, 23
        %s583 = scalar_lea.vmem %s3, %s582
        %s584 = sadd.s32 %s23, 1
        %s585 = smul.u32 8, %s584
        %s586 = smul.u32 8, %s23
        %p587 = scmp.lt.s32.totalorder %s586, 15
        %s588 = scalar_select %p587, %s586, 15
        %s589 = scalar_lea.vmem %s8, %s588
        %s590 = smul.u32 8, %s23
        %s591 = smul.u32 8, %s23
        %v593 = vld [vmem:[%s4] sm:$0xff]
        %v594 = vld [vmem:[%s4 + $0x8] sm:$0xff]
        %v595 = vld [vmem:[%s5] sm:$0xff]
        %v596 = vld [vmem:[%s5 + $0x8] sm:$0xff]
        %v597 = vld [vmem:[%s491] sm:$0xff]
        %v598 = vld [vmem:[%s491 + $0x8] sm:$0xff]
        %v599 = vunpack.c.l.bf16 %v597
        %v600 = vunpack.c.h.bf16 %v597
        %v601 = vunpack.c.l.bf16 %v598
        %v602 = vunpack.c.h.bf16 %v598
        %604 = vset.pattern.permute.xlu0 0
        %605 = vperm.xlu0 %604, %v593
        %v606 = vpop.permute.xlu0 %605
        %609 = vset.pattern.permute.xlu0 0
        %610 = vperm.xlu0 %609, %v594
        %v611 = vpop.permute.xlu0 %610
        %v613 = vmul.f32 %v606, %v599
        %v614 = vmul.f32 %v606, %v600
        %v615 = vmul.f32 %v611, %v601
        %v616 = vmul.f32 %v611, %v602
        %618 = vset.pattern.permute.xlu0 0
        %619 = vperm.xlu0 %618, %v595
        %v620 = vpop.permute.xlu0 %619
        %623 = vset.pattern.permute.xlu0 0
        %624 = vperm.xlu0 %623, %v596
        %v625 = vpop.permute.xlu0 %624
        %v627 = vadd.f32 %v613, %v620
        %v628 = vadd.f32 %v614, %v620
        %v629 = vadd.f32 %v615, %v625
        %v630 = vadd.f32 %v616, %v625
        %vm631 = vcmp.ge.f32.partialorder %v627, 0.0
        %vm632 = vcmp.ge.f32.partialorder %v628, 0.0
        %vm633 = vcmp.ge.f32.partialorder %v629, 0.0
        %vm634 = vcmp.ge.f32.partialorder %v630, 0.0
        %v635 = vmul.f32 %v627, 0.01
        %v636 = vmul.f32 %v628, 0.01
        %v637 = vmul.f32 %v629, 0.01
        %v638 = vmul.f32 %v630, 0.01
        %v639 = vsel %vm631, %v627, %v635
        %v640 = vsel %vm632, %v628, %v636
        %v641 = vsel %vm633, %v629, %v637
        %v642 = vsel %vm634, %v630, %v638
        %v643 = vld [vmem:[%s574] sm:$0x3]
        %vm644 = vcmp.gt.f32.partialorder %v643, 0.0
        %v645 = vsel %vm644, 1, 0
        %v646 = vlaneseq
        %v647 = vshrl.u32 %v646, 7
        %v648 = vsub.s32 0, %v647
        %v649 = vrot.slane %v645, %v648
        %v650 = vlaneseq
        %v651 = vshrl.u32 %v650, 7
        %v652 = vsub.s32 1, %v651
        %v653 = vrot.slane %v645, %v652
        %vm654 = vcmp.eq.s32.totalorder %v649, 1
        %vm655 = vcmp.eq.s32.totalorder %v653, 1
        %v656 = vsel %vm654, %v639, 0.0
        %v657 = vsel %vm655, %v640, 0.0
        %v658 = vsel %vm654, %v641, 0.0
        %v659 = vsel %vm655, %v642, 0.0
        %v660 = vpack.c.bf16 %v658, %v656
        %v661 = vpack.c.bf16 %v659, %v657
        %v664 = vunpack.c.l.b16 %v660
        %v665 = vunpack.c.l.b16 %v661
        %v666 = vunpack.c.h.b16 %v660
        %v667 = vunpack.c.h.b16 %v661
        %v668 = vpack.c.b16 %v665, %v664
        %v669 = vpack.c.b16 %v667, %v666
        %672 = vst [vmem:[#allocation2] sm:$0xff] %v668
        %673 = vst [vmem:[#allocation2 + $0x28] sm:$0xff] %v669
        %v674 = vld [vmem:[%s498] sm:$0xff]
        %v675 = vld [vmem:[%s498 + $0x8] sm:$0xff]
        %v676 = vld [vmem:[%s498 + $0x10] sm:$0xff]
        %v677 = vld [vmem:[%s498 + $0x18] sm:$0xff]
        %v678 = vld [vmem:[%s498 + $0x20] sm:$0xff]
        %v679 = vld [vmem:[%s498 + $0x28] sm:$0xff]
        %v680 = vld [vmem:[%s498 + $0x30] sm:$0xff]
        %v681 = vld [vmem:[%s498 + $0x38] sm:$0xff]
        %v682 = vunpack.c.l.bf16 %v674
        %v683 = vunpack.c.h.bf16 %v674
        %v684 = vunpack.c.l.bf16 %v675
        %v685 = vunpack.c.h.bf16 %v675
        %v686 = vunpack.c.l.bf16 %v676
        %v687 = vunpack.c.h.bf16 %v676
        %v688 = vunpack.c.l.bf16 %v677
        %v689 = vunpack.c.h.bf16 %v677
        %v690 = vunpack.c.l.bf16 %v678
        %v691 = vunpack.c.h.bf16 %v678
        %v692 = vunpack.c.l.bf16 %v679
        %v693 = vunpack.c.h.bf16 %v679
        %v694 = vunpack.c.l.bf16 %v680
        %v695 = vunpack.c.h.bf16 %v680
        %v696 = vunpack.c.l.bf16 %v681
        %v697 = vunpack.c.h.bf16 %v681
        %v698 = vmul.f32 %v606, %v682
        %v699 = vmul.f32 %v606, %v683
        %v700 = vmul.f32 %v606, %v684
        %v701 = vmul.f32 %v606, %v685
        %v702 = vmul.f32 %v606, %v686
        %v703 = vmul.f32 %v606, %v687
        %v704 = vmul.f32 %v606, %v688
        %v705 = vmul.f32 %v606, %v689
        %v706 = vmul.f32 %v611, %v690
        %v707 = vmul.f32 %v611, %v691
        %v708 = vmul.f32 %v611, %v692
        %v709 = vmul.f32 %v611, %v693
        %v710 = vmul.f32 %v611, %v694
        %v711 = vmul.f32 %v611, %v695
        %v712 = vmul.f32 %v611, %v696
        %v713 = vmul.f32 %v611, %v697
        %v714 = vadd.f32 %v698, %v620
        %v715 = vadd.f32 %v699, %v620
        %v716 = vadd.f32 %v700, %v620
        %v717 = vadd.f32 %v701, %v620
        %v718 = vadd.f32 %v702, %v620
        %v719 = vadd.f32 %v703, %v620
        %v720 = vadd.f32 %v704, %v620
        %v721 = vadd.f32 %v705, %v620
        %v722 = vadd.f32 %v706, %v625
        %v723 = vadd.f32 %v707, %v625
        %v724 = vadd.f32 %v708, %v625
        %v725 = vadd.f32 %v709, %v625
        %v726 = vadd.f32 %v710, %v625
        %v727 = vadd.f32 %v711, %v625
        %v728 = vadd.f32 %v712, %v625
        %v729 = vadd.f32 %v713, %v625
        %vm730 = vcmp.ge.f32.partialorder %v714, 0.0
        %vm731 = vcmp.ge.f32.partialorder %v715, 0.0
        %vm732 = vcmp.ge.f32.partialorder %v716, 0.0
        %vm733 = vcmp.ge.f32.partialorder %v717, 0.0
        %vm734 = vcmp.ge.f32.partialorder %v718, 0.0
        %vm735 = vcmp.ge.f32.partialorder %v719, 0.0
        %vm736 = vcmp.ge.f32.partialorder %v720, 0.0
        %vm737 = vcmp.ge.f32.partialorder %v721, 0.0
        %vm738 = vcmp.ge.f32.partialorder %v722, 0.0
        %vm739 = vcmp.ge.f32.partialorder %v723, 0.0
        %vm740 = vcmp.ge.f32.partialorder %v724, 0.0
        %vm741 = vcmp.ge.f32.partialorder %v725, 0.0
        %vm742 = vcmp.ge.f32.partialorder %v726, 0.0
        %vm743 = vcmp.ge.f32.partialorder %v727, 0.0
        %vm744 = vcmp.ge.f32.partialorder %v728, 0.0
        %vm745 = vcmp.ge.f32.partialorder %v729, 0.0
        %v746 = vmul.f32 %v714, 0.01
        %v747 = vmul.f32 %v715, 0.01
        %v748 = vmul.f32 %v716, 0.01
        %v749 = vmul.f32 %v717, 0.01
        %v750 = vmul.f32 %v718, 0.01
        %v751 = vmul.f32 %v719, 0.01
        %v752 = vmul.f32 %v720, 0.01
        %v753 = vmul.f32 %v721, 0.01
        %v754 = vmul.f32 %v722, 0.01
        %v755 = vmul.f32 %v723, 0.01
        %v756 = vmul.f32 %v724, 0.01
        %v757 = vmul.f32 %v725, 0.01
        %v758 = vmul.f32 %v726, 0.01
        %v759 = vmul.f32 %v727, 0.01
        %v760 = vmul.f32 %v728, 0.01
        %v761 = vmul.f32 %v729, 0.01
        %v762 = vsel %vm730, %v714, %v746
        %v763 = vsel %vm731, %v715, %v747
        %v764 = vsel %vm732, %v716, %v748
        %v765 = vsel %vm733, %v717, %v749
        %v766 = vsel %vm734, %v718, %v750
        %v767 = vsel %vm735, %v719, %v751
        %v768 = vsel %vm736, %v720, %v752
        %v769 = vsel %vm737, %v721, %v753
        %v770 = vsel %vm738, %v722, %v754
        %v771 = vsel %vm739, %v723, %v755
        %v772 = vsel %vm740, %v724, %v756
        %v773 = vsel %vm741, %v725, %v757
        %v774 = vsel %vm742, %v726, %v758
        %v775 = vsel %vm743, %v727, %v759
        %v776 = vsel %vm744, %v728, %v760
        %v777 = vsel %vm745, %v729, %v761
        %v778 = vld [vmem:[%s583] sm:$0xff]
        %vm779 = vcmp.gt.f32.partialorder %v778, 0.0
        %v780 = vsel %vm779, 1, 0
        %v781 = vlaneseq
        %v782 = vshrl.u32 %v781, 7
        %v783 = vsub.s32 0, %v782
        %v784 = vrot.slane %v780, %v783
        %v785 = vlaneseq
        %v786 = vshrl.u32 %v785, 7
        %v787 = vsub.s32 1, %v786
        %v788 = vrot.slane %v780, %v787
        %v789 = vlaneseq
        %v790 = vshrl.u32 %v789, 7
        %v791 = vsub.s32 2, %v790
        %v792 = vrot.slane %v780, %v791
        %v793 = vlaneseq
        %v794 = vshrl.u32 %v793, 7
        %v795 = vsub.s32 3, %v794
        %v796 = vrot.slane %v780, %v795
        %v797 = vlaneseq
        %v798 = vshrl.u32 %v797, 7
        %v799 = vsub.s32 4, %v798
        %v800 = vrot.slane %v780, %v799
        %v801 = vlaneseq
        %v802 = vshrl.u32 %v801, 7
        %v803 = vsub.s32 5, %v802
        %v804 = vrot.slane %v780, %v803
        %v805 = vlaneseq
        %v806 = vshrl.u32 %v805, 7
        %v807 = vsub.s32 6, %v806
        %v808 = vrot.slane %v780, %v807
        %v809 = vlaneseq
        %v810 = vshrl.u32 %v809, 7
        %v811 = vsub.s32 7, %v810
        %v812 = vrot.slane %v780, %v811
        %vm813 = vcmp.eq.s32.totalorder %v784, 1
        %vm814 = vcmp.eq.s32.totalorder %v788, 1
        %vm815 = vcmp.eq.s32.totalorder %v792, 1
        %vm816 = vcmp.eq.s32.totalorder %v796, 1
        %vm817 = vcmp.eq.s32.totalorder %v800, 1
        %vm818 = vcmp.eq.s32.totalorder %v804, 1
        %vm819 = vcmp.eq.s32.totalorder %v808, 1
        %vm820 = vcmp.eq.s32.totalorder %v812, 1
        %v821 = vsel %vm813, %v762, 0.0
        %v822 = vsel %vm814, %v763, 0.0
        %v823 = vsel %vm815, %v764, 0.0
        %v824 = vsel %vm816, %v765, 0.0
        %v825 = vsel %vm817, %v766, 0.0
        %v826 = vsel %vm818, %v767, 0.0
        %v827 = vsel %vm819, %v768, 0.0
        %v828 = vsel %vm820, %v769, 0.0
        %v829 = vsel %vm813, %v770, 0.0
        %v830 = vsel %vm814, %v771, 0.0
        %v831 = vsel %vm815, %v772, 0.0
        %v832 = vsel %vm816, %v773, 0.0
        %v833 = vsel %vm817, %v774, 0.0
        %v834 = vsel %vm818, %v775, 0.0
        %v835 = vsel %vm819, %v776, 0.0
        %v836 = vsel %vm820, %v777, 0.0
        %v837 = vpack.c.bf16 %v829, %v821
        %v838 = vpack.c.bf16 %v830, %v822
        %v839 = vpack.c.bf16 %v831, %v823
        %v840 = vpack.c.bf16 %v832, %v824
        %v841 = vpack.c.bf16 %v833, %v825
        %v842 = vpack.c.bf16 %v834, %v826
        %v843 = vpack.c.bf16 %v835, %v827
        %v844 = vpack.c.bf16 %v836, %v828
        %v853 = vunpack.c.l.b16 %v837
        %v854 = vunpack.c.l.b16 %v838
        %v855 = vunpack.c.l.b16 %v839
        %v856 = vunpack.c.l.b16 %v840
        %v857 = vunpack.c.l.b16 %v841
        %v858 = vunpack.c.l.b16 %v842
        %v859 = vunpack.c.l.b16 %v843
        %v860 = vunpack.c.l.b16 %v844
        %v861 = vunpack.c.h.b16 %v837
        %v862 = vunpack.c.h.b16 %v838
        %v863 = vunpack.c.h.b16 %v839
        %v864 = vunpack.c.h.b16 %v840
        %v865 = vunpack.c.h.b16 %v841
        %v866 = vunpack.c.h.b16 %v842
        %v867 = vunpack.c.h.b16 %v843
        %v868 = vunpack.c.h.b16 %v844
        %v869 = vpack.c.b16 %v854, %v853
        %v870 = vpack.c.b16 %v856, %v855
        %v871 = vpack.c.b16 %v858, %v857
        %v872 = vpack.c.b16 %v860, %v859
        %v873 = vpack.c.b16 %v862, %v861
        %v874 = vpack.c.b16 %v864, %v863
        %v875 = vpack.c.b16 %v866, %v865
        %v876 = vpack.c.b16 %v868, %v867
        %885 = vst [vmem:[#allocation2 + $0x8] sm:$0xff] %v869
        %886 = vst [vmem:[#allocation2 + $0x10] sm:$0xff] %v870
        %887 = vst [vmem:[#allocation2 + $0x18] sm:$0xff] %v871
        %888 = vst [vmem:[#allocation2 + $0x20] sm:$0xff] %v872
        %889 = vst [vmem:[#allocation2 + $0x30] sm:$0xff] %v873
        %890 = vst [vmem:[#allocation2 + $0x38] sm:$0xff] %v874
        %891 = vst [vmem:[#allocation2 + $0x40] sm:$0xff] %v875
        %892 = vst [vmem:[#allocation2 + $0x48] sm:$0xff] %v876
        %v893 = vld [vmem:[#allocation2] sm:$0xff]
        %v894 = vld [vmem:[#allocation2 + $0x8] sm:$0xff]
        %v895 = vld [vmem:[#allocation2 + $0x10] sm:$0xff]
        %v896 = vld [vmem:[#allocation2 + $0x18] sm:$0xff]
        %v897 = vld [vmem:[#allocation2 + $0x20] sm:$0xf]
        %v898 = vld [vmem:[#allocation2 + $0x28] sm:$0xff]
        %v899 = vld [vmem:[#allocation2 + $0x30] sm:$0xff]
        %v900 = vld [vmem:[#allocation2 + $0x38] sm:$0xff]
        %v901 = vld [vmem:[#allocation2 + $0x40] sm:$0xff]
        %v902 = vld [vmem:[#allocation2 + $0x48] sm:$0xf]
        %913 = vrot.lane.b32.xlu0 %v893, 94
        %v914 = vpop.permute.xlu0 %913
        %915 = vrot.lane.b32.xlu0 %v894, 94
        %v916 = vpop.permute.xlu0 %915
        %917 = vrot.lane.b32.xlu0 %v895, 94
        %v918 = vpop.permute.xlu0 %917
        %919 = vrot.lane.b32.xlu0 %v896, 94
        %v920 = vpop.permute.xlu0 %919
        %921 = vrot.lane.b32.xlu0 %v897, 94
        %v922 = vpop.permute.xlu0 %921
        %923 = vrot.lane.b32.xlu0 %v898, 94
        %v924 = vpop.permute.xlu0 %923
        %925 = vrot.lane.b32.xlu0 %v899, 94
        %v926 = vpop.permute.xlu0 %925
        %927 = vrot.lane.b32.xlu0 %v900, 94
        %v928 = vpop.permute.xlu0 %927
        %929 = vrot.lane.b32.xlu0 %v901, 94
        %v930 = vpop.permute.xlu0 %929
        %931 = vrot.lane.b32.xlu0 %v902, 94
        %v932 = vpop.permute.xlu0 %931
        %v933 = vrot.slane %v914, 4
        %v934 = vrot.slane %v916, 4
        %v935 = vrot.slane %v918, 4
        %v936 = vrot.slane %v920, 4
        %v937 = vrot.slane %v922, 4
        %v938 = vrot.slane %v924, 4
        %v939 = vrot.slane %v926, 4
        %v940 = vrot.slane %v928, 4
        %v941 = vrot.slane %v930, 4
        %v942 = vrot.slane %v932, 4
        %vm943 = vcmask 1043456
        %v944 = vsel %vm943, %v933, %v934
        %vm945 = vcmask 769024
        %v946 = vsel %vm945, %v914, %v944
        %v947 = vsel %vm943, %v934, %v935
        %v948 = vsel %vm945, %v916, %v947
        %v949 = vsel %vm943, %v935, %v936
        %v950 = vsel %vm945, %v918, %v949
        %v951 = vsel %vm943, %v936, %v937
        %v952 = vsel %vm945, %v920, %v951
        %v953 = vsel %vm943, %v938, %v939
        %v954 = vsel %vm945, %v924, %v953
        %v955 = vsel %vm943, %v939, %v940
        %v956 = vsel %vm945, %v926, %v955
        %v957 = vsel %vm943, %v940, %v941
        %v958 = vsel %vm945, %v928, %v957
        %v959 = vsel %vm943, %v941, %v942
        %v960 = vsel %vm945, %v930, %v959
        %969 = vst [vmem:[#allocation3] sm:$0xff] %v946
        %970 = vst [vmem:[#allocation3 + $0x8] sm:$0xff] %v948
        %971 = vst [vmem:[#allocation3 + $0x10] sm:$0xff] %v950
        %972 = vst [vmem:[#allocation3 + $0x18] sm:$0xff] %v952
        %973 = vst [vmem:[#allocation3 + $0x20] sm:$0xff] %v954
        %974 = vst [vmem:[#allocation3 + $0x28] sm:$0xff] %v956
        %975 = vst [vmem:[#allocation3 + $0x30] sm:$0xff] %v958
        %976 = vst [vmem:[#allocation3 + $0x38] sm:$0xff] %v960
        %v977 = vld [vmem:[#allocation2] sm:$0xff]
        %v978 = vld [vmem:[#allocation2 + $0x8] sm:$0xff]
        %v979 = vld [vmem:[#allocation2 + $0x10] sm:$0xff]
        %v980 = vld [vmem:[#allocation2 + $0x18] sm:$0xff]
        %v981 = vld [vmem:[#allocation2 + $0x20] sm:$0xf]
        %v982 = vld [vmem:[#allocation2 + $0x28] sm:$0xff]
        %v983 = vld [vmem:[#allocation2 + $0x30] sm:$0xff]
        %v984 = vld [vmem:[#allocation2 + $0x38] sm:$0xff]
        %v985 = vld [vmem:[#allocation2 + $0x40] sm:$0xff]
        %v986 = vld [vmem:[#allocation2 + $0x48] sm:$0xf]
        %997 = vrot.lane.b32.xlu0 %v977, 93
        %v998 = vpop.permute.xlu0 %997
        %999 = vrot.lane.b32.xlu0 %v978, 93
        %v1000 = vpop.permute.xlu0 %999
        %1001 = vrot.lane.b32.xlu0 %v979, 93
        %v1002 = vpop.permute.xlu0 %1001
        %1003 = vrot.lane.b32.xlu0 %v980, 93
        %v1004 = vpop.permute.xlu0 %1003
        %1005 = vrot.lane.b32.xlu0 %v981, 93
        %v1006 = vpop.permute.xlu0 %1005
        %1007 = vrot.lane.b32.xlu0 %v982, 93
        %v1008 = vpop.permute.xlu0 %1007
        %1009 = vrot.lane.b32.xlu0 %v983, 93
        %v1010 = vpop.permute.xlu0 %1009
        %1011 = vrot.lane.b32.xlu0 %v984, 93
        %v1012 = vpop.permute.xlu0 %1011
        %1013 = vrot.lane.b32.xlu0 %v985, 93
        %v1014 = vpop.permute.xlu0 %1013
        %1015 = vrot.lane.b32.xlu0 %v986, 93
        %v1016 = vpop.permute.xlu0 %1015
        %v1017 = vrot.slane %v998, 4
        %v1018 = vrot.slane %v1000, 4
        %v1019 = vrot.slane %v1002, 4
        %v1020 = vrot.slane %v1004, 4
        %v1021 = vrot.slane %v1006, 4
        %v1022 = vrot.slane %v1008, 4
        %v1023 = vrot.slane %v1010, 4
        %v1024 = vrot.slane %v1012, 4
        %v1025 = vrot.slane %v1014, 4
        %v1026 = vrot.slane %v1016, 4
        %v1027 = vsel %vm943, %v1017, %v1018
        %vm1028 = vcmask 760832
        %v1029 = vsel %vm1028, %v998, %v1027
        %v1030 = vsel %vm943, %v1018, %v1019
        %v1031 = vsel %vm1028, %v1000, %v1030
        %v1032 = vsel %vm943, %v1019, %v1020
        %v1033 = vsel %vm1028, %v1002, %v1032
        %v1034 = vsel %vm943, %v1020, %v1021
        %v1035 = vsel %vm1028, %v1004, %v1034
        %v1036 = vsel %vm943, %v1022, %v1023
        %v1037 = vsel %vm1028, %v1008, %v1036
        %v1038 = vsel %vm943, %v1023, %v1024
        %v1039 = vsel %vm1028, %v1010, %v1038
        %v1040 = vsel %vm943, %v1024, %v1025
        %v1041 = vsel %vm1028, %v1012, %v1040
        %v1042 = vsel %vm943, %v1025, %v1026
        %v1043 = vsel %vm1028, %v1014, %v1042
        %1052 = vst [vmem:[#allocation3 + $0x40] sm:$0xff] %v1029
        %1053 = vst [vmem:[#allocation3 + $0x48] sm:$0xff] %v1031
        %1054 = vst [vmem:[#allocation3 + $0x50] sm:$0xff] %v1033
        %1055 = vst [vmem:[#allocation3 + $0x58] sm:$0xff] %v1035
        %1056 = vst [vmem:[#allocation3 + $0x60] sm:$0xff] %v1037
        %1057 = vst [vmem:[#allocation3 + $0x68] sm:$0xff] %v1039
        %1058 = vst [vmem:[#allocation3 + $0x70] sm:$0xff] %v1041
        %1059 = vst [vmem:[#allocation3 + $0x78] sm:$0xff] %v1043
        %v1060 = vld [vmem:[#allocation2] sm:$0xff]
        %v1061 = vld [vmem:[#allocation2 + $0x8] sm:$0xff]
        %v1062 = vld [vmem:[#allocation2 + $0x10] sm:$0xff]
        %v1063 = vld [vmem:[#allocation2 + $0x18] sm:$0xff]
        %v1064 = vld [vmem:[#allocation2 + $0x20] sm:$0xf]
        %v1065 = vld [vmem:[#allocation2 + $0x28] sm:$0xff]
        %v1066 = vld [vmem:[#allocation2 + $0x30] sm:$0xff]
        %v1067 = vld [vmem:[#allocation2 + $0x38] sm:$0xff]
        %v1068 = vld [vmem:[#allocation2 + $0x40] sm:$0xff]
        %v1069 = vld [vmem:[#allocation2 + $0x48] sm:$0xf]
        %1080 = vrot.lane.b32.xlu0 %v1060, 92
        %v1081 = vpop.permute.xlu0 %1080
        %1082 = vrot.lane.b32.xlu0 %v1061, 92
        %v1083 = vpop.permute.xlu0 %1082
        %1084 = vrot.lane.b32.xlu0 %v1062, 92
        %v1085 = vpop.permute.xlu0 %1084
        %1086 = vrot.lane.b32.xlu0 %v1063, 92
        %v1087 = vpop.permute.xlu0 %1086
        %1088 = vrot.lane.b32.xlu0 %v1064, 92
        %v1089 = vpop.permute.xlu0 %1088
        %1090 = vrot.lane.b32.xlu0 %v1065, 92
        %v1091 = vpop.permute.xlu0 %1090
        %1092 = vrot.lane.b32.xlu0 %v1066, 92
        %v1093 = vpop.permute.xlu0 %1092
        %1094 = vrot.lane.b32.xlu0 %v1067, 92
        %v1095 = vpop.permute.xlu0 %1094
        %1096 = vrot.lane.b32.xlu0 %v1068, 92
        %v1097 = vpop.permute.xlu0 %1096
        %1098 = vrot.lane.b32.xlu0 %v1069, 92
        %v1099 = vpop.permute.xlu0 %1098
        %v1100 = vrot.slane %v1081, 4
        %v1101 = vrot.slane %v1083, 4
        %v1102 = vrot.slane %v1085, 4
        %v1103 = vrot.slane %v1087, 4
        %v1104 = vrot.slane %v1089, 4
        %v1105 = vrot.slane %v1091, 4
        %v1106 = vrot.slane %v1093, 4
        %v1107 = vrot.slane %v1095, 4
        %v1108 = vrot.slane %v1097, 4
        %v1109 = vrot.slane %v1099, 4
        %v1110 = vsel %vm943, %v1100, %v1101
        %vm1111 = vcmask 752640
        %v1112 = vsel %vm1111, %v1081, %v1110
        %v1113 = vsel %vm943, %v1101, %v1102
        %v1114 = vsel %vm1111, %v1083, %v1113
        %v1115 = vsel %vm943, %v1102, %v1103
        %v1116 = vsel %vm1111, %v1085, %v1115
        %v1117 = vsel %vm943, %v1103, %v1104
        %v1118 = vsel %vm1111, %v1087, %v1117
        %v1119 = vsel %vm943, %v1105, %v1106
        %v1120 = vsel %vm1111, %v1091, %v1119
        %v1121 = vsel %vm943, %v1106, %v1107
        %v1122 = vsel %vm1111, %v1093, %v1121
        %v1123 = vsel %vm943, %v1107, %v1108
        %v1124 = vsel %vm1111, %v1095, %v1123
        %v1125 = vsel %vm943, %v1108, %v1109
        %v1126 = vsel %vm1111, %v1097, %v1125
        %1135 = vst [vmem:[#allocation3 + $0x80] sm:$0xff] %v1112
        %1136 = vst [vmem:[#allocation3 + $0x88] sm:$0xff] %v1114
        %1137 = vst [vmem:[#allocation3 + $0x90] sm:$0xff] %v1116
        %1138 = vst [vmem:[#allocation3 + $0x98] sm:$0xff] %v1118
        %1139 = vst [vmem:[#allocation3 + $0xa0] sm:$0xff] %v1120
        %1140 = vst [vmem:[#allocation3 + $0xa8] sm:$0xff] %v1122
        %1141 = vst [vmem:[#allocation3 + $0xb0] sm:$0xff] %v1124
        %1142 = vst [vmem:[#allocation3 + $0xb8] sm:$0xff] %v1126
        %v1143 = vld [vmem:[#allocation2] sm:$0xff]
        %v1144 = vld [vmem:[#allocation2 + $0x8] sm:$0xff]
        %v1145 = vld [vmem:[#allocation2 + $0x10] sm:$0xff]
        %v1146 = vld [vmem:[#allocation2 + $0x18] sm:$0xff]
        %v1147 = vld [vmem:[#allocation2 + $0x20] sm:$0xf]
        %v1148 = vld [vmem:[#allocation2 + $0x28] sm:$0xff]
        %v1149 = vld [vmem:[#allocation2 + $0x30] sm:$0xff]
        %v1150 = vld [vmem:[#allocation2 + $0x38] sm:$0xff]
        %v1151 = vld [vmem:[#allocation2 + $0x40] sm:$0xff]
        %v1152 = vld [vmem:[#allocation2 + $0x48] sm:$0xf]
        %1163 = vrot.lane.b32.xlu0 %v1143, 84
        %v1164 = vpop.permute.xlu0 %1163
        %1165 = vrot.lane.b32.xlu0 %v1144, 84
        %v1166 = vpop.permute.xlu0 %1165
        %1167 = vrot.lane.b32.xlu0 %v1145, 84
        %v1168 = vpop.permute.xlu0 %1167
        %1169 = vrot.lane.b32.xlu0 %v1146, 84
        %v1170 = vpop.permute.xlu0 %1169
        %1171 = vrot.lane.b32.xlu0 %v1147, 84
        %v1172 = vpop.permute.xlu0 %1171
        %1173 = vrot.lane.b32.xlu0 %v1148, 84
        %v1174 = vpop.permute.xlu0 %1173
        %1175 = vrot.lane.b32.xlu0 %v1149, 84
        %v1176 = vpop.permute.xlu0 %1175
        %1177 = vrot.lane.b32.xlu0 %v1150, 84
        %v1178 = vpop.permute.xlu0 %1177
        %1179 = vrot.lane.b32.xlu0 %v1151, 84
        %v1180 = vpop.permute.xlu0 %1179
        %1181 = vrot.lane.b32.xlu0 %v1152, 84
        %v1182 = vpop.permute.xlu0 %1181
        %v1183 = vrot.slane %v1164, 4
        %v1184 = vrot.slane %v1166, 4
        %v1185 = vrot.slane %v1168, 4
        %v1186 = vrot.slane %v1170, 4
        %v1187 = vrot.slane %v1172, 4
        %v1188 = vrot.slane %v1174, 4
        %v1189 = vrot.slane %v1176, 4
        %v1190 = vrot.slane %v1178, 4
        %v1191 = vrot.slane %v1180, 4
        %v1192 = vrot.slane %v1182, 4
        %v1193 = vsel %vm943, %v1183, %v1184
        %vm1194 = vcmask 687104
        %v1195 = vsel %vm1194, %v1164, %v1193
        %v1196 = vsel %vm943, %v1184, %v1185
        %v1197 = vsel %vm1194, %v1166, %v1196
        %v1198 = vsel %vm943, %v1185, %v1186
        %v1199 = vsel %vm1194, %v1168, %v1198
        %v1200 = vsel %vm943, %v1186, %v1187
        %v1201 = vsel %vm1194, %v1170, %v1200
        %v1202 = vsel %vm943, %v1188, %v1189
        %v1203 = vsel %vm1194, %v1174, %v1202
        %v1204 = vsel %vm943, %v1189, %v1190
        %v1205 = vsel %vm1194, %v1176, %v1204
        %v1206 = vsel %vm943, %v1190, %v1191
        %v1207 = vsel %vm1194, %v1178, %v1206
        %v1208 = vsel %vm943, %v1191, %v1192
        %v1209 = vsel %vm1194, %v1180, %v1208
        %1218 = vst [vmem:[#allocation3 + $0xc0] sm:$0xff] %v1195
        %1219 = vst [vmem:[#allocation3 + $0xc8] sm:$0xff] %v1197
        %1220 = vst [vmem:[#allocation3 + $0xd0] sm:$0xff] %v1199
        %1221 = vst [vmem:[#allocation3 + $0xd8] sm:$0xff] %v1201
        %1222 = vst [vmem:[#allocation3 + $0xe0] sm:$0xff] %v1203
        %1223 = vst [vmem:[#allocation3 + $0xe8] sm:$0xff] %v1205
        %1224 = vst [vmem:[#allocation3 + $0xf0] sm:$0xff] %v1207
        %1225 = vst [vmem:[#allocation3 + $0xf8] sm:$0xff] %v1209
        %v1226 = vld [vmem:[#allocation2] sm:$0xff]
        %v1227 = vld [vmem:[#allocation2 + $0x8] sm:$0xff]
        %v1228 = vld [vmem:[#allocation2 + $0x10] sm:$0xff]
        %v1229 = vld [vmem:[#allocation2 + $0x18] sm:$0xff]
        %v1230 = vld [vmem:[#allocation2 + $0x20] sm:$0xf]
        %v1231 = vld [vmem:[#allocation2 + $0x28] sm:$0xff]
        %v1232 = vld [vmem:[#allocation2 + $0x30] sm:$0xff]
        %v1233 = vld [vmem:[#allocation2 + $0x38] sm:$0xff]
        %v1234 = vld [vmem:[#allocation2 + $0x40] sm:$0xff]
        %v1235 = vld [vmem:[#allocation2 + $0x48] sm:$0xf]
        %1246 = vrot.lane.b32.xlu0 %v1226, 83
        %v1247 = vpop.permute.xlu0 %1246
        %1248 = vrot.lane.b32.xlu0 %v1227, 83
        %v1249 = vpop.permute.xlu0 %1248
        %1250 = vrot.lane.b32.xlu0 %v1228, 83
        %v1251 = vpop.permute.xlu0 %1250
        %1252 = vrot.lane.b32.xlu0 %v1229, 83
        %v1253 = vpop.permute.xlu0 %1252
        %1254 = vrot.lane.b32.xlu0 %v1230, 83
        %v1255 = vpop.permute.xlu0 %1254
        %1256 = vrot.lane.b32.xlu0 %v1231, 83
        %v1257 = vpop.permute.xlu0 %1256
        %1258 = vrot.lane.b32.xlu0 %v1232, 83
        %v1259 = vpop.permute.xlu0 %1258
        %1260 = vrot.lane.b32.xlu0 %v1233, 83
        %v1261 = vpop.permute.xlu0 %1260
        %1262 = vrot.lane.b32.xlu0 %v1234, 83
        %v1263 = vpop.permute.xlu0 %1262
        %1264 = vrot.lane.b32.xlu0 %v1235, 83
        %v1265 = vpop.permute.xlu0 %1264
        %v1266 = vrot.slane %v1247, 4
        %v1267 = vrot.slane %v1249, 4
        %v1268 = vrot.slane %v1251, 4
        %v1269 = vrot.slane %v1253, 4
        %v1270 = vrot.slane %v1255, 4
        %v1271 = vrot.slane %v1257, 4
        %v1272 = vrot.slane %v1259, 4
        %v1273 = vrot.slane %v1261, 4
        %v1274 = vrot.slane %v1263, 4
        %v1275 = vrot.slane %v1265, 4
        %v1276 = vsel %vm943, %v1266, %v1267
        %vm1277 = vcmask 678912
        %v1278 = vsel %vm1277, %v1247, %v1276
        %v1279 = vsel %vm943, %v1267, %v1268
        %v1280 = vsel %vm1277, %v1249, %v1279
        %v1281 = vsel %vm943, %v1268, %v1269
        %v1282 = vsel %vm1277, %v1251, %v1281
        %v1283 = vsel %vm943, %v1269, %v1270
        %v1284 = vsel %vm1277, %v1253, %v1283
        %v1285 = vsel %vm943, %v1271, %v1272
        %v1286 = vsel %vm1277, %v1257, %v1285
        %v1287 = vsel %vm943, %v1272, %v1273
        %v1288 = vsel %vm1277, %v1259, %v1287
        %v1289 = vsel %vm943, %v1273, %v1274
        %v1290 = vsel %vm1277, %v1261, %v1289
        %v1291 = vsel %vm943, %v1274, %v1275
        %v1292 = vsel %vm1277, %v1263, %v1291
        %1301 = vst [vmem:[#allocation3 + $0x100] sm:$0xff] %v1278
        %1302 = vst [vmem:[#allocation3 + $0x108] sm:$0xff] %v1280
        %1303 = vst [vmem:[#allocation3 + $0x110] sm:$0xff] %v1282
        %1304 = vst [vmem:[#allocation3 + $0x118] sm:$0xff] %v1284
        %1305 = vst [vmem:[#allocation3 + $0x120] sm:$0xff] %v1286
        %1306 = vst [vmem:[#allocation3 + $0x128] sm:$0xff] %v1288
        %1307 = vst [vmem:[#allocation3 + $0x130] sm:$0xff] %v1290
        %1308 = vst [vmem:[#allocation3 + $0x138] sm:$0xff] %v1292
        %v1309 = vld [vmem:[#allocation2] sm:$0xff]
        %v1310 = vld [vmem:[#allocation2 + $0x8] sm:$0xff]
        %v1311 = vld [vmem:[#allocation2 + $0x10] sm:$0xff]
        %v1312 = vld [vmem:[#allocation2 + $0x18] sm:$0xff]
        %v1313 = vld [vmem:[#allocation2 + $0x20] sm:$0xf]
        %v1314 = vld [vmem:[#allocation2 + $0x28] sm:$0xff]
        %v1315 = vld [vmem:[#allocation2 + $0x30] sm:$0xff]
        %v1316 = vld [vmem:[#allocation2 + $0x38] sm:$0xff]
        %v1317 = vld [vmem:[#allocation2 + $0x40] sm:$0xff]
        %v1318 = vld [vmem:[#allocation2 + $0x48] sm:$0xf]
        %1329 = vrot.lane.b32.xlu0 %v1309, 82
        %v1330 = vpop.permute.xlu0 %1329
        %1331 = vrot.lane.b32.xlu0 %v1310, 82
        %v1332 = vpop.permute.xlu0 %1331
        %1333 = vrot.lane.b32.xlu0 %v1311, 82
        %v1334 = vpop.permute.xlu0 %1333
        %1335 = vrot.lane.b32.xlu0 %v1312, 82
        %v1336 = vpop.permute.xlu0 %1335
        %1337 = vrot.lane.b32.xlu0 %v1313, 82
        %v1338 = vpop.permute.xlu0 %1337
        %1339 = vrot.lane.b32.xlu0 %v1314, 82
        %v1340 = vpop.permute.xlu0 %1339
        %1341 = vrot.lane.b32.xlu0 %v1315, 82
        %v1342 = vpop.permute.xlu0 %1341
        %1343 = vrot.lane.b32.xlu0 %v1316, 82
        %v1344 = vpop.permute.xlu0 %1343
        %1345 = vrot.lane.b32.xlu0 %v1317, 82
        %v1346 = vpop.permute.xlu0 %1345
        %1347 = vrot.lane.b32.xlu0 %v1318, 82
        %v1348 = vpop.permute.xlu0 %1347
        %v1349 = vrot.slane %v1330, 4
        %v1350 = vrot.slane %v1332, 4
        %v1351 = vrot.slane %v1334, 4
        %v1352 = vrot.slane %v1336, 4
        %v1353 = vrot.slane %v1338, 4
        %v1354 = vrot.slane %v1340, 4
        %v1355 = vrot.slane %v1342, 4
        %v1356 = vrot.slane %v1344, 4
        %v1357 = vrot.slane %v1346, 4
        %v1358 = vrot.slane %v1348, 4
        %v1359 = vsel %vm943, %v1349, %v1350
        %vm1360 = vcmask 670720
        %v1361 = vsel %vm1360, %v1330, %v1359
        %v1362 = vsel %vm943, %v1350, %v1351
        %v1363 = vsel %vm1360, %v1332, %v1362
        %v1364 = vsel %vm943, %v1351, %v1352
        %v1365 = vsel %vm1360, %v1334, %v1364
        %v1366 = vsel %vm943, %v1352, %v1353
        %v1367 = vsel %vm1360, %v1336, %v1366
        %v1368 = vsel %vm943, %v1354, %v1355
        %v1369 = vsel %vm1360, %v1340, %v1368
        %v1370 = vsel %vm943, %v1355, %v1356
        %v1371 = vsel %vm1360, %v1342, %v1370
        %v1372 = vsel %vm943, %v1356, %v1357
        %v1373 = vsel %vm1360, %v1344, %v1372
        %v1374 = vsel %vm943, %v1357, %v1358
        %v1375 = vsel %vm1360, %v1346, %v1374
        %1384 = vst [vmem:[#allocation3 + $0x140] sm:$0xff] %v1361
        %1385 = vst [vmem:[#allocation3 + $0x148] sm:$0xff] %v1363
        %1386 = vst [vmem:[#allocation3 + $0x150] sm:$0xff] %v1365
        %1387 = vst [vmem:[#allocation3 + $0x158] sm:$0xff] %v1367
        %1388 = vst [vmem:[#allocation3 + $0x160] sm:$0xff] %v1369
        %1389 = vst [vmem:[#allocation3 + $0x168] sm:$0xff] %v1371
        %1390 = vst [vmem:[#allocation3 + $0x170] sm:$0xff] %v1373
        %1391 = vst [vmem:[#allocation3 + $0x178] sm:$0xff] %v1375
        %v1392 = vld [vmem:[#allocation2] sm:$0xff]
        %v1393 = vld [vmem:[#allocation2 + $0x8] sm:$0xff]
        %v1394 = vld [vmem:[#allocation2 + $0x10] sm:$0xff]
        %v1395 = vld [vmem:[#allocation2 + $0x18] sm:$0xff]
        %v1396 = vld [vmem:[#allocation2 + $0x20] sm:$0xf]
        %v1397 = vld [vmem:[#allocation2 + $0x28] sm:$0xff]
        %v1398 = vld [vmem:[#allocation2 + $0x30] sm:$0xff]
        %v1399 = vld [vmem:[#allocation2 + $0x38] sm:$0xff]
        %v1400 = vld [vmem:[#allocation2 + $0x40] sm:$0xff]
        %v1401 = vld [vmem:[#allocation2 + $0x48] sm:$0xf]
        %1412 = vrot.lane.b32.xlu0 %v1392, 74
        %v1413 = vpop.permute.xlu0 %1412
        %1414 = vrot.lane.b32.xlu0 %v1393, 74
        %v1415 = vpop.permute.xlu0 %1414
        %1416 = vrot.lane.b32.xlu0 %v1394, 74
        %v1417 = vpop.permute.xlu0 %1416
        %1418 = vrot.lane.b32.xlu0 %v1395, 74
        %v1419 = vpop.permute.xlu0 %1418
        %1420 = vrot.lane.b32.xlu0 %v1396, 74
        %v1421 = vpop.permute.xlu0 %1420
        %1422 = vrot.lane.b32.xlu0 %v1397, 74
        %v1423 = vpop.permute.xlu0 %1422
        %1424 = vrot.lane.b32.xlu0 %v1398, 74
        %v1425 = vpop.permute.xlu0 %1424
        %1426 = vrot.lane.b32.xlu0 %v1399, 74
        %v1427 = vpop.permute.xlu0 %1426
        %1428 = vrot.lane.b32.xlu0 %v1400, 74
        %v1429 = vpop.permute.xlu0 %1428
        %1430 = vrot.lane.b32.xlu0 %v1401, 74
        %v1431 = vpop.permute.xlu0 %1430
        %v1432 = vrot.slane %v1413, 4
        %v1433 = vrot.slane %v1415, 4
        %v1434 = vrot.slane %v1417, 4
        %v1435 = vrot.slane %v1419, 4
        %v1436 = vrot.slane %v1421, 4
        %v1437 = vrot.slane %v1423, 4
        %v1438 = vrot.slane %v1425, 4
        %v1439 = vrot.slane %v1427, 4
        %v1440 = vrot.slane %v1429, 4
        %v1441 = vrot.slane %v1431, 4
        %v1442 = vsel %vm943, %v1432, %v1433
        %vm1443 = vcmask 605184
        %v1444 = vsel %vm1443, %v1413, %v1442
        %v1445 = vsel %vm943, %v1433, %v1434
        %v1446 = vsel %vm1443, %v1415, %v1445
        %v1447 = vsel %vm943, %v1434, %v1435
        %v1448 = vsel %vm1443, %v1417, %v1447
        %v1449 = vsel %vm943, %v1435, %v1436
        %v1450 = vsel %vm1443, %v1419, %v1449
        %v1451 = vsel %vm943, %v1437, %v1438
        %v1452 = vsel %vm1443, %v1423, %v1451
        %v1453 = vsel %vm943, %v1438, %v1439
        %v1454 = vsel %vm1443, %v1425, %v1453
        %v1455 = vsel %vm943, %v1439, %v1440
        %v1456 = vsel %vm1443, %v1427, %v1455
        %v1457 = vsel %vm943, %v1440, %v1441
        %v1458 = vsel %vm1443, %v1429, %v1457
        %1467 = vst [vmem:[#allocation3 + $0x180] sm:$0xff] %v1444
        %1468 = vst [vmem:[#allocation3 + $0x188] sm:$0xff] %v1446
        %1469 = vst [vmem:[#allocation3 + $0x190] sm:$0xff] %v1448
        %1470 = vst [vmem:[#allocation3 + $0x198] sm:$0xff] %v1450
        %1471 = vst [vmem:[#allocation3 + $0x1a0] sm:$0xff] %v1452
        %1472 = vst [vmem:[#allocation3 + $0x1a8] sm:$0xff] %v1454
        %1473 = vst [vmem:[#allocation3 + $0x1b0] sm:$0xff] %v1456
        %1474 = vst [vmem:[#allocation3 + $0x1b8] sm:$0xff] %v1458
        %v1475 = vld [vmem:[#allocation2] sm:$0xff]
        %v1476 = vld [vmem:[#allocation2 + $0x8] sm:$0xff]
        %v1477 = vld [vmem:[#allocation2 + $0x10] sm:$0xff]
        %v1478 = vld [vmem:[#allocation2 + $0x18] sm:$0xff]
        %v1479 = vld [vmem:[#allocation2 + $0x20] sm:$0xf]
        %v1480 = vld [vmem:[#allocation2 + $0x28] sm:$0xff]
        %v1481 = vld [vmem:[#allocation2 + $0x30] sm:$0xff]
        %v1482 = vld [vmem:[#allocation2 + $0x38] sm:$0xff]
        %v1483 = vld [vmem:[#allocation2 + $0x40] sm:$0xff]
        %v1484 = vld [vmem:[#allocation2 + $0x48] sm:$0xf]
        %1495 = vrot.lane.b32.xlu0 %v1475, 73
        %v1496 = vpop.permute.xlu0 %1495
        %1497 = vrot.lane.b32.xlu0 %v1476, 73
        %v1498 = vpop.permute.xlu0 %1497
        %1499 = vrot.lane.b32.xlu0 %v1477, 73
        %v1500 = vpop.permute.xlu0 %1499
        %1501 = vrot.lane.b32.xlu0 %v1478, 73
        %v1502 = vpop.permute.xlu0 %1501
        %1503 = vrot.lane.b32.xlu0 %v1479, 73
        %v1504 = vpop.permute.xlu0 %1503
        %1505 = vrot.lane.b32.xlu0 %v1480, 73
        %v1506 = vpop.permute.xlu0 %1505
        %1507 = vrot.lane.b32.xlu0 %v1481, 73
        %v1508 = vpop.permute.xlu0 %1507
        %1509 = vrot.lane.b32.xlu0 %v1482, 73
        %v1510 = vpop.permute.xlu0 %1509
        %1511 = vrot.lane.b32.xlu0 %v1483, 73
        %v1512 = vpop.permute.xlu0 %1511
        %1513 = vrot.lane.b32.xlu0 %v1484, 73
        %v1514 = vpop.permute.xlu0 %1513
        %v1515 = vrot.slane %v1496, 4
        %v1516 = vrot.slane %v1498, 4
        %v1517 = vrot.slane %v1500, 4
        %v1518 = vrot.slane %v1502, 4
        %v1519 = vrot.slane %v1504, 4
        %v1520 = vrot.slane %v1506, 4
        %v1521 = vrot.slane %v1508, 4
        %v1522 = vrot.slane %v1510, 4
        %v1523 = vrot.slane %v1512, 4
        %v1524 = vrot.slane %v1514, 4
        %v1525 = vsel %vm943, %v1515, %v1516
        %vm1526 = vcmask 596992
        %v1527 = vsel %vm1526, %v1496, %v1525
        %v1528 = vsel %vm943, %v1516, %v1517
        %v1529 = vsel %vm1526, %v1498, %v1528
        %v1530 = vsel %vm943, %v1517, %v1518
        %v1531 = vsel %vm1526, %v1500, %v1530
        %v1532 = vsel %vm943, %v1518, %v1519
        %v1533 = vsel %vm1526, %v1502, %v1532
        %v1534 = vsel %vm943, %v1520, %v1521
        %v1535 = vsel %vm1526, %v1506, %v1534
        %v1536 = vsel %vm943, %v1521, %v1522
        %v1537 = vsel %vm1526, %v1508, %v1536
        %v1538 = vsel %vm943, %v1522, %v1523
        %v1539 = vsel %vm1526, %v1510, %v1538
        %v1540 = vsel %vm943, %v1523, %v1524
        %v1541 = vsel %vm1526, %v1512, %v1540
        %1550 = vst [vmem:[#allocation3 + $0x1c0] sm:$0xff] %v1527
        %1551 = vst [vmem:[#allocation3 + $0x1c8] sm:$0xff] %v1529
        %1552 = vst [vmem:[#allocation3 + $0x1d0] sm:$0xff] %v1531
        %1553 = vst [vmem:[#allocation3 + $0x1d8] sm:$0xff] %v1533
        %1554 = vst [vmem:[#allocation3 + $0x1e0] sm:$0xff] %v1535
        %1555 = vst [vmem:[#allocation3 + $0x1e8] sm:$0xff] %v1537
        %1556 = vst [vmem:[#allocation3 + $0x1f0] sm:$0xff] %v1539
        %1557 = vst [vmem:[#allocation3 + $0x1f8] sm:$0xff] %v1541
        %v1558 = vld [vmem:[#allocation2] sm:$0xff]
        %v1559 = vld [vmem:[#allocation2 + $0x8] sm:$0xff]
        %v1560 = vld [vmem:[#allocation2 + $0x10] sm:$0xff]
        %v1561 = vld [vmem:[#allocation2 + $0x18] sm:$0xff]
        %v1562 = vld [vmem:[#allocation2 + $0x20] sm:$0xf]
        %v1563 = vld [vmem:[#allocation2 + $0x28] sm:$0xff]
        %v1564 = vld [vmem:[#allocation2 + $0x30] sm:$0xff]
        %v1565 = vld [vmem:[#allocation2 + $0x38] sm:$0xff]
        %v1566 = vld [vmem:[#allocation2 + $0x40] sm:$0xff]
        %v1567 = vld [vmem:[#allocation2 + $0x48] sm:$0xf]
        %1578 = vrot.lane.b32.xlu0 %v1558, 72
        %v1579 = vpop.permute.xlu0 %1578
        %1580 = vrot.lane.b32.xlu0 %v1559, 72
        %v1581 = vpop.permute.xlu0 %1580
        %1582 = vrot.lane.b32.xlu0 %v1560, 72
        %v1583 = vpop.permute.xlu0 %1582
        %1584 = vrot.lane.b32.xlu0 %v1561, 72
        %v1585 = vpop.permute.xlu0 %1584
        %1586 = vrot.lane.b32.xlu0 %v1562, 72
        %v1587 = vpop.permute.xlu0 %1586
        %1588 = vrot.lane.b32.xlu0 %v1563, 72
        %v1589 = vpop.permute.xlu0 %1588
        %1590 = vrot.lane.b32.xlu0 %v1564, 72
        %v1591 = vpop.permute.xlu0 %1590
        %1592 = vrot.lane.b32.xlu0 %v1565, 72
        %v1593 = vpop.permute.xlu0 %1592
        %1594 = vrot.lane.b32.xlu0 %v1566, 72
        %v1595 = vpop.permute.xlu0 %1594
        %1596 = vrot.lane.b32.xlu0 %v1567, 72
        %v1597 = vpop.permute.xlu0 %1596
        %v1598 = vrot.slane %v1579, 4
        %v1599 = vrot.slane %v1581, 4
        %v1600 = vrot.slane %v1583, 4
        %v1601 = vrot.slane %v1585, 4
        %v1602 = vrot.slane %v1587, 4
        %v1603 = vrot.slane %v1589, 4
        %v1604 = vrot.slane %v1591, 4
        %v1605 = vrot.slane %v1593, 4
        %v1606 = vrot.slane %v1595, 4
        %v1607 = vrot.slane %v1597, 4
        %v1608 = vsel %vm943, %v1598, %v1599
        %vm1609 = vcmask 588800
        %v1610 = vsel %vm1609, %v1579, %v1608
        %v1611 = vsel %vm943, %v1599, %v1600
        %v1612 = vsel %vm1609, %v1581, %v1611
        %v1613 = vsel %vm943, %v1600, %v1601
        %v1614 = vsel %vm1609, %v1583, %v1613
        %v1615 = vsel %vm943, %v1601, %v1602
        %v1616 = vsel %vm1609, %v1585, %v1615
        %v1617 = vsel %vm943, %v1603, %v1604
        %v1618 = vsel %vm1609, %v1589, %v1617
        %v1619 = vsel %vm943, %v1604, %v1605
        %v1620 = vsel %vm1609, %v1591, %v1619
        %v1621 = vsel %vm943, %v1605, %v1606
        %v1622 = vsel %vm1609, %v1593, %v1621
        %v1623 = vsel %vm943, %v1606, %v1607
        %v1624 = vsel %vm1609, %v1595, %v1623
        %1633 = vst [vmem:[#allocation3 + $0x200] sm:$0xff] %v1610
        %1634 = vst [vmem:[#allocation3 + $0x208] sm:$0xff] %v1612
        %1635 = vst [vmem:[#allocation3 + $0x210] sm:$0xff] %v1614
        %1636 = vst [vmem:[#allocation3 + $0x218] sm:$0xff] %v1616
        %1637 = vst [vmem:[#allocation3 + $0x220] sm:$0xff] %v1618
        %1638 = vst [vmem:[#allocation3 + $0x228] sm:$0xff] %v1620
        %1639 = vst [vmem:[#allocation3 + $0x230] sm:$0xff] %v1622
        %1640 = vst [vmem:[#allocation3 + $0x238] sm:$0xff] %v1624
        %v1641 = vld [vmem:[#allocation2 + $0x4] sm:$0xff]
        %v1642 = vld [vmem:[#allocation2 + $0xc] sm:$0xff]
        %v1643 = vld [vmem:[#allocation2 + $0x14] sm:$0xff]
        %v1644 = vld [vmem:[#allocation2 + $0x1c] sm:$0xff]
        %v1645 = vld [vmem:[#allocation2 + $0x24] sm:$0xf]
        %v1646 = vld [vmem:[#allocation2 + $0x2c] sm:$0xff]
        %v1647 = vld [vmem:[#allocation2 + $0x34] sm:$0xff]
        %v1648 = vld [vmem:[#allocation2 + $0x3c] sm:$0xff]
        %v1649 = vld [vmem:[#allocation2 + $0x44] sm:$0xff]
        %v1650 = vld [vmem:[#allocation2 + $0x4c] sm:$0xf]
        %1661 = vrot.lane.b32.xlu0 %v1641, 122
        %v1662 = vpop.permute.xlu0 %1661
        %1663 = vrot.lane.b32.xlu0 %v1642, 122
        %v1664 = vpop.permute.xlu0 %1663
        %1665 = vrot.lane.b32.xlu0 %v1643, 122
        %v1666 = vpop.permute.xlu0 %1665
        %1667 = vrot.lane.b32.xlu0 %v1644, 122
        %v1668 = vpop.permute.xlu0 %1667
        %1669 = vrot.lane.b32.xlu0 %v1645, 122
        %v1670 = vpop.permute.xlu0 %1669
        %1671 = vrot.lane.b32.xlu0 %v1646, 122
        %v1672 = vpop.permute.xlu0 %1671
        %1673 = vrot.lane.b32.xlu0 %v1647, 122
        %v1674 = vpop.permute.xlu0 %1673
        %1675 = vrot.lane.b32.xlu0 %v1648, 122
        %v1676 = vpop.permute.xlu0 %1675
        %1677 = vrot.lane.b32.xlu0 %v1649, 122
        %v1678 = vpop.permute.xlu0 %1677
        %1679 = vrot.lane.b32.xlu0 %v1650, 122
        %v1680 = vpop.permute.xlu0 %1679
        %v1681 = vrot.slane %v1662, 4
        %v1682 = vrot.slane %v1664, 4
        %v1683 = vrot.slane %v1666, 4
        %v1684 = vrot.slane %v1668, 4
        %v1685 = vrot.slane %v1670, 4
        %v1686 = vrot.slane %v1672, 4
        %v1687 = vrot.slane %v1674, 4
        %v1688 = vrot.slane %v1676, 4
        %v1689 = vrot.slane %v1678, 4
        %v1690 = vrot.slane %v1680, 4
        %v1691 = vsel %vm943, %v1681, %v1682
        %vm1692 = vcmask 998400
        %v1693 = vsel %vm1692, %v1662, %v1691
        %v1694 = vsel %vm943, %v1682, %v1683
        %v1695 = vsel %vm1692, %v1664, %v1694
        %v1696 = vsel %vm943, %v1683, %v1684
        %v1697 = vsel %vm1692, %v1666, %v1696
        %v1698 = vsel %vm943, %v1684, %v1685
        %v1699 = vsel %vm1692, %v1668, %v1698
        %v1700 = vsel %vm943, %v1686, %v1687
        %v1701 = vsel %vm1692, %v1672, %v1700
        %v1702 = vsel %vm943, %v1687, %v1688
        %v1703 = vsel %vm1692, %v1674, %v1702
        %v1704 = vsel %vm943, %v1688, %v1689
        %v1705 = vsel %vm1692, %v1676, %v1704
        %v1706 = vsel %vm943, %v1689, %v1690
        %v1707 = vsel %vm1692, %v1678, %v1706
        %1716 = vst [vmem:[#allocation3 + $0x240] sm:$0xff] %v1693
        %1717 = vst [vmem:[#allocation3 + $0x248] sm:$0xff] %v1695
        %1718 = vst [vmem:[#allocation3 + $0x250] sm:$0xff] %v1697
        %1719 = vst [vmem:[#allocation3 + $0x258] sm:$0xff] %v1699
        %1720 = vst [vmem:[#allocation3 + $0x260] sm:$0xff] %v1701
        %1721 = vst [vmem:[#allocation3 + $0x268] sm:$0xff] %v1703
        %1722 = vst [vmem:[#allocation3 + $0x270] sm:$0xff] %v1705
        %1723 = vst [vmem:[#allocation3 + $0x278] sm:$0xff] %v1707
        %v1724 = vld [vmem:[#allocation2 + $0x4] sm:$0xff]
        %v1725 = vld [vmem:[#allocation2 + $0xc] sm:$0xff]
        %v1726 = vld [vmem:[#allocation2 + $0x14] sm:$0xff]
        %v1727 = vld [vmem:[#allocation2 + $0x1c] sm:$0xff]
        %v1728 = vld [vmem:[#allocation2 + $0x24] sm:$0xf]
        %v1729 = vld [vmem:[#allocation2 + $0x2c] sm:$0xff]
        %v1730 = vld [vmem:[#allocation2 + $0x34] sm:$0xff]
        %v1731 = vld [vmem:[#allocation2 + $0x3c] sm:$0xff]
        %v1732 = vld [vmem:[#allocation2 + $0x44] sm:$0xff]
        %v1733 = vld [vmem:[#allocation2 + $0x4c] sm:$0xf]
        %1744 = vrot.lane.b32.xlu0 %v1724, 121
        %v1745 = vpop.permute.xlu0 %1744
        %1746 = vrot.lane.b32.xlu0 %v1725, 121
        %v1747 = vpop.permute.xlu0 %1746
        %1748 = vrot.lane.b32.xlu0 %v1726, 121
        %v1749 = vpop.permute.xlu0 %1748
        %1750 = vrot.lane.b32.xlu0 %v1727, 121
        %v1751 = vpop.permute.xlu0 %1750
        %1752 = vrot.lane.b32.xlu0 %v1728, 121
        %v1753 = vpop.permute.xlu0 %1752
        %1754 = vrot.lane.b32.xlu0 %v1729, 121
        %v1755 = vpop.permute.xlu0 %1754
        %1756 = vrot.lane.b32.xlu0 %v1730, 121
        %v1757 = vpop.permute.xlu0 %1756
        %1758 = vrot.lane.b32.xlu0 %v1731, 121
        %v1759 = vpop.permute.xlu0 %1758
        %1760 = vrot.lane.b32.xlu0 %v1732, 121
        %v1761 = vpop.permute.xlu0 %1760
        %1762 = vrot.lane.b32.xlu0 %v1733, 121
        %v1763 = vpop.permute.xlu0 %1762
        %v1764 = vrot.slane %v1745, 4
        %v1765 = vrot.slane %v1747, 4
        %v1766 = vrot.slane %v1749, 4
        %v1767 = vrot.slane %v1751, 4
        %v1768 = vrot.slane %v1753, 4
        %v1769 = vrot.slane %v1755, 4
        %v1770 = vrot.slane %v1757, 4
        %v1771 = vrot.slane %v1759, 4
        %v1772 = vrot.slane %v1761, 4
        %v1773 = vrot.slane %v1763, 4
        %v1774 = vsel %vm943, %v1764, %v1765
        %vm1775 = vcmask 990208
        %v1776 = vsel %vm1775, %v1745, %v1774
        %v1777 = vsel %vm943, %v1765, %v1766
        %v1778 = vsel %vm1775, %v1747, %v1777
        %v1779 = vsel %vm943, %v1766, %v1767
        %v1780 = vsel %vm1775, %v1749, %v1779
        %v1781 = vsel %vm943, %v1767, %v1768
        %v1782 = vsel %vm1775, %v1751, %v1781
        %v1783 = vsel %vm943, %v1769, %v1770
        %v1784 = vsel %vm1775, %v1755, %v1783
        %v1785 = vsel %vm943, %v1770, %v1771
        %v1786 = vsel %vm1775, %v1757, %v1785
        %v1787 = vsel %vm943, %v1771, %v1772
        %v1788 = vsel %vm1775, %v1759, %v1787
        %v1789 = vsel %vm943, %v1772, %v1773
        %v1790 = vsel %vm1775, %v1761, %v1789
        %1799 = vst [vmem:[#allocation3 + $0x280] sm:$0xff] %v1776
        %1800 = vst [vmem:[#allocation3 + $0x288] sm:$0xff] %v1778
        %1801 = vst [vmem:[#allocation3 + $0x290] sm:$0xff] %v1780
        %1802 = vst [vmem:[#allocation3 + $0x298] sm:$0xff] %v1782
        %1803 = vst [vmem:[#allocation3 + $0x2a0] sm:$0xff] %v1784
        %1804 = vst [vmem:[#allocation3 + $0x2a8] sm:$0xff] %v1786
        %1805 = vst [vmem:[#allocation3 + $0x2b0] sm:$0xff] %v1788
        %1806 = vst [vmem:[#allocation3 + $0x2b8] sm:$0xff] %v1790
        %v1807 = vld [vmem:[#allocation2 + $0x4] sm:$0xff]
        %v1808 = vld [vmem:[#allocation2 + $0xc] sm:$0xff]
        %v1809 = vld [vmem:[#allocation2 + $0x14] sm:$0xff]
        %v1810 = vld [vmem:[#allocation2 + $0x1c] sm:$0xff]
        %v1811 = vld [vmem:[#allocation2 + $0x24] sm:$0xf]
        %v1812 = vld [vmem:[#allocation2 + $0x2c] sm:$0xff]
        %v1813 = vld [vmem:[#allocation2 + $0x34] sm:$0xff]
        %v1814 = vld [vmem:[#allocation2 + $0x3c] sm:$0xff]
        %v1815 = vld [vmem:[#allocation2 + $0x44] sm:$0xff]
        %v1816 = vld [vmem:[#allocation2 + $0x4c] sm:$0xf]
        %1827 = vrot.lane.b32.xlu0 %v1807, 120
        %v1828 = vpop.permute.xlu0 %1827
        %1829 = vrot.lane.b32.xlu0 %v1808, 120
        %v1830 = vpop.permute.xlu0 %1829
        %1831 = vrot.lane.b32.xlu0 %v1809, 120
        %v1832 = vpop.permute.xlu0 %1831
        %1833 = vrot.lane.b32.xlu0 %v1810, 120
        %v1834 = vpop.permute.xlu0 %1833
        %1835 = vrot.lane.b32.xlu0 %v1811, 120
        %v1836 = vpop.permute.xlu0 %1835
        %1837 = vrot.lane.b32.xlu0 %v1812, 120
        %v1838 = vpop.permute.xlu0 %1837
        %1839 = vrot.lane.b32.xlu0 %v1813, 120
        %v1840 = vpop.permute.xlu0 %1839
        %1841 = vrot.lane.b32.xlu0 %v1814, 120
        %v1842 = vpop.permute.xlu0 %1841
        %1843 = vrot.lane.b32.xlu0 %v1815, 120
        %v1844 = vpop.permute.xlu0 %1843
        %1845 = vrot.lane.b32.xlu0 %v1816, 120
        %v1846 = vpop.permute.xlu0 %1845
        %v1847 = vrot.slane %v1828, 4
        %v1848 = vrot.slane %v1830, 4
        %v1849 = vrot.slane %v1832, 4
        %v1850 = vrot.slane %v1834, 4
        %v1851 = vrot.slane %v1836, 4
        %v1852 = vrot.slane %v1838, 4
        %v1853 = vrot.slane %v1840, 4
        %v1854 = vrot.slane %v1842, 4
        %v1855 = vrot.slane %v1844, 4
        %v1856 = vrot.slane %v1846, 4
        %v1857 = vsel %vm943, %v1847, %v1848
        %vm1858 = vcmask 982016
        %v1859 = vsel %vm1858, %v1828, %v1857
        %v1860 = vsel %vm943, %v1848, %v1849
        %v1861 = vsel %vm1858, %v1830, %v1860
        %v1862 = vsel %vm943, %v1849, %v1850
        %v1863 = vsel %vm1858, %v1832, %v1862
        %v1864 = vsel %vm943, %v1850, %v1851
        %v1865 = vsel %vm1858, %v1834, %v1864
        %v1866 = vsel %vm943, %v1852, %v1853
        %v1867 = vsel %vm1858, %v1838, %v1866
        %v1868 = vsel %vm943, %v1853, %v1854
        %v1869 = vsel %vm1858, %v1840, %v1868
        %v1870 = vsel %vm943, %v1854, %v1855
        %v1871 = vsel %vm1858, %v1842, %v1870
        %v1872 = vsel %vm943, %v1855, %v1856
        %v1873 = vsel %vm1858, %v1844, %v1872
        %1882 = vst [vmem:[#allocation3 + $0x2c0] sm:$0xff] %v1859
        %1883 = vst [vmem:[#allocation3 + $0x2c8] sm:$0xff] %v1861
        %1884 = vst [vmem:[#allocation3 + $0x2d0] sm:$0xff] %v1863
        %1885 = vst [vmem:[#allocation3 + $0x2d8] sm:$0xff] %v1865
        %1886 = vst [vmem:[#allocation3 + $0x2e0] sm:$0xff] %v1867
        %1887 = vst [vmem:[#allocation3 + $0x2e8] sm:$0xff] %v1869
        %1888 = vst [vmem:[#allocation3 + $0x2f0] sm:$0xff] %v1871
        %1889 = vst [vmem:[#allocation3 + $0x2f8] sm:$0xff] %v1873
        %v1890 = vld [vmem:[#allocation2 + $0x4] sm:$0xff]
        %v1891 = vld [vmem:[#allocation2 + $0xc] sm:$0xff]
        %v1892 = vld [vmem:[#allocation2 + $0x14] sm:$0xff]
        %v1893 = vld [vmem:[#allocation2 + $0x1c] sm:$0xff]
        %v1894 = vld [vmem:[#allocation2 + $0x24] sm:$0xf]
        %v1895 = vld [vmem:[#allocation2 + $0x2c] sm:$0xff]
        %v1896 = vld [vmem:[#allocation2 + $0x34] sm:$0xff]
        %v1897 = vld [vmem:[#allocation2 + $0x3c] sm:$0xff]
        %v1898 = vld [vmem:[#allocation2 + $0x44] sm:$0xff]
        %v1899 = vld [vmem:[#allocation2 + $0x4c] sm:$0xf]
        %1910 = vrot.lane.b32.xlu0 %v1890, 112
        %v1911 = vpop.permute.xlu0 %1910
        %1912 = vrot.lane.b32.xlu0 %v1891, 112
        %v1913 = vpop.permute.xlu0 %1912
        %1914 = vrot.lane.b32.xlu0 %v1892, 112
        %v1915 = vpop.permute.xlu0 %1914
        %1916 = vrot.lane.b32.xlu0 %v1893, 112
        %v1917 = vpop.permute.xlu0 %1916
        %1918 = vrot.lane.b32.xlu0 %v1894, 112
        %v1919 = vpop.permute.xlu0 %1918
        %1920 = vrot.lane.b32.xlu0 %v1895, 112
        %v1921 = vpop.permute.xlu0 %1920
        %1922 = vrot.lane.b32.xlu0 %v1896, 112
        %v1923 = vpop.permute.xlu0 %1922
        %1924 = vrot.lane.b32.xlu0 %v1897, 112
        %v1925 = vpop.permute.xlu0 %1924
        %1926 = vrot.lane.b32.xlu0 %v1898, 112
        %v1927 = vpop.permute.xlu0 %1926
        %1928 = vrot.lane.b32.xlu0 %v1899, 112
        %v1929 = vpop.permute.xlu0 %1928
        %v1930 = vrot.slane %v1911, 4
        %v1931 = vrot.slane %v1913, 4
        %v1932 = vrot.slane %v1915, 4
        %v1933 = vrot.slane %v1917, 4
        %v1934 = vrot.slane %v1919, 4
        %v1935 = vrot.slane %v1921, 4
        %v1936 = vrot.slane %v1923, 4
        %v1937 = vrot.slane %v1925, 4
        %v1938 = vrot.slane %v1927, 4
        %v1939 = vrot.slane %v1929, 4
        %v1940 = vsel %vm943, %v1930, %v1931
        %vm1941 = vcmask 916480
        %v1942 = vsel %vm1941, %v1911, %v1940
        %v1943 = vsel %vm943, %v1931, %v1932
        %v1944 = vsel %vm1941, %v1913, %v1943
        %v1945 = vsel %vm943, %v1932, %v1933
        %v1946 = vsel %vm1941, %v1915, %v1945
        %v1947 = vsel %vm943, %v1933, %v1934
        %v1948 = vsel %vm1941, %v1917, %v1947
        %v1949 = vsel %vm943, %v1935, %v1936
        %v1950 = vsel %vm1941, %v1921, %v1949
        %v1951 = vsel %vm943, %v1936, %v1937
        %v1952 = vsel %vm1941, %v1923, %v1951
        %v1953 = vsel %vm943, %v1937, %v1938
        %v1954 = vsel %vm1941, %v1925, %v1953
        %v1955 = vsel %vm943, %v1938, %v1939
        %v1956 = vsel %vm1941, %v1927, %v1955
        %1965 = vst [vmem:[#allocation3 + $0x300] sm:$0xff] %v1942
        %1966 = vst [vmem:[#allocation3 + $0x308] sm:$0xff] %v1944
        %1967 = vst [vmem:[#allocation3 + $0x310] sm:$0xff] %v1946
        %1968 = vst [vmem:[#allocation3 + $0x318] sm:$0xff] %v1948
        %1969 = vst [vmem:[#allocation3 + $0x320] sm:$0xff] %v1950
        %1970 = vst [vmem:[#allocation3 + $0x328] sm:$0xff] %v1952
        %1971 = vst [vmem:[#allocation3 + $0x330] sm:$0xff] %v1954
        %1972 = vst [vmem:[#allocation3 + $0x338] sm:$0xff] %v1956
        %v1973 = vld [vmem:[#allocation2 + $0x4] sm:$0xff]
        %v1974 = vld [vmem:[#allocation2 + $0xc] sm:$0xff]
        %v1975 = vld [vmem:[#allocation2 + $0x14] sm:$0xff]
        %v1976 = vld [vmem:[#allocation2 + $0x1c] sm:$0xff]
        %v1977 = vld [vmem:[#allocation2 + $0x24] sm:$0xf]
        %v1978 = vld [vmem:[#allocation2 + $0x2c] sm:$0xff]
        %v1979 = vld [vmem:[#allocation2 + $0x34] sm:$0xff]
        %v1980 = vld [vmem:[#allocation2 + $0x3c] sm:$0xff]
        %v1981 = vld [vmem:[#allocation2 + $0x44] sm:$0xff]
        %v1982 = vld [vmem:[#allocation2 + $0x4c] sm:$0xf]
        %1993 = vrot.lane.b32.xlu0 %v1973, 111
        %v1994 = vpop.permute.xlu0 %1993
        %1995 = vrot.lane.b32.xlu0 %v1974, 111
        %v1996 = vpop.permute.xlu0 %1995
        %1997 = vrot.lane.b32.xlu0 %v1975, 111
        %v1998 = vpop.permute.xlu0 %1997
        %1999 = vrot.lane.b32.xlu0 %v1976, 111
        %v2000 = vpop.permute.xlu0 %1999
        %2001 = vrot.lane.b32.xlu0 %v1977, 111
        %v2002 = vpop.permute.xlu0 %2001
        %2003 = vrot.lane.b32.xlu0 %v1978, 111
        %v2004 = vpop.permute.xlu0 %2003
        %2005 = vrot.lane.b32.xlu0 %v1979, 111
        %v2006 = vpop.permute.xlu0 %2005
        %2007 = vrot.lane.b32.xlu0 %v1980, 111
        %v2008 = vpop.permute.xlu0 %2007
        %2009 = vrot.lane.b32.xlu0 %v1981, 111
        %v2010 = vpop.permute.xlu0 %2009
        %2011 = vrot.lane.b32.xlu0 %v1982, 111
        %v2012 = vpop.permute.xlu0 %2011
        %v2013 = vrot.slane %v1994, 4
        %v2014 = vrot.slane %v1996, 4
        %v2015 = vrot.slane %v1998, 4
        %v2016 = vrot.slane %v2000, 4
        %v2017 = vrot.slane %v2002, 4
        %v2018 = vrot.slane %v2004, 4
        %v2019 = vrot.slane %v2006, 4
        %v2020 = vrot.slane %v2008, 4
        %v2021 = vrot.slane %v2010, 4
        %v2022 = vrot.slane %v2012, 4
        %v2023 = vsel %vm943, %v2013, %v2014
        %vm2024 = vcmask 908288
        %v2025 = vsel %vm2024, %v1994, %v2023
        %v2026 = vsel %vm943, %v2014, %v2015
        %v2027 = vsel %vm2024, %v1996, %v2026
        %v2028 = vsel %vm943, %v2015, %v2016
        %v2029 = vsel %vm2024, %v1998, %v2028
        %v2030 = vsel %vm943, %v2016, %v2017
        %v2031 = vsel %vm2024, %v2000, %v2030
        %v2032 = vsel %vm943, %v2018, %v2019
        %v2033 = vsel %vm2024, %v2004, %v2032
        %v2034 = vsel %vm943, %v2019, %v2020
        %v2035 = vsel %vm2024, %v2006, %v2034
        %v2036 = vsel %vm943, %v2020, %v2021
        %v2037 = vsel %vm2024, %v2008, %v2036
        %v2038 = vsel %vm943, %v2021, %v2022
        %v2039 = vsel %vm2024, %v2010, %v2038
        %2048 = vst [vmem:[#allocation3 + $0x340] sm:$0xff] %v2025
        %2049 = vst [vmem:[#allocation3 + $0x348] sm:$0xff] %v2027
        %2050 = vst [vmem:[#allocation3 + $0x350] sm:$0xff] %v2029
        %2051 = vst [vmem:[#allocation3 + $0x358] sm:$0xff] %v2031
        %2052 = vst [vmem:[#allocation3 + $0x360] sm:$0xff] %v2033
        %2053 = vst [vmem:[#allocation3 + $0x368] sm:$0xff] %v2035
        %2054 = vst [vmem:[#allocation3 + $0x370] sm:$0xff] %v2037
        %2055 = vst [vmem:[#allocation3 + $0x378] sm:$0xff] %v2039
        %v2056 = vld [vmem:[#allocation2 + $0x4] sm:$0xff]
        %v2057 = vld [vmem:[#allocation2 + $0xc] sm:$0xff]
        %v2058 = vld [vmem:[#allocation2 + $0x14] sm:$0xff]
        %v2059 = vld [vmem:[#allocation2 + $0x1c] sm:$0xff]
        %v2060 = vld [vmem:[#allocation2 + $0x24] sm:$0xf]
        %v2061 = vld [vmem:[#allocation2 + $0x2c] sm:$0xff]
        %v2062 = vld [vmem:[#allocation2 + $0x34] sm:$0xff]
        %v2063 = vld [vmem:[#allocation2 + $0x3c] sm:$0xff]
        %v2064 = vld [vmem:[#allocation2 + $0x44] sm:$0xff]
        %v2065 = vld [vmem:[#allocation2 + $0x4c] sm:$0xf]
        %2076 = vrot.lane.b32.xlu0 %v2056, 110
        %v2077 = vpop.permute.xlu0 %2076
        %2078 = vrot.lane.b32.xlu0 %v2057, 110
        %v2079 = vpop.permute.xlu0 %2078
        %2080 = vrot.lane.b32.xlu0 %v2058, 110
        %v2081 = vpop.permute.xlu0 %2080
        %2082 = vrot.lane.b32.xlu0 %v2059, 110
        %v2083 = vpop.permute.xlu0 %2082
        %2084 = vrot.lane.b32.xlu0 %v2060, 110
        %v2085 = vpop.permute.xlu0 %2084
        %2086 = vrot.lane.b32.xlu0 %v2061, 110
        %v2087 = vpop.permute.xlu0 %2086
        %2088 = vrot.lane.b32.xlu0 %v2062, 110
        %v2089 = vpop.permute.xlu0 %2088
        %2090 = vrot.lane.b32.xlu0 %v2063, 110
        %v2091 = vpop.permute.xlu0 %2090
        %2092 = vrot.lane.b32.xlu0 %v2064, 110
        %v2093 = vpop.permute.xlu0 %2092
        %2094 = vrot.lane.b32.xlu0 %v2065, 110
        %v2095 = vpop.permute.xlu0 %2094
        %v2096 = vrot.slane %v2077, 4
        %v2097 = vrot.slane %v2079, 4
        %v2098 = vrot.slane %v2081, 4
        %v2099 = vrot.slane %v2083, 4
        %v2100 = vrot.slane %v2085, 4
        %v2101 = vrot.slane %v2087, 4
        %v2102 = vrot.slane %v2089, 4
        %v2103 = vrot.slane %v2091, 4
        %v2104 = vrot.slane %v2093, 4
        %v2105 = vrot.slane %v2095, 4
        %v2106 = vsel %vm943, %v2096, %v2097
        %vm2107 = vcmask 900096
        %v2108 = vsel %vm2107, %v2077, %v2106
        %v2109 = vsel %vm943, %v2097, %v2098
        %v2110 = vsel %vm2107, %v2079, %v2109
        %v2111 = vsel %vm943, %v2098, %v2099
        %v2112 = vsel %vm2107, %v2081, %v2111
        %v2113 = vsel %vm943, %v2099, %v2100
        %v2114 = vsel %vm2107, %v2083, %v2113
        %v2115 = vsel %vm943, %v2101, %v2102
        %v2116 = vsel %vm2107, %v2087, %v2115
        %v2117 = vsel %vm943, %v2102, %v2103
        %v2118 = vsel %vm2107, %v2089, %v2117
        %v2119 = vsel %vm943, %v2103, %v2104
        %v2120 = vsel %vm2107, %v2091, %v2119
        %v2121 = vsel %vm943, %v2104, %v2105
        %v2122 = vsel %vm2107, %v2093, %v2121
        %2131 = vst [vmem:[#allocation3 + $0x380] sm:$0xff] %v2108
        %2132 = vst [vmem:[#allocation3 + $0x388] sm:$0xff] %v2110
        %2133 = vst [vmem:[#allocation3 + $0x390] sm:$0xff] %v2112
        %2134 = vst [vmem:[#allocation3 + $0x398] sm:$0xff] %v2114
        %2135 = vst [vmem:[#allocation3 + $0x3a0] sm:$0xff] %v2116
        %2136 = vst [vmem:[#allocation3 + $0x3a8] sm:$0xff] %v2118
        %2137 = vst [vmem:[#allocation3 + $0x3b0] sm:$0xff] %v2120
        %2138 = vst [vmem:[#allocation3 + $0x3b8] sm:$0xff] %v2122
        %v2139 = vld [vmem:[#allocation2 + $0x4] sm:$0xff]
        %v2140 = vld [vmem:[#allocation2 + $0xc] sm:$0xff]
        %v2141 = vld [vmem:[#allocation2 + $0x14] sm:$0xff]
        %v2142 = vld [vmem:[#allocation2 + $0x1c] sm:$0xff]
        %v2143 = vld [vmem:[#allocation2 + $0x24] sm:$0xf]
        %v2144 = vld [vmem:[#allocation2 + $0x2c] sm:$0xff]
        %v2145 = vld [vmem:[#allocation2 + $0x34] sm:$0xff]
        %v2146 = vld [vmem:[#allocation2 + $0x3c] sm:$0xff]
        %v2147 = vld [vmem:[#allocation2 + $0x44] sm:$0xff]
        %v2148 = vld [vmem:[#allocation2 + $0x4c] sm:$0xf]
        %2159 = vrot.lane.b32.xlu0 %v2139, 102
        %v2160 = vpop.permute.xlu0 %2159
        %2161 = vrot.lane.b32.xlu0 %v2140, 102
        %v2162 = vpop.permute.xlu0 %2161
        %2163 = vrot.lane.b32.xlu0 %v2141, 102
        %v2164 = vpop.permute.xlu0 %2163
        %2165 = vrot.lane.b32.xlu0 %v2142, 102
        %v2166 = vpop.permute.xlu0 %2165
        %2167 = vrot.lane.b32.xlu0 %v2143, 102
        %v2168 = vpop.permute.xlu0 %2167
        %2169 = vrot.lane.b32.xlu0 %v2144, 102
        %v2170 = vpop.permute.xlu0 %2169
        %2171 = vrot.lane.b32.xlu0 %v2145, 102
        %v2172 = vpop.permute.xlu0 %2171
        %2173 = vrot.lane.b32.xlu0 %v2146, 102
        %v2174 = vpop.permute.xlu0 %2173
        %2175 = vrot.lane.b32.xlu0 %v2147, 102
        %v2176 = vpop.permute.xlu0 %2175
        %2177 = vrot.lane.b32.xlu0 %v2148, 102
        %v2178 = vpop.permute.xlu0 %2177
        %v2179 = vrot.slane %v2160, 4
        %v2180 = vrot.slane %v2162, 4
        %v2181 = vrot.slane %v2164, 4
        %v2182 = vrot.slane %v2166, 4
        %v2183 = vrot.slane %v2168, 4
        %v2184 = vrot.slane %v2170, 4
        %v2185 = vrot.slane %v2172, 4
        %v2186 = vrot.slane %v2174, 4
        %v2187 = vrot.slane %v2176, 4
        %v2188 = vrot.slane %v2178, 4
        %v2189 = vsel %vm943, %v2179, %v2180
        %vm2190 = vcmask 834560
        %v2191 = vsel %vm2190, %v2160, %v2189
        %v2192 = vsel %vm943, %v2180, %v2181
        %v2193 = vsel %vm2190, %v2162, %v2192
        %v2194 = vsel %vm943, %v2181, %v2182
        %v2195 = vsel %vm2190, %v2164, %v2194
        %v2196 = vsel %vm943, %v2182, %v2183
        %v2197 = vsel %vm2190, %v2166, %v2196
        %v2198 = vsel %vm943, %v2184, %v2185
        %v2199 = vsel %vm2190, %v2170, %v2198
        %v2200 = vsel %vm943, %v2185, %v2186
        %v2201 = vsel %vm2190, %v2172, %v2200
        %v2202 = vsel %vm943, %v2186, %v2187
        %v2203 = vsel %vm2190, %v2174, %v2202
        %v2204 = vsel %vm943, %v2187, %v2188
        %v2205 = vsel %vm2190, %v2176, %v2204
        %2214 = vst [vmem:[#allocation3 + $0x3c0] sm:$0xff] %v2191
        %2215 = vst [vmem:[#allocation3 + $0x3c8] sm:$0xff] %v2193
        %2216 = vst [vmem:[#allocation3 + $0x3d0] sm:$0xff] %v2195
        %2217 = vst [vmem:[#allocation3 + $0x3d8] sm:$0xff] %v2197
        %2218 = vst [vmem:[#allocation3 + $0x3e0] sm:$0xff] %v2199
        %2219 = vst [vmem:[#allocation3 + $0x3e8] sm:$0xff] %v2201
        %2220 = vst [vmem:[#allocation3 + $0x3f0] sm:$0xff] %v2203
        %2221 = vst [vmem:[#allocation3 + $0x3f8] sm:$0xff] %v2205
        %v2222 = vld [vmem:[#allocation2 + $0x4] sm:$0xff]
        %v2223 = vld [vmem:[#allocation2 + $0xc] sm:$0xff]
        %v2224 = vld [vmem:[#allocation2 + $0x14] sm:$0xff]
        %v2225 = vld [vmem:[#allocation2 + $0x1c] sm:$0xff]
        %v2226 = vld [vmem:[#allocation2 + $0x24] sm:$0xf]
        %v2227 = vld [vmem:[#allocation2 + $0x2c] sm:$0xff]
        %v2228 = vld [vmem:[#allocation2 + $0x34] sm:$0xff]
        %v2229 = vld [vmem:[#allocation2 + $0x3c] sm:$0xff]
        %v2230 = vld [vmem:[#allocation2 + $0x44] sm:$0xff]
        %v2231 = vld [vmem:[#allocation2 + $0x4c] sm:$0xf]
        %2242 = vrot.lane.b32.xlu0 %v2222, 101
        %v2243 = vpop.permute.xlu0 %2242
        %2244 = vrot.lane.b32.xlu0 %v2223, 101
        %v2245 = vpop.permute.xlu0 %2244
        %2246 = vrot.lane.b32.xlu0 %v2224, 101
        %v2247 = vpop.permute.xlu0 %2246
        %2248 = vrot.lane.b32.xlu0 %v2225, 101
        %v2249 = vpop.permute.xlu0 %2248
        %2250 = vrot.lane.b32.xlu0 %v2226, 101
        %v2251 = vpop.permute.xlu0 %2250
        %2252 = vrot.lane.b32.xlu0 %v2227, 101
        %v2253 = vpop.permute.xlu0 %2252
        %2254 = vrot.lane.b32.xlu0 %v2228, 101
        %v2255 = vpop.permute.xlu0 %2254
        %2256 = vrot.lane.b32.xlu0 %v2229, 101
        %v2257 = vpop.permute.xlu0 %2256
        %2258 = vrot.lane.b32.xlu0 %v2230, 101
        %v2259 = vpop.permute.xlu0 %2258
        %2260 = vrot.lane.b32.xlu0 %v2231, 101
        %v2261 = vpop.permute.xlu0 %2260
        %v2262 = vrot.slane %v2243, 4
        %v2263 = vrot.slane %v2245, 4
        %v2264 = vrot.slane %v2247, 4
        %v2265 = vrot.slane %v2249, 4
        %v2266 = vrot.slane %v2251, 4
        %v2267 = vrot.slane %v2253, 4
        %v2268 = vrot.slane %v2255, 4
        %v2269 = vrot.slane %v2257, 4
        %v2270 = vrot.slane %v2259, 4
        %v2271 = vrot.slane %v2261, 4
        %v2272 = vsel %vm943, %v2262, %v2263
        %vm2273 = vcmask 826368
        %v2274 = vsel %vm2273, %v2243, %v2272
        %v2275 = vsel %vm943, %v2263, %v2264
        %v2276 = vsel %vm2273, %v2245, %v2275
        %v2277 = vsel %vm943, %v2264, %v2265
        %v2278 = vsel %vm2273, %v2247, %v2277
        %v2279 = vsel %vm943, %v2265, %v2266
        %v2280 = vsel %vm2273, %v2249, %v2279
        %v2281 = vsel %vm943, %v2267, %v2268
        %v2282 = vsel %vm2273, %v2253, %v2281
        %v2283 = vsel %vm943, %v2268, %v2269
        %v2284 = vsel %vm2273, %v2255, %v2283
        %v2285 = vsel %vm943, %v2269, %v2270
        %v2286 = vsel %vm2273, %v2257, %v2285
        %v2287 = vsel %vm943, %v2270, %v2271
        %v2288 = vsel %vm2273, %v2259, %v2287
        %2297 = vst [vmem:[#allocation3 + $0x400] sm:$0xff] %v2274
        %2298 = vst [vmem:[#allocation3 + $0x408] sm:$0xff] %v2276
        %2299 = vst [vmem:[#allocation3 + $0x410] sm:$0xff] %v2278
        %2300 = vst [vmem:[#allocation3 + $0x418] sm:$0xff] %v2280
        %2301 = vst [vmem:[#allocation3 + $0x420] sm:$0xff] %v2282
        %2302 = vst [vmem:[#allocation3 + $0x428] sm:$0xff] %v2284
        %2303 = vst [vmem:[#allocation3 + $0x430] sm:$0xff] %v2286
        %2304 = vst [vmem:[#allocation3 + $0x438] sm:$0xff] %v2288
        %v2305 = vld [vmem:[#allocation2 + $0x4] sm:$0xff]
        %v2306 = vld [vmem:[#allocation2 + $0xc] sm:$0xff]
        %v2307 = vld [vmem:[#allocation2 + $0x14] sm:$0xff]
        %v2308 = vld [vmem:[#allocation2 + $0x1c] sm:$0xff]
        %v2309 = vld [vmem:[#allocation2 + $0x24] sm:$0xf]
        %v2310 = vld [vmem:[#allocation2 + $0x2c] sm:$0xff]
        %v2311 = vld [vmem:[#allocation2 + $0x34] sm:$0xff]
        %v2312 = vld [vmem:[#allocation2 + $0x3c] sm:$0xff]
        %v2313 = vld [vmem:[#allocation2 + $0x44] sm:$0xff]
        %v2314 = vld [vmem:[#allocation2 + $0x4c] sm:$0xf]
        %2325 = vrot.lane.b32.xlu0 %v2305, 100
        %v2326 = vpop.permute.xlu0 %2325
        %2327 = vrot.lane.b32.xlu0 %v2306, 100
        %v2328 = vpop.permute.xlu0 %2327
        %2329 = vrot.lane.b32.xlu0 %v2307, 100
        %v2330 = vpop.permute.xlu0 %2329
        %2331 = vrot.lane.b32.xlu0 %v2308, 100
        %v2332 = vpop.permute.xlu0 %2331
        %2333 = vrot.lane.b32.xlu0 %v2309, 100
        %v2334 = vpop.permute.xlu0 %2333
        %2335 = vrot.lane.b32.xlu0 %v2310, 100
        %v2336 = vpop.permute.xlu0 %2335
        %2337 = vrot.lane.b32.xlu0 %v2311, 100
        %v2338 = vpop.permute.xlu0 %2337
        %2339 = vrot.lane.b32.xlu0 %v2312, 100
        %v2340 = vpop.permute.xlu0 %2339
        %2341 = vrot.lane.b32.xlu0 %v2313, 100
        %v2342 = vpop.permute.xlu0 %2341
        %2343 = vrot.lane.b32.xlu0 %v2314, 100
        %v2344 = vpop.permute.xlu0 %2343
        %v2345 = vrot.slane %v2326, 4
        %v2346 = vrot.slane %v2328, 4
        %v2347 = vrot.slane %v2330, 4
        %v2348 = vrot.slane %v2332, 4
        %v2349 = vrot.slane %v2334, 4
        %v2350 = vrot.slane %v2336, 4
        %v2351 = vrot.slane %v2338, 4
        %v2352 = vrot.slane %v2340, 4
        %v2353 = vrot.slane %v2342, 4
        %v2354 = vrot.slane %v2344, 4
        %v2355 = vsel %vm943, %v2345, %v2346
        %vm2356 = vcmask 818176
        %v2357 = vsel %vm2356, %v2326, %v2355
        %v2358 = vsel %vm943, %v2346, %v2347
        %v2359 = vsel %vm2356, %v2328, %v2358
        %v2360 = vsel %vm943, %v2347, %v2348
        %v2361 = vsel %vm2356, %v2330, %v2360
        %v2362 = vsel %vm943, %v2348, %v2349
        %v2363 = vsel %vm2356, %v2332, %v2362
        %v2364 = vsel %vm943, %v2350, %v2351
        %v2365 = vsel %vm2356, %v2336, %v2364
        %v2366 = vsel %vm943, %v2351, %v2352
        %v2367 = vsel %vm2356, %v2338, %v2366
        %v2368 = vsel %vm943, %v2352, %v2353
        %v2369 = vsel %vm2356, %v2340, %v2368
        %v2370 = vsel %vm943, %v2353, %v2354
        %v2371 = vsel %vm2356, %v2342, %v2370
        %2380 = vst [vmem:[#allocation3 + $0x440] sm:$0xff] %v2357
        %2381 = vst [vmem:[#allocation3 + $0x448] sm:$0xff] %v2359
        %2382 = vst [vmem:[#allocation3 + $0x450] sm:$0xff] %v2361
        %2383 = vst [vmem:[#allocation3 + $0x458] sm:$0xff] %v2363
        %2384 = vst [vmem:[#allocation3 + $0x460] sm:$0xff] %v2365
        %2385 = vst [vmem:[#allocation3 + $0x468] sm:$0xff] %v2367
        %2386 = vst [vmem:[#allocation3 + $0x470] sm:$0xff] %v2369
        %2387 = vst [vmem:[#allocation3 + $0x478] sm:$0xff] %v2371
        %v2388 = vld [vmem:[#allocation2 + $0x4] sm:$0xff]
        %v2389 = vld [vmem:[#allocation2 + $0xc] sm:$0xff]
        %v2390 = vld [vmem:[#allocation2 + $0x14] sm:$0xff]
        %v2391 = vld [vmem:[#allocation2 + $0x1c] sm:$0xff]
        %v2392 = vld [vmem:[#allocation2 + $0x24] sm:$0xf]
        %v2393 = vld [vmem:[#allocation2 + $0x2c] sm:$0xff]
        %v2394 = vld [vmem:[#allocation2 + $0x34] sm:$0xff]
        %v2395 = vld [vmem:[#allocation2 + $0x3c] sm:$0xff]
        %v2396 = vld [vmem:[#allocation2 + $0x44] sm:$0xff]
        %v2397 = vld [vmem:[#allocation2 + $0x4c] sm:$0xf]
        %2408 = vrot.lane.b32.xlu0 %v2388, 22
        %v2409 = vpop.permute.xlu0 %2408
        %2410 = vrot.lane.b32.xlu0 %v2389, 22
        %v2411 = vpop.permute.xlu0 %2410
        %2412 = vrot.lane.b32.xlu0 %v2390, 22
        %v2413 = vpop.permute.xlu0 %2412
        %2414 = vrot.lane.b32.xlu0 %v2391, 22
        %v2415 = vpop.permute.xlu0 %2414
        %2416 = vrot.lane.b32.xlu0 %v2392, 22
        %v2417 = vpop.permute.xlu0 %2416
        %2418 = vrot.lane.b32.xlu0 %v2393, 22
        %v2419 = vpop.permute.xlu0 %2418
        %2420 = vrot.lane.b32.xlu0 %v2394, 22
        %v2421 = vpop.permute.xlu0 %2420
        %2422 = vrot.lane.b32.xlu0 %v2395, 22
        %v2423 = vpop.permute.xlu0 %2422
        %2424 = vrot.lane.b32.xlu0 %v2396, 22
        %v2425 = vpop.permute.xlu0 %2424
        %2426 = vrot.lane.b32.xlu0 %v2397, 22
        %v2427 = vpop.permute.xlu0 %2426
        %v2428 = vrot.slane %v2409, 4
        %v2429 = vrot.slane %v2411, 4
        %v2430 = vrot.slane %v2413, 4
        %v2431 = vrot.slane %v2415, 4
        %v2432 = vrot.slane %v2417, 4
        %v2433 = vrot.slane %v2419, 4
        %v2434 = vrot.slane %v2421, 4
        %v2435 = vrot.slane %v2423, 4
        %v2436 = vrot.slane %v2425, 4
        %v2437 = vrot.slane %v2427, 4
        %v2438 = vsel %vm943, %v2428, %v2429
        %vm2439 = vcmask 179200
        %v2440 = vsel %vm2439, %v2409, %v2438
        %v2441 = vsel %vm943, %v2429, %v2430
        %v2442 = vsel %vm2439, %v2411, %v2441
        %v2443 = vsel %vm943, %v2430, %v2431
        %v2444 = vsel %vm2439, %v2413, %v2443
        %v2445 = vsel %vm943, %v2431, %v2432
        %v2446 = vsel %vm2439, %v2415, %v2445
        %v2447 = vsel %vm943, %v2433, %v2434
        %v2448 = vsel %vm2439, %v2419, %v2447
        %v2449 = vsel %vm943, %v2434, %v2435
        %v2450 = vsel %vm2439, %v2421, %v2449
        %v2451 = vsel %vm943, %v2435, %v2436
        %v2452 = vsel %vm2439, %v2423, %v2451
        %v2453 = vsel %vm943, %v2436, %v2437
        %v2454 = vsel %vm2439, %v2425, %v2453
        %2463 = vst [vmem:[#allocation3 + $0x480] sm:$0xff] %v2440
        %2464 = vst [vmem:[#allocation3 + $0x488] sm:$0xff] %v2442
        %2465 = vst [vmem:[#allocation3 + $0x490] sm:$0xff] %v2444
        %2466 = vst [vmem:[#allocation3 + $0x498] sm:$0xff] %v2446
        %2467 = vst [vmem:[#allocation3 + $0x4a0] sm:$0xff] %v2448
        %2468 = vst [vmem:[#allocation3 + $0x4a8] sm:$0xff] %v2450
        %2469 = vst [vmem:[#allocation3 + $0x4b0] sm:$0xff] %v2452
        %2470 = vst [vmem:[#allocation3 + $0x4b8] sm:$0xff] %v2454
        %v2471 = vld [vmem:[#allocation2 + $0x4] sm:$0xff]
        %v2472 = vld [vmem:[#allocation2 + $0xc] sm:$0xff]
        %v2473 = vld [vmem:[#allocation2 + $0x14] sm:$0xff]
        %v2474 = vld [vmem:[#allocation2 + $0x1c] sm:$0xff]
        %v2475 = vld [vmem:[#allocation2 + $0x24] sm:$0xf]
        %v2476 = vld [vmem:[#allocation2 + $0x2c] sm:$0xff]
        %v2477 = vld [vmem:[#allocation2 + $0x34] sm:$0xff]
        %v2478 = vld [vmem:[#allocation2 + $0x3c] sm:$0xff]
        %v2479 = vld [vmem:[#allocation2 + $0x44] sm:$0xff]
        %v2480 = vld [vmem:[#allocation2 + $0x4c] sm:$0xf]
        %2491 = vrot.lane.b32.xlu0 %v2471, 21
        %v2492 = vpop.permute.xlu0 %2491
        %2493 = vrot.lane.b32.xlu0 %v2472, 21
        %v2494 = vpop.permute.xlu0 %2493
        %2495 = vrot.lane.b32.xlu0 %v2473, 21
        %v2496 = vpop.permute.xlu0 %2495
        %2497 = vrot.lane.b32.xlu0 %v2474, 21
        %v2498 = vpop.permute.xlu0 %2497
        %2499 = vrot.lane.b32.xlu0 %v2475, 21
        %v2500 = vpop.permute.xlu0 %2499
        %2501 = vrot.lane.b32.xlu0 %v2476, 21
        %v2502 = vpop.permute.xlu0 %2501
        %2503 = vrot.lane.b32.xlu0 %v2477, 21
        %v2504 = vpop.permute.xlu0 %2503
        %2505 = vrot.lane.b32.xlu0 %v2478, 21
        %v2506 = vpop.permute.xlu0 %2505
        %2507 = vrot.lane.b32.xlu0 %v2479, 21
        %v2508 = vpop.permute.xlu0 %2507
        %2509 = vrot.lane.b32.xlu0 %v2480, 21
        %v2510 = vpop.permute.xlu0 %2509
        %v2511 = vrot.slane %v2492, 4
        %v2512 = vrot.slane %v2494, 4
        %v2513 = vrot.slane %v2496, 4
        %v2514 = vrot.slane %v2498, 4
        %v2515 = vrot.slane %v2500, 4
        %v2516 = vrot.slane %v2502, 4
        %v2517 = vrot.slane %v2504, 4
        %v2518 = vrot.slane %v2506, 4
        %v2519 = vrot.slane %v2508, 4
        %v2520 = vrot.slane %v2510, 4
        %v2521 = vsel %vm943, %v2511, %v2512
        %vm2522 = vcmask 171008
        %v2523 = vsel %vm2522, %v2492, %v2521
        %v2524 = vsel %vm943, %v2512, %v2513
        %v2525 = vsel %vm2522, %v2494, %v2524
        %v2526 = vsel %vm943, %v2513, %v2514
        %v2527 = vsel %vm2522, %v2496, %v2526
        %v2528 = vsel %vm943, %v2514, %v2515
        %v2529 = vsel %vm2522, %v2498, %v2528
        %v2530 = vsel %vm943, %v2516, %v2517
        %v2531 = vsel %vm2522, %v2502, %v2530
        %v2532 = vsel %vm943, %v2517, %v2518
        %v2533 = vsel %vm2522, %v2504, %v2532
        %v2534 = vsel %vm943, %v2518, %v2519
        %v2535 = vsel %vm2522, %v2506, %v2534
        %v2536 = vsel %vm943, %v2519, %v2520
        %v2537 = vsel %vm2522, %v2508, %v2536
        %2546 = vst [vmem:[#allocation3 + $0x4c0] sm:$0xff] %v2523
        %2547 = vst [vmem:[#allocation3 + $0x4c8] sm:$0xff] %v2525
        %2548 = vst [vmem:[#allocation3 + $0x4d0] sm:$0xff] %v2527
        %2549 = vst [vmem:[#allocation3 + $0x4d8] sm:$0xff] %v2529
        %2550 = vst [vmem:[#allocation3 + $0x4e0] sm:$0xff] %v2531
        %2551 = vst [vmem:[#allocation3 + $0x4e8] sm:$0xff] %v2533
        %2552 = vst [vmem:[#allocation3 + $0x4f0] sm:$0xff] %v2535
        %2553 = vst [vmem:[#allocation3 + $0x4f8] sm:$0xff] %v2537
        %v2554 = vld [vmem:[#allocation2 + $0x4] sm:$0xff]
        %v2555 = vld [vmem:[#allocation2 + $0xc] sm:$0xff]
        %v2556 = vld [vmem:[#allocation2 + $0x14] sm:$0xff]
        %v2557 = vld [vmem:[#allocation2 + $0x1c] sm:$0xff]
        %v2558 = vld [vmem:[#allocation2 + $0x24] sm:$0xf]
        %v2559 = vld [vmem:[#allocation2 + $0x2c] sm:$0xff]
        %v2560 = vld [vmem:[#allocation2 + $0x34] sm:$0xff]
        %v2561 = vld [vmem:[#allocation2 + $0x3c] sm:$0xff]
        %v2562 = vld [vmem:[#allocation2 + $0x44] sm:$0xff]
        %v2563 = vld [vmem:[#allocation2 + $0x4c] sm:$0xf]
        %2574 = vrot.lane.b32.xlu0 %v2554, 20
        %v2575 = vpop.permute.xlu0 %2574
        %2576 = vrot.lane.b32.xlu0 %v2555, 20
        %v2577 = vpop.permute.xlu0 %2576
        %2578 = vrot.lane.b32.xlu0 %v2556, 20
        %v2579 = vpop.permute.xlu0 %2578
        %2580 = vrot.lane.b32.xlu0 %v2557, 20
        %v2581 = vpop.permute.xlu0 %2580
        %2582 = vrot.lane.b32.xlu0 %v2558, 20
        %v2583 = vpop.permute.xlu0 %2582
        %2584 = vrot.lane.b32.xlu0 %v2559, 20
        %v2585 = vpop.permute.xlu0 %2584
        %2586 = vrot.lane.b32.xlu0 %v2560, 20
        %v2587 = vpop.permute.xlu0 %2586
        %2588 = vrot.lane.b32.xlu0 %v2561, 20
        %v2589 = vpop.permute.xlu0 %2588
        %2590 = vrot.lane.b32.xlu0 %v2562, 20
        %v2591 = vpop.permute.xlu0 %2590
        %2592 = vrot.lane.b32.xlu0 %v2563, 20
        %v2593 = vpop.permute.xlu0 %2592
        %v2594 = vrot.slane %v2575, 4
        %v2595 = vrot.slane %v2577, 4
        %v2596 = vrot.slane %v2579, 4
        %v2597 = vrot.slane %v2581, 4
        %v2598 = vrot.slane %v2583, 4
        %v2599 = vrot.slane %v2585, 4
        %v2600 = vrot.slane %v2587, 4
        %v2601 = vrot.slane %v2589, 4
        %v2602 = vrot.slane %v2591, 4
        %v2603 = vrot.slane %v2593, 4
        %v2604 = vsel %vm943, %v2594, %v2595
        %vm2605 = vcmask 162816
        %v2606 = vsel %vm2605, %v2575, %v2604
        %v2607 = vsel %vm943, %v2595, %v2596
        %v2608 = vsel %vm2605, %v2577, %v2607
        %v2609 = vsel %vm943, %v2596, %v2597
        %v2610 = vsel %vm2605, %v2579, %v2609
        %v2611 = vsel %vm943, %v2597, %v2598
        %v2612 = vsel %vm2605, %v2581, %v2611
        %v2613 = vsel %vm943, %v2599, %v2600
        %v2614 = vsel %vm2605, %v2585, %v2613
        %v2615 = vsel %vm943, %v2600, %v2601
        %v2616 = vsel %vm2605, %v2587, %v2615
        %v2617 = vsel %vm943, %v2601, %v2602
        %v2618 = vsel %vm2605, %v2589, %v2617
        %v2619 = vsel %vm943, %v2602, %v2603
        %v2620 = vsel %vm2605, %v2591, %v2619
        %2629 = vst [vmem:[#allocation3 + $0x500] sm:$0xff] %v2606
        %2630 = vst [vmem:[#allocation3 + $0x508] sm:$0xff] %v2608
        %2631 = vst [vmem:[#allocation3 + $0x510] sm:$0xff] %v2610
        %2632 = vst [vmem:[#allocation3 + $0x518] sm:$0xff] %v2612
        %2633 = vst [vmem:[#allocation3 + $0x520] sm:$0xff] %v2614
        %2634 = vst [vmem:[#allocation3 + $0x528] sm:$0xff] %v2616
        %2635 = vst [vmem:[#allocation3 + $0x530] sm:$0xff] %v2618
        %2636 = vst [vmem:[#allocation3 + $0x538] sm:$0xff] %v2620
        %v2637 = vld [vmem:[#allocation2 + $0x4] sm:$0xff]
        %v2638 = vld [vmem:[#allocation2 + $0xc] sm:$0xff]
        %v2639 = vld [vmem:[#allocation2 + $0x14] sm:$0xff]
        %v2640 = vld [vmem:[#allocation2 + $0x1c] sm:$0xff]
        %v2641 = vld [vmem:[#allocation2 + $0x24] sm:$0xf]
        %v2642 = vld [vmem:[#allocation2 + $0x2c] sm:$0xff]
        %v2643 = vld [vmem:[#allocation2 + $0x34] sm:$0xff]
        %v2644 = vld [vmem:[#allocation2 + $0x3c] sm:$0xff]
        %v2645 = vld [vmem:[#allocation2 + $0x44] sm:$0xff]
        %v2646 = vld [vmem:[#allocation2 + $0x4c] sm:$0xf]
        %2657 = vrot.lane.b32.xlu0 %v2637, 12
        %v2658 = vpop.permute.xlu0 %2657
        %2659 = vrot.lane.b32.xlu0 %v2638, 12
        %v2660 = vpop.permute.xlu0 %2659
        %2661 = vrot.lane.b32.xlu0 %v2639, 12
        %v2662 = vpop.permute.xlu0 %2661
        %2663 = vrot.lane.b32.xlu0 %v2640, 12
        %v2664 = vpop.permute.xlu0 %2663
        %2665 = vrot.lane.b32.xlu0 %v2641, 12
        %v2666 = vpop.permute.xlu0 %2665
        %2667 = vrot.lane.b32.xlu0 %v2642, 12
        %v2668 = vpop.permute.xlu0 %2667
        %2669 = vrot.lane.b32.xlu0 %v2643, 12
        %v2670 = vpop.permute.xlu0 %2669
        %2671 = vrot.lane.b32.xlu0 %v2644, 12
        %v2672 = vpop.permute.xlu0 %2671
        %2673 = vrot.lane.b32.xlu0 %v2645, 12
        %v2674 = vpop.permute.xlu0 %2673
        %2675 = vrot.lane.b32.xlu0 %v2646, 12
        %v2676 = vpop.permute.xlu0 %2675
        %v2677 = vrot.slane %v2658, 4
        %v2678 = vrot.slane %v2660, 4
        %v2679 = vrot.slane %v2662, 4
        %v2680 = vrot.slane %v2664, 4
        %v2681 = vrot.slane %v2666, 4
        %v2682 = vrot.slane %v2668, 4
        %v2683 = vrot.slane %v2670, 4
        %v2684 = vrot.slane %v2672, 4
        %v2685 = vrot.slane %v2674, 4
        %v2686 = vrot.slane %v2676, 4
        %v2687 = vsel %vm943, %v2677, %v2678
        %vm2688 = vcmask 97280
        %v2689 = vsel %vm2688, %v2658, %v2687
        %v2690 = vsel %vm943, %v2678, %v2679
        %v2691 = vsel %vm2688, %v2660, %v2690
        %v2692 = vsel %vm943, %v2679, %v2680
        %v2693 = vsel %vm2688, %v2662, %v2692
        %v2694 = vsel %vm943, %v2680, %v2681
        %v2695 = vsel %vm2688, %v2664, %v2694
        %v2696 = vsel %vm943, %v2682, %v2683
        %v2697 = vsel %vm2688, %v2668, %v2696
        %v2698 = vsel %vm943, %v2683, %v2684
        %v2699 = vsel %vm2688, %v2670, %v2698
        %v2700 = vsel %vm943, %v2684, %v2685
        %v2701 = vsel %vm2688, %v2672, %v2700
        %v2702 = vsel %vm943, %v2685, %v2686
        %v2703 = vsel %vm2688, %v2674, %v2702
        %2712 = vst [vmem:[#allocation3 + $0x540] sm:$0xff] %v2689
        %2713 = vst [vmem:[#allocation3 + $0x548] sm:$0xff] %v2691
        %2714 = vst [vmem:[#allocation3 + $0x550] sm:$0xff] %v2693
        %2715 = vst [vmem:[#allocation3 + $0x558] sm:$0xff] %v2695
        %2716 = vst [vmem:[#allocation3 + $0x560] sm:$0xff] %v2697
        %2717 = vst [vmem:[#allocation3 + $0x568] sm:$0xff] %v2699
        %2718 = vst [vmem:[#allocation3 + $0x570] sm:$0xff] %v2701
        %2719 = vst [vmem:[#allocation3 + $0x578] sm:$0xff] %v2703
        %v2720 = vld [vmem:[#allocation2 + $0x4] sm:$0xff]
        %v2721 = vld [vmem:[#allocation2 + $0xc] sm:$0xff]
        %v2722 = vld [vmem:[#allocation2 + $0x14] sm:$0xff]
        %v2723 = vld [vmem:[#allocation2 + $0x1c] sm:$0xff]
        %v2724 = vld [vmem:[#allocation2 + $0x24] sm:$0xf]
        %v2725 = vld [vmem:[#allocation2 + $0x2c] sm:$0xff]
        %v2726 = vld [vmem:[#allocation2 + $0x34] sm:$0xff]
        %v2727 = vld [vmem:[#allocation2 + $0x3c] sm:$0xff]
        %v2728 = vld [vmem:[#allocation2 + $0x44] sm:$0xff]
        %v2729 = vld [vmem:[#allocation2 + $0x4c] sm:$0xf]
        %2740 = vrot.lane.b32.xlu0 %v2720, 11
        %v2741 = vpop.permute.xlu0 %2740
        %2742 = vrot.lane.b32.xlu0 %v2721, 11
        %v2743 = vpop.permute.xlu0 %2742
        %2744 = vrot.lane.b32.xlu0 %v2722, 11
        %v2745 = vpop.permute.xlu0 %2744
        %2746 = vrot.lane.b32.xlu0 %v2723, 11
        %v2747 = vpop.permute.xlu0 %2746
        %2748 = vrot.lane.b32.xlu0 %v2724, 11
        %v2749 = vpop.permute.xlu0 %2748
        %2750 = vrot.lane.b32.xlu0 %v2725, 11
        %v2751 = vpop.permute.xlu0 %2750
        %2752 = vrot.lane.b32.xlu0 %v2726, 11
        %v2753 = vpop.permute.xlu0 %2752
        %2754 = vrot.lane.b32.xlu0 %v2727, 11
        %v2755 = vpop.permute.xlu0 %2754
        %2756 = vrot.lane.b32.xlu0 %v2728, 11
        %v2757 = vpop.permute.xlu0 %2756
        %2758 = vrot.lane.b32.xlu0 %v2729, 11
        %v2759 = vpop.permute.xlu0 %2758
        %v2760 = vrot.slane %v2741, 4
        %v2761 = vrot.slane %v2743, 4
        %v2762 = vrot.slane %v2745, 4
        %v2763 = vrot.slane %v2747, 4
        %v2764 = vrot.slane %v2749, 4
        %v2765 = vrot.slane %v2751, 4
        %v2766 = vrot.slane %v2753, 4
        %v2767 = vrot.slane %v2755, 4
        %v2768 = vrot.slane %v2757, 4
        %v2769 = vrot.slane %v2759, 4
        %v2770 = vsel %vm943, %v2760, %v2761
        %vm2771 = vcmask 89088
        %v2772 = vsel %vm2771, %v2741, %v2770
        %v2773 = vsel %vm943, %v2761, %v2762
        %v2774 = vsel %vm2771, %v2743, %v2773
        %v2775 = vsel %vm943, %v2762, %v2763
        %v2776 = vsel %vm2771, %v2745, %v2775
        %v2777 = vsel %vm943, %v2763, %v2764
        %v2778 = vsel %vm2771, %v2747, %v2777
        %v2779 = vsel %vm943, %v2765, %v2766
        %v2780 = vsel %vm2771, %v2751, %v2779
        %v2781 = vsel %vm943, %v2766, %v2767
        %v2782 = vsel %vm2771, %v2753, %v2781
        %v2783 = vsel %vm943, %v2767, %v2768
        %v2784 = vsel %vm2771, %v2755, %v2783
        %v2785 = vsel %vm943, %v2768, %v2769
        %v2786 = vsel %vm2771, %v2757, %v2785
        %2795 = vst [vmem:[#allocation3 + $0x580] sm:$0xff] %v2772
        %2796 = vst [vmem:[#allocation3 + $0x588] sm:$0xff] %v2774
        %2797 = vst [vmem:[#allocation3 + $0x590] sm:$0xff] %v2776
        %2798 = vst [vmem:[#allocation3 + $0x598] sm:$0xff] %v2778
        %2799 = vst [vmem:[#allocation3 + $0x5a0] sm:$0xff] %v2780
        %2800 = vst [vmem:[#allocation3 + $0x5a8] sm:$0xff] %v2782
        %2801 = vst [vmem:[#allocation3 + $0x5b0] sm:$0xff] %v2784
        %2802 = vst [vmem:[#allocation3 + $0x5b8] sm:$0xff] %v2786
        %v2803 = vld [vmem:[#allocation2 + $0x4] sm:$0xff]
        %v2804 = vld [vmem:[#allocation2 + $0xc] sm:$0xff]
        %v2805 = vld [vmem:[#allocation2 + $0x14] sm:$0xff]
        %v2806 = vld [vmem:[#allocation2 + $0x1c] sm:$0xff]
        %v2807 = vld [vmem:[#allocation2 + $0x24] sm:$0xf]
        %v2808 = vld [vmem:[#allocation2 + $0x2c] sm:$0xff]
        %v2809 = vld [vmem:[#allocation2 + $0x34] sm:$0xff]
        %v2810 = vld [vmem:[#allocation2 + $0x3c] sm:$0xff]
        %v2811 = vld [vmem:[#allocation2 + $0x44] sm:$0xff]
        %v2812 = vld [vmem:[#allocation2 + $0x4c] sm:$0xf]
        %2823 = vrot.lane.b32.xlu0 %v2803, 10
        %v2824 = vpop.permute.xlu0 %2823
        %2825 = vrot.lane.b32.xlu0 %v2804, 10
        %v2826 = vpop.permute.xlu0 %2825
        %2827 = vrot.lane.b32.xlu0 %v2805, 10
        %v2828 = vpop.permute.xlu0 %2827
        %2829 = vrot.lane.b32.xlu0 %v2806, 10
        %v2830 = vpop.permute.xlu0 %2829
        %2831 = vrot.lane.b32.xlu0 %v2807, 10
        %v2832 = vpop.permute.xlu0 %2831
        %2833 = vrot.lane.b32.xlu0 %v2808, 10
        %v2834 = vpop.permute.xlu0 %2833
        %2835 = vrot.lane.b32.xlu0 %v2809, 10
        %v2836 = vpop.permute.xlu0 %2835
        %2837 = vrot.lane.b32.xlu0 %v2810, 10
        %v2838 = vpop.permute.xlu0 %2837
        %2839 = vrot.lane.b32.xlu0 %v2811, 10
        %v2840 = vpop.permute.xlu0 %2839
        %2841 = vrot.lane.b32.xlu0 %v2812, 10
        %v2842 = vpop.permute.xlu0 %2841
        %v2843 = vrot.slane %v2824, 4
        %v2844 = vrot.slane %v2826, 4
        %v2845 = vrot.slane %v2828, 4
        %v2846 = vrot.slane %v2830, 4
        %v2847 = vrot.slane %v2832, 4
        %v2848 = vrot.slane %v2834, 4
        %v2849 = vrot.slane %v2836, 4
        %v2850 = vrot.slane %v2838, 4
        %v2851 = vrot.slane %v2840, 4
        %v2852 = vrot.slane %v2842, 4
        %v2853 = vsel %vm943, %v2843, %v2844
        %vm2854 = vcmask 80896
        %v2855 = vsel %vm2854, %v2824, %v2853
        %v2856 = vsel %vm943, %v2844, %v2845
        %v2857 = vsel %vm2854, %v2826, %v2856
        %v2858 = vsel %vm943, %v2845, %v2846
        %v2859 = vsel %vm2854, %v2828, %v2858
        %v2860 = vsel %vm943, %v2846, %v2847
        %v2861 = vsel %vm2854, %v2830, %v2860
        %v2862 = vsel %vm943, %v2848, %v2849
        %v2863 = vsel %vm2854, %v2834, %v2862
        %v2864 = vsel %vm943, %v2849, %v2850
        %v2865 = vsel %vm2854, %v2836, %v2864
        %v2866 = vsel %vm943, %v2850, %v2851
        %v2867 = vsel %vm2854, %v2838, %v2866
        %v2868 = vsel %vm943, %v2851, %v2852
        %v2869 = vsel %vm2854, %v2840, %v2868
        %2878 = vst [vmem:[#allocation3 + $0x5c0] sm:$0xff] %v2855
        %2879 = vst [vmem:[#allocation3 + $0x5c8] sm:$0xff] %v2857
        %2880 = vst [vmem:[#allocation3 + $0x5d0] sm:$0xff] %v2859
        %2881 = vst [vmem:[#allocation3 + $0x5d8] sm:$0xff] %v2861
        %2882 = vst [vmem:[#allocation3 + $0x5e0] sm:$0xff] %v2863
        %2883 = vst [vmem:[#allocation3 + $0x5e8] sm:$0xff] %v2865
        %2884 = vst [vmem:[#allocation3 + $0x5f0] sm:$0xff] %v2867
        %2885 = vst [vmem:[#allocation3 + $0x5f8] sm:$0xff] %v2869
        %v2886 = vld [vmem:[#allocation2 + $0x4] sm:$0xff]
        %v2887 = vld [vmem:[#allocation2 + $0xc] sm:$0xff]
        %v2888 = vld [vmem:[#allocation2 + $0x14] sm:$0xff]
        %v2889 = vld [vmem:[#allocation2 + $0x1c] sm:$0xff]
        %v2890 = vld [vmem:[#allocation2 + $0x24] sm:$0xf]
        %v2891 = vld [vmem:[#allocation2 + $0x2c] sm:$0xff]
        %v2892 = vld [vmem:[#allocation2 + $0x34] sm:$0xff]
        %v2893 = vld [vmem:[#allocation2 + $0x3c] sm:$0xff]
        %v2894 = vld [vmem:[#allocation2 + $0x44] sm:$0xff]
        %v2895 = vld [vmem:[#allocation2 + $0x4c] sm:$0xf]
        %2906 = vrot.lane.b32.xlu0 %v2886, 2
        %v2907 = vpop.permute.xlu0 %2906
        %2908 = vrot.lane.b32.xlu0 %v2887, 2
        %v2909 = vpop.permute.xlu0 %2908
        %2910 = vrot.lane.b32.xlu0 %v2888, 2
        %v2911 = vpop.permute.xlu0 %2910
        %2912 = vrot.lane.b32.xlu0 %v2889, 2
        %v2913 = vpop.permute.xlu0 %2912
        %2914 = vrot.lane.b32.xlu0 %v2890, 2
        %v2915 = vpop.permute.xlu0 %2914
        %2916 = vrot.lane.b32.xlu0 %v2891, 2
        %v2917 = vpop.permute.xlu0 %2916
        %2918 = vrot.lane.b32.xlu0 %v2892, 2
        %v2919 = vpop.permute.xlu0 %2918
        %2920 = vrot.lane.b32.xlu0 %v2893, 2
        %v2921 = vpop.permute.xlu0 %2920
        %2922 = vrot.lane.b32.xlu0 %v2894, 2
        %v2923 = vpop.permute.xlu0 %2922
        %2924 = vrot.lane.b32.xlu0 %v2895, 2
        %v2925 = vpop.permute.xlu0 %2924
        %v2926 = vrot.slane %v2907, 4
        %v2927 = vrot.slane %v2909, 4
        %v2928 = vrot.slane %v2911, 4
        %v2929 = vrot.slane %v2913, 4
        %v2930 = vrot.slane %v2915, 4
        %v2931 = vrot.slane %v2917, 4
        %v2932 = vrot.slane %v2919, 4
        %v2933 = vrot.slane %v2921, 4
        %v2934 = vrot.slane %v2923, 4
        %v2935 = vrot.slane %v2925, 4
        %v2936 = vsel %vm943, %v2926, %v2927
        %vm2937 = vcmask 15360
        %v2938 = vsel %vm2937, %v2907, %v2936
        %v2939 = vsel %vm943, %v2927, %v2928
        %v2940 = vsel %vm2937, %v2909, %v2939
        %v2941 = vsel %vm943, %v2928, %v2929
        %v2942 = vsel %vm2937, %v2911, %v2941
        %v2943 = vsel %vm943, %v2929, %v2930
        %v2944 = vsel %vm2937, %v2913, %v2943
        %v2945 = vsel %vm943, %v2931, %v2932
        %v2946 = vsel %vm2937, %v2917, %v2945
        %v2947 = vsel %vm943, %v2932, %v2933
        %v2948 = vsel %vm2937, %v2919, %v2947
        %v2949 = vsel %vm943, %v2933, %v2934
        %v2950 = vsel %vm2937, %v2921, %v2949
        %v2951 = vsel %vm943, %v2934, %v2935
        %v2952 = vsel %vm2937, %v2923, %v2951
        %2961 = vst [vmem:[#allocation3 + $0x600] sm:$0xff] %v2938
        %2962 = vst [vmem:[#allocation3 + $0x608] sm:$0xff] %v2940
        %2963 = vst [vmem:[#allocation3 + $0x610] sm:$0xff] %v2942
        %2964 = vst [vmem:[#allocation3 + $0x618] sm:$0xff] %v2944
        %2965 = vst [vmem:[#allocation3 + $0x620] sm:$0xff] %v2946
        %2966 = vst [vmem:[#allocation3 + $0x628] sm:$0xff] %v2948
        %2967 = vst [vmem:[#allocation3 + $0x630] sm:$0xff] %v2950
        %2968 = vst [vmem:[#allocation3 + $0x638] sm:$0xff] %v2952
        %v2969 = vld [vmem:[#allocation2 + $0x4] sm:$0xff]
        %v2970 = vld [vmem:[#allocation2 + $0xc] sm:$0xff]
        %v2971 = vld [vmem:[#allocation2 + $0x14] sm:$0xff]
        %v2972 = vld [vmem:[#allocation2 + $0x1c] sm:$0xff]
        %v2973 = vld [vmem:[#allocation2 + $0x24] sm:$0xf]
        %v2974 = vld [vmem:[#allocation2 + $0x2c] sm:$0xff]
        %v2975 = vld [vmem:[#allocation2 + $0x34] sm:$0xff]
        %v2976 = vld [vmem:[#allocation2 + $0x3c] sm:$0xff]
        %v2977 = vld [vmem:[#allocation2 + $0x44] sm:$0xff]
        %v2978 = vld [vmem:[#allocation2 + $0x4c] sm:$0xf]
        %2989 = vrot.lane.b32.xlu0 %v2969, 1
        %v2990 = vpop.permute.xlu0 %2989
        %2991 = vrot.lane.b32.xlu0 %v2970, 1
        %v2992 = vpop.permute.xlu0 %2991
        %2993 = vrot.lane.b32.xlu0 %v2971, 1
        %v2994 = vpop.permute.xlu0 %2993
        %2995 = vrot.lane.b32.xlu0 %v2972, 1
        %v2996 = vpop.permute.xlu0 %2995
        %2997 = vrot.lane.b32.xlu0 %v2973, 1
        %v2998 = vpop.permute.xlu0 %2997
        %2999 = vrot.lane.b32.xlu0 %v2974, 1
        %v3000 = vpop.permute.xlu0 %2999
        %3001 = vrot.lane.b32.xlu0 %v2975, 1
        %v3002 = vpop.permute.xlu0 %3001
        %3003 = vrot.lane.b32.xlu0 %v2976, 1
        %v3004 = vpop.permute.xlu0 %3003
        %3005 = vrot.lane.b32.xlu0 %v2977, 1
        %v3006 = vpop.permute.xlu0 %3005
        %3007 = vrot.lane.b32.xlu0 %v2978, 1
        %v3008 = vpop.permute.xlu0 %3007
        %v3009 = vrot.slane %v2990, 4
        %v3010 = vrot.slane %v2992, 4
        %v3011 = vrot.slane %v2994, 4
        %v3012 = vrot.slane %v2996, 4
        %v3013 = vrot.slane %v2998, 4
        %v3014 = vrot.slane %v3000, 4
        %v3015 = vrot.slane %v3002, 4
        %v3016 = vrot.slane %v3004, 4
        %v3017 = vrot.slane %v3006, 4
        %v3018 = vrot.slane %v3008, 4
        %v3019 = vsel %vm943, %v3009, %v3010
        %vm3020 = vcmask 7168
        %v3021 = vsel %vm3020, %v2990, %v3019
        %v3022 = vsel %vm943, %v3010, %v3011
        %v3023 = vsel %vm3020, %v2992, %v3022
        %v3024 = vsel %vm943, %v3011, %v3012
        %v3025 = vsel %vm3020, %v2994, %v3024
        %v3026 = vsel %vm943, %v3012, %v3013
        %v3027 = vsel %vm3020, %v2996, %v3026
        %v3028 = vsel %vm943, %v3014, %v3015
        %v3029 = vsel %vm3020, %v3000, %v3028
        %v3030 = vsel %vm943, %v3015, %v3016
        %v3031 = vsel %vm3020, %v3002, %v3030
        %v3032 = vsel %vm943, %v3016, %v3017
        %v3033 = vsel %vm3020, %v3004, %v3032
        %v3034 = vsel %vm943, %v3017, %v3018
        %v3035 = vsel %vm3020, %v3006, %v3034
        %3044 = vst [vmem:[#allocation3 + $0x640] sm:$0xff] %v3021
        %3045 = vst [vmem:[#allocation3 + $0x648] sm:$0xff] %v3023
        %3046 = vst [vmem:[#allocation3 + $0x650] sm:$0xff] %v3025
        %3047 = vst [vmem:[#allocation3 + $0x658] sm:$0xff] %v3027
        %3048 = vst [vmem:[#allocation3 + $0x660] sm:$0xff] %v3029
        %3049 = vst [vmem:[#allocation3 + $0x668] sm:$0xff] %v3031
        %3050 = vst [vmem:[#allocation3 + $0x670] sm:$0xff] %v3033
        %3051 = vst [vmem:[#allocation3 + $0x678] sm:$0xff] %v3035
        %v3052 = vld [vmem:[#allocation2 + $0x8] sm:$0xff]
        %v3053 = vld [vmem:[#allocation2 + $0x10] sm:$0xff]
        %v3054 = vld [vmem:[#allocation2 + $0x18] sm:$0xff]
        %v3055 = vld [vmem:[#allocation2 + $0x20] sm:$0xff]
        %v3056 = vld [vmem:[#allocation2 + $0x30] sm:$0xff]
        %v3057 = vld [vmem:[#allocation2 + $0x38] sm:$0xff]
        %v3058 = vld [vmem:[#allocation2 + $0x40] sm:$0xff]
        %v3059 = vld [vmem:[#allocation2 + $0x48] sm:$0xff]
        %3060 = vst [vmem:[#allocation3 + $0x680] sm:$0xff] %v3052
        %3061 = vst [vmem:[#allocation3 + $0x688] sm:$0xff] %v3053
        %3062 = vst [vmem:[#allocation3 + $0x690] sm:$0xff] %v3054
        %3063 = vst [vmem:[#allocation3 + $0x698] sm:$0xff] %v3055
        %3064 = vst [vmem:[#allocation3 + $0x6a0] sm:$0xff] %v3056
        %3065 = vst [vmem:[#allocation3 + $0x6a8] sm:$0xff] %v3057
        %3066 = vst [vmem:[#allocation3 + $0x6b0] sm:$0xff] %v3058
        %3067 = vst [vmem:[#allocation3 + $0x6b8] sm:$0xff] %v3059
        %v3068 = vld [vmem:[%s6] sm:$0xff]
        %v3069 = vld [vmem:[%s6 + $0x8] sm:$0xff]
        %v3070 = vld [vmem:[%s6 + $0x10] sm:$0xff]
        %v3071 = vld [vmem:[%s6 + $0x18] sm:$0xff]
        %v3072 = vld [vmem:[%s6 + $0x20] sm:$0xff]
        %v3073 = vld [vmem:[%s6 + $0x28] sm:$0xff]
        %v3074 = vld [vmem:[%s6 + $0x30] sm:$0xff]
        %v3075 = vld [vmem:[%s6 + $0x38] sm:$0xff]
        %v3076 = vld [vmem:[#allocation3] sm:$0xff]
        %v3077 = vld [vmem:[#allocation3 + $0x8] sm:$0xff]
        %v3078 = vld [vmem:[#allocation3 + $0x10] sm:$0xff]
        %v3079 = vld [vmem:[#allocation3 + $0x18] sm:$0xff]
        %v3080 = vld [vmem:[#allocation3 + $0x20] sm:$0xff]
        %v3081 = vld [vmem:[#allocation3 + $0x28] sm:$0xff]
        %v3082 = vld [vmem:[#allocation3 + $0x30] sm:$0xff]
        %v3083 = vld [vmem:[#allocation3 + $0x38] sm:$0xff]
        %v3084 = vld [vmem:[#allocation3 + $0x40] sm:$0xff]
        %v3085 = vld [vmem:[#allocation3 + $0x48] sm:$0xff]
        %v3086 = vld [vmem:[#allocation3 + $0x50] sm:$0xff]
        %v3087 = vld [vmem:[#allocation3 + $0x58] sm:$0xff]
        %v3088 = vld [vmem:[#allocation3 + $0x60] sm:$0xff]
        %v3089 = vld [vmem:[#allocation3 + $0x68] sm:$0xff]
        %v3090 = vld [vmem:[#allocation3 + $0x70] sm:$0xff]
        %v3091 = vld [vmem:[#allocation3 + $0x78] sm:$0xff]
        %v3092 = vld [vmem:[#allocation3 + $0x80] sm:$0xff]
        %v3093 = vld [vmem:[#allocation3 + $0x88] sm:$0xff]
        %v3094 = vld [vmem:[#allocation3 + $0x90] sm:$0xff]
        %v3095 = vld [vmem:[#allocation3 + $0x98] sm:$0xff]
        %v3096 = vld [vmem:[#allocation3 + $0xa0] sm:$0xff]
        %v3097 = vld [vmem:[#allocation3 + $0xa8] sm:$0xff]
        %v3098 = vld [vmem:[#allocation3 + $0xb0] sm:$0xff]
        %v3099 = vld [vmem:[#allocation3 + $0xb8] sm:$0xff]
        %v3100 = vld [vmem:[#allocation3 + $0xc0] sm:$0xff]
        %v3101 = vld [vmem:[#allocation3 + $0xc8] sm:$0xff]
        %v3102 = vld [vmem:[#allocation3 + $0xd0] sm:$0xff]
        %v3103 = vld [vmem:[#allocation3 + $0xd8] sm:$0xff]
        %v3104 = vld [vmem:[#allocation3 + $0xe0] sm:$0xff]
        %v3105 = vld [vmem:[#allocation3 + $0xe8] sm:$0xff]
        %v3106 = vld [vmem:[#allocation3 + $0xf0] sm:$0xff]
        %v3107 = vld [vmem:[#allocation3 + $0xf8] sm:$0xff]
        %v3108 = vld [vmem:[#allocation3 + $0x100] sm:$0xff]
        %v3109 = vld [vmem:[#allocation3 + $0x108] sm:$0xff]
        %v3110 = vld [vmem:[#allocation3 + $0x110] sm:$0xff]
        %v3111 = vld [vmem:[#allocation3 + $0x118] sm:$0xff]
        %v3112 = vld [vmem:[#allocation3 + $0x120] sm:$0xff]
        %v3113 = vld [vmem:[#allocation3 + $0x128] sm:$0xff]
        %v3114 = vld [vmem:[#allocation3 + $0x130] sm:$0xff]
        %v3115 = vld [vmem:[#allocation3 + $0x138] sm:$0xff]
        %v3116 = vld [vmem:[#allocation3 + $0x140] sm:$0xff]
        %v3117 = vld [vmem:[#allocation3 + $0x148] sm:$0xff]
        %v3118 = vld [vmem:[#allocation3 + $0x150] sm:$0xff]
        %v3119 = vld [vmem:[#allocation3 + $0x158] sm:$0xff]
        %v3120 = vld [vmem:[#allocation3 + $0x160] sm:$0xff]
        %v3121 = vld [vmem:[#allocation3 + $0x168] sm:$0xff]
        %v3122 = vld [vmem:[#allocation3 + $0x170] sm:$0xff]
        %v3123 = vld [vmem:[#allocation3 + $0x178] sm:$0xff]
        %v3124 = vld [vmem:[#allocation3 + $0x180] sm:$0xff]
        %v3125 = vld [vmem:[#allocation3 + $0x188] sm:$0xff]
        %v3126 = vld [vmem:[#allocation3 + $0x190] sm:$0xff]
        %v3127 = vld [vmem:[#allocation3 + $0x198] sm:$0xff]
        %v3128 = vld [vmem:[#allocation3 + $0x1a0] sm:$0xff]
        %v3129 = vld [vmem:[#allocation3 + $0x1a8] sm:$0xff]
        %v3130 = vld [vmem:[#allocation3 + $0x1b0] sm:$0xff]
        %v3131 = vld [vmem:[#allocation3 + $0x1b8] sm:$0xff]
        %v3132 = vld [vmem:[#allocation3 + $0x1c0] sm:$0xff]
        %v3133 = vld [vmem:[#allocation3 + $0x1c8] sm:$0xff]
        %v3134 = vld [vmem:[#allocation3 + $0x1d0] sm:$0xff]
        %v3135 = vld [vmem:[#allocation3 + $0x1d8] sm:$0xff]
        %v3136 = vld [vmem:[#allocation3 + $0x1e0] sm:$0xff]
        %v3137 = vld [vmem:[#allocation3 + $0x1e8] sm:$0xff]
        %v3138 = vld [vmem:[#allocation3 + $0x1f0] sm:$0xff]
        %v3139 = vld [vmem:[#allocation3 + $0x1f8] sm:$0xff]
        %v3140 = vld [vmem:[#allocation3 + $0x200] sm:$0xff]
        %v3141 = vld [vmem:[#allocation3 + $0x208] sm:$0xff]
        %v3142 = vld [vmem:[#allocation3 + $0x210] sm:$0xff]
        %v3143 = vld [vmem:[#allocation3 + $0x218] sm:$0xff]
        %v3144 = vld [vmem:[#allocation3 + $0x220] sm:$0xff]
        %v3145 = vld [vmem:[#allocation3 + $0x228] sm:$0xff]
        %v3146 = vld [vmem:[#allocation3 + $0x230] sm:$0xff]
        %v3147 = vld [vmem:[#allocation3 + $0x238] sm:$0xff]
        %v3148 = vld [vmem:[#allocation3 + $0x240] sm:$0xff]
        %v3149 = vld [vmem:[#allocation3 + $0x248] sm:$0xff]
        %v3150 = vld [vmem:[#allocation3 + $0x250] sm:$0xff]
        %v3151 = vld [vmem:[#allocation3 + $0x258] sm:$0xff]
        %v3152 = vld [vmem:[#allocation3 + $0x260] sm:$0xff]
        %v3153 = vld [vmem:[#allocation3 + $0x268] sm:$0xff]
        %v3154 = vld [vmem:[#allocation3 + $0x270] sm:$0xff]
        %v3155 = vld [vmem:[#allocation3 + $0x278] sm:$0xff]
        %v3156 = vld [vmem:[#allocation3 + $0x280] sm:$0xff]
        %v3157 = vld [vmem:[#allocation3 + $0x288] sm:$0xff]
        %v3158 = vld [vmem:[#allocation3 + $0x290] sm:$0xff]
        %v3159 = vld [vmem:[#allocation3 + $0x298] sm:$0xff]
        %v3160 = vld [vmem:[#allocation3 + $0x2a0] sm:$0xff]
        %v3161 = vld [vmem:[#allocation3 + $0x2a8] sm:$0xff]
        %v3162 = vld [vmem:[#allocation3 + $0x2b0] sm:$0xff]
        %v3163 = vld [vmem:[#allocation3 + $0x2b8] sm:$0xff]
        %v3164 = vld [vmem:[#allocation3 + $0x2c0] sm:$0xff]
        %v3165 = vld [vmem:[#allocation3 + $0x2c8] sm:$0xff]
        %v3166 = vld [vmem:[#allocation3 + $0x2d0] sm:$0xff]
        %v3167 = vld [vmem:[#allocation3 + $0x2d8] sm:$0xff]
        %v3168 = vld [vmem:[#allocation3 + $0x2e0] sm:$0xff]
        %v3169 = vld [vmem:[#allocation3 + $0x2e8] sm:$0xff]
        %v3170 = vld [vmem:[#allocation3 + $0x2f0] sm:$0xff]
        %v3171 = vld [vmem:[#allocation3 + $0x2f8] sm:$0xff]
        %v3172 = vld [vmem:[#allocation3 + $0x300] sm:$0xff]
        %v3173 = vld [vmem:[#allocation3 + $0x308] sm:$0xff]
        %v3174 = vld [vmem:[#allocation3 + $0x310] sm:$0xff]
        %v3175 = vld [vmem:[#allocation3 + $0x318] sm:$0xff]
        %v3176 = vld [vmem:[#allocation3 + $0x320] sm:$0xff]
        %v3177 = vld [vmem:[#allocation3 + $0x328] sm:$0xff]
        %v3178 = vld [vmem:[#allocation3 + $0x330] sm:$0xff]
        %v3179 = vld [vmem:[#allocation3 + $0x338] sm:$0xff]
        %v3180 = vld [vmem:[#allocation3 + $0x340] sm:$0xff]
        %v3181 = vld [vmem:[#allocation3 + $0x348] sm:$0xff]
        %v3182 = vld [vmem:[#allocation3 + $0x350] sm:$0xff]
        %v3183 = vld [vmem:[#allocation3 + $0x358] sm:$0xff]
        %v3184 = vld [vmem:[#allocation3 + $0x360] sm:$0xff]
        %v3185 = vld [vmem:[#allocation3 + $0x368] sm:$0xff]
        %v3186 = vld [vmem:[#allocation3 + $0x370] sm:$0xff]
        %v3187 = vld [vmem:[#allocation3 + $0x378] sm:$0xff]
        %v3188 = vld [vmem:[#allocation3 + $0x380] sm:$0xff]
        %v3189 = vld [vmem:[#allocation3 + $0x388] sm:$0xff]
        %v3190 = vld [vmem:[#allocation3 + $0x390] sm:$0xff]
        %v3191 = vld [vmem:[#allocation3 + $0x398] sm:$0xff]
        %v3192 = vld [vmem:[#allocation3 + $0x3a0] sm:$0xff]
        %v3193 = vld [vmem:[#allocation3 + $0x3a8] sm:$0xff]
        %v3194 = vld [vmem:[#allocation3 + $0x3b0] sm:$0xff]
        %v3195 = vld [vmem:[#allocation3 + $0x3b8] sm:$0xff]
        %v3196 = vld [vmem:[#allocation3 + $0x3c0] sm:$0xff]
        %v3197 = vld [vmem:[#allocation3 + $0x3c8] sm:$0xff]
        %v3198 = vld [vmem:[#allocation3 + $0x3d0] sm:$0xff]
        %v3199 = vld [vmem:[#allocation3 + $0x3d8] sm:$0xff]
        %v3200 = vld [vmem:[#allocation3 + $0x3e0] sm:$0xff]
        %v3201 = vld [vmem:[#allocation3 + $0x3e8] sm:$0xff]
        %v3202 = vld [vmem:[#allocation3 + $0x3f0] sm:$0xff]
        %v3203 = vld [vmem:[#allocation3 + $0x3f8] sm:$0xff]
        %v3204 = vld [vmem:[#allocation3 + $0x400] sm:$0xff]
        %v3205 = vld [vmem:[#allocation3 + $0x408] sm:$0xff]
        %v3206 = vld [vmem:[#allocation3 + $0x410] sm:$0xff]
        %v3207 = vld [vmem:[#allocation3 + $0x418] sm:$0xff]
        %v3208 = vld [vmem:[#allocation3 + $0x420] sm:$0xff]
        %v3209 = vld [vmem:[#allocation3 + $0x428] sm:$0xff]
        %v3210 = vld [vmem:[#allocation3 + $0x430] sm:$0xff]
        %v3211 = vld [vmem:[#allocation3 + $0x438] sm:$0xff]
        %v3212 = vld [vmem:[#allocation3 + $0x440] sm:$0xff]
        %v3213 = vld [vmem:[#allocation3 + $0x448] sm:$0xff]
        %v3214 = vld [vmem:[#allocation3 + $0x450] sm:$0xff]
        %v3215 = vld [vmem:[#allocation3 + $0x458] sm:$0xff]
        %v3216 = vld [vmem:[#allocation3 + $0x460] sm:$0xff]
        %v3217 = vld [vmem:[#allocation3 + $0x468] sm:$0xff]
        %v3218 = vld [vmem:[#allocation3 + $0x470] sm:$0xff]
        %v3219 = vld [vmem:[#allocation3 + $0x478] sm:$0xff]
        %v3220 = vld [vmem:[#allocation3 + $0x480] sm:$0xff]
        %v3221 = vld [vmem:[#allocation3 + $0x488] sm:$0xff]
        %v3222 = vld [vmem:[#allocation3 + $0x490] sm:$0xff]
        %v3223 = vld [vmem:[#allocation3 + $0x498] sm:$0xff]
        %v3224 = vld [vmem:[#allocation3 + $0x4a0] sm:$0xff]
        %v3225 = vld [vmem:[#allocation3 + $0x4a8] sm:$0xff]
        %v3226 = vld [vmem:[#allocation3 + $0x4b0] sm:$0xff]
        %v3227 = vld [vmem:[#allocation3 + $0x4b8] sm:$0xff]
        %v3228 = vld [vmem:[#allocation3 + $0x4c0] sm:$0xff]
        %v3229 = vld [vmem:[#allocation3 + $0x4c8] sm:$0xff]
        %v3230 = vld [vmem:[#allocation3 + $0x4d0] sm:$0xff]
        %v3231 = vld [vmem:[#allocation3 + $0x4d8] sm:$0xff]
        %v3232 = vld [vmem:[#allocation3 + $0x4e0] sm:$0xff]
        %v3233 = vld [vmem:[#allocation3 + $0x4e8] sm:$0xff]
        %v3234 = vld [vmem:[#allocation3 + $0x4f0] sm:$0xff]
        %v3235 = vld [vmem:[#allocation3 + $0x4f8] sm:$0xff]
        %v3236 = vld [vmem:[#allocation3 + $0x500] sm:$0xff]
        %v3237 = vld [vmem:[#allocation3 + $0x508] sm:$0xff]
        %v3238 = vld [vmem:[#allocation3 + $0x510] sm:$0xff]
        %v3239 = vld [vmem:[#allocation3 + $0x518] sm:$0xff]
        %v3240 = vld [vmem:[#allocation3 + $0x520] sm:$0xff]
        %v3241 = vld [vmem:[#allocation3 + $0x528] sm:$0xff]
        %v3242 = vld [vmem:[#allocation3 + $0x530] sm:$0xff]
        %v3243 = vld [vmem:[#allocation3 + $0x538] sm:$0xff]
        %v3244 = vld [vmem:[#allocation3 + $0x540] sm:$0xff]
        %v3245 = vld [vmem:[#allocation3 + $0x548] sm:$0xff]
        %v3246 = vld [vmem:[#allocation3 + $0x550] sm:$0xff]
        %v3247 = vld [vmem:[#allocation3 + $0x558] sm:$0xff]
        %v3248 = vld [vmem:[#allocation3 + $0x560] sm:$0xff]
        %v3249 = vld [vmem:[#allocation3 + $0x568] sm:$0xff]
        %v3250 = vld [vmem:[#allocation3 + $0x570] sm:$0xff]
        %v3251 = vld [vmem:[#allocation3 + $0x578] sm:$0xff]
        %v3252 = vld [vmem:[#allocation3 + $0x580] sm:$0xff]
        %v3253 = vld [vmem:[#allocation3 + $0x588] sm:$0xff]
        %v3254 = vld [vmem:[#allocation3 + $0x590] sm:$0xff]
        %v3255 = vld [vmem:[#allocation3 + $0x598] sm:$0xff]
        %v3256 = vld [vmem:[#allocation3 + $0x5a0] sm:$0xff]
        %v3257 = vld [vmem:[#allocation3 + $0x5a8] sm:$0xff]
        %v3258 = vld [vmem:[#allocation3 + $0x5b0] sm:$0xff]
        %v3259 = vld [vmem:[#allocation3 + $0x5b8] sm:$0xff]
        %v3260 = vld [vmem:[#allocation3 + $0x5c0] sm:$0xff]
        %v3261 = vld [vmem:[#allocation3 + $0x5c8] sm:$0xff]
        %v3262 = vld [vmem:[#allocation3 + $0x5d0] sm:$0xff]
        %v3263 = vld [vmem:[#allocation3 + $0x5d8] sm:$0xff]
        %v3264 = vld [vmem:[#allocation3 + $0x5e0] sm:$0xff]
        %v3265 = vld [vmem:[#allocation3 + $0x5e8] sm:$0xff]
        %v3266 = vld [vmem:[#allocation3 + $0x5f0] sm:$0xff]
        %v3267 = vld [vmem:[#allocation3 + $0x5f8] sm:$0xff]
        %v3268 = vld [vmem:[#allocation3 + $0x600] sm:$0xff]
        %v3269 = vld [vmem:[#allocation3 + $0x608] sm:$0xff]
        %v3270 = vld [vmem:[#allocation3 + $0x610] sm:$0xff]
        %v3271 = vld [vmem:[#allocation3 + $0x618] sm:$0xff]
        %v3272 = vld [vmem:[#allocation3 + $0x620] sm:$0xff]
        %v3273 = vld [vmem:[#allocation3 + $0x628] sm:$0xff]
        %v3274 = vld [vmem:[#allocation3 + $0x630] sm:$0xff]
        %v3275 = vld [vmem:[#allocation3 + $0x638] sm:$0xff]
        %v3276 = vld [vmem:[#allocation3 + $0x640] sm:$0xff]
        %v3277 = vld [vmem:[#allocation3 + $0x648] sm:$0xff]
        %v3278 = vld [vmem:[#allocation3 + $0x650] sm:$0xff]
        %v3279 = vld [vmem:[#allocation3 + $0x658] sm:$0xff]
        %v3280 = vld [vmem:[#allocation3 + $0x660] sm:$0xff]
        %v3281 = vld [vmem:[#allocation3 + $0x668] sm:$0xff]
        %v3282 = vld [vmem:[#allocation3 + $0x670] sm:$0xff]
        %v3283 = vld [vmem:[#allocation3 + $0x678] sm:$0xff]
        %v3284 = vld [vmem:[#allocation3 + $0x680] sm:$0xff]
        %v3285 = vld [vmem:[#allocation3 + $0x688] sm:$0xff]
        %v3286 = vld [vmem:[#allocation3 + $0x690] sm:$0xff]
        %v3287 = vld [vmem:[#allocation3 + $0x698] sm:$0xff]
        %v3288 = vld [vmem:[#allocation3 + $0x6a0] sm:$0xff]
        %v3289 = vld [vmem:[#allocation3 + $0x6a8] sm:$0xff]
        %v3290 = vld [vmem:[#allocation3 + $0x6b0] sm:$0xff]
        %v3291 = vld [vmem:[#allocation3 + $0x6b8] sm:$0xff]
        %v3292 = vld [vmem:[%s7] sm:$0xff]
        %v3293 = vld [vmem:[%s7 + $0x8] sm:$0xff]
        %v3294 = vld [vmem:[%s7 + $0x10] sm:$0xff]
        %v3295 = vld [vmem:[%s7 + $0x18] sm:$0xff]
        %3297 = vset.pattern.permute.xlu0 0
        %3298 = vperm.xlu0 %3297, %v3292
        %v3299 = vpop.permute.xlu0 %3298
        %3302 = vset.pattern.permute.xlu0 0
        %3303 = vperm.xlu0 %3302, %v3293
        %v3304 = vpop.permute.xlu0 %3303
        %3307 = vset.pattern.permute.xlu0 0
        %3308 = vperm.xlu0 %3307, %v3294
        %v3309 = vpop.permute.xlu0 %3308
        %3312 = vset.pattern.permute.xlu0 0
        %3313 = vperm.xlu0 %3312, %v3295
        %v3314 = vpop.permute.xlu0 %3313
        %v3324 = vunpack.c.l.b16 %v3068
        %v3325 = vunpack.c.h.b16 %v3068
        %v3326 = vunpack.c.l.b16 %v3069
        %v3327 = vunpack.c.h.b16 %v3069
        %v3328 = vunpack.c.l.b16 %v3070
        %v3329 = vunpack.c.h.b16 %v3070
        %v3330 = vunpack.c.l.b16 %v3071
        %v3331 = vunpack.c.h.b16 %v3071
        %v3332 = vunpack.c.l.b16 %v3072
        %v3333 = vunpack.c.h.b16 %v3072
        %v3334 = vunpack.c.l.b16 %v3073
        %v3335 = vunpack.c.h.b16 %v3073
        %v3336 = vunpack.c.l.b16 %v3074
        %v3337 = vunpack.c.h.b16 %v3074
        %v3338 = vunpack.c.l.b16 %v3075
        %v3339 = vunpack.c.h.b16 %v3075
        %v3340 = vpack.c.b16 %v3328, %v3324
        %v3341 = vpack.c.b16 %v3329, %v3325
        %v3342 = vpack.c.b16 %v3330, %v3326
        %v3343 = vpack.c.b16 %v3331, %v3327
        %v3344 = vpack.c.b16 %v3336, %v3332
        %v3345 = vpack.c.b16 %v3337, %v3333
        %v3346 = vpack.c.b16 %v3338, %v3334
        %v3347 = vpack.c.b16 %v3339, %v3335
        %v3570 = vunpack.c.l.b16 %v3076
        %v3571 = vunpack.c.h.b16 %v3076
        %v3572 = vunpack.c.l.b16 %v3077
        %v3573 = vunpack.c.h.b16 %v3077
        %v3574 = vunpack.c.l.b16 %v3078
        %v3575 = vunpack.c.h.b16 %v3078
        %v3576 = vunpack.c.l.b16 %v3079
        %v3577 = vunpack.c.h.b16 %v3079
        %v3578 = vunpack.c.l.b16 %v3080
        %v3579 = vunpack.c.h.b16 %v3080
        %v3580 = vunpack.c.l.b16 %v3081
        %v3581 = vunpack.c.h.b16 %v3081
        %v3582 = vunpack.c.l.b16 %v3082
        %v3583 = vunpack.c.h.b16 %v3082
        %v3584 = vunpack.c.l.b16 %v3083
        %v3585 = vunpack.c.h.b16 %v3083
        %v3586 = vunpack.c.l.b16 %v3084
        %v3587 = vunpack.c.h.b16 %v3084
        %v3588 = vunpack.c.l.b16 %v3085
        %v3589 = vunpack.c.h.b16 %v3085
        %v3590 = vunpack.c.l.b16 %v3086
        %v3591 = vunpack.c.h.b16 %v3086
        %v3592 = vunpack.c.l.b16 %v3087
        %v3593 = vunpack.c.h.b16 %v3087
        %v3594 = vunpack.c.l.b16 %v3088
        %v3595 = vunpack.c.h.b16 %v3088
        %v3596 = vunpack.c.l.b16 %v3089
        %v3597 = vunpack.c.h.b16 %v3089
        %v3598 = vunpack.c.l.b16 %v3090
        %v3599 = vunpack.c.h.b16 %v3090
        %v3600 = vunpack.c.l.b16 %v3091
        %v3601 = vunpack.c.h.b16 %v3091
        %v3602 = vunpack.c.l.b16 %v3092
        %v3603 = vunpack.c.h.b16 %v3092
        %v3604 = vunpack.c.l.b16 %v3093
        %v3605 = vunpack.c.h.b16 %v3093
        %v3606 = vunpack.c.l.b16 %v3094
        %v3607 = vunpack.c.h.b16 %v3094
        %v3608 = vunpack.c.l.b16 %v3095
        %v3609 = vunpack.c.h.b16 %v3095
        %v3610 = vunpack.c.l.b16 %v3096
        %v3611 = vunpack.c.h.b16 %v3096
        %v3612 = vunpack.c.l.b16 %v3097
        %v3613 = vunpack.c.h.b16 %v3097
        %v3614 = vunpack.c.l.b16 %v3098
        %v3615 = vunpack.c.h.b16 %v3098
        %v3616 = vunpack.c.l.b16 %v3099
        %v3617 = vunpack.c.h.b16 %v3099
        %v3618 = vunpack.c.l.b16 %v3100
        %v3619 = vunpack.c.h.b16 %v3100
        %v3620 = vunpack.c.l.b16 %v3101
        %v3621 = vunpack.c.h.b16 %v3101
        %v3622 = vunpack.c.l.b16 %v3102
        %v3623 = vunpack.c.h.b16 %v3102
        %v3624 = vunpack.c.l.b16 %v3103
        %v3625 = vunpack.c.h.b16 %v3103
        %v3626 = vunpack.c.l.b16 %v3104
        %v3627 = vunpack.c.h.b16 %v3104
        %v3628 = vunpack.c.l.b16 %v3105
        %v3629 = vunpack.c.h.b16 %v3105
        %v3630 = vunpack.c.l.b16 %v3106
        %v3631 = vunpack.c.h.b16 %v3106
        %v3632 = vunpack.c.l.b16 %v3107
        %v3633 = vunpack.c.h.b16 %v3107
        %v3634 = vunpack.c.l.b16 %v3108
        %v3635 = vunpack.c.h.b16 %v3108
        %v3636 = vunpack.c.l.b16 %v3109
        %v3637 = vunpack.c.h.b16 %v3109
        %v3638 = vunpack.c.l.b16 %v3110
        %v3639 = vunpack.c.h.b16 %v3110
        %v3640 = vunpack.c.l.b16 %v3111
        %v3641 = vunpack.c.h.b16 %v3111
        %v3642 = vunpack.c.l.b16 %v3112
        %v3643 = vunpack.c.h.b16 %v3112
        %v3644 = vunpack.c.l.b16 %v3113
        %v3645 = vunpack.c.h.b16 %v3113
        %v3646 = vunpack.c.l.b16 %v3114
        %v3647 = vunpack.c.h.b16 %v3114
        %v3648 = vunpack.c.l.b16 %v3115
        %v3649 = vunpack.c.h.b16 %v3115
        %v3650 = vunpack.c.l.b16 %v3116
        %v3651 = vunpack.c.h.b16 %v3116
        %v3652 = vunpack.c.l.b16 %v3117
        %v3653 = vunpack.c.h.b16 %v3117
        %v3654 = vunpack.c.l.b16 %v3118
        %v3655 = vunpack.c.h.b16 %v3118
        %v3656 = vunpack.c.l.b16 %v3119
        %v3657 = vunpack.c.h.b16 %v3119
        %v3658 = vunpack.c.l.b16 %v3120
        %v3659 = vunpack.c.h.b16 %v3120
        %v3660 = vunpack.c.l.b16 %v3121
        %v3661 = vunpack.c.h.b16 %v3121
        %v3662 = vunpack.c.l.b16 %v3122
        %v3663 = vunpack.c.h.b16 %v3122
        %v3664 = vunpack.c.l.b16 %v3123
        %v3665 = vunpack.c.h.b16 %v3123
        %v3666 = vunpack.c.l.b16 %v3124
        %v3667 = vunpack.c.h.b16 %v3124
        %v3668 = vunpack.c.l.b16 %v3125
        %v3669 = vunpack.c.h.b16 %v3125
        %v3670 = vunpack.c.l.b16 %v3126
        %v3671 = vunpack.c.h.b16 %v3126
        %v3672 = vunpack.c.l.b16 %v3127
        %v3673 = vunpack.c.h.b16 %v3127
        %v3674 = vunpack.c.l.b16 %v3128
        %v3675 = vunpack.c.h.b16 %v3128
        %v3676 = vunpack.c.l.b16 %v3129
        %v3677 = vunpack.c.h.b16 %v3129
        %v3678 = vunpack.c.l.b16 %v3130
        %v3679 = vunpack.c.h.b16 %v3130
        %v3680 = vunpack.c.l.b16 %v3131
        %v3681 = vunpack.c.h.b16 %v3131
        %v3682 = vunpack.c.l.b16 %v3132
        %v3683 = vunpack.c.h.b16 %v3132
        %v3684 = vunpack.c.l.b16 %v3133
        %v3685 = vunpack.c.h.b16 %v3133
        %v3686 = vunpack.c.l.b16 %v3134
        %v3687 = vunpack.c.h.b16 %v3134
        %v3688 = vunpack.c.l.b16 %v3135
        %v3689 = vunpack.c.h.b16 %v3135
        %v3690 = vunpack.c.l.b16 %v3136
        %v3691 = vunpack.c.h.b16 %v3136
        %v3692 = vunpack.c.l.b16 %v3137
        %v3693 = vunpack.c.h.b16 %v3137
        %v3694 = vunpack.c.l.b16 %v3138
        %v3695 = vunpack.c.h.b16 %v3138
        %v3696 = vunpack.c.l.b16 %v3139
        %v3697 = vunpack.c.h.b16 %v3139
        %v3698 = vunpack.c.l.b16 %v3140
        %v3699 = vunpack.c.h.b16 %v3140
        %v3700 = vunpack.c.l.b16 %v3141
        %v3701 = vunpack.c.h.b16 %v3141
        %v3702 = vunpack.c.l.b16 %v3142
        %v3703 = vunpack.c.h.b16 %v3142
        %v3704 = vunpack.c.l.b16 %v3143
        %v3705 = vunpack.c.h.b16 %v3143
        %v3706 = vunpack.c.l.b16 %v3144
        %v3707 = vunpack.c.h.b16 %v3144
        %v3708 = vunpack.c.l.b16 %v3145
        %v3709 = vunpack.c.h.b16 %v3145
        %v3710 = vunpack.c.l.b16 %v3146
        %v3711 = vunpack.c.h.b16 %v3146
        %v3712 = vunpack.c.l.b16 %v3147
        %v3713 = vunpack.c.h.b16 %v3147
        %v3714 = vunpack.c.l.b16 %v3148
        %v3715 = vunpack.c.h.b16 %v3148
        %v3716 = vunpack.c.l.b16 %v3149
        %v3717 = vunpack.c.h.b16 %v3149
        %v3718 = vunpack.c.l.b16 %v3150
        %v3719 = vunpack.c.h.b16 %v3150
        %v3720 = vunpack.c.l.b16 %v3151
        %v3721 = vunpack.c.h.b16 %v3151
        %v3722 = vunpack.c.l.b16 %v3152
        %v3723 = vunpack.c.h.b16 %v3152
        %v3724 = vunpack.c.l.b16 %v3153
        %v3725 = vunpack.c.h.b16 %v3153
        %v3726 = vunpack.c.l.b16 %v3154
        %v3727 = vunpack.c.h.b16 %v3154
        %v3728 = vunpack.c.l.b16 %v3155
        %v3729 = vunpack.c.h.b16 %v3155
        %v3730 = vunpack.c.l.b16 %v3156
        %v3731 = vunpack.c.h.b16 %v3156
        %v3732 = vunpack.c.l.b16 %v3157
        %v3733 = vunpack.c.h.b16 %v3157
        %v3734 = vunpack.c.l.b16 %v3158
        %v3735 = vunpack.c.h.b16 %v3158
        %v3736 = vunpack.c.l.b16 %v3159
        %v3737 = vunpack.c.h.b16 %v3159
        %v3738 = vunpack.c.l.b16 %v3160
        %v3739 = vunpack.c.h.b16 %v3160
        %v3740 = vunpack.c.l.b16 %v3161
        %v3741 = vunpack.c.h.b16 %v3161
        %v3742 = vunpack.c.l.b16 %v3162
        %v3743 = vunpack.c.h.b16 %v3162
        %v3744 = vunpack.c.l.b16 %v3163
        %v3745 = vunpack.c.h.b16 %v3163
        %v3746 = vunpack.c.l.b16 %v3164
        %v3747 = vunpack.c.h.b16 %v3164
        %v3748 = vunpack.c.l.b16 %v3165
        %v3749 = vunpack.c.h.b16 %v3165
        %v3750 = vunpack.c.l.b16 %v3166
        %v3751 = vunpack.c.h.b16 %v3166
        %v3752 = vunpack.c.l.b16 %v3167
        %v3753 = vunpack.c.h.b16 %v3167
        %v3754 = vunpack.c.l.b16 %v3168
        %v3755 = vunpack.c.h.b16 %v3168
        %v3756 = vunpack.c.l.b16 %v3169
        %v3757 = vunpack.c.h.b16 %v3169
        %v3758 = vunpack.c.l.b16 %v3170
        %v3759 = vunpack.c.h.b16 %v3170
        %v3760 = vunpack.c.l.b16 %v3171
        %v3761 = vunpack.c.h.b16 %v3171
        %v3762 = vunpack.c.l.b16 %v3172
        %v3763 = vunpack.c.h.b16 %v3172
        %v3764 = vunpack.c.l.b16 %v3173
        %v3765 = vunpack.c.h.b16 %v3173
        %v3766 = vunpack.c.l.b16 %v3174
        %v3767 = vunpack.c.h.b16 %v3174
        %v3768 = vunpack.c.l.b16 %v3175
        %v3769 = vunpack.c.h.b16 %v3175
        %v3770 = vunpack.c.l.b16 %v3176
        %v3771 = vunpack.c.h.b16 %v3176
        %v3772 = vunpack.c.l.b16 %v3177
        %v3773 = vunpack.c.h.b16 %v3177
        %v3774 = vunpack.c.l.b16 %v3178
        %v3775 = vunpack.c.h.b16 %v3178
        %v3776 = vunpack.c.l.b16 %v3179
        %v3777 = vunpack.c.h.b16 %v3179
        %v3778 = vunpack.c.l.b16 %v3180
        %v3779 = vunpack.c.h.b16 %v3180
        %v3780 = vunpack.c.l.b16 %v3181
        %v3781 = vunpack.c.h.b16 %v3181
        %v3782 = vunpack.c.l.b16 %v3182
        %v3783 = vunpack.c.h.b16 %v3182
        %v3784 = vunpack.c.l.b16 %v3183
        %v3785 = vunpack.c.h.b16 %v3183
        %v3786 = vunpack.c.l.b16 %v3184
        %v3787 = vunpack.c.h.b16 %v3184
        %v3788 = vunpack.c.l.b16 %v3185
        %v3789 = vunpack.c.h.b16 %v3185
        %v3790 = vunpack.c.l.b16 %v3186
        %v3791 = vunpack.c.h.b16 %v3186
        %v3792 = vunpack.c.l.b16 %v3187
        %v3793 = vunpack.c.h.b16 %v3187
        %v3794 = vunpack.c.l.b16 %v3188
        %v3795 = vunpack.c.h.b16 %v3188
        %v3796 = vunpack.c.l.b16 %v3189
        %v3797 = vunpack.c.h.b16 %v3189
        %v3798 = vunpack.c.l.b16 %v3190
        %v3799 = vunpack.c.h.b16 %v3190
        %v3800 = vunpack.c.l.b16 %v3191
        %v3801 = vunpack.c.h.b16 %v3191
        %v3802 = vunpack.c.l.b16 %v3192
        %v3803 = vunpack.c.h.b16 %v3192
        %v3804 = vunpack.c.l.b16 %v3193
        %v3805 = vunpack.c.h.b16 %v3193
        %v3806 = vunpack.c.l.b16 %v3194
        %v3807 = vunpack.c.h.b16 %v3194
        %v3808 = vunpack.c.l.b16 %v3195
        %v3809 = vunpack.c.h.b16 %v3195
        %v3810 = vunpack.c.l.b16 %v3196
        %v3811 = vunpack.c.h.b16 %v3196
        %v3812 = vunpack.c.l.b16 %v3197
        %v3813 = vunpack.c.h.b16 %v3197
        %v3814 = vunpack.c.l.b16 %v3198
        %v3815 = vunpack.c.h.b16 %v3198
        %v3816 = vunpack.c.l.b16 %v3199
        %v3817 = vunpack.c.h.b16 %v3199
        %v3818 = vunpack.c.l.b16 %v3200
        %v3819 = vunpack.c.h.b16 %v3200
        %v3820 = vunpack.c.l.b16 %v3201
        %v3821 = vunpack.c.h.b16 %v3201
        %v3822 = vunpack.c.l.b16 %v3202
        %v3823 = vunpack.c.h.b16 %v3202
        %v3824 = vunpack.c.l.b16 %v3203
        %v3825 = vunpack.c.h.b16 %v3203
        %v3826 = vunpack.c.l.b16 %v3204
        %v3827 = vunpack.c.h.b16 %v3204
        %v3828 = vunpack.c.l.b16 %v3205
        %v3829 = vunpack.c.h.b16 %v3205
        %v3830 = vunpack.c.l.b16 %v3206
        %v3831 = vunpack.c.h.b16 %v3206
        %v3832 = vunpack.c.l.b16 %v3207
        %v3833 = vunpack.c.h.b16 %v3207
        %v3834 = vunpack.c.l.b16 %v3208
        %v3835 = vunpack.c.h.b16 %v3208
        %v3836 = vunpack.c.l.b16 %v3209
        %v3837 = vunpack.c.h.b16 %v3209
        %v3838 = vunpack.c.l.b16 %v3210
        %v3839 = vunpack.c.h.b16 %v3210
        %v3840 = vunpack.c.l.b16 %v3211
        %v3841 = vunpack.c.h.b16 %v3211
        %v3842 = vunpack.c.l.b16 %v3212
        %v3843 = vunpack.c.h.b16 %v3212
        %v3844 = vunpack.c.l.b16 %v3213
        %v3845 = vunpack.c.h.b16 %v3213
        %v3846 = vunpack.c.l.b16 %v3214
        %v3847 = vunpack.c.h.b16 %v3214
        %v3848 = vunpack.c.l.b16 %v3215
        %v3849 = vunpack.c.h.b16 %v3215
        %v3850 = vunpack.c.l.b16 %v3216
        %v3851 = vunpack.c.h.b16 %v3216
        %v3852 = vunpack.c.l.b16 %v3217
        %v3853 = vunpack.c.h.b16 %v3217
        %v3854 = vunpack.c.l.b16 %v3218
        %v3855 = vunpack.c.h.b16 %v3218
        %v3856 = vunpack.c.l.b16 %v3219
        %v3857 = vunpack.c.h.b16 %v3219
        %v3858 = vunpack.c.l.b16 %v3220
        %v3859 = vunpack.c.h.b16 %v3220
        %v3860 = vunpack.c.l.b16 %v3221
        %v3861 = vunpack.c.h.b16 %v3221
        %v3862 = vunpack.c.l.b16 %v3222
        %v3863 = vunpack.c.h.b16 %v3222
        %v3864 = vunpack.c.l.b16 %v3223
        %v3865 = vunpack.c.h.b16 %v3223
        %v3866 = vunpack.c.l.b16 %v3224
        %v3867 = vunpack.c.h.b16 %v3224
        %v3868 = vunpack.c.l.b16 %v3225
        %v3869 = vunpack.c.h.b16 %v3225
        %v3870 = vunpack.c.l.b16 %v3226
        %v3871 = vunpack.c.h.b16 %v3226
        %v3872 = vunpack.c.l.b16 %v3227
        %v3873 = vunpack.c.h.b16 %v3227
        %v3874 = vunpack.c.l.b16 %v3228
        %v3875 = vunpack.c.h.b16 %v3228
        %v3876 = vunpack.c.l.b16 %v3229
        %v3877 = vunpack.c.h.b16 %v3229
        %v3878 = vunpack.c.l.b16 %v3230
        %v3879 = vunpack.c.h.b16 %v3230
        %v3880 = vunpack.c.l.b16 %v3231
        %v3881 = vunpack.c.h.b16 %v3231
        %v3882 = vunpack.c.l.b16 %v3232
        %v3883 = vunpack.c.h.b16 %v3232
        %v3884 = vunpack.c.l.b16 %v3233
        %v3885 = vunpack.c.h.b16 %v3233
        %v3886 = vunpack.c.l.b16 %v3234
        %v3887 = vunpack.c.h.b16 %v3234
        %v3888 = vunpack.c.l.b16 %v3235
        %v3889 = vunpack.c.h.b16 %v3235
        %v3890 = vunpack.c.l.b16 %v3236
        %v3891 = vunpack.c.h.b16 %v3236
        %v3892 = vunpack.c.l.b16 %v3237
        %v3893 = vunpack.c.h.b16 %v3237
        %v3894 = vunpack.c.l.b16 %v3238
        %v3895 = vunpack.c.h.b16 %v3238
        %v3896 = vunpack.c.l.b16 %v3239
        %v3897 = vunpack.c.h.b16 %v3239
        %v3898 = vunpack.c.l.b16 %v3240
        %v3899 = vunpack.c.h.b16 %v3240
        %v3900 = vunpack.c.l.b16 %v3241
        %v3901 = vunpack.c.h.b16 %v3241
        %v3902 = vunpack.c.l.b16 %v3242
        %v3903 = vunpack.c.h.b16 %v3242
        %v3904 = vunpack.c.l.b16 %v3243
        %v3905 = vunpack.c.h.b16 %v3243
        %v3906 = vunpack.c.l.b16 %v3244
        %v3907 = vunpack.c.h.b16 %v3244
        %v3908 = vunpack.c.l.b16 %v3245
        %v3909 = vunpack.c.h.b16 %v3245
        %v3910 = vunpack.c.l.b16 %v3246
        %v3911 = vunpack.c.h.b16 %v3246
        %v3912 = vunpack.c.l.b16 %v3247
        %v3913 = vunpack.c.h.b16 %v3247
        %v3914 = vunpack.c.l.b16 %v3248
        %v3915 = vunpack.c.h.b16 %v3248
        %v3916 = vunpack.c.l.b16 %v3249
        %v3917 = vunpack.c.h.b16 %v3249
        %v3918 = vunpack.c.l.b16 %v3250
        %v3919 = vunpack.c.h.b16 %v3250
        %v3920 = vunpack.c.l.b16 %v3251
        %v3921 = vunpack.c.h.b16 %v3251
        %v3922 = vunpack.c.l.b16 %v3252
        %v3923 = vunpack.c.h.b16 %v3252
        %v3924 = vunpack.c.l.b16 %v3253
        %v3925 = vunpack.c.h.b16 %v3253
        %v3926 = vunpack.c.l.b16 %v3254
        %v3927 = vunpack.c.h.b16 %v3254
        %v3928 = vunpack.c.l.b16 %v3255
        %v3929 = vunpack.c.h.b16 %v3255
        %v3930 = vunpack.c.l.b16 %v3256
        %v3931 = vunpack.c.h.b16 %v3256
        %v3932 = vunpack.c.l.b16 %v3257
        %v3933 = vunpack.c.h.b16 %v3257
        %v3934 = vunpack.c.l.b16 %v3258
        %v3935 = vunpack.c.h.b16 %v3258
        %v3936 = vunpack.c.l.b16 %v3259
        %v3937 = vunpack.c.h.b16 %v3259
        %v3938 = vunpack.c.l.b16 %v3260
        %v3939 = vunpack.c.h.b16 %v3260
        %v3940 = vunpack.c.l.b16 %v3261
        %v3941 = vunpack.c.h.b16 %v3261
        %v3942 = vunpack.c.l.b16 %v3262
        %v3943 = vunpack.c.h.b16 %v3262
        %v3944 = vunpack.c.l.b16 %v3263
        %v3945 = vunpack.c.h.b16 %v3263
        %v3946 = vunpack.c.l.b16 %v3264
        %v3947 = vunpack.c.h.b16 %v3264
        %v3948 = vunpack.c.l.b16 %v3265
        %v3949 = vunpack.c.h.b16 %v3265
        %v3950 = vunpack.c.l.b16 %v3266
        %v3951 = vunpack.c.h.b16 %v3266
        %v3952 = vunpack.c.l.b16 %v3267
        %v3953 = vunpack.c.h.b16 %v3267
        %v3954 = vunpack.c.l.b16 %v3268
        %v3955 = vunpack.c.h.b16 %v3268
        %v3956 = vunpack.c.l.b16 %v3269
        %v3957 = vunpack.c.h.b16 %v3269
        %v3958 = vunpack.c.l.b16 %v3270
        %v3959 = vunpack.c.h.b16 %v3270
        %v3960 = vunpack.c.l.b16 %v3271
        %v3961 = vunpack.c.h.b16 %v3271
        %v3962 = vunpack.c.l.b16 %v3272
        %v3963 = vunpack.c.h.b16 %v3272
        %v3964 = vunpack.c.l.b16 %v3273
        %v3965 = vunpack.c.h.b16 %v3273
        %v3966 = vunpack.c.l.b16 %v3274
        %v3967 = vunpack.c.h.b16 %v3274
        %v3968 = vunpack.c.l.b16 %v3275
        %v3969 = vunpack.c.h.b16 %v3275
        %v3970 = vunpack.c.l.b16 %v3276
        %v3971 = vunpack.c.h.b16 %v3276
        %v3972 = vunpack.c.l.b16 %v3277
        %v3973 = vunpack.c.h.b16 %v3277
        %v3974 = vunpack.c.l.b16 %v3278
        %v3975 = vunpack.c.h.b16 %v3278
        %v3976 = vunpack.c.l.b16 %v3279
        %v3977 = vunpack.c.h.b16 %v3279
        %v3978 = vunpack.c.l.b16 %v3280
        %v3979 = vunpack.c.h.b16 %v3280
        %v3980 = vunpack.c.l.b16 %v3281
        %v3981 = vunpack.c.h.b16 %v3281
        %v3982 = vunpack.c.l.b16 %v3282
        %v3983 = vunpack.c.h.b16 %v3282
        %v3984 = vunpack.c.l.b16 %v3283
        %v3985 = vunpack.c.h.b16 %v3283
        %v3986 = vunpack.c.l.b16 %v3284
        %v3987 = vunpack.c.h.b16 %v3284
        %v3988 = vunpack.c.l.b16 %v3285
        %v3989 = vunpack.c.h.b16 %v3285
        %v3990 = vunpack.c.l.b16 %v3286
        %v3991 = vunpack.c.h.b16 %v3286
        %v3992 = vunpack.c.l.b16 %v3287
        %v3993 = vunpack.c.h.b16 %v3287
        %v3994 = vunpack.c.l.b16 %v3288
        %v3995 = vunpack.c.h.b16 %v3288
        %v3996 = vunpack.c.l.b16 %v3289
        %v3997 = vunpack.c.h.b16 %v3289
        %v3998 = vunpack.c.l.b16 %v3290
        %v3999 = vunpack.c.h.b16 %v3290
        %v4000 = vunpack.c.l.b16 %v3291
        %v4001 = vunpack.c.h.b16 %v3291
        %v4002 = vpack.c.b16 %v3578, %v3570
        %v4003 = vpack.c.b16 %v3579, %v3571
        %v4004 = vpack.c.b16 %v3580, %v3572
        %v4005 = vpack.c.b16 %v3581, %v3573
        %v4006 = vpack.c.b16 %v3582, %v3574
        %v4007 = vpack.c.b16 %v3583, %v3575
        %v4008 = vpack.c.b16 %v3584, %v3576
        %v4009 = vpack.c.b16 %v3585, %v3577
        %v4010 = vpack.c.b16 %v3594, %v3586
        %v4011 = vpack.c.b16 %v3595, %v3587
        %v4012 = vpack.c.b16 %v3596, %v3588
        %v4013 = vpack.c.b16 %v3597, %v3589
        %v4014 = vpack.c.b16 %v3598, %v3590
        %v4015 = vpack.c.b16 %v3599, %v3591
        %v4016 = vpack.c.b16 %v3600, %v3592
        %v4017 = vpack.c.b16 %v3601, %v3593
        %v4018 = vpack.c.b16 %v3610, %v3602
        %v4019 = vpack.c.b16 %v3611, %v3603
        %v4020 = vpack.c.b16 %v3612, %v3604
        %v4021 = vpack.c.b16 %v3613, %v3605
        %v4022 = vpack.c.b16 %v3614, %v3606
        %v4023 = vpack.c.b16 %v3615, %v3607
        %v4024 = vpack.c.b16 %v3616, %v3608
        %v4025 = vpack.c.b16 %v3617, %v3609
        %v4026 = vpack.c.b16 %v3626, %v3618
        %v4027 = vpack.c.b16 %v3627, %v3619
        %v4028 = vpack.c.b16 %v3628, %v3620
        %v4029 = vpack.c.b16 %v3629, %v3621
        %v4030 = vpack.c.b16 %v3630, %v3622
        %v4031 = vpack.c.b16 %v3631, %v3623
        %v4032 = vpack.c.b16 %v3632, %v3624
        %v4033 = vpack.c.b16 %v3633, %v3625
        %v4034 = vpack.c.b16 %v3642, %v3634
        %v4035 = vpack.c.b16 %v3643, %v3635
        %v4036 = vpack.c.b16 %v3644, %v3636
        %v4037 = vpack.c.b16 %v3645, %v3637
        %v4038 = vpack.c.b16 %v3646, %v3638
        %v4039 = vpack.c.b16 %v3647, %v3639
        %v4040 = vpack.c.b16 %v3648, %v3640
        %v4041 = vpack.c.b16 %v3649, %v3641
        %v4042 = vpack.c.b16 %v3658, %v3650
        %v4043 = vpack.c.b16 %v3659, %v3651
        %v4044 = vpack.c.b16 %v3660, %v3652
        %v4045 = vpack.c.b16 %v3661, %v3653
        %v4046 = vpack.c.b16 %v3662, %v3654
        %v4047 = vpack.c.b16 %v3663, %v3655
        %v4048 = vpack.c.b16 %v3664, %v3656
        %v4049 = vpack.c.b16 %v3665, %v3657
        %v4050 = vpack.c.b16 %v3674, %v3666
        %v4051 = vpack.c.b16 %v3675, %v3667
        %v4052 = vpack.c.b16 %v3676, %v3668
        %v4053 = vpack.c.b16 %v3677, %v3669
        %v4054 = vpack.c.b16 %v3678, %v3670
        %v4055 = vpack.c.b16 %v3679, %v3671
        %v4056 = vpack.c.b16 %v3680, %v3672
        %v4057 = vpack.c.b16 %v3681, %v3673
        %v4058 = vpack.c.b16 %v3690, %v3682
        %v4059 = vpack.c.b16 %v3691, %v3683
        %v4060 = vpack.c.b16 %v3692, %v3684
        %v4061 = vpack.c.b16 %v3693, %v3685
        %v4062 = vpack.c.b16 %v3694, %v3686
        %v4063 = vpack.c.b16 %v3695, %v3687
        %v4064 = vpack.c.b16 %v3696, %v3688
        %v4065 = vpack.c.b16 %v3697, %v3689
        %v4066 = vpack.c.b16 %v3706, %v3698
        %v4067 = vpack.c.b16 %v3707, %v3699
        %v4068 = vpack.c.b16 %v3708, %v3700
        %v4069 = vpack.c.b16 %v3709, %v3701
        %v4070 = vpack.c.b16 %v3710, %v3702
        %v4071 = vpack.c.b16 %v3711, %v3703
        %v4072 = vpack.c.b16 %v3712, %v3704
        %v4073 = vpack.c.b16 %v3713, %v3705
        %v4074 = vpack.c.b16 %v3722, %v3714
        %v4075 = vpack.c.b16 %v3723, %v3715
        %v4076 = vpack.c.b16 %v3724, %v3716
        %v4077 = vpack.c.b16 %v3725, %v3717
        %v4078 = vpack.c.b16 %v3726, %v3718
        %v4079 = vpack.c.b16 %v3727, %v3719
        %v4080 = vpack.c.b16 %v3728, %v3720
        %v4081 = vpack.c.b16 %v3729, %v3721
        %v4082 = vpack.c.b16 %v3738, %v3730
        %v4083 = vpack.c.b16 %v3739, %v3731
        %v4084 = vpack.c.b16 %v3740, %v3732
        %v4085 = vpack.c.b16 %v3741, %v3733
        %v4086 = vpack.c.b16 %v3742, %v3734
        %v4087 = vpack.c.b16 %v3743, %v3735
        %v4088 = vpack.c.b16 %v3744, %v3736
        %v4089 = vpack.c.b16 %v3745, %v3737
        %v4090 = vpack.c.b16 %v3754, %v3746
        %v4091 = vpack.c.b16 %v3755, %v3747
        %v4092 = vpack.c.b16 %v3756, %v3748
        %v4093 = vpack.c.b16 %v3757, %v3749
        %v4094 = vpack.c.b16 %v3758, %v3750
        %v4095 = vpack.c.b16 %v3759, %v3751
        %v4096 = vpack.c.b16 %v3760, %v3752
        %v4097 = vpack.c.b16 %v3761, %v3753
        %v4098 = vpack.c.b16 %v3770, %v3762
        %v4099 = vpack.c.b16 %v3771, %v3763
        %v4100 = vpack.c.b16 %v3772, %v3764
        %v4101 = vpack.c.b16 %v3773, %v3765
        %v4102 = vpack.c.b16 %v3774, %v3766
        %v4103 = vpack.c.b16 %v3775, %v3767
        %v4104 = vpack.c.b16 %v3776, %v3768
        %v4105 = vpack.c.b16 %v3777, %v3769
        %v4106 = vpack.c.b16 %v3786, %v3778
        %v4107 = vpack.c.b16 %v3787, %v3779
        %v4108 = vpack.c.b16 %v3788, %v3780
        %v4109 = vpack.c.b16 %v3789, %v3781
        %v4110 = vpack.c.b16 %v3790, %v3782
        %v4111 = vpack.c.b16 %v3791, %v3783
        %v4112 = vpack.c.b16 %v3792, %v3784
        %v4113 = vpack.c.b16 %v3793, %v3785
        %v4114 = vpack.c.b16 %v3802, %v3794
        %v4115 = vpack.c.b16 %v3803, %v3795
        %v4116 = vpack.c.b16 %v3804, %v3796
        %v4117 = vpack.c.b16 %v3805, %v3797
        %v4118 = vpack.c.b16 %v3806, %v3798
        %v4119 = vpack.c.b16 %v3807, %v3799
        %v4120 = vpack.c.b16 %v3808, %v3800
        %v4121 = vpack.c.b16 %v3809, %v3801
        %v4122 = vpack.c.b16 %v3818, %v3810
        %v4123 = vpack.c.b16 %v3819, %v3811
        %v4124 = vpack.c.b16 %v3820, %v3812
        %v4125 = vpack.c.b16 %v3821, %v3813
        %v4126 = vpack.c.b16 %v3822, %v3814
        %v4127 = vpack.c.b16 %v3823, %v3815
        %v4128 = vpack.c.b16 %v3824, %v3816
        %v4129 = vpack.c.b16 %v3825, %v3817
        %v4130 = vpack.c.b16 %v3834, %v3826
        %v4131 = vpack.c.b16 %v3835, %v3827
        %v4132 = vpack.c.b16 %v3836, %v3828
        %v4133 = vpack.c.b16 %v3837, %v3829
        %v4134 = vpack.c.b16 %v3838, %v3830
        %v4135 = vpack.c.b16 %v3839, %v3831
        %v4136 = vpack.c.b16 %v3840, %v3832
        %v4137 = vpack.c.b16 %v3841, %v3833
        %v4138 = vpack.c.b16 %v3850, %v3842
        %v4139 = vpack.c.b16 %v3851, %v3843
        %v4140 = vpack.c.b16 %v3852, %v3844
        %v4141 = vpack.c.b16 %v3853, %v3845
        %v4142 = vpack.c.b16 %v3854, %v3846
        %v4143 = vpack.c.b16 %v3855, %v3847
        %v4144 = vpack.c.b16 %v3856, %v3848
        %v4145 = vpack.c.b16 %v3857, %v3849
        %v4146 = vpack.c.b16 %v3866, %v3858
        %v4147 = vpack.c.b16 %v3867, %v3859
        %v4148 = vpack.c.b16 %v3868, %v3860
        %v4149 = vpack.c.b16 %v3869, %v3861
        %v4150 = vpack.c.b16 %v3870, %v3862
        %v4151 = vpack.c.b16 %v3871, %v3863
        %v4152 = vpack.c.b16 %v3872, %v3864
        %v4153 = vpack.c.b16 %v3873, %v3865
        %v4154 = vpack.c.b16 %v3882, %v3874
        %v4155 = vpack.c.b16 %v3883, %v3875
        %v4156 = vpack.c.b16 %v3884, %v3876
        %v4157 = vpack.c.b16 %v3885, %v3877
        %v4158 = vpack.c.b16 %v3886, %v3878
        %v4159 = vpack.c.b16 %v3887, %v3879
        %v4160 = vpack.c.b16 %v3888, %v3880
        %v4161 = vpack.c.b16 %v3889, %v3881
        %v4162 = vpack.c.b16 %v3898, %v3890
        %v4163 = vpack.c.b16 %v3899, %v3891
        %v4164 = vpack.c.b16 %v3900, %v3892
        %v4165 = vpack.c.b16 %v3901, %v3893
        %v4166 = vpack.c.b16 %v3902, %v3894
        %v4167 = vpack.c.b16 %v3903, %v3895
        %v4168 = vpack.c.b16 %v3904, %v3896
        %v4169 = vpack.c.b16 %v3905, %v3897
        %v4170 = vpack.c.b16 %v3914, %v3906
        %v4171 = vpack.c.b16 %v3915, %v3907
        %v4172 = vpack.c.b16 %v3916, %v3908
        %v4173 = vpack.c.b16 %v3917, %v3909
        %v4174 = vpack.c.b16 %v3918, %v3910
        %v4175 = vpack.c.b16 %v3919, %v3911
        %v4176 = vpack.c.b16 %v3920, %v3912
        %v4177 = vpack.c.b16 %v3921, %v3913
        %v4178 = vpack.c.b16 %v3930, %v3922
        %v4179 = vpack.c.b16 %v3931, %v3923
        %v4180 = vpack.c.b16 %v3932, %v3924
        %v4181 = vpack.c.b16 %v3933, %v3925
        %v4182 = vpack.c.b16 %v3934, %v3926
        %v4183 = vpack.c.b16 %v3935, %v3927
        %v4184 = vpack.c.b16 %v3936, %v3928
        %v4185 = vpack.c.b16 %v3937, %v3929
        %v4186 = vpack.c.b16 %v3946, %v3938
        %v4187 = vpack.c.b16 %v3947, %v3939
        %v4188 = vpack.c.b16 %v3948, %v3940
        %v4189 = vpack.c.b16 %v3949, %v3941
        %v4190 = vpack.c.b16 %v3950, %v3942
        %v4191 = vpack.c.b16 %v3951, %v3943
        %v4192 = vpack.c.b16 %v3952, %v3944
        %v4193 = vpack.c.b16 %v3953, %v3945
        %v4194 = vpack.c.b16 %v3962, %v3954
        %v4195 = vpack.c.b16 %v3963, %v3955
        %v4196 = vpack.c.b16 %v3964, %v3956
        %v4197 = vpack.c.b16 %v3965, %v3957
        %v4198 = vpack.c.b16 %v3966, %v3958
        %v4199 = vpack.c.b16 %v3967, %v3959
        %v4200 = vpack.c.b16 %v3968, %v3960
        %v4201 = vpack.c.b16 %v3969, %v3961
        %v4202 = vpack.c.b16 %v3978, %v3970
        %v4203 = vpack.c.b16 %v3979, %v3971
        %v4204 = vpack.c.b16 %v3980, %v3972
        %v4205 = vpack.c.b16 %v3981, %v3973
        %v4206 = vpack.c.b16 %v3982, %v3974
        %v4207 = vpack.c.b16 %v3983, %v3975
        %v4208 = vpack.c.b16 %v3984, %v3976
        %v4209 = vpack.c.b16 %v3985, %v3977
        %v4210 = vpack.c.b16 %v3994, %v3986
        %v4211 = vpack.c.b16 %v3995, %v3987
        %v4212 = vpack.c.b16 %v3996, %v3988
        %v4213 = vpack.c.b16 %v3997, %v3989
        %v4214 = vpack.c.b16 %v3998, %v3990
        %v4215 = vpack.c.b16 %v3999, %v3991
        %v4216 = vpack.c.b16 %v4000, %v3992
        %v4217 = vpack.c.b16 %v4001, %v3993
        %vm4434 = vcmask 392192
        %v4436 = vsel %vm4434, %v3343, 0
        %v4439 = vsel %vm4434, %v3347, 0
        %4441 = vmatprep.subr.bf16.mxu0 %v4059
        %4442 = vmatpush1.bf16.msra.mxu0 %v4058
        %4443 = vmatprep.subr.bf16.mxu0 %v4051
        %4444 = vmatpush1.bf16.msra.mxu0 %v4050
        %4445 = vmatprep.subr.bf16.mxu0 %v4043
        %4446 = vmatpush1.bf16.msra.mxu0 %v4042
        %4447 = vmatprep.subr.bf16.mxu0 %v4035
        %4448 = vmatpush1.bf16.msra.mxu0 %v4034
        %4449 = vmatprep.subr.bf16.mxu0 %v4027
        %4450 = vmatpush1.bf16.msra.mxu0 %v4026
        %4451 = vmatprep.subr.bf16.mxu0 %v4019
        %4452 = vmatpush1.bf16.msra.mxu0 %v4018
        %4453 = vmatprep.subr.bf16.mxu0 %v4011
        %4454 = vmatpush1.bf16.msra.mxu0 %v4010
        %4455 = vmatprep.subr.bf16.mxu0 %v4003
        %4456 = vmatpush1.bf16.msra.mxu0 %v4002
        %4457 = vmatprep.subr.bf16.mxu0 %v4123
        %4458 = vmatpush2.bf16.msra.mxu0 %v4122
        %4459 = vmatprep.subr.bf16.mxu0 %v4115
        %4460 = vmatpush2.bf16.msra.mxu0 %v4114
        %4461 = vmatprep.subr.bf16.mxu0 %v4107
        %4462 = vmatpush2.bf16.msra.mxu0 %v4106
        %4463 = vmatprep.subr.bf16.mxu0 %v4099
        %4464 = vmatpush2.bf16.msra.mxu0 %v4098
        %4465 = vmatprep.subr.bf16.mxu0 %v4091
        %4466 = vmatpush2.bf16.msra.mxu0 %v4090
        %4467 = vmatprep.subr.bf16.mxu0 %v4083
        %4468 = vmatpush2.bf16.msra.mxu0 %v4082
        %4469 = vmatprep.subr.bf16.mxu0 %v4075
        %4470 = vmatpush2.bf16.msra.mxu0 %v4074
        %4471 = vmatprep.subr.bf16.mxu0 %v4067
        %4472 = vmatpush2.bf16.msra.mxu0 %v4066
        %4473 = vmatprep.mubr.bf16.mxu0 %v3341
        %4474 = vmatmul.mubr.bf16.gmra.mxu0 %v3340
        %v4475 = vpop.f32.mrf.mxu0
        %v4476 = vadd.f32 %v3299, %v4475
        %v4477 = vpop.f32.mrf.mxu0
        %v4478 = vadd.f32 %v3299, %v4477
        %v4479 = vpop.f32.mrf.mxu0
        %v4480 = vadd.f32 %v3304, %v4479
        %v4481 = vpop.f32.mrf.mxu0
        %v4482 = vadd.f32 %v3304, %v4481
        %4483 = vmatprep.mubr.bf16.mxu0 %v3345
        %4484 = vmatmul.mubr.bf16.gmra.mxu0 %v3344
        %v4485 = vpop.f32.mrf.mxu0
        %v4486 = vadd.f32 %v3309, %v4485
        %v4487 = vpop.f32.mrf.mxu0
        %v4488 = vadd.f32 %v3309, %v4487
        %v4489 = vpop.f32.mrf.mxu0
        %v4490 = vadd.f32 %v3314, %v4489
        %v4491 = vpop.f32.mrf.mxu0
        %v4492 = vadd.f32 %v3314, %v4491
        %4493 = vdwg.mxu0
        %4494 = vmatprep.subr.bf16.mxu0 %v4187
        %4495 = vmatpush1.bf16.msra.mxu0 %v4186
        %4496 = vmatprep.subr.bf16.mxu0 %v4179
        %4497 = vmatpush1.bf16.msra.mxu0 %v4178
        %4498 = vmatprep.subr.bf16.mxu0 %v4171
        %4499 = vmatpush1.bf16.msra.mxu0 %v4170
        %4500 = vmatprep.subr.bf16.mxu0 %v4163
        %4501 = vmatpush1.bf16.msra.mxu0 %v4162
        %4502 = vmatprep.subr.bf16.mxu0 %v4155
        %4503 = vmatpush1.bf16.msra.mxu0 %v4154
        %4504 = vmatprep.subr.bf16.mxu0 %v4147
        %4505 = vmatpush1.bf16.msra.mxu0 %v4146
        %4506 = vmatprep.subr.bf16.mxu0 %v4139
        %4507 = vmatpush1.bf16.msra.mxu0 %v4138
        %4508 = vmatprep.subr.bf16.mxu0 %v4131
        %4509 = vmatpush1.bf16.msra.mxu0 %v4130
        %4510 = vmatprep.subr.bf16.mxu0 0
        %4511 = vmatpush2.bf16.msra.mxu0 0
        %4512 = vmatprep.subr.bf16.mxu0 0
        %4513 = vmatpush2.bf16.msra.mxu0 0
        %4514 = vmatprep.subr.bf16.mxu0 0
        %4515 = vmatpush2.bf16.msra.mxu0 0
        %4516 = vmatprep.subr.bf16.mxu0 0
        %4517 = vmatpush2.bf16.msra.mxu0 0
        %4518 = vmatprep.subr.bf16.mxu0 0
        %4519 = vmatpush2.bf16.msra.mxu0 0
        %4520 = vmatprep.subr.bf16.mxu0 %v4211
        %4521 = vmatpush2.bf16.msra.mxu0 %v4210
        %4522 = vmatprep.subr.bf16.mxu0 %v4203
        %4523 = vmatpush2.bf16.msra.mxu0 %v4202
        %4524 = vmatprep.subr.bf16.mxu0 %v4195
        %4525 = vmatpush2.bf16.msra.mxu0 %v4194
        %4526 = vmatprep.mubr.bf16.mxu0 %v4436
        %4527 = vmatmul.mubr.bf16.gmra.mxu0 %v3342
        %v4528 = vpop.f32.mrf.mxu0
        %v4529 = vadd.f32 %v4476, %v4528
        %v4530 = vpop.f32.mrf.mxu0
        %v4531 = vadd.f32 %v4478, %v4530
        %v4532 = vpop.f32.mrf.mxu0
        %v4533 = vadd.f32 %v4480, %v4532
        %v4534 = vpop.f32.mrf.mxu0
        %v4535 = vadd.f32 %v4482, %v4534
        %4536 = vmatprep.mubr.bf16.mxu0 %v4439
        %4537 = vmatmul.mubr.bf16.gmra.mxu0 %v3346
        %v4538 = vpop.f32.mrf.mxu0
        %v4539 = vadd.f32 %v4486, %v4538
        %v4540 = vpop.f32.mrf.mxu0
        %v4541 = vadd.f32 %v4488, %v4540
        %v4542 = vpop.f32.mrf.mxu0
        %v4543 = vadd.f32 %v4490, %v4542
        %v4544 = vpop.f32.mrf.mxu0
        %v4545 = vadd.f32 %v4492, %v4544
        %4546 = vdwg.mxu0
        %4547 = vmatprep.subr.bf16.mxu0 %v4061
        %4548 = vmatpush1.bf16.msra.mxu0 %v4060
        %4549 = vmatprep.subr.bf16.mxu0 %v4053
        %4550 = vmatpush1.bf16.msra.mxu0 %v4052
        %4551 = vmatprep.subr.bf16.mxu0 %v4045
        %4552 = vmatpush1.bf16.msra.mxu0 %v4044
        %4553 = vmatprep.subr.bf16.mxu0 %v4037
        %4554 = vmatpush1.bf16.msra.mxu0 %v4036
        %4555 = vmatprep.subr.bf16.mxu0 %v4029
        %4556 = vmatpush1.bf16.msra.mxu0 %v4028
        %4557 = vmatprep.subr.bf16.mxu0 %v4021
        %4558 = vmatpush1.bf16.msra.mxu0 %v4020
        %4559 = vmatprep.subr.bf16.mxu0 %v4013
        %4560 = vmatpush1.bf16.msra.mxu0 %v4012
        %4561 = vmatprep.subr.bf16.mxu0 %v4005
        %4562 = vmatpush1.bf16.msra.mxu0 %v4004
        %4563 = vmatprep.subr.bf16.mxu0 %v4125
        %4564 = vmatpush2.bf16.msra.mxu0 %v4124
        %4565 = vmatprep.subr.bf16.mxu0 %v4117
        %4566 = vmatpush2.bf16.msra.mxu0 %v4116
        %4567 = vmatprep.subr.bf16.mxu0 %v4109
        %4568 = vmatpush2.bf16.msra.mxu0 %v4108
        %4569 = vmatprep.subr.bf16.mxu0 %v4101
        %4570 = vmatpush2.bf16.msra.mxu0 %v4100
        %4571 = vmatprep.subr.bf16.mxu0 %v4093
        %4572 = vmatpush2.bf16.msra.mxu0 %v4092
        %4573 = vmatprep.subr.bf16.mxu0 %v4085
        %4574 = vmatpush2.bf16.msra.mxu0 %v4084
        %4575 = vmatprep.subr.bf16.mxu0 %v4077
        %4576 = vmatpush2.bf16.msra.mxu0 %v4076
        %4577 = vmatprep.subr.bf16.mxu0 %v4069
        %4578 = vmatpush2.bf16.msra.mxu0 %v4068
        %4579 = vmatprep.mubr.bf16.mxu0 %v3341
        %4580 = vmatmul.mubr.bf16.gmra.mxu0 %v3340
        %v4581 = vpop.f32.mrf.mxu0
        %v4582 = vadd.f32 %v3299, %v4581
        %v4583 = vpop.f32.mrf.mxu0
        %v4584 = vadd.f32 %v3299, %v4583
        %v4585 = vpop.f32.mrf.mxu0
        %v4586 = vadd.f32 %v3304, %v4585
        %v4587 = vpop.f32.mrf.mxu0
        %v4588 = vadd.f32 %v3304, %v4587
        %4589 = vmatprep.mubr.bf16.mxu0 %v3345
        %4590 = vmatmul.mubr.bf16.gmra.mxu0 %v3344
        %v4591 = vpop.f32.mrf.mxu0
        %v4592 = vadd.f32 %v3309, %v4591
        %v4593 = vpop.f32.mrf.mxu0
        %v4594 = vadd.f32 %v3309, %v4593
        %v4595 = vpop.f32.mrf.mxu0
        %v4596 = vadd.f32 %v3314, %v4595
        %v4597 = vpop.f32.mrf.mxu0
        %v4598 = vadd.f32 %v3314, %v4597
        %4599 = vdwg.mxu0
        %4600 = vmatprep.subr.bf16.mxu0 %v4189
        %4601 = vmatpush1.bf16.msra.mxu0 %v4188
        %4602 = vmatprep.subr.bf16.mxu0 %v4181
        %4603 = vmatpush1.bf16.msra.mxu0 %v4180
        %4604 = vmatprep.subr.bf16.mxu0 %v4173
        %4605 = vmatpush1.bf16.msra.mxu0 %v4172
        %4606 = vmatprep.subr.bf16.mxu0 %v4165
        %4607 = vmatpush1.bf16.msra.mxu0 %v4164
        %4608 = vmatprep.subr.bf16.mxu0 %v4157
        %4609 = vmatpush1.bf16.msra.mxu0 %v4156
        %4610 = vmatprep.subr.bf16.mxu0 %v4149
        %4611 = vmatpush1.bf16.msra.mxu0 %v4148
        %4612 = vmatprep.subr.bf16.mxu0 %v4141
        %4613 = vmatpush1.bf16.msra.mxu0 %v4140
        %4614 = vmatprep.subr.bf16.mxu0 %v4133
        %4615 = vmatpush1.bf16.msra.mxu0 %v4132
        %4616 = vmatprep.subr.bf16.mxu0 0
        %4617 = vmatpush2.bf16.msra.mxu0 0
        %4618 = vmatprep.subr.bf16.mxu0 0
        %4619 = vmatpush2.bf16.msra.mxu0 0
        %4620 = vmatprep.subr.bf16.mxu0 0
        %4621 = vmatpush2.bf16.msra.mxu0 0
        %4622 = vmatprep.subr.bf16.mxu0 0
        %4623 = vmatpush2.bf16.msra.mxu0 0
        %4624 = vmatprep.subr.bf16.mxu0 0
        %4625 = vmatpush2.bf16.msra.mxu0 0
        %4626 = vmatprep.subr.bf16.mxu0 %v4213
        %4627 = vmatpush2.bf16.msra.mxu0 %v4212
        %4628 = vmatprep.subr.bf16.mxu0 %v4205
        %4629 = vmatpush2.bf16.msra.mxu0 %v4204
        %4630 = vmatprep.subr.bf16.mxu0 %v4197
        %4631 = vmatpush2.bf16.msra.mxu0 %v4196
        %4632 = vmatprep.mubr.bf16.mxu0 %v4436
        %4633 = vmatmul.mubr.bf16.gmra.mxu0 %v3342
        %v4634 = vpop.f32.mrf.mxu0
        %v4635 = vadd.f32 %v4582, %v4634
        %v4636 = vpop.f32.mrf.mxu0
        %v4637 = vadd.f32 %v4584, %v4636
        %v4638 = vpop.f32.mrf.mxu0
        %v4639 = vadd.f32 %v4586, %v4638
        %v4640 = vpop.f32.mrf.mxu0
        %v4641 = vadd.f32 %v4588, %v4640
        %4642 = vmatprep.mubr.bf16.mxu0 %v4439
        %4643 = vmatmul.mubr.bf16.gmra.mxu0 %v3346
        %v4644 = vpop.f32.mrf.mxu0
        %v4645 = vadd.f32 %v4592, %v4644
        %v4646 = vpop.f32.mrf.mxu0
        %v4647 = vadd.f32 %v4594, %v4646
        %v4648 = vpop.f32.mrf.mxu0
        %v4649 = vadd.f32 %v4596, %v4648
        %v4650 = vpop.f32.mrf.mxu0
        %v4651 = vadd.f32 %v4598, %v4650
        %4652 = vdwg.mxu0
        %4653 = vmatprep.subr.bf16.mxu0 %v4063
        %4654 = vmatpush1.bf16.msra.mxu0 %v4062
        %4655 = vmatprep.subr.bf16.mxu0 %v4055
        %4656 = vmatpush1.bf16.msra.mxu0 %v4054
        %4657 = vmatprep.subr.bf16.mxu0 %v4047
        %4658 = vmatpush1.bf16.msra.mxu0 %v4046
        %4659 = vmatprep.subr.bf16.mxu0 %v4039
        %4660 = vmatpush1.bf16.msra.mxu0 %v4038
        %4661 = vmatprep.subr.bf16.mxu0 %v4031
        %4662 = vmatpush1.bf16.msra.mxu0 %v4030
        %4663 = vmatprep.subr.bf16.mxu0 %v4023
        %4664 = vmatpush1.bf16.msra.mxu0 %v4022
        %4665 = vmatprep.subr.bf16.mxu0 %v4015
        %4666 = vmatpush1.bf16.msra.mxu0 %v4014
        %4667 = vmatprep.subr.bf16.mxu0 %v4007
        %4668 = vmatpush1.bf16.msra.mxu0 %v4006
        %4669 = vmatprep.subr.bf16.mxu0 %v4127
        %4670 = vmatpush2.bf16.msra.mxu0 %v4126
        %4671 = vmatprep.subr.bf16.mxu0 %v4119
        %4672 = vmatpush2.bf16.msra.mxu0 %v4118
        %4673 = vmatprep.subr.bf16.mxu0 %v4111
        %4674 = vmatpush2.bf16.msra.mxu0 %v4110
        %4675 = vmatprep.subr.bf16.mxu0 %v4103
        %4676 = vmatpush2.bf16.msra.mxu0 %v4102
        %4677 = vmatprep.subr.bf16.mxu0 %v4095
        %4678 = vmatpush2.bf16.msra.mxu0 %v4094
        %4679 = vmatprep.subr.bf16.mxu0 %v4087
        %4680 = vmatpush2.bf16.msra.mxu0 %v4086
        %4681 = vmatprep.subr.bf16.mxu0 %v4079
        %4682 = vmatpush2.bf16.msra.mxu0 %v4078
        %4683 = vmatprep.subr.bf16.mxu0 %v4071
        %4684 = vmatpush2.bf16.msra.mxu0 %v4070
        %4685 = vmatprep.mubr.bf16.mxu0 %v3341
        %4686 = vmatmul.mubr.bf16.gmra.mxu0 %v3340
        %v4687 = vpop.f32.mrf.mxu0
        %v4688 = vadd.f32 %v3299, %v4687
        %v4689 = vpop.f32.mrf.mxu0
        %v4690 = vadd.f32 %v3299, %v4689
        %v4691 = vpop.f32.mrf.mxu0
        %v4692 = vadd.f32 %v3304, %v4691
        %v4693 = vpop.f32.mrf.mxu0
        %v4694 = vadd.f32 %v3304, %v4693
        %4695 = vmatprep.mubr.bf16.mxu0 %v3345
        %4696 = vmatmul.mubr.bf16.gmra.mxu0 %v3344
        %v4697 = vpop.f32.mrf.mxu0
        %v4698 = vadd.f32 %v3309, %v4697
        %v4699 = vpop.f32.mrf.mxu0
        %v4700 = vadd.f32 %v3309, %v4699
        %v4701 = vpop.f32.mrf.mxu0
        %v4702 = vadd.f32 %v3314, %v4701
        %v4703 = vpop.f32.mrf.mxu0
        %v4704 = vadd.f32 %v3314, %v4703
        %4705 = vdwg.mxu0
        %4706 = vmatprep.subr.bf16.mxu0 %v4191
        %4707 = vmatpush1.bf16.msra.mxu0 %v4190
        %4708 = vmatprep.subr.bf16.mxu0 %v4183
        %4709 = vmatpush1.bf16.msra.mxu0 %v4182
        %4710 = vmatprep.subr.bf16.mxu0 %v4175
        %4711 = vmatpush1.bf16.msra.mxu0 %v4174
        %4712 = vmatprep.subr.bf16.mxu0 %v4167
        %4713 = vmatpush1.bf16.msra.mxu0 %v4166
        %4714 = vmatprep.subr.bf16.mxu0 %v4159
        %4715 = vmatpush1.bf16.msra.mxu0 %v4158
        %4716 = vmatprep.subr.bf16.mxu0 %v4151
        %4717 = vmatpush1.bf16.msra.mxu0 %v4150
        %4718 = vmatprep.subr.bf16.mxu0 %v4143
        %4719 = vmatpush1.bf16.msra.mxu0 %v4142
        %4720 = vmatprep.subr.bf16.mxu0 %v4135
        %4721 = vmatpush1.bf16.msra.mxu0 %v4134
        %4722 = vmatprep.subr.bf16.mxu0 0
        %4723 = vmatpush2.bf16.msra.mxu0 0
        %4724 = vmatprep.subr.bf16.mxu0 0
        %4725 = vmatpush2.bf16.msra.mxu0 0
        %4726 = vmatprep.subr.bf16.mxu0 0
        %4727 = vmatpush2.bf16.msra.mxu0 0
        %4728 = vmatprep.subr.bf16.mxu0 0
        %4729 = vmatpush2.bf16.msra.mxu0 0
        %4730 = vmatprep.subr.bf16.mxu0 0
        %4731 = vmatpush2.bf16.msra.mxu0 0
        %4732 = vmatprep.subr.bf16.mxu0 %v4215
        %4733 = vmatpush2.bf16.msra.mxu0 %v4214
        %4734 = vmatprep.subr.bf16.mxu0 %v4207
        %4735 = vmatpush2.bf16.msra.mxu0 %v4206
        %4736 = vmatprep.subr.bf16.mxu0 %v4199
        %4737 = vmatpush2.bf16.msra.mxu0 %v4198
        %4738 = vmatprep.mubr.bf16.mxu0 %v4436
        %4739 = vmatmul.mubr.bf16.gmra.mxu0 %v3342
        %v4740 = vpop.f32.mrf.mxu0
        %v4741 = vadd.f32 %v4688, %v4740
        %v4742 = vpop.f32.mrf.mxu0
        %v4743 = vadd.f32 %v4690, %v4742
        %v4744 = vpop.f32.mrf.mxu0
        %v4745 = vadd.f32 %v4692, %v4744
        %v4746 = vpop.f32.mrf.mxu0
        %v4747 = vadd.f32 %v4694, %v4746
        %4748 = vmatprep.mubr.bf16.mxu0 %v4439
        %4749 = vmatmul.mubr.bf16.gmra.mxu0 %v3346
        %v4750 = vpop.f32.mrf.mxu0
        %v4751 = vadd.f32 %v4698, %v4750
        %v4752 = vpop.f32.mrf.mxu0
        %v4753 = vadd.f32 %v4700, %v4752
        %v4754 = vpop.f32.mrf.mxu0
        %v4755 = vadd.f32 %v4702, %v4754
        %v4756 = vpop.f32.mrf.mxu0
        %v4757 = vadd.f32 %v4704, %v4756
        %4758 = vdwg.mxu0
        %4759 = vmatprep.subr.bf16.mxu0 %v4065
        %4760 = vmatpush1.bf16.msra.mxu0 %v4064
        %4761 = vmatprep.subr.bf16.mxu0 %v4057
        %4762 = vmatpush1.bf16.msra.mxu0 %v4056
        %4763 = vmatprep.subr.bf16.mxu0 %v4049
        %4764 = vmatpush1.bf16.msra.mxu0 %v4048
        %4765 = vmatprep.subr.bf16.mxu0 %v4041
        %4766 = vmatpush1.bf16.msra.mxu0 %v4040
        %4767 = vmatprep.subr.bf16.mxu0 %v4033
        %4768 = vmatpush1.bf16.msra.mxu0 %v4032
        %4769 = vmatprep.subr.bf16.mxu0 %v4025
        %4770 = vmatpush1.bf16.msra.mxu0 %v4024
        %4771 = vmatprep.subr.bf16.mxu0 %v4017
        %4772 = vmatpush1.bf16.msra.mxu0 %v4016
        %4773 = vmatprep.subr.bf16.mxu0 %v4009
        %4774 = vmatpush1.bf16.msra.mxu0 %v4008
        %4775 = vmatprep.subr.bf16.mxu0 %v4129
        %4776 = vmatpush2.bf16.msra.mxu0 %v4128
        %4777 = vmatprep.subr.bf16.mxu0 %v4121
        %4778 = vmatpush2.bf16.msra.mxu0 %v4120
        %4779 = vmatprep.subr.bf16.mxu0 %v4113
        %4780 = vmatpush2.bf16.msra.mxu0 %v4112
        %4781 = vmatprep.subr.bf16.mxu0 %v4105
        %4782 = vmatpush2.bf16.msra.mxu0 %v4104
        %4783 = vmatprep.subr.bf16.mxu0 %v4097
        %4784 = vmatpush2.bf16.msra.mxu0 %v4096
        %4785 = vmatprep.subr.bf16.mxu0 %v4089
        %4786 = vmatpush2.bf16.msra.mxu0 %v4088
        %4787 = vmatprep.subr.bf16.mxu0 %v4081
        %4788 = vmatpush2.bf16.msra.mxu0 %v4080
        %4789 = vmatprep.subr.bf16.mxu0 %v4073
        %4790 = vmatpush2.bf16.msra.mxu0 %v4072
        %4791 = vmatprep.mubr.bf16.mxu0 %v3341
        %4792 = vmatmul.mubr.bf16.gmra.mxu0 %v3340
        %v4793 = vpop.f32.mrf.mxu0
        %v4794 = vadd.f32 %v3299, %v4793
        %v4795 = vpop.f32.mrf.mxu0
        %v4796 = vadd.f32 %v3299, %v4795
        %v4797 = vpop.f32.mrf.mxu0
        %v4798 = vadd.f32 %v3304, %v4797
        %v4799 = vpop.f32.mrf.mxu0
        %v4800 = vadd.f32 %v3304, %v4799
        %4801 = vmatprep.mubr.bf16.mxu0 %v3345
        %4802 = vmatmul.mubr.bf16.gmra.mxu0 %v3344
        %v4803 = vpop.f32.mrf.mxu0
        %v4804 = vadd.f32 %v3309, %v4803
        %v4805 = vpop.f32.mrf.mxu0
        %v4806 = vadd.f32 %v3309, %v4805
        %v4807 = vpop.f32.mrf.mxu0
        %v4808 = vadd.f32 %v3314, %v4807
        %v4809 = vpop.f32.mrf.mxu0
        %v4810 = vadd.f32 %v3314, %v4809
        %4811 = vdwg.mxu0
        %4812 = vmatprep.subr.bf16.mxu0 %v4193
        %4813 = vmatpush1.bf16.msra.mxu0 %v4192
        %4814 = vmatprep.subr.bf16.mxu0 %v4185
        %4815 = vmatpush1.bf16.msra.mxu0 %v4184
        %4816 = vmatprep.subr.bf16.mxu0 %v4177
        %4817 = vmatpush1.bf16.msra.mxu0 %v4176
        %4818 = vmatprep.subr.bf16.mxu0 %v4169
        %4819 = vmatpush1.bf16.msra.mxu0 %v4168
        %4820 = vmatprep.subr.bf16.mxu0 %v4161
        %4821 = vmatpush1.bf16.msra.mxu0 %v4160
        %4822 = vmatprep.subr.bf16.mxu0 %v4153
        %4823 = vmatpush1.bf16.msra.mxu0 %v4152
        %4824 = vmatprep.subr.bf16.mxu0 %v4145
        %4825 = vmatpush1.bf16.msra.mxu0 %v4144
        %4826 = vmatprep.subr.bf16.mxu0 %v4137
        %4827 = vmatpush1.bf16.msra.mxu0 %v4136
        %4828 = vmatprep.subr.bf16.mxu0 0
        %4829 = vmatpush2.bf16.msra.mxu0 0
        %4830 = vmatprep.subr.bf16.mxu0 0
        %4831 = vmatpush2.bf16.msra.mxu0 0
        %4832 = vmatprep.subr.bf16.mxu0 0
        %4833 = vmatpush2.bf16.msra.mxu0 0
        %4834 = vmatprep.subr.bf16.mxu0 0
        %4835 = vmatpush2.bf16.msra.mxu0 0
        %4836 = vmatprep.subr.bf16.mxu0 0
        %4837 = vmatpush2.bf16.msra.mxu0 0
        %4838 = vmatprep.subr.bf16.mxu0 %v4217
        %4839 = vmatpush2.bf16.msra.mxu0 %v4216
        %4840 = vmatprep.subr.bf16.mxu0 %v4209
        %4841 = vmatpush2.bf16.msra.mxu0 %v4208
        %4842 = vmatprep.subr.bf16.mxu0 %v4201
        %4843 = vmatpush2.bf16.msra.mxu0 %v4200
        %4844 = vmatprep.mubr.bf16.mxu0 %v4436
        %4845 = vmatmul.mubr.bf16.gmra.mxu0 %v3342
        %v4846 = vpop.f32.mrf.mxu0
        %v4847 = vadd.f32 %v4794, %v4846
        %v4848 = vpop.f32.mrf.mxu0
        %v4849 = vadd.f32 %v4796, %v4848
        %v4850 = vpop.f32.mrf.mxu0
        %v4851 = vadd.f32 %v4798, %v4850
        %v4852 = vpop.f32.mrf.mxu0
        %v4853 = vadd.f32 %v4800, %v4852
        %4854 = vmatprep.mubr.bf16.mxu0 %v4439
        %4855 = vmatmul.mubr.bf16.gmra.mxu0 %v3346
        %v4856 = vpop.f32.mrf.mxu0
        %v4857 = vadd.f32 %v4804, %v4856
        %v4858 = vpop.f32.mrf.mxu0
        %v4859 = vadd.f32 %v4806, %v4858
        %v4860 = vpop.f32.mrf.mxu0
        %v4861 = vadd.f32 %v4808, %v4860
        %v4862 = vpop.f32.mrf.mxu0
        %v4863 = vadd.f32 %v4810, %v4862
        %4864 = vdwg.mxu0
        %4865 = vst [vmem:[%s549] sm:$0xff] %v4529
        %4866 = vst [vmem:[%s549 + $0x8] sm:$0xff] %v4531
        %4867 = vst [vmem:[%s549 + $0x10] sm:$0xff] %v4635
        %4868 = vst [vmem:[%s549 + $0x18] sm:$0xff] %v4637
        %4869 = vst [vmem:[%s549 + $0x20] sm:$0xff] %v4741
        %4870 = vst [vmem:[%s549 + $0x28] sm:$0xff] %v4743
        %4871 = vst [vmem:[%s549 + $0x30] sm:$0xff] %v4847
        %4872 = vst [vmem:[%s549 + $0x38] sm:$0xff] %v4849
        %4873 = vst [vmem:[%s549 + $0x40] sm:$0xff] %v4533
        %4874 = vst [vmem:[%s549 + $0x48] sm:$0xff] %v4535
        %4875 = vst [vmem:[%s549 + $0x50] sm:$0xff] %v4639
        %4876 = vst [vmem:[%s549 + $0x58] sm:$0xff] %v4641
        %4877 = vst [vmem:[%s549 + $0x60] sm:$0xff] %v4745
        %4878 = vst [vmem:[%s549 + $0x68] sm:$0xff] %v4747
        %4879 = vst [vmem:[%s549 + $0x70] sm:$0xff] %v4851
        %4880 = vst [vmem:[%s549 + $0x78] sm:$0xff] %v4853
        %4881 = vst [vmem:[%s549 + $0x80] sm:$0xff] %v4539
        %4882 = vst [vmem:[%s549 + $0x88] sm:$0xff] %v4541
        %4883 = vst [vmem:[%s549 + $0x90] sm:$0xff] %v4645
        %4884 = vst [vmem:[%s549 + $0x98] sm:$0xff] %v4647
        %4885 = vst [vmem:[%s549 + $0xa0] sm:$0xff] %v4751
        %4886 = vst [vmem:[%s549 + $0xa8] sm:$0xff] %v4753
        %4887 = vst [vmem:[%s549 + $0xb0] sm:$0xff] %v4857
        %4888 = vst [vmem:[%s549 + $0xb8] sm:$0xff] %v4859
        %4889 = vst [vmem:[%s549 + $0xc0] sm:$0xff] %v4543
        %4890 = vst [vmem:[%s549 + $0xc8] sm:$0xff] %v4545
        %4891 = vst [vmem:[%s549 + $0xd0] sm:$0xff] %v4649
        %4892 = vst [vmem:[%s549 + $0xd8] sm:$0xff] %v4651
        %4893 = vst [vmem:[%s549 + $0xe0] sm:$0xff] %v4755
        %4894 = vst [vmem:[%s549 + $0xe8] sm:$0xff] %v4757
        %4895 = vst [vmem:[%s549 + $0xf0] sm:$0xff] %v4861
        %4896 = vst [vmem:[%s549 + $0xf8] sm:$0xff] %v4863
        %v4897 = vld [vmem:[%s589] sm:$0xff]
        %vm4898 = vcmp.gt.f32.partialorder %v4897, 0.0
        %v4899 = vsel %vm4898, 1, 0
        %v4900 = vlaneseq
        %v4901 = vshrl.u32 %v4900, 7
        %v4902 = vsub.s32 0, %v4901
        %v4903 = vrot.slane %v4899, %v4902
        %v4904 = vlaneseq
        %v4905 = vshrl.u32 %v4904, 7
        %v4906 = vsub.s32 1, %v4905
        %v4907 = vrot.slane %v4899, %v4906
        %v4908 = vlaneseq
        %v4909 = vshrl.u32 %v4908, 7
        %v4910 = vsub.s32 2, %v4909
        %v4911 = vrot.slane %v4899, %v4910
        %v4912 = vlaneseq
        %v4913 = vshrl.u32 %v4912, 7
        %v4914 = vsub.s32 3, %v4913
        %v4915 = vrot.slane %v4899, %v4914
        %v4916 = vlaneseq
        %v4917 = vshrl.u32 %v4916, 7
        %v4918 = vsub.s32 4, %v4917
        %v4919 = vrot.slane %v4899, %v4918
        %v4920 = vlaneseq
        %v4921 = vshrl.u32 %v4920, 7
        %v4922 = vsub.s32 5, %v4921
        %v4923 = vrot.slane %v4899, %v4922
        %v4924 = vlaneseq
        %v4925 = vshrl.u32 %v4924, 7
        %v4926 = vsub.s32 6, %v4925
        %v4927 = vrot.slane %v4899, %v4926
        %v4928 = vlaneseq
        %v4929 = vshrl.u32 %v4928, 7
        %v4930 = vsub.s32 7, %v4929
        %v4931 = vrot.slane %v4899, %v4930
        %vm4932 = vcmp.eq.s32.totalorder %v4903, 1
        %vm4933 = vcmp.eq.s32.totalorder %v4907, 1
        %vm4934 = vcmp.eq.s32.totalorder %v4911, 1
        %vm4935 = vcmp.eq.s32.totalorder %v4915, 1
        %vm4936 = vcmp.eq.s32.totalorder %v4919, 1
        %vm4937 = vcmp.eq.s32.totalorder %v4923, 1
        %vm4938 = vcmp.eq.s32.totalorder %v4927, 1
        %vm4939 = vcmp.eq.s32.totalorder %v4931, 1
        %v4940 = vsel %vm4932, %v4529, 0.0
        %v4941 = vsel %vm4933, %v4531, 0.0
        %v4942 = vsel %vm4934, %v4635, 0.0
        %v4943 = vsel %vm4935, %v4637, 0.0
        %v4944 = vsel %vm4936, %v4741, 0.0
        %v4945 = vsel %vm4937, %v4743, 0.0
        %v4946 = vsel %vm4938, %v4847, 0.0
        %v4947 = vsel %vm4939, %v4849, 0.0
        %v4948 = vsel %vm4932, %v4533, 0.0
        %v4949 = vsel %vm4933, %v4535, 0.0
        %v4950 = vsel %vm4934, %v4639, 0.0
        %v4951 = vsel %vm4935, %v4641, 0.0
        %v4952 = vsel %vm4936, %v4745, 0.0
        %v4953 = vsel %vm4937, %v4747, 0.0
        %v4954 = vsel %vm4938, %v4851, 0.0
        %v4955 = vsel %vm4939, %v4853, 0.0
        %v4956 = vsel %vm4932, %v4539, 0.0
        %v4957 = vsel %vm4933, %v4541, 0.0
        %v4958 = vsel %vm4934, %v4645, 0.0
        %v4959 = vsel %vm4935, %v4647, 0.0
        %v4960 = vsel %vm4936, %v4751, 0.0
        %v4961 = vsel %vm4937, %v4753, 0.0
        %v4962 = vsel %vm4938, %v4857, 0.0
        %v4963 = vsel %vm4939, %v4859, 0.0
        %v4964 = vsel %vm4932, %v4543, 0.0
        %v4965 = vsel %vm4933, %v4545, 0.0
        %v4966 = vsel %vm4934, %v4649, 0.0
        %v4967 = vsel %vm4935, %v4651, 0.0
        %v4968 = vsel %vm4936, %v4755, 0.0
        %v4969 = vsel %vm4937, %v4757, 0.0
        %v4970 = vsel %vm4938, %v4861, 0.0
        %v4971 = vsel %vm4939, %v4863, 0.0
        %v4972 = vadd.f32 %v4940, %v4941
        %v4973 = vadd.f32 %v4972, %v4942
        %v4974 = vadd.f32 %v4973, %v4943
        %v4975 = vadd.f32 %v4974, %v4944
        %v4976 = vadd.f32 %v4975, %v4945
        %v4977 = vadd.f32 %v4976, %v4946
        %v4978 = vadd.f32 %v4977, %v4947
        %4979 = vadd.xlane.f32.xlu0 %v4978
        %v4980 = vpop.xlane.xlu0 %4979
        %v4981 = vadd.f32 %v4948, %v4949
        %v4982 = vadd.f32 %v4981, %v4950
        %v4983 = vadd.f32 %v4982, %v4951
        %v4984 = vadd.f32 %v4983, %v4952
        %v4985 = vadd.f32 %v4984, %v4953
        %v4986 = vadd.f32 %v4985, %v4954
        %v4987 = vadd.f32 %v4986, %v4955
        %4988 = vadd.xlane.f32.xlu0 %v4987
        %v4989 = vpop.xlane.xlu0 %4988
        %v4990 = vadd.f32 %v4956, %v4957
        %v4991 = vadd.f32 %v4990, %v4958
        %v4992 = vadd.f32 %v4991, %v4959
        %v4993 = vadd.f32 %v4992, %v4960
        %v4994 = vadd.f32 %v4993, %v4961
        %v4995 = vadd.f32 %v4994, %v4962
        %v4996 = vadd.f32 %v4995, %v4963
        %4997 = vadd.xlane.f32.xlu0 %v4996
        %v4998 = vpop.xlane.xlu0 %4997
        %v4999 = vadd.f32 %v4964, %v4965
        %v5000 = vadd.f32 %v4999, %v4966
        %v5001 = vadd.f32 %v5000, %v4967
        %v5002 = vadd.f32 %v5001, %v4968
        %v5003 = vadd.f32 %v5002, %v4969
        %v5004 = vadd.f32 %v5003, %v4970
        %v5005 = vadd.f32 %v5004, %v4971
        %5006 = vadd.xlane.f32.xlu0 %v5005
        %v5007 = vpop.xlane.xlu0 %5006
        %5008 = vst [vmem:[%s555] sm:$0xff] %v4980
        %5009 = vst [vmem:[%s555 + $0x8] sm:$0xff] %v4989
        %5010 = vst [vmem:[%s555 + $0x10] sm:$0xff] %v4998
        %5011 = vst [vmem:[%s555 + $0x18] sm:$0xff] %v5007
        %v5012 = vmul.f32 %v4940, %v4940
        %v5013 = vmul.f32 %v4941, %v4941
        %v5014 = vmul.f32 %v4942, %v4942
        %v5015 = vmul.f32 %v4943, %v4943
        %v5016 = vmul.f32 %v4944, %v4944
        %v5017 = vmul.f32 %v4945, %v4945
        %v5018 = vmul.f32 %v4946, %v4946
        %v5019 = vmul.f32 %v4947, %v4947
        %v5020 = vmul.f32 %v4948, %v4948
        %v5021 = vmul.f32 %v4949, %v4949
        %v5022 = vmul.f32 %v4950, %v4950
        %v5023 = vmul.f32 %v4951, %v4951
        %v5024 = vmul.f32 %v4952, %v4952
        %v5025 = vmul.f32 %v4953, %v4953
        %v5026 = vmul.f32 %v4954, %v4954
        %v5027 = vmul.f32 %v4955, %v4955
        %v5028 = vmul.f32 %v4956, %v4956
        %v5029 = vmul.f32 %v4957, %v4957
        %v5030 = vmul.f32 %v4958, %v4958
        %v5031 = vmul.f32 %v4959, %v4959
        %v5032 = vmul.f32 %v4960, %v4960
        %v5033 = vmul.f32 %v4961, %v4961
        %v5034 = vmul.f32 %v4962, %v4962
        %v5035 = vmul.f32 %v4963, %v4963
        %v5036 = vmul.f32 %v4964, %v4964
        %v5037 = vmul.f32 %v4965, %v4965
        %v5038 = vmul.f32 %v4966, %v4966
        %v5039 = vmul.f32 %v4967, %v4967
        %v5040 = vmul.f32 %v4968, %v4968
        %v5041 = vmul.f32 %v4969, %v4969
        %v5042 = vmul.f32 %v4970, %v4970
        %v5043 = vmul.f32 %v4971, %v4971
        %v5044 = vadd.f32 %v5012, %v5013
        %v5045 = vadd.f32 %v5044, %v5014
        %v5046 = vadd.f32 %v5045, %v5015
        %v5047 = vadd.f32 %v5046, %v5016
        %v5048 = vadd.f32 %v5047, %v5017
        %v5049 = vadd.f32 %v5048, %v5018
        %v5050 = vadd.f32 %v5049, %v5019
        %5051 = vadd.xlane.f32.xlu0 %v5050
        %v5052 = vpop.xlane.xlu0 %5051
        %v5053 = vadd.f32 %v5020, %v5021
        %v5054 = vadd.f32 %v5053, %v5022
        %v5055 = vadd.f32 %v5054, %v5023
        %v5056 = vadd.f32 %v5055, %v5024
        %v5057 = vadd.f32 %v5056, %v5025
        %v5058 = vadd.f32 %v5057, %v5026
        %v5059 = vadd.f32 %v5058, %v5027
        %5060 = vadd.xlane.f32.xlu0 %v5059
        %v5061 = vpop.xlane.xlu0 %5060
        %v5062 = vadd.f32 %v5028, %v5029
        %v5063 = vadd.f32 %v5062, %v5030
        %v5064 = vadd.f32 %v5063, %v5031
        %v5065 = vadd.f32 %v5064, %v5032
        %v5066 = vadd.f32 %v5065, %v5033
        %v5067 = vadd.f32 %v5066, %v5034
        %v5068 = vadd.f32 %v5067, %v5035
        %5069 = vadd.xlane.f32.xlu0 %v5068
        %v5070 = vpop.xlane.xlu0 %5069
        %v5071 = vadd.f32 %v5036, %v5037
        %v5072 = vadd.f32 %v5071, %v5038
        %v5073 = vadd.f32 %v5072, %v5039
        %v5074 = vadd.f32 %v5073, %v5040
        %v5075 = vadd.f32 %v5074, %v5041
        %v5076 = vadd.f32 %v5075, %v5042
        %v5077 = vadd.f32 %v5076, %v5043
        %5078 = vadd.xlane.f32.xlu0 %v5077
        %v5079 = vpop.xlane.xlu0 %5078
        %5080 = vst [vmem:[%s561] sm:$0xff] %v5052
        %5081 = vst [vmem:[%s561 + $0x8] sm:$0xff] %v5061
        %5082 = vst [vmem:[%s561 + $0x10] sm:$0xff] %v5070
        %5083 = vst [vmem:[%s561 + $0x18] sm:$0xff] %v5079
        %s5084 = sand.u32 %s261, 1
        %s5085 = sand.u32 %s261, 1
        %s5086 = smul.addr %s5085, 256
        %s5087 = scalar_lea.vmem [#allocation6], %s5086
        %s5088 = sand.u32 %s287, 1
        %s5089 = sand.u32 %s287, 1
        %s5090 = smul.addr %s5089, 32
        %s5091 = scalar_lea.vmem [#allocation7], %s5090
        %s5092 = sand.u32 %s313, 1
        %s5093 = sand.u32 %s313, 1
        %s5094 = smul.addr %s5093, 32
        %s5095 = scalar_lea.vmem [#allocation8], %s5094
        // Predicated region
        $region118: #{_forward.3} parent=108 // pred_check
          %p5096 = pneg %p271
        $region119: #{_forward.3} parent=108 // pred_check_branch
          %5098 = sbr.rel (%p5096) target = $region121
        $region120: #{_forward.3} parent=108 // pred_region
          %s5099 = smul.u32 8, %s23
          %s5100 = smul.addr %s5099, 8
          %s5101 = scalar_lea.vmem %s9, %s5100
          // Predicated region
          $region122: #{_forward.3} parent=120 // pred_check
            _
          $region123: #{_forward.3} parent=120 // pred_check_branch
            %5103 = sbr.rel (0) target = $region125
          $region124: #{_forward.3} parent=120 // pred_region
            // Predicated region
            $region126: #{_forward.3} parent=124 // pred_check
              _
            $region127: #{_forward.3} parent=124 // pred_check_branch
              %5105 = sbr.rel (0) target = $region129
            $region128: #{_forward.3} parent=124 // pred_region
              loop: start=0, step=1, limit=1
              $region130: #{_forward.3} parent=128 // loop_pre_header
                _
              $region131: #{_forward.3} parent=128 // loop_header
                %s5107 = sphi 0, %s5111
                %p5108 = scmp.ge.s32.totalorder %s5107, 1
                %s5112 = sphi %s5087, %s5087
                %s5113 = sphi %s5101, %s5101
              $region132: #{_forward.3} parent=128 // loop_header_branch
                %5110 = sbr.rel (%p5108) target = $region136
              $region133: #{_forward.3} parent=128 // loop_body
                %v5114 = vld [vmem:[%s5112] sm:$0xff]
                %5115 = vst [vmem:[%s5113] sm:$0xff] %v5114
                %v5116 = vld [vmem:[%s5112 + $0x8] sm:$0xff]
                %5117 = vst [vmem:[%s5113 + $0x8] sm:$0xff] %v5116
                %v5118 = vld [vmem:[%s5112 + $0x10] sm:$0xff]
                %5119 = vst [vmem:[%s5113 + $0x10] sm:$0xff] %v5118
                %v5120 = vld [vmem:[%s5112 + $0x18] sm:$0xff]
                %5121 = vst [vmem:[%s5113 + $0x18] sm:$0xff] %v5120
                %v5122 = vld [vmem:[%s5112 + $0x20] sm:$0xff]
                %5123 = vst [vmem:[%s5113 + $0x20] sm:$0xff] %v5122
                %v5124 = vld [vmem:[%s5112 + $0x28] sm:$0xff]
                %5125 = vst [vmem:[%s5113 + $0x28] sm:$0xff] %v5124
                %v5126 = vld [vmem:[%s5112 + $0x30] sm:$0xff]
                %5127 = vst [vmem:[%s5113 + $0x30] sm:$0xff] %v5126
                %v5128 = vld [vmem:[%s5112 + $0x38] sm:$0xff]
                %5129 = vst [vmem:[%s5113 + $0x38] sm:$0xff] %v5128
                %v5130 = vld [vmem:[%s5112 + $0x40] sm:$0xff]
                %5131 = vst [vmem:[%s5113 + $0x80] sm:$0xff] %v5130
                %v5132 = vld [vmem:[%s5112 + $0x48] sm:$0xff]
                %5133 = vst [vmem:[%s5113 + $0x88] sm:$0xff] %v5132
                %v5134 = vld [vmem:[%s5112 + $0x50] sm:$0xff]
                %5135 = vst [vmem:[%s5113 + $0x90] sm:$0xff] %v5134
                %v5136 = vld [vmem:[%s5112 + $0x58] sm:$0xff]
                %5137 = vst [vmem:[%s5113 + $0x98] sm:$0xff] %v5136
                %v5138 = vld [vmem:[%s5112 + $0x60] sm:$0xff]
                %5139 = vst [vmem:[%s5113 + $0xa0] sm:$0xff] %v5138
                %v5140 = vld [vmem:[%s5112 + $0x68] sm:$0xff]
                %5141 = vst [vmem:[%s5113 + $0xa8] sm:$0xff] %v5140
                %v5142 = vld [vmem:[%s5112 + $0x70] sm:$0xff]
                %5143 = vst [vmem:[%s5113 + $0xb0] sm:$0xff] %v5142
                %v5144 = vld [vmem:[%s5112 + $0x78] sm:$0xff]
                %5145 = vst [vmem:[%s5113 + $0xb8] sm:$0xff] %v5144
                %v5146 = vld [vmem:[%s5112 + $0x80] sm:$0xff]
                %5147 = vst [vmem:[%s5113 + $0x100] sm:$0xff] %v5146
                %v5148 = vld [vmem:[%s5112 + $0x88] sm:$0xff]
                %5149 = vst [vmem:[%s5113 + $0x108] sm:$0xff] %v5148
                %v5150 = vld [vmem:[%s5112 + $0x90] sm:$0xff]
                %5151 = vst [vmem:[%s5113 + $0x110] sm:$0xff] %v5150
                %v5152 = vld [vmem:[%s5112 + $0x98] sm:$0xff]
                %5153 = vst [vmem:[%s5113 + $0x118] sm:$0xff] %v5152
                %v5154 = vld [vmem:[%s5112 + $0xa0] sm:$0xff]
                %5155 = vst [vmem:[%s5113 + $0x120] sm:$0xff] %v5154
                %v5156 = vld [vmem:[%s5112 + $0xa8] sm:$0xff]
                %5157 = vst [vmem:[%s5113 + $0x128] sm:$0xff] %v5156
                %v5158 = vld [vmem:[%s5112 + $0xb0] sm:$0xff]
                %5159 = vst [vmem:[%s5113 + $0x130] sm:$0xff] %v5158
                %v5160 = vld [vmem:[%s5112 + $0xb8] sm:$0xff]
                %5161 = vst [vmem:[%s5113 + $0x138] sm:$0xff] %v5160
                %v5162 = vld [vmem:[%s5112 + $0xc0] sm:$0xff]
                %5163 = vst [vmem:[%s5113 + $0x180] sm:$0xff] %v5162
                %v5164 = vld [vmem:[%s5112 + $0xc8] sm:$0xff]
                %5165 = vst [vmem:[%s5113 + $0x188] sm:$0xff] %v5164
                %v5166 = vld [vmem:[%s5112 + $0xd0] sm:$0xff]
                %5167 = vst [vmem:[%s5113 + $0x190] sm:$0xff] %v5166
                %v5168 = vld [vmem:[%s5112 + $0xd8] sm:$0xff]
                %5169 = vst [vmem:[%s5113 + $0x198] sm:$0xff] %v5168
                %v5170 = vld [vmem:[%s5112 + $0xe0] sm:$0xff]
                %5171 = vst [vmem:[%s5113 + $0x1a0] sm:$0xff] %v5170
                %v5172 = vld [vmem:[%s5112 + $0xe8] sm:$0xff]
                %5173 = vst [vmem:[%s5113 + $0x1a8] sm:$0xff] %v5172
                %v5174 = vld [vmem:[%s5112 + $0xf0] sm:$0xff]
                %5175 = vst [vmem:[%s5113 + $0x1b0] sm:$0xff] %v5174
                %v5176 = vld [vmem:[%s5112 + $0xf8] sm:$0xff]
                %5177 = vst [vmem:[%s5113 + $0x1b8] sm:$0xff] %v5176
              $region134: #{_forward.3} parent=128 // loop_footer
                %s5111 = sadd.s32 1, %s5107
              $region135: #{_forward.3} parent=128 // loop_footer_branch
                %5106 = sbr.rel target = $region131
              $region136: #{_forward.3} parent=128 // loop_exit
                _
            $region129: #{_forward.3} parent=124 // pred_fallthru
              _
            // Predicated region
            $region137: #{_forward.3} parent=124 // pred_check
              _
            $region138: #{_forward.3} parent=124 // pred_check_branch
              %5179 = sbr.rel target = $region140
            $region139: #{_forward.3} parent=124 // pred_region
              _
            $region140: #{_forward.3} parent=124 // pred_fallthru
              _
          $region125: #{_forward.3} parent=120 // pred_fallthru
            _
          %5180 = vnop
        $region121: #{_forward.3} parent=108 // pred_fallthru
          _
        // Predicated region
        $region141: #{_forward.3} parent=108 // pred_check
          %p5181 = pneg %p297
        $region142: #{_forward.3} parent=108 // pred_check_branch
          %5183 = sbr.rel (%p5181) target = $region144
        $region143: #{_forward.3} parent=108 // pred_region
          %s5184 = smul.addr %s23, 8
          %s5185 = scalar_lea.vmem %s10, %s5184
          // Predicated region
          $region145: #{_forward.3} parent=143 // pred_check
            _
          $region146: #{_forward.3} parent=143 // pred_check_branch
            %5187 = sbr.rel (0) target = $region148
          $region147: #{_forward.3} parent=143 // pred_region
            // Predicated region
            $region149: #{_forward.3} parent=147 // pred_check
              _
            $region150: #{_forward.3} parent=147 // pred_check_branch
              %5189 = sbr.rel (0) target = $region152
            $region151: #{_forward.3} parent=147 // pred_region
              // Predicated region
              $region164: #{_forward.3} parent=151 // pred_check
                _
              $region165: #{_forward.3} parent=151 // pred_check_branch
                %5211 = sbr.rel (0) target = $region167
              $region166: #{_forward.3} parent=151 // pred_region
                loop: start=0, step=1, limit=1
                $region168: #{_forward.3} parent=166 // loop_pre_header
                  _
                $region169: #{_forward.3} parent=166 // loop_header
                  %s5213 = sphi 0, %s5217
                  %p5214 = scmp.ge.s32.totalorder %s5213, 1
                  %s5218 = sphi %s5091, %s5091
                  %s5219 = sphi %s5185, %s5185
                $region170: #{_forward.3} parent=166 // loop_header_branch
                  %5216 = sbr.rel (%p5214) target = $region174
                $region171: #{_forward.3} parent=166 // loop_body
                  %v5220 = vld [vmem:[%s5218] sm:$0xff]
                  %5221 = vst [vmem:[%s5219] sm:$0xff] %v5220
                  %v5222 = vld [vmem:[%s5218 + $0x8] sm:$0xff]
                  %5223 = vst [vmem:[%s5219 + $0x10] sm:$0xff] %v5222
                  %v5224 = vld [vmem:[%s5218 + $0x10] sm:$0xff]
                  %5225 = vst [vmem:[%s5219 + $0x20] sm:$0xff] %v5224
                  %v5226 = vld [vmem:[%s5218 + $0x18] sm:$0xff]
                  %5227 = vst [vmem:[%s5219 + $0x30] sm:$0xff] %v5226
                $region172: #{_forward.3} parent=166 // loop_footer
                  %s5217 = sadd.s32 1, %s5213
                $region173: #{_forward.3} parent=166 // loop_footer_branch
                  %5212 = sbr.rel target = $region169
                $region174: #{_forward.3} parent=166 // loop_exit
                  _
              $region167: #{_forward.3} parent=151 // pred_fallthru
                _
              // Predicated region
              $region175: #{_forward.3} parent=151 // pred_check
                _
              $region176: #{_forward.3} parent=151 // pred_check_branch
                %5229 = sbr.rel target = $region178
              $region177: #{_forward.3} parent=151 // pred_region
                _
              $region178: #{_forward.3} parent=151 // pred_fallthru
                _
            $region152: #{_forward.3} parent=147 // pred_fallthru
              _
            // Predicated region
            $region153: #{_forward.3} parent=147 // pred_check
              _
            $region154: #{_forward.3} parent=147 // pred_check_branch
              %5191 = sbr.rel target = $region156
            $region155: #{_forward.3} parent=147 // pred_region
              %s5193 = ssub.s32 256, 1
              loop: start=0, step=1, limit=1
              $region157: #{_forward.3} parent=155 // loop_pre_header
                _
              $region158: #{_forward.3} parent=155 // loop_header
                %s5195 = sphi 0, %s5199
                %p5196 = scmp.ge.s32.totalorder %s5195, 1
                %s5200 = sphi %s5091, %s5091
                %s5201 = sphi %s5185, %s5185
              $region159: #{_forward.3} parent=155 // loop_header_branch
                %5198 = sbr.rel (%p5196) target = $region163
              $region160: #{_forward.3} parent=155 // loop_body
                %v5202 = vld [vmem:[%s5200] sm:%s5193]
                %5203 = vst [vmem:[%s5201] sm:%s5193] %v5202
                %v5204 = vld [vmem:[%s5200 + $0x8] sm:%s5193]
                %5205 = vst [vmem:[%s5201 + $0x10] sm:%s5193] %v5204
                %v5206 = vld [vmem:[%s5200 + $0x10] sm:%s5193]
                %5207 = vst [vmem:[%s5201 + $0x20] sm:%s5193] %v5206
                %v5208 = vld [vmem:[%s5200 + $0x18] sm:%s5193]
                %5209 = vst [vmem:[%s5201 + $0x30] sm:%s5193] %v5208
              $region161: #{_forward.3} parent=155 // loop_footer
                %s5199 = sadd.s32 1, %s5195
              $region162: #{_forward.3} parent=155 // loop_footer_branch
                %5194 = sbr.rel target = $region158
              $region163: #{_forward.3} parent=155 // loop_exit
                _
            $region156: #{_forward.3} parent=147 // pred_fallthru
              _
          $region148: #{_forward.3} parent=143 // pred_fallthru
            _
          %5230 = vnop
        $region144: #{_forward.3} parent=108 // pred_fallthru
          _
        // Predicated region
        $region179: #{_forward.3} parent=108 // pred_check
          %p5231 = pneg %p323
        $region180: #{_forward.3} parent=108 // pred_check_branch
          %5233 = sbr.rel (%p5231) target = $region182
        $region181: #{_forward.3} parent=108 // pred_region
          %s5234 = smul.addr %s23, 8
          %s5235 = scalar_lea.vmem %s11, %s5234
          // Predicated region
          $region183: #{_forward.3} parent=181 // pred_check
            _
          $region184: #{_forward.3} parent=181 // pred_check_branch
            %5237 = sbr.rel (0) target = $region186
          $region185: #{_forward.3} parent=181 // pred_region
            // Predicated region
            $region187: #{_forward.3} parent=185 // pred_check
              _
            $region188: #{_forward.3} parent=185 // pred_check_branch
              %5239 = sbr.rel (0) target = $region190
            $region189: #{_forward.3} parent=185 // pred_region
              // Predicated region
              $region202: #{_forward.3} parent=189 // pred_check
                _
              $region203: #{_forward.3} parent=189 // pred_check_branch
                %5261 = sbr.rel (0) target = $region205
              $region204: #{_forward.3} parent=189 // pred_region
                loop: start=0, step=1, limit=1
                $region206: #{_forward.3} parent=204 // loop_pre_header
                  _
                $region207: #{_forward.3} parent=204 // loop_header
                  %s5263 = sphi 0, %s5267
                  %p5264 = scmp.ge.s32.totalorder %s5263, 1
                  %s5268 = sphi %s5095, %s5095
                  %s5269 = sphi %s5235, %s5235
                $region208: #{_forward.3} parent=204 // loop_header_branch
                  %5266 = sbr.rel (%p5264) target = $region212
                $region209: #{_forward.3} parent=204 // loop_body
                  %v5270 = vld [vmem:[%s5268] sm:$0xff]
                  %5271 = vst [vmem:[%s5269] sm:$0xff] %v5270
                  %v5272 = vld [vmem:[%s5268 + $0x8] sm:$0xff]
                  %5273 = vst [vmem:[%s5269 + $0x10] sm:$0xff] %v5272
                  %v5274 = vld [vmem:[%s5268 + $0x10] sm:$0xff]
                  %5275 = vst [vmem:[%s5269 + $0x20] sm:$0xff] %v5274
                  %v5276 = vld [vmem:[%s5268 + $0x18] sm:$0xff]
                  %5277 = vst [vmem:[%s5269 + $0x30] sm:$0xff] %v5276
                $region210: #{_forward.3} parent=204 // loop_footer
                  %s5267 = sadd.s32 1, %s5263
                $region211: #{_forward.3} parent=204 // loop_footer_branch
                  %5262 = sbr.rel target = $region207
                $region212: #{_forward.3} parent=204 // loop_exit
                  _
              $region205: #{_forward.3} parent=189 // pred_fallthru
                _
              // Predicated region
              $region213: #{_forward.3} parent=189 // pred_check
                _
              $region214: #{_forward.3} parent=189 // pred_check_branch
                %5279 = sbr.rel target = $region216
              $region215: #{_forward.3} parent=189 // pred_region
                _
              $region216: #{_forward.3} parent=189 // pred_fallthru
                _
            $region190: #{_forward.3} parent=185 // pred_fallthru
              _
            // Predicated region
            $region191: #{_forward.3} parent=185 // pred_check
              _
            $region192: #{_forward.3} parent=185 // pred_check_branch
              %5241 = sbr.rel target = $region194
            $region193: #{_forward.3} parent=185 // pred_region
              %s5243 = ssub.s32 256, 1
              loop: start=0, step=1, limit=1
              $region195: #{_forward.3} parent=193 // loop_pre_header
                _
              $region196: #{_forward.3} parent=193 // loop_header
                %s5245 = sphi 0, %s5249
                %p5246 = scmp.ge.s32.totalorder %s5245, 1
                %s5250 = sphi %s5095, %s5095
                %s5251 = sphi %s5235, %s5235
              $region197: #{_forward.3} parent=193 // loop_header_branch
                %5248 = sbr.rel (%p5246) target = $region201
              $region198: #{_forward.3} parent=193 // loop_body
                %v5252 = vld [vmem:[%s5250] sm:%s5243]
                %5253 = vst [vmem:[%s5251] sm:%s5243] %v5252
                %v5254 = vld [vmem:[%s5250 + $0x8] sm:%s5243]
                %5255 = vst [vmem:[%s5251 + $0x10] sm:%s5243] %v5254
                %v5256 = vld [vmem:[%s5250 + $0x10] sm:%s5243]
                %5257 = vst [vmem:[%s5251 + $0x20] sm:%s5243] %v5256
                %v5258 = vld [vmem:[%s5250 + $0x18] sm:%s5243]
                %5259 = vst [vmem:[%s5251 + $0x30] sm:%s5243] %v5258
              $region199: #{_forward.3} parent=193 // loop_footer
                %s5249 = sadd.s32 1, %s5245
              $region200: #{_forward.3} parent=193 // loop_footer_branch
                %5244 = sbr.rel target = $region196
              $region201: #{_forward.3} parent=193 // loop_exit
                _
            $region194: #{_forward.3} parent=185 // pred_fallthru
              _
          $region186: #{_forward.3} parent=181 // pred_fallthru
            _
          %5280 = vnop
        $region182: #{_forward.3} parent=108 // pred_fallthru
          _
      $region109: #{_forward.3} parent=5 // pred_fallthru
        _
      %p5281 = scmp.le.s32.totalorder 2, %s18
      // Predicated region
      $region217: #{_forward.3} parent=5 // pred_check
        %p5282 = pneg %p5281
      $region218: #{_forward.3} parent=5 // pred_check_branch
        %5284 = sbr.rel (%p5282) target = $region220
      $region219: #{_forward.3} parent=5 // pred_region
        %s5285 = ssub.s32 %s18, 2
        // Predicated region
        $region221: #{_forward.3} parent=219 // pred_check
          %p5286 = pneg %p277
        $region222: #{_forward.3} parent=219 // pred_check_branch
          %5288 = sbr.rel (%p5286) target = $region224
        $region223: #{_forward.3} parent=219 // pred_region
          %s5289 = sand.u32 %s262, 1
          %s5290 = sand.u32 %s262, 1
          %s5291 = smul.addr %s5290, 256
          %s5292 = scalar_lea.vmem [#allocation6], %s5291
        $region224: #{_forward.3} parent=219 // pred_fallthru
          _
        // Predicated region
        $region225: #{_forward.3} parent=219 // pred_check
          %p5293 = pneg %p303
        $region226: #{_forward.3} parent=219 // pred_check_branch
          %5295 = sbr.rel (%p5293) target = $region228
        $region227: #{_forward.3} parent=219 // pred_region
          %s5296 = sand.u32 %s288, 1
          %s5297 = sand.u32 %s288, 1
          %s5298 = smul.addr %s5297, 32
          %s5299 = scalar_lea.vmem [#allocation7], %s5298
        $region228: #{_forward.3} parent=219 // pred_fallthru
          _
        // Predicated region
        $region229: #{_forward.3} parent=219 // pred_check
          %p5300 = pneg %p329
        $region230: #{_forward.3} parent=219 // pred_check_branch
          %5302 = sbr.rel (%p5300) target = $region232
        $region231: #{_forward.3} parent=219 // pred_region
          %s5303 = sand.u32 %s314, 1
          %s5304 = sand.u32 %s314, 1
          %s5305 = smul.addr %s5304, 32
          %s5306 = scalar_lea.vmem [#allocation8], %s5305
        $region232: #{_forward.3} parent=219 // pred_fallthru
          _
      $region220: #{_forward.3} parent=5 // pred_fallthru
        _
    $region6: #{_forward.3} parent=1 // loop_footer
      %s22 = sadd.s32 1, %s18
    $region7: #{_forward.3} parent=1 // loop_footer_branch
      %17 = sbr.rel target = $region3
    $region8: #{_forward.3} parent=1 // loop_exit
      _

</llo_original>
